<compile_context>
chip_gen: v5e
topology: v5e:2x2
jax: 0.10.0
libtpu: 0.0.40
codegen_flags: <defaults>
</compile_context>

<pallas_src>
import numpy as np

import jax
import jax.numpy as jnp
from jax.experimental import pallas as pl
from jax.experimental.pallas import tpu as pltpu

# ----------------------------- model hyper-params (small) -----------------------------
SR = 16000
N_FFT = 256          # window size == n_fft, center=False framing
HOP = 128
N_FREQ = N_FFT // 2 + 1   # 129
F_PAD = 256               # frequency dim zero-padded to whole lane tiles
N_MELS = 20
M_PAD = 128               # mel dim padded lane-dense (zero fb cols / frontend rows)
D_MODEL = 32         # "conformer size 384" scaled down
FF_DIM = 4 * D_MODEL
N_HEADS = 4
HEAD_DIM = D_MODEL // N_HEADS
CONV_KERNEL = 7      # (31 in the real model)
N_LAYERS = 2
TARGET_SIZE = 40
V_PAD = 128               # vocab padded lane-dense (padded logits pinned to NEG_INF)
LN_EPS = 1e-5
BN_EPS = 1e-5
MIN_AMP = 1e-10
NEG_INF = -1e9       # finite large-negative (avoids NaN for fully-masked rows)

assert N_FFT == 2 * HOP  # in-kernel framing relies on frame t = [chunk t | chunk t+1]


# =============================== fused Pallas kernel ===================================

def fused_conformer_ctc(params, chunks, mask, t_true):
    """chunks: (B, T_pad+1, HOP) f32 hop-sized audio slabs; mask: (B, 1, T_pad) f32
    (1 = valid key); t_true: true (unpadded) frame count.  -> (B, T_pad, V_PAD)."""
    B, tc1, _ = chunks.shape
    T = tc1 - 1                                   # padded frame count (multiple of 8)
    flat_w, treedef = jax.tree_util.tree_flatten(params)
    n_w = len(flat_w)

    def kernel(chunks_ref, mask_ref, *rest):
        w_refs, out_ref = rest[:n_w], rest[n_w]
        P = jax.tree_util.tree_unflatten(treedef, [r[...] for r in w_refs])

        # ---- helpers (bf16 MXU operands, f32 accumulation) -------------------------
        def mm(a, b):                                   # (m,k)@(k,n)
            return jax.lax.dot_general(
                a.astype(jnp.bfloat16), b.astype(jnp.bfloat16),
                (((a.ndim - 1,), (0,)), ((), ())),
                preferred_element_type=jnp.float32)

        def bmm_nt(a, b):                               # (H,T,d),(H,S,d) -> (H,T,S)
            return jax.lax.dot_general(
                a.astype(jnp.bfloat16), b.astype(jnp.bfloat16),
                (((2,), (2,)), ((0,), (0,))),
                preferred_element_type=jnp.float32)

        def bmm(a, b):                                  # (H,T,S),(H,S,d) -> (H,T,d)
            return jax.lax.dot_general(
                a.astype(jnp.bfloat16), b.astype(jnp.bfloat16),
                (((2,), (1,)), ((0,), (0,))),
                preferred_element_type=jnp.float32)

        def layernorm(x, g, b):
            mu = jnp.mean(x, axis=-1, keepdims=True)
            xc = x - mu
            var = jnp.mean(xc * xc, axis=-1, keepdims=True)
            return xc * jax.lax.rsqrt(var + LN_EPS) * g + b

        # ---- in-kernel framing: frame t = [chunk t | chunk t+1] --------------------
        au = chunks_ref[...]                                    # (T+1, HOP)
        frames = jnp.concatenate([au[:T, :], au[1:T + 1, :]], axis=1)   # (T, n_fft)

        # ---- log-mel feature extraction (STFT power -> mel fb -> log10) ------------
        spec = mm(frames, P["dft_cat"])                         # (T, 2*F_PAD) [re|im]
        re = spec[:, :F_PAD]
        im = spec[:, F_PAD:]
        power = re * re + im * im                               # padded bins are zero
        mel = mm(power, P["melfb"])                             # (T, M_PAD)
        feat = jnp.log10(jnp.maximum(mel, MIN_AMP))

        # frontend projection (padded mel cols hit zero rows of frontend_w -> exact)
        x = mm(feat, P["frontend_w"]) + P["frontend_b"]         # (T, D)

        # ---- hoisted masks (built once, reused by every head / layer) --------------
        key_mask = mask_ref[...]                                # (1, T), 1 = valid key
        mask_add = jnp.where(key_mask > 0.5, 0.0, NEG_INF)      # additive attn mask
        pad = (CONV_KERNEL - 1) // 2
        ri = jax.lax.broadcasted_iota(jnp.int32, (T, 1), 0)
        tap_masks = [((ri + (k - pad) >= 0) & (ri + (k - pad) < t_true)
                      ).astype(jnp.float32) for k in range(CONV_KERNEL)]
        scale = 1.0 / float(np.sqrt(HEAD_DIM))

        # ---- conformer sub-modules --------------------------------------------------
        def ff_module(x, p):
            h = layernorm(x, p["ln_g"], p["ln_b"])
            h = mm(h, p["w1"]) + p["b1"]
            h = h * jax.nn.sigmoid(h)                           # SiLU
            h = mm(h, p["w2"]) + p["b2"]
            return x + 0.5 * h                                  # 0.5 macaron residual

        def mhsa_module(x, p):
            h = layernorm(x, p["ln_g"], p["ln_b"])
            qkv = mm(h, p["w_qkv"]) + p["b_qkv"]                # (T, 3D)
            q = qkv[:, :D_MODEL]
            k = qkv[:, D_MODEL:2 * D_MODEL]
            v = qkv[:, 2 * D_MODEL:]
            split = lambda m: jnp.stack(
                [m[:, hh * HEAD_DIM:(hh + 1) * HEAD_DIM] for hh in range(N_HEADS)],
                axis=0)                                         # (H, T, dh)
            qh, kh, vh = split(q), split(k), split(v)
            sc = bmm_nt(qh, kh) * scale + mask_add              # (H, T, T), masked keys
            mx = jnp.max(sc, axis=-1, keepdims=True)
            e = jnp.exp(sc - mx)
            prob = e * pl.reciprocal(jnp.sum(e, axis=-1, keepdims=True), approx=True)
            ctx = bmm(prob, vh)                                 # (H, T, dh)
            ctx = jnp.concatenate([ctx[hh] for hh in range(N_HEADS)], axis=1)  # (T, D)
            return x + mm(ctx, p["w_out"]) + p["b_out"]         # single out-projection

        def conv_module(x, p):
            h = layernorm(x, p["ln_g"], p["ln_b"])
            y = mm(h, p["pw1_w"]) + p["pw1_b"]                  # pointwise d -> 2d
            a = y[:, :D_MODEL]
            g = y[:, D_MODEL:]
            hg = a * jax.nn.sigmoid(g)                          # GLU
            acc = jnp.zeros((T, D_MODEL), jnp.float32)
            for kk in range(CONV_KERNEL):                       # depthwise conv via roll
                off = kk - pad
                shifted = hg if off == 0 else pltpu.roll(hg, shift=(-off) % T, axis=0)
                acc = acc + shifted * tap_masks[kk] * p["dw_w"][kk:kk + 1, :]
            acc = acc + p["dw_b"]
            acc = acc * p["bn_scale"] + p["bn_shift"]           # folded BatchNorm (eval)
            acc = acc * jax.nn.sigmoid(acc)                     # SiLU
            return x + (mm(acc, p["pw2_w"]) + p["pw2_b"])

        # ---- ConformerBlockV2: ff/2, mhsa, conv, ff/2, final LN ---------------------
        for lp in P["layers"]:
            x = ff_module(x, lp["ff1"])
            x = mhsa_module(x, lp["mhsa"])
            x = conv_module(x, lp["conv"])
            x = ff_module(x, lp["ff2"])
            x = layernorm(x, lp["final_ln_g"], lp["final_ln_b"])

        # ---- final Linear + log_softmax (padded vocab cols pinned to NEG_INF) ------
        logits = mm(x, P["final_w"]) + P["final_b"]             # (T, V_PAD)
        mx = jnp.max(logits, axis=-1, keepdims=True)
        z = logits - mx
        lse = jnp.log(jnp.sum(jnp.exp(z), axis=-1, keepdims=True))
        out_ref[...] = z - lse                                  # lane-dense 128-wide store

    weight_specs = [pl.BlockSpec(w.shape, lambda b, nd=w.ndim: (0,) * nd) for w in flat_w]
    return pl.pallas_call(
        kernel,
        out_shape=jax.ShapeDtypeStruct((B, T, V_PAD), jnp.float32),
        grid=(B,),
        in_specs=[pl.BlockSpec((None, T + 1, HOP), lambda b: (b, 0, 0)),
                  pl.BlockSpec((None, 1, T), lambda b: (b, 0, 0))] + weight_specs,
        out_specs=pl.BlockSpec((None, T, V_PAD), lambda b: (b, 0, 0)),
        compiler_params=pltpu.CompilerParams(
            dimension_semantics=("parallel",),          # B maps onto the 2 TCs on v7x
            vmem_limit_bytes=48 * 1024 * 1024),
    )(chunks, mask, *flat_w)


# =============================== model forward (wrapper) ===============================

def forward(params, audio_features, audio_features_len):
    # torch.squeeze(...) on the channel axis only (batch-size-1 safe) + cast to float32
    audio = jnp.squeeze(audio_features, axis=-1).astype(jnp.float32)      # (B, N)
    B, N = audio.shape
    T = (N - N_FFT) // HOP + 1                       # true frame count (center=False)
    T_pad = ((T + 7) // 8) * 8                       # sublane-aligned frame count
    n_need = (T_pad + 1) * HOP
    audio = jnp.pad(audio, ((0, 0), (0, max(0, n_need - N))))[:, :n_need]
    chunks = audio.reshape(B, T_pad + 1, HOP)        # no gather: no sample duplication
    feat_len = (audio_features_len - N_FFT) // HOP + 1
    mask = (jnp.arange(T_pad)[None, :] < feat_len[:, None]).astype(jnp.float32)
    mask = mask[:, None, :]                                               # (B, 1, T_pad)
    out = fused_conformer_ctc(params, chunks, mask, T)                    # (B,T_pad,128)
    return out[:, :T, :TARGET_SIZE]


# =============================== parameter construction ================================

def _mel_filterbank(n_mels, n_fft, sr, fmin=0.0, fmax=None):
    fmax = fmax if fmax is not None else sr / 2.0
    hz_to_mel = lambda f: 2595.0 * np.log10(1.0 + f / 700.0)
    mel_to_hz = lambda m: 700.0 * (10.0 ** (m / 2595.0) - 1.0)
    n_freqs = n_fft // 2 + 1
    mels = np.linspace(hz_to_mel(fmin), hz_to_mel(fmax), n_mels + 2)
    bins = np.floor((n_fft + 1) * mel_to_hz(mels) / sr).astype(int)
    fb = np.zeros((n_freqs, n_mels), dtype=np.float32)
    for m in range(1, n_mels + 1):
        l, c, r = bins[m - 1], bins[m], bins[m + 1]
        for f in range(l, c):
            if c > l:
                fb[f, m - 1] = (f - l) / (c - l)
        for f in range(c, min(r, n_freqs - 1) + 1):
            if r > c:
                fb[f, m - 1] = (r - f) / (r - c)
    return fb


def _dft_bases(n_fft):
    n = np.arange(n_fft)
    f = np.arange(n_fft // 2 + 1)
    win = 0.5 - 0.5 * np.cos(2.0 * np.pi * n / n_fft)        # periodic Hann
    ang = 2.0 * np.pi * np.outer(n, f) / n_fft
    cr = (win[:, None] * np.cos(ang)).astype(np.float32)
    ci = (-win[:, None] * np.sin(ang)).astype(np.float32)
    return cr, ci


def init_params(key):
    keys = iter(jax.random.split(key, 512))
    nxt = lambda: next(keys)
    # matmul weights stored in bf16 (MXU operands); biases / norm params stay f32
    dense = lambda shape, s=0.05: (s * jax.random.normal(nxt(), shape, jnp.float32)
                                   ).astype(jnp.bfloat16)
    row = lambda n: jnp.zeros((1, n), jnp.float32)
    ones_row = lambda n: jnp.ones((1, n), jnp.float32)

    cr, ci = _dft_bases(N_FFT)
    dft = np.zeros((N_FFT, 2 * F_PAD), np.float32)            # [real | imag], F padded
    dft[:, :N_FREQ] = cr
    dft[:, F_PAD:F_PAD + N_FREQ] = ci
    mel = np.zeros((F_PAD, M_PAD), np.float32)                 # padded rows/cols zero
    mel[:N_FREQ, :N_MELS] = _mel_filterbank(N_MELS, N_FFT, SR)

    frontend_w = jnp.zeros((M_PAD, D_MODEL), jnp.float32).at[:N_MELS].set(
        0.05 * jax.random.normal(nxt(), (N_MELS, D_MODEL), jnp.float32))
    final_w = jnp.zeros((D_MODEL, V_PAD), jnp.float32).at[:, :TARGET_SIZE].set(
        0.05 * jax.random.normal(nxt(), (D_MODEL, TARGET_SIZE), jnp.float32))
    # padded vocab entries get a NEG_INF bias so they vanish from the log_softmax
    final_b = jnp.full((1, V_PAD), NEG_INF, jnp.float32).at[:, :TARGET_SIZE].set(0.0)

    params = {
        "dft_cat": jnp.asarray(dft, jnp.bfloat16),
        "melfb": jnp.asarray(mel, jnp.bfloat16),
        "frontend_w": frontend_w.astype(jnp.bfloat16),
        "frontend_b": row(D_MODEL),
        "final_w": final_w.astype(jnp.bfloat16),
        "final_b": final_b,
        "layers": [],
    }

    def ff_params():
        return {"ln_g": ones_row(D_MODEL), "ln_b": row(D_MODEL),
                "w1": dense((D_MODEL, FF_DIM)), "b1": row(FF_DIM),
                "w2": dense((FF_DIM, D_MODEL)), "b2": row(D_MODEL)}

    # eval-folded BatchNorm: gamma=1, beta=0, running_mean=0, running_var=1
    bn_scale = jnp.full((1, D_MODEL), 1.0 / np.sqrt(1.0 + BN_EPS), jnp.float32)
    bn_shift = row(D_MODEL)

    for _ in range(N_LAYERS):
        layer = {
            "ff1": ff_params(),
            "mhsa": {"ln_g": ones_row(D_MODEL), "ln_b": row(D_MODEL),
                     "w_qkv": dense((D_MODEL, 3 * D_MODEL)), "b_qkv": row(3 * D_MODEL),
                     "w_out": dense((D_MODEL, D_MODEL)), "b_out": row(D_MODEL)},
            "conv": {"ln_g": ones_row(D_MODEL), "ln_b": row(D_MODEL),
                     # pointwise conv d -> 2d (GLU halves concatenated into one matmul)
                     "pw1_w": dense((D_MODEL, 2 * D_MODEL)), "pw1_b": row(2 * D_MODEL),
                     "dw_w": 0.05 * jax.random.normal(nxt(), (CONV_KERNEL, D_MODEL),
                                                      jnp.float32),
                     "dw_b": row(D_MODEL),
                     "bn_scale": bn_scale, "bn_shift": bn_shift,
                     "pw2_w": dense((D_MODEL, D_MODEL)), "pw2_b": row(D_MODEL)},
            "ff2": ff_params(),
            "final_ln_g": ones_row(D_MODEL), "final_ln_b": row(D_MODEL),
        }
        params["layers"].append(layer)
    return params


# ======================================= main ==========================================

if __name__ == "__main__":
    B = 2
    N_SAMPLES = 2048
    key = jax.random.PRNGKey(0)
    audio = jax.random.normal(key, (B, N_SAMPLES, 1), dtype=jnp.float32)   # raw waveform
    audio_len = jnp.array([N_SAMPLES, N_SAMPLES - 3 * HOP], dtype=jnp.int32)

    params = init_params(jax.random.PRNGKey(1))

    log_probs = jax.jit(forward)(params, audio, audio_len)
    log_probs = jax.block_until_ready(log_probs)

    T = (N_SAMPLES - N_FFT) // HOP + 1
    assert log_probs.shape == (B, T, TARGET_SIZE)
    # log_softmax rows must sum to ~1 in probability space, and stay finite
    sums = jnp.sum(jnp.exp(log_probs), axis=-1)
    assert bool(jnp.all(jnp.isfinite(log_probs))) and bool(jnp.all(jnp.abs(sums - 1.0) < 1e-3))
    print("KERNEL_OK")
</pallas_src>

<mosaic_0001>
module attributes {stable_mosaic.version = 11 : i64} {
  func.func @kernel(%arg0: i32, %arg1: memref<1x17x128xf32, #tpu.memory_space<vmem>>, %arg2: memref<1x1x16xf32, #tpu.memory_space<vmem>>, %arg3: memref<256x512xbf16, #tpu.memory_space<vmem>>, %arg4: memref<1x128xf32, #tpu.memory_space<vmem>>, %arg5: memref<32x128xbf16, #tpu.memory_space<vmem>>, %arg6: memref<1x32xf32, #tpu.memory_space<vmem>>, %arg7: memref<128x32xbf16, #tpu.memory_space<vmem>>, %arg8: memref<1x32xf32, #tpu.memory_space<vmem>>, %arg9: memref<1x32xf32, #tpu.memory_space<vmem>>, %arg10: memref<1x32xf32, #tpu.memory_space<vmem>>, %arg11: memref<7x32xf32, #tpu.memory_space<vmem>>, %arg12: memref<1x32xf32, #tpu.memory_space<vmem>>, %arg13: memref<1x32xf32, #tpu.memory_space<vmem>>, %arg14: memref<1x64xf32, #tpu.memory_space<vmem>>, %arg15: memref<32x64xbf16, #tpu.memory_space<vmem>>, %arg16: memref<1x32xf32, #tpu.memory_space<vmem>>, %arg17: memref<32x32xbf16, #tpu.memory_space<vmem>>, %arg18: memref<1x128xf32, #tpu.memory_space<vmem>>, %arg19: memref<1x32xf32, #tpu.memory_space<vmem>>, %arg20: memref<1x32xf32, #tpu.memory_space<vmem>>, %arg21: memref<1x32xf32, #tpu.memory_space<vmem>>, %arg22: memref<32x128xbf16, #tpu.memory_space<vmem>>, %arg23: memref<128x32xbf16, #tpu.memory_space<vmem>>, %arg24: memref<1x128xf32, #tpu.memory_space<vmem>>, %arg25: memref<1x32xf32, #tpu.memory_space<vmem>>, %arg26: memref<1x32xf32, #tpu.memory_space<vmem>>, %arg27: memref<1x32xf32, #tpu.memory_space<vmem>>, %arg28: memref<32x128xbf16, #tpu.memory_space<vmem>>, %arg29: memref<128x32xbf16, #tpu.memory_space<vmem>>, %arg30: memref<1x32xf32, #tpu.memory_space<vmem>>, %arg31: memref<1x32xf32, #tpu.memory_space<vmem>>, %arg32: memref<1x32xf32, #tpu.memory_space<vmem>>, %arg33: memref<1x96xf32, #tpu.memory_space<vmem>>, %arg34: memref<1x32xf32, #tpu.memory_space<vmem>>, %arg35: memref<1x32xf32, #tpu.memory_space<vmem>>, %arg36: memref<32x32xbf16, #tpu.memory_space<vmem>>, %arg37: memref<32x96xbf16, #tpu.memory_space<vmem>>, %arg38: memref<1x32xf32, #tpu.memory_space<vmem>>, %arg39: memref<1x32xf32, #tpu.memory_space<vmem>>, %arg40: memref<1x32xf32, #tpu.memory_space<vmem>>, %arg41: memref<7x32xf32, #tpu.memory_space<vmem>>, %arg42: memref<1x32xf32, #tpu.memory_space<vmem>>, %arg43: memref<1x32xf32, #tpu.memory_space<vmem>>, %arg44: memref<1x64xf32, #tpu.memory_space<vmem>>, %arg45: memref<32x64xbf16, #tpu.memory_space<vmem>>, %arg46: memref<1x32xf32, #tpu.memory_space<vmem>>, %arg47: memref<32x32xbf16, #tpu.memory_space<vmem>>, %arg48: memref<1x128xf32, #tpu.memory_space<vmem>>, %arg49: memref<1x32xf32, #tpu.memory_space<vmem>>, %arg50: memref<1x32xf32, #tpu.memory_space<vmem>>, %arg51: memref<1x32xf32, #tpu.memory_space<vmem>>, %arg52: memref<32x128xbf16, #tpu.memory_space<vmem>>, %arg53: memref<128x32xbf16, #tpu.memory_space<vmem>>, %arg54: memref<1x128xf32, #tpu.memory_space<vmem>>, %arg55: memref<1x32xf32, #tpu.memory_space<vmem>>, %arg56: memref<1x32xf32, #tpu.memory_space<vmem>>, %arg57: memref<1x32xf32, #tpu.memory_space<vmem>>, %arg58: memref<32x128xbf16, #tpu.memory_space<vmem>>, %arg59: memref<128x32xbf16, #tpu.memory_space<vmem>>, %arg60: memref<1x32xf32, #tpu.memory_space<vmem>>, %arg61: memref<1x32xf32, #tpu.memory_space<vmem>>, %arg62: memref<1x32xf32, #tpu.memory_space<vmem>>, %arg63: memref<1x96xf32, #tpu.memory_space<vmem>>, %arg64: memref<1x32xf32, #tpu.memory_space<vmem>>, %arg65: memref<1x32xf32, #tpu.memory_space<vmem>>, %arg66: memref<32x32xbf16, #tpu.memory_space<vmem>>, %arg67: memref<32x96xbf16, #tpu.memory_space<vmem>>, %arg68: memref<256x128xbf16, #tpu.memory_space<vmem>>, %arg69: memref<1x16x128xf32, #tpu.memory_space<vmem>>) attributes {dimension_semantics = [#tpu.dimension_semantics<parallel>], iteration_bounds = array<i64: 2>, scalar_prefetch = 0 : i64, scratch_operands = 0 : i64, tpu.core_type = #tpu.core_type<tc>, window_params = [{transform_indices = @transform_0, window_bounds = array<i64: 1, 17, 128>}, {transform_indices = @transform_1, window_bounds = array<i64: 1, 1, 16>}, {pipeline_mode = #tpu.pipeline_mode<synchronous>, transform_indices = @transform_2, window_bounds = array<i64: 256, 512>}, {pipeline_mode = #tpu.pipeline_mode<synchronous>, transform_indices = @transform_3, window_bounds = array<i64: 1, 128>}, {pipeline_mode = #tpu.pipeline_mode<synchronous>, transform_indices = @transform_4, window_bounds = array<i64: 32, 128>}, {pipeline_mode = #tpu.pipeline_mode<synchronous>, transform_indices = @transform_5, window_bounds = array<i64: 1, 32>}, {pipeline_mode = #tpu.pipeline_mode<synchronous>, transform_indices = @transform_6, window_bounds = array<i64: 128, 32>}, {pipeline_mode = #tpu.pipeline_mode<synchronous>, transform_indices = @transform_7, window_bounds = array<i64: 1, 32>}, {pipeline_mode = #tpu.pipeline_mode<synchronous>, transform_indices = @transform_8, window_bounds = array<i64: 1, 32>}, {pipeline_mode = #tpu.pipeline_mode<synchronous>, transform_indices = @transform_9, window_bounds = array<i64: 1, 32>}, {pipeline_mode = #tpu.pipeline_mode<synchronous>, transform_indices = @transform_10, window_bounds = array<i64: 7, 32>}, {pipeline_mode = #tpu.pipeline_mode<synchronous>, transform_indices = @transform_11, window_bounds = array<i64: 1, 32>}, {pipeline_mode = #tpu.pipeline_mode<synchronous>, transform_indices = @transform_12, window_bounds = array<i64: 1, 32>}, {pipeline_mode = #tpu.pipeline_mode<synchronous>, transform_indices = @transform_13, window_bounds = array<i64: 1, 64>}, {pipeline_mode = #tpu.pipeline_mode<synchronous>, transform_indices = @transform_14, window_bounds = array<i64: 32, 64>}, {pipeline_mode = #tpu.pipeline_mode<synchronous>, transform_indices = @transform_15, window_bounds = array<i64: 1, 32>}, {pipeline_mode = #tpu.pipeline_mode<synchronous>, transform_indices = @transform_16, window_bounds = array<i64: 32, 32>}, {pipeline_mode = #tpu.pipeline_mode<synchronous>, transform_indices = @transform_17, window_bounds = array<i64: 1, 128>}, {pipeline_mode = #tpu.pipeline_mode<synchronous>, transform_indices = @transform_18, window_bounds = array<i64: 1, 32>}, {pipeline_mode = #tpu.pipeline_mode<synchronous>, transform_indices = @transform_19, window_bounds = array<i64: 1, 32>}, {pipeline_mode = #tpu.pipeline_mode<synchronous>, transform_indices = @transform_20, window_bounds = array<i64: 1, 32>}, {pipeline_mode = #tpu.pipeline_mode<synchronous>, transform_indices = @transform_21, window_bounds = array<i64: 32, 128>}, {pipeline_mode = #tpu.pipeline_mode<synchronous>, transform_indices = @transform_22, window_bounds = array<i64: 128, 32>}, {pipeline_mode = #tpu.pipeline_mode<synchronous>, transform_indices = @transform_23, window_bounds = array<i64: 1, 128>}, {pipeline_mode = #tpu.pipeline_mode<synchronous>, transform_indices = @transform_24, window_bounds = array<i64: 1, 32>}, {pipeline_mode = #tpu.pipeline_mode<synchronous>, transform_indices = @transform_25, window_bounds = array<i64: 1, 32>}, {pipeline_mode = #tpu.pipeline_mode<synchronous>, transform_indices = @transform_26, window_bounds = array<i64: 1, 32>}, {pipeline_mode = #tpu.pipeline_mode<synchronous>, transform_indices = @transform_27, window_bounds = array<i64: 32, 128>}, {pipeline_mode = #tpu.pipeline_mode<synchronous>, transform_indices = @transform_28, window_bounds = array<i64: 128, 32>}, {pipeline_mode = #tpu.pipeline_mode<synchronous>, transform_indices = @transform_29, window_bounds = array<i64: 1, 32>}, {pipeline_mode = #tpu.pipeline_mode<synchronous>, transform_indices = @transform_30, window_bounds = array<i64: 1, 32>}, {pipeline_mode = #tpu.pipeline_mode<synchronous>, transform_indices = @transform_31, window_bounds = array<i64: 1, 32>}, {pipeline_mode = #tpu.pipeline_mode<synchronous>, transform_indices = @transform_32, window_bounds = array<i64: 1, 96>}, {pipeline_mode = #tpu.pipeline_mode<synchronous>, transform_indices = @transform_33, window_bounds = array<i64: 1, 32>}, {pipeline_mode = #tpu.pipeline_mode<synchronous>, transform_indices = @transform_34, window_bounds = array<i64: 1, 32>}, {pipeline_mode = #tpu.pipeline_mode<synchronous>, transform_indices = @transform_35, window_bounds = array<i64: 32, 32>}, {pipeline_mode = #tpu.pipeline_mode<synchronous>, transform_indices = @transform_36, window_bounds = array<i64: 32, 96>}, {pipeline_mode = #tpu.pipeline_mode<synchronous>, transform_indices = @transform_37, window_bounds = array<i64: 1, 32>}, {pipeline_mode = #tpu.pipeline_mode<synchronous>, transform_indices = @transform_38, window_bounds = array<i64: 1, 32>}, {pipeline_mode = #tpu.pipeline_mode<synchronous>, transform_indices = @transform_39, window_bounds = array<i64: 1, 32>}, {pipeline_mode = #tpu.pipeline_mode<synchronous>, transform_indices = @transform_40, window_bounds = array<i64: 7, 32>}, {pipeline_mode = #tpu.pipeline_mode<synchronous>, transform_indices = @transform_41, window_bounds = array<i64: 1, 32>}, {pipeline_mode = #tpu.pipeline_mode<synchronous>, transform_indices = @transform_42, window_bounds = array<i64: 1, 32>}, {pipeline_mode = #tpu.pipeline_mode<synchronous>, transform_indices = @transform_43, window_bounds = array<i64: 1, 64>}, {pipeline_mode = #tpu.pipeline_mode<synchronous>, transform_indices = @transform_44, window_bounds = array<i64: 32, 64>}, {pipeline_mode = #tpu.pipeline_mode<synchronous>, transform_indices = @transform_45, window_bounds = array<i64: 1, 32>}, {pipeline_mode = #tpu.pipeline_mode<synchronous>, transform_indices = @transform_46, window_bounds = array<i64: 32, 32>}, {pipeline_mode = #tpu.pipeline_mode<synchronous>, transform_indices = @transform_47, window_bounds = array<i64: 1, 128>}, {pipeline_mode = #tpu.pipeline_mode<synchronous>, transform_indices = @transform_48, window_bounds = array<i64: 1, 32>}, {pipeline_mode = #tpu.pipeline_mode<synchronous>, transform_indices = @transform_49, window_bounds = array<i64: 1, 32>}, {pipeline_mode = #tpu.pipeline_mode<synchronous>, transform_indices = @transform_50, window_bounds = array<i64: 1, 32>}, {pipeline_mode = #tpu.pipeline_mode<synchronous>, transform_indices = @transform_51, window_bounds = array<i64: 32, 128>}, {pipeline_mode = #tpu.pipeline_mode<synchronous>, transform_indices = @transform_52, window_bounds = array<i64: 128, 32>}, {pipeline_mode = #tpu.pipeline_mode<synchronous>, transform_indices = @transform_53, window_bounds = array<i64: 1, 128>}, {pipeline_mode = #tpu.pipeline_mode<synchronous>, transform_indices = @transform_54, window_bounds = array<i64: 1, 32>}, {pipeline_mode = #tpu.pipeline_mode<synchronous>, transform_indices = @transform_55, window_bounds = array<i64: 1, 32>}, {pipeline_mode = #tpu.pipeline_mode<synchronous>, transform_indices = @transform_56, window_bounds = array<i64: 1, 32>}, {pipeline_mode = #tpu.pipeline_mode<synchronous>, transform_indices = @transform_57, window_bounds = array<i64: 32, 128>}, {pipeline_mode = #tpu.pipeline_mode<synchronous>, transform_indices = @transform_58, window_bounds = array<i64: 128, 32>}, {pipeline_mode = #tpu.pipeline_mode<synchronous>, transform_indices = @transform_59, window_bounds = array<i64: 1, 32>}, {pipeline_mode = #tpu.pipeline_mode<synchronous>, transform_indices = @transform_60, window_bounds = array<i64: 1, 32>}, {pipeline_mode = #tpu.pipeline_mode<synchronous>, transform_indices = @transform_61, window_bounds = array<i64: 1, 32>}, {pipeline_mode = #tpu.pipeline_mode<synchronous>, transform_indices = @transform_62, window_bounds = array<i64: 1, 96>}, {pipeline_mode = #tpu.pipeline_mode<synchronous>, transform_indices = @transform_63, window_bounds = array<i64: 1, 32>}, {pipeline_mode = #tpu.pipeline_mode<synchronous>, transform_indices = @transform_64, window_bounds = array<i64: 1, 32>}, {pipeline_mode = #tpu.pipeline_mode<synchronous>, transform_indices = @transform_65, window_bounds = array<i64: 32, 32>}, {pipeline_mode = #tpu.pipeline_mode<synchronous>, transform_indices = @transform_66, window_bounds = array<i64: 32, 96>}, {pipeline_mode = #tpu.pipeline_mode<synchronous>, transform_indices = @transform_67, window_bounds = array<i64: 256, 128>}, {transform_indices = @transform_68, window_bounds = array<i64: 1, 16, 128>}]} {
    %c0 = arith.constant 0 : index
    %c0_0 = arith.constant 0 : index
    %0 = vector.load %arg3[%c0, %c0_0] : memref<256x512xbf16, #tpu.memory_space<vmem>>, vector<256x512xbf16>
    %c0_1 = arith.constant 0 : index
    %c0_2 = arith.constant 0 : index
    %1 = vector.load %arg4[%c0_1, %c0_2] : memref<1x128xf32, #tpu.memory_space<vmem>>, vector<1x128xf32>
    %c0_3 = arith.constant 0 : index
    %c0_4 = arith.constant 0 : index
    %2 = vector.load %arg5[%c0_3, %c0_4] : memref<32x128xbf16, #tpu.memory_space<vmem>>, vector<32x128xbf16>
    %c0_5 = arith.constant 0 : index
    %c0_6 = arith.constant 0 : index
    %3 = vector.load %arg6[%c0_5, %c0_6] : memref<1x32xf32, #tpu.memory_space<vmem>>, vector<1x32xf32>
    %c0_7 = arith.constant 0 : index
    %c0_8 = arith.constant 0 : index
    %4 = vector.load %arg7[%c0_7, %c0_8] : memref<128x32xbf16, #tpu.memory_space<vmem>>, vector<128x32xbf16>
    %c0_9 = arith.constant 0 : index
    %c0_10 = arith.constant 0 : index
    %5 = vector.load %arg8[%c0_9, %c0_10] : memref<1x32xf32, #tpu.memory_space<vmem>>, vector<1x32xf32>
    %c0_11 = arith.constant 0 : index
    %c0_12 = arith.constant 0 : index
    %6 = vector.load %arg9[%c0_11, %c0_12] : memref<1x32xf32, #tpu.memory_space<vmem>>, vector<1x32xf32>
    %c0_13 = arith.constant 0 : index
    %c0_14 = arith.constant 0 : index
    %7 = vector.load %arg10[%c0_13, %c0_14] : memref<1x32xf32, #tpu.memory_space<vmem>>, vector<1x32xf32>
    %c0_15 = arith.constant 0 : index
    %c0_16 = arith.constant 0 : index
    %8 = vector.load %arg11[%c0_15, %c0_16] : memref<7x32xf32, #tpu.memory_space<vmem>>, vector<7x32xf32>
    %c0_17 = arith.constant 0 : index
    %c0_18 = arith.constant 0 : index
    %9 = vector.load %arg12[%c0_17, %c0_18] : memref<1x32xf32, #tpu.memory_space<vmem>>, vector<1x32xf32>
    %c0_19 = arith.constant 0 : index
    %c0_20 = arith.constant 0 : index
    %10 = vector.load %arg13[%c0_19, %c0_20] : memref<1x32xf32, #tpu.memory_space<vmem>>, vector<1x32xf32>
    %c0_21 = arith.constant 0 : index
    %c0_22 = arith.constant 0 : index
    %11 = vector.load %arg14[%c0_21, %c0_22] : memref<1x64xf32, #tpu.memory_space<vmem>>, vector<1x64xf32>
    %c0_23 = arith.constant 0 : index
    %c0_24 = arith.constant 0 : index
    %12 = vector.load %arg15[%c0_23, %c0_24] : memref<32x64xbf16, #tpu.memory_space<vmem>>, vector<32x64xbf16>
    %c0_25 = arith.constant 0 : index
    %c0_26 = arith.constant 0 : index
    %13 = vector.load %arg16[%c0_25, %c0_26] : memref<1x32xf32, #tpu.memory_space<vmem>>, vector<1x32xf32>
    %c0_27 = arith.constant 0 : index
    %c0_28 = arith.constant 0 : index
    %14 = vector.load %arg17[%c0_27, %c0_28] : memref<32x32xbf16, #tpu.memory_space<vmem>>, vector<32x32xbf16>
    %c0_29 = arith.constant 0 : index
    %c0_30 = arith.constant 0 : index
    %15 = vector.load %arg18[%c0_29, %c0_30] : memref<1x128xf32, #tpu.memory_space<vmem>>, vector<1x128xf32>
    %c0_31 = arith.constant 0 : index
    %c0_32 = arith.constant 0 : index
    %16 = vector.load %arg19[%c0_31, %c0_32] : memref<1x32xf32, #tpu.memory_space<vmem>>, vector<1x32xf32>
    %c0_33 = arith.constant 0 : index
    %c0_34 = arith.constant 0 : index
    %17 = vector.load %arg20[%c0_33, %c0_34] : memref<1x32xf32, #tpu.memory_space<vmem>>, vector<1x32xf32>
    %c0_35 = arith.constant 0 : index
    %c0_36 = arith.constant 0 : index
    %18 = vector.load %arg21[%c0_35, %c0_36] : memref<1x32xf32, #tpu.memory_space<vmem>>, vector<1x32xf32>
    %c0_37 = arith.constant 0 : index
    %c0_38 = arith.constant 0 : index
    %19 = vector.load %arg22[%c0_37, %c0_38] : memref<32x128xbf16, #tpu.memory_space<vmem>>, vector<32x128xbf16>
    %c0_39 = arith.constant 0 : index
    %c0_40 = arith.constant 0 : index
    %20 = vector.load %arg23[%c0_39, %c0_40] : memref<128x32xbf16, #tpu.memory_space<vmem>>, vector<128x32xbf16>
    %c0_41 = arith.constant 0 : index
    %c0_42 = arith.constant 0 : index
    %21 = vector.load %arg24[%c0_41, %c0_42] : memref<1x128xf32, #tpu.memory_space<vmem>>, vector<1x128xf32>
    %c0_43 = arith.constant 0 : index
    %c0_44 = arith.constant 0 : index
    %22 = vector.load %arg25[%c0_43, %c0_44] : memref<1x32xf32, #tpu.memory_space<vmem>>, vector<1x32xf32>
    %c0_45 = arith.constant 0 : index
    %c0_46 = arith.constant 0 : index
    %23 = vector.load %arg26[%c0_45, %c0_46] : memref<1x32xf32, #tpu.memory_space<vmem>>, vector<1x32xf32>
    %c0_47 = arith.constant 0 : index
    %c0_48 = arith.constant 0 : index
    %24 = vector.load %arg27[%c0_47, %c0_48] : memref<1x32xf32, #tpu.memory_space<vmem>>, vector<1x32xf32>
    %c0_49 = arith.constant 0 : index
    %c0_50 = arith.constant 0 : index
    %25 = vector.load %arg28[%c0_49, %c0_50] : memref<32x128xbf16, #tpu.memory_space<vmem>>, vector<32x128xbf16>
    %c0_51 = arith.constant 0 : index
    %c0_52 = arith.constant 0 : index
    %26 = vector.load %arg29[%c0_51, %c0_52] : memref<128x32xbf16, #tpu.memory_space<vmem>>, vector<128x32xbf16>
    %c0_53 = arith.constant 0 : index
    %c0_54 = arith.constant 0 : index
    %27 = vector.load %arg30[%c0_53, %c0_54] : memref<1x32xf32, #tpu.memory_space<vmem>>, vector<1x32xf32>
    %c0_55 = arith.constant 0 : index
    %c0_56 = arith.constant 0 : index
    %28 = vector.load %arg31[%c0_55, %c0_56] : memref<1x32xf32, #tpu.memory_space<vmem>>, vector<1x32xf32>
    %c0_57 = arith.constant 0 : index
    %c0_58 = arith.constant 0 : index
    %29 = vector.load %arg32[%c0_57, %c0_58] : memref<1x32xf32, #tpu.memory_space<vmem>>, vector<1x32xf32>
    %c0_59 = arith.constant 0 : index
    %c0_60 = arith.constant 0 : index
    %30 = vector.load %arg33[%c0_59, %c0_60] : memref<1x96xf32, #tpu.memory_space<vmem>>, vector<1x96xf32>
    %c0_61 = arith.constant 0 : index
    %c0_62 = arith.constant 0 : index
    %31 = vector.load %arg34[%c0_61, %c0_62] : memref<1x32xf32, #tpu.memory_space<vmem>>, vector<1x32xf32>
    %c0_63 = arith.constant 0 : index
    %c0_64 = arith.constant 0 : index
    %32 = vector.load %arg35[%c0_63, %c0_64] : memref<1x32xf32, #tpu.memory_space<vmem>>, vector<1x32xf32>
    %c0_65 = arith.constant 0 : index
    %c0_66 = arith.constant 0 : index
    %33 = vector.load %arg36[%c0_65, %c0_66] : memref<32x32xbf16, #tpu.memory_space<vmem>>, vector<32x32xbf16>
    %c0_67 = arith.constant 0 : index
    %c0_68 = arith.constant 0 : index
    %34 = vector.load %arg37[%c0_67, %c0_68] : memref<32x96xbf16, #tpu.memory_space<vmem>>, vector<32x96xbf16>
    %c0_69 = arith.constant 0 : index
    %c0_70 = arith.constant 0 : index
    %35 = vector.load %arg38[%c0_69, %c0_70] : memref<1x32xf32, #tpu.memory_space<vmem>>, vector<1x32xf32>
    %c0_71 = arith.constant 0 : index
    %c0_72 = arith.constant 0 : index
    %36 = vector.load %arg39[%c0_71, %c0_72] : memref<1x32xf32, #tpu.memory_space<vmem>>, vector<1x32xf32>
    %c0_73 = arith.constant 0 : index
    %c0_74 = arith.constant 0 : index
    %37 = vector.load %arg40[%c0_73, %c0_74] : memref<1x32xf32, #tpu.memory_space<vmem>>, vector<1x32xf32>
    %c0_75 = arith.constant 0 : index
    %c0_76 = arith.constant 0 : index
    %38 = vector.load %arg41[%c0_75, %c0_76] : memref<7x32xf32, #tpu.memory_space<vmem>>, vector<7x32xf32>
    %c0_77 = arith.constant 0 : index
    %c0_78 = arith.constant 0 : index
    %39 = vector.load %arg42[%c0_77, %c0_78] : memref<1x32xf32, #tpu.memory_space<vmem>>, vector<1x32xf32>
    %c0_79 = arith.constant 0 : index
    %c0_80 = arith.constant 0 : index
    %40 = vector.load %arg43[%c0_79, %c0_80] : memref<1x32xf32, #tpu.memory_space<vmem>>, vector<1x32xf32>
    %c0_81 = arith.constant 0 : index
    %c0_82 = arith.constant 0 : index
    %41 = vector.load %arg44[%c0_81, %c0_82] : memref<1x64xf32, #tpu.memory_space<vmem>>, vector<1x64xf32>
    %c0_83 = arith.constant 0 : index
    %c0_84 = arith.constant 0 : index
    %42 = vector.load %arg45[%c0_83, %c0_84] : memref<32x64xbf16, #tpu.memory_space<vmem>>, vector<32x64xbf16>
    %c0_85 = arith.constant 0 : index
    %c0_86 = arith.constant 0 : index
    %43 = vector.load %arg46[%c0_85, %c0_86] : memref<1x32xf32, #tpu.memory_space<vmem>>, vector<1x32xf32>
    %c0_87 = arith.constant 0 : index
    %c0_88 = arith.constant 0 : index
    %44 = vector.load %arg47[%c0_87, %c0_88] : memref<32x32xbf16, #tpu.memory_space<vmem>>, vector<32x32xbf16>
    %c0_89 = arith.constant 0 : index
    %c0_90 = arith.constant 0 : index
    %45 = vector.load %arg48[%c0_89, %c0_90] : memref<1x128xf32, #tpu.memory_space<vmem>>, vector<1x128xf32>
    %c0_91 = arith.constant 0 : index
    %c0_92 = arith.constant 0 : index
    %46 = vector.load %arg49[%c0_91, %c0_92] : memref<1x32xf32, #tpu.memory_space<vmem>>, vector<1x32xf32>
    %c0_93 = arith.constant 0 : index
    %c0_94 = arith.constant 0 : index
    %47 = vector.load %arg50[%c0_93, %c0_94] : memref<1x32xf32, #tpu.memory_space<vmem>>, vector<1x32xf32>
    %c0_95 = arith.constant 0 : index
    %c0_96 = arith.constant 0 : index
    %48 = vector.load %arg51[%c0_95, %c0_96] : memref<1x32xf32, #tpu.memory_space<vmem>>, vector<1x32xf32>
    %c0_97 = arith.constant 0 : index
    %c0_98 = arith.constant 0 : index
    %49 = vector.load %arg52[%c0_97, %c0_98] : memref<32x128xbf16, #tpu.memory_space<vmem>>, vector<32x128xbf16>
    %c0_99 = arith.constant 0 : index
    %c0_100 = arith.constant 0 : index
    %50 = vector.load %arg53[%c0_99, %c0_100] : memref<128x32xbf16, #tpu.memory_space<vmem>>, vector<128x32xbf16>
    %c0_101 = arith.constant 0 : index
    %c0_102 = arith.constant 0 : index
    %51 = vector.load %arg54[%c0_101, %c0_102] : memref<1x128xf32, #tpu.memory_space<vmem>>, vector<1x128xf32>
    %c0_103 = arith.constant 0 : index
    %c0_104 = arith.constant 0 : index
    %52 = vector.load %arg55[%c0_103, %c0_104] : memref<1x32xf32, #tpu.memory_space<vmem>>, vector<1x32xf32>
    %c0_105 = arith.constant 0 : index
    %c0_106 = arith.constant 0 : index
    %53 = vector.load %arg56[%c0_105, %c0_106] : memref<1x32xf32, #tpu.memory_space<vmem>>, vector<1x32xf32>
    %c0_107 = arith.constant 0 : index
    %c0_108 = arith.constant 0 : index
    %54 = vector.load %arg57[%c0_107, %c0_108] : memref<1x32xf32, #tpu.memory_space<vmem>>, vector<1x32xf32>
    %c0_109 = arith.constant 0 : index
    %c0_110 = arith.constant 0 : index
    %55 = vector.load %arg58[%c0_109, %c0_110] : memref<32x128xbf16, #tpu.memory_space<vmem>>, vector<32x128xbf16>
    %c0_111 = arith.constant 0 : index
    %c0_112 = arith.constant 0 : index
    %56 = vector.load %arg59[%c0_111, %c0_112] : memref<128x32xbf16, #tpu.memory_space<vmem>>, vector<128x32xbf16>
    %c0_113 = arith.constant 0 : index
    %c0_114 = arith.constant 0 : index
    %57 = vector.load %arg60[%c0_113, %c0_114] : memref<1x32xf32, #tpu.memory_space<vmem>>, vector<1x32xf32>
    %c0_115 = arith.constant 0 : index
    %c0_116 = arith.constant 0 : index
    %58 = vector.load %arg61[%c0_115, %c0_116] : memref<1x32xf32, #tpu.memory_space<vmem>>, vector<1x32xf32>
    %c0_117 = arith.constant 0 : index
    %c0_118 = arith.constant 0 : index
    %59 = vector.load %arg62[%c0_117, %c0_118] : memref<1x32xf32, #tpu.memory_space<vmem>>, vector<1x32xf32>
    %c0_119 = arith.constant 0 : index
    %c0_120 = arith.constant 0 : index
    %60 = vector.load %arg63[%c0_119, %c0_120] : memref<1x96xf32, #tpu.memory_space<vmem>>, vector<1x96xf32>
    %c0_121 = arith.constant 0 : index
    %c0_122 = arith.constant 0 : index
    %61 = vector.load %arg64[%c0_121, %c0_122] : memref<1x32xf32, #tpu.memory_space<vmem>>, vector<1x32xf32>
    %c0_123 = arith.constant 0 : index
    %c0_124 = arith.constant 0 : index
    %62 = vector.load %arg65[%c0_123, %c0_124] : memref<1x32xf32, #tpu.memory_space<vmem>>, vector<1x32xf32>
    %c0_125 = arith.constant 0 : index
    %c0_126 = arith.constant 0 : index
    %63 = vector.load %arg66[%c0_125, %c0_126] : memref<32x32xbf16, #tpu.memory_space<vmem>>, vector<32x32xbf16>
    %c0_127 = arith.constant 0 : index
    %c0_128 = arith.constant 0 : index
    %64 = vector.load %arg67[%c0_127, %c0_128] : memref<32x96xbf16, #tpu.memory_space<vmem>>, vector<32x96xbf16>
    %c0_129 = arith.constant 0 : index
    %c0_130 = arith.constant 0 : index
    %65 = vector.load %arg68[%c0_129, %c0_130] : memref<256x128xbf16, #tpu.memory_space<vmem>>, vector<256x128xbf16>
    %c0_131 = arith.constant 0 : index
    %c0_132 = arith.constant 0 : index
    %c0_133 = arith.constant 0 : index
    %66 = vector.load %arg1[%c0_131, %c0_132, %c0_133] : memref<1x17x128xf32, #tpu.memory_space<vmem>>, vector<1x17x128xf32>
    %67 = vector.shape_cast %66 : vector<1x17x128xf32> to vector<17x128xf32>
    %68 = vector.extract_strided_slice %67 {offsets = [0, 0], sizes = [16, 128], strides = [1, 1]} : vector<17x128xf32> to vector<16x128xf32>
    %69 = vector.extract_strided_slice %67 {offsets = [1, 0], sizes = [16, 128], strides = [1, 1]} : vector<17x128xf32> to vector<16x128xf32>
    %70 = tpu.concatenate %68, %69 in 1 : vector<16x128xf32>, vector<16x128xf32> -> vector<16x256xf32>
    %71 = arith.truncf %70 : vector<16x256xf32> to vector<16x256xbf16>
    %cst = arith.constant dense<0.000000e+00> : vector<16x512xf32>
    %72 = tpu.matmul %71, %0, %cst {dimension_numbers = #tpu.dot_dimension_numbers<[1], [0], [0], [1], [0, 0, 1, 1], [], []>} : vector<16x256xbf16>, vector<256x512xbf16>, vector<16x512xf32> -> vector<16x512xf32>
    %73 = vector.extract_strided_slice %72 {offsets = [0, 0], sizes = [16, 256], strides = [1, 1]} : vector<16x512xf32> to vector<16x256xf32>
    %74 = vector.extract_strided_slice %72 {offsets = [0, 256], sizes = [16, 256], strides = [1, 1]} : vector<16x512xf32> to vector<16x256xf32>
    %75 = arith.mulf %73, %73 : vector<16x256xf32>
    %76 = arith.mulf %74, %74 : vector<16x256xf32>
    %77 = arith.addf %75, %76 : vector<16x256xf32>
    %78 = arith.truncf %77 : vector<16x256xf32> to vector<16x256xbf16>
    %cst_134 = arith.constant dense<0.000000e+00> : vector<16x128xf32>
    %79 = tpu.matmul %78, %65, %cst_134 {dimension_numbers = #tpu.dot_dimension_numbers<[1], [0], [0], [1], [0, 0, 1, 1], [], []>} : vector<16x256xbf16>, vector<256x128xbf16>, vector<16x128xf32> -> vector<16x128xf32>
    %cst_135 = arith.constant 1.000000e-10 : f32
    %80 = vector.broadcast %cst_135 : f32 to vector<16x128xf32>
    %81 = arith.maximumf %79, %80 : vector<16x128xf32>
    %82 = math.log %81 : vector<16x128xf32>
    %cst_136 = arith.constant 0.434294492 : f32
    %83 = vector.broadcast %cst_136 : f32 to vector<16x128xf32>
    %84 = arith.mulf %82, %83 : vector<16x128xf32>
    %85 = arith.truncf %84 : vector<16x128xf32> to vector<16x128xbf16>
    %cst_137 = arith.constant dense<0.000000e+00> : vector<16x32xf32>
    %86 = tpu.matmul %85, %4, %cst_137 {dimension_numbers = #tpu.dot_dimension_numbers<[1], [0], [0], [1], [0, 0, 1, 1], [], []>} : vector<16x128xbf16>, vector<128x32xbf16>, vector<16x32xf32> -> vector<16x32xf32>
    %87 = vector.broadcast %3 : vector<1x32xf32> to vector<16x32xf32>
    %88 = arith.addf %86, %87 : vector<16x32xf32>
    %c0_138 = arith.constant 0 : index
    %c0_139 = arith.constant 0 : index
    %c0_140 = arith.constant 0 : index
    %89 = vector.load %arg2[%c0_138, %c0_139, %c0_140] : memref<1x1x16xf32, #tpu.memory_space<vmem>>, vector<1x1x16xf32>
    %90 = vector.shape_cast %89 : vector<1x1x16xf32> to vector<1x16xf32>
    %cst_141 = arith.constant 5.000000e-01 : f32
    %91 = vector.broadcast %cst_141 : f32 to vector<1x16xf32>
    %92 = arith.cmpf ogt, %90, %91 : vector<1x16xf32>
    %cst_142 = arith.constant 0.000000e+00 : f32
    %cst_143 = arith.constant -1.000000e+09 : f32
    %93 = vector.broadcast %cst_142 : f32 to vector<1x16xf32>
    %94 = vector.broadcast %cst_143 : f32 to vector<1x16xf32>
    %95 = arith.select %92, %93, %94 : vector<1x16xi1>, vector<1x16xf32>
    %96 = tpu.iota {dimensions = array<i32: 0>} : vector<16x1xi32>
    %c-3_i32 = arith.constant -3 : i32
    %97 = vector.broadcast %c-3_i32 : i32 to vector<16x1xi32>
    %98 = arith.addi %96, %97 : vector<16x1xi32>
    %c0_i32 = arith.constant 0 : i32
    %99 = vector.broadcast %c0_i32 : i32 to vector<16x1xi32>
    %100 = arith.cmpi sge, %98, %99 : vector<16x1xi32>
    %c-3_i32_144 = arith.constant -3 : i32
    %101 = vector.broadcast %c-3_i32_144 : i32 to vector<16x1xi32>
    %102 = arith.addi %96, %101 : vector<16x1xi32>
    %c15_i32 = arith.constant 15 : i32
    %103 = vector.broadcast %c15_i32 : i32 to vector<16x1xi32>
    %104 = arith.cmpi slt, %102, %103 : vector<16x1xi32>
    %105 = arith.andi %100, %104 : vector<16x1xi1>
    %106 = arith.extui %105 : vector<16x1xi1> to vector<16x1xi32>
    %107 = arith.sitofp %106 : vector<16x1xi32> to vector<16x1xf32>
    %c-2_i32 = arith.constant -2 : i32
    %108 = vector.broadcast %c-2_i32 : i32 to vector<16x1xi32>
    %109 = arith.addi %96, %108 : vector<16x1xi32>
    %c0_i32_145 = arith.constant 0 : i32
    %110 = vector.broadcast %c0_i32_145 : i32 to vector<16x1xi32>
    %111 = arith.cmpi sge, %109, %110 : vector<16x1xi32>
    %c-2_i32_146 = arith.constant -2 : i32
    %112 = vector.broadcast %c-2_i32_146 : i32 to vector<16x1xi32>
    %113 = arith.addi %96, %112 : vector<16x1xi32>
    %c15_i32_147 = arith.constant 15 : i32
    %114 = vector.broadcast %c15_i32_147 : i32 to vector<16x1xi32>
    %115 = arith.cmpi slt, %113, %114 : vector<16x1xi32>
    %116 = arith.andi %111, %115 : vector<16x1xi1>
    %117 = arith.extui %116 : vector<16x1xi1> to vector<16x1xi32>
    %118 = arith.sitofp %117 : vector<16x1xi32> to vector<16x1xf32>
    %c-1_i32 = arith.constant -1 : i32
    %119 = vector.broadcast %c-1_i32 : i32 to vector<16x1xi32>
    %120 = arith.addi %96, %119 : vector<16x1xi32>
    %c0_i32_148 = arith.constant 0 : i32
    %121 = vector.broadcast %c0_i32_148 : i32 to vector<16x1xi32>
    %122 = arith.cmpi sge, %120, %121 : vector<16x1xi32>
    %c-1_i32_149 = arith.constant -1 : i32
    %123 = vector.broadcast %c-1_i32_149 : i32 to vector<16x1xi32>
    %124 = arith.addi %96, %123 : vector<16x1xi32>
    %c15_i32_150 = arith.constant 15 : i32
    %125 = vector.broadcast %c15_i32_150 : i32 to vector<16x1xi32>
    %126 = arith.cmpi slt, %124, %125 : vector<16x1xi32>
    %127 = arith.andi %122, %126 : vector<16x1xi1>
    %128 = arith.extui %127 : vector<16x1xi1> to vector<16x1xi32>
    %129 = arith.sitofp %128 : vector<16x1xi32> to vector<16x1xf32>
    %c0_i32_151 = arith.constant 0 : i32
    %130 = vector.broadcast %c0_i32_151 : i32 to vector<16x1xi32>
    %131 = arith.addi %96, %130 : vector<16x1xi32>
    %c0_i32_152 = arith.constant 0 : i32
    %132 = vector.broadcast %c0_i32_152 : i32 to vector<16x1xi32>
    %133 = arith.cmpi sge, %131, %132 : vector<16x1xi32>
    %c0_i32_153 = arith.constant 0 : i32
    %134 = vector.broadcast %c0_i32_153 : i32 to vector<16x1xi32>
    %135 = arith.addi %96, %134 : vector<16x1xi32>
    %c15_i32_154 = arith.constant 15 : i32
    %136 = vector.broadcast %c15_i32_154 : i32 to vector<16x1xi32>
    %137 = arith.cmpi slt, %135, %136 : vector<16x1xi32>
    %138 = arith.andi %133, %137 : vector<16x1xi1>
    %139 = arith.extui %138 : vector<16x1xi1> to vector<16x1xi32>
    %140 = arith.sitofp %139 : vector<16x1xi32> to vector<16x1xf32>
    %c1_i32 = arith.constant 1 : i32
    %141 = vector.broadcast %c1_i32 : i32 to vector<16x1xi32>
    %142 = arith.addi %96, %141 : vector<16x1xi32>
    %c0_i32_155 = arith.constant 0 : i32
    %143 = vector.broadcast %c0_i32_155 : i32 to vector<16x1xi32>
    %144 = arith.cmpi sge, %142, %143 : vector<16x1xi32>
    %c1_i32_156 = arith.constant 1 : i32
    %145 = vector.broadcast %c1_i32_156 : i32 to vector<16x1xi32>
    %146 = arith.addi %96, %145 : vector<16x1xi32>
    %c15_i32_157 = arith.constant 15 : i32
    %147 = vector.broadcast %c15_i32_157 : i32 to vector<16x1xi32>
    %148 = arith.cmpi slt, %146, %147 : vector<16x1xi32>
    %149 = arith.andi %144, %148 : vector<16x1xi1>
    %150 = arith.extui %149 : vector<16x1xi1> to vector<16x1xi32>
    %151 = arith.sitofp %150 : vector<16x1xi32> to vector<16x1xf32>
    %c2_i32 = arith.constant 2 : i32
    %152 = vector.broadcast %c2_i32 : i32 to vector<16x1xi32>
    %153 = arith.addi %96, %152 : vector<16x1xi32>
    %c0_i32_158 = arith.constant 0 : i32
    %154 = vector.broadcast %c0_i32_158 : i32 to vector<16x1xi32>
    %155 = arith.cmpi sge, %153, %154 : vector<16x1xi32>
    %c2_i32_159 = arith.constant 2 : i32
    %156 = vector.broadcast %c2_i32_159 : i32 to vector<16x1xi32>
    %157 = arith.addi %96, %156 : vector<16x1xi32>
    %c15_i32_160 = arith.constant 15 : i32
    %158 = vector.broadcast %c15_i32_160 : i32 to vector<16x1xi32>
    %159 = arith.cmpi slt, %157, %158 : vector<16x1xi32>
    %160 = arith.andi %155, %159 : vector<16x1xi1>
    %161 = arith.extui %160 : vector<16x1xi1> to vector<16x1xi32>
    %162 = arith.sitofp %161 : vector<16x1xi32> to vector<16x1xf32>
    %c3_i32 = arith.constant 3 : i32
    %163 = vector.broadcast %c3_i32 : i32 to vector<16x1xi32>
    %164 = arith.addi %96, %163 : vector<16x1xi32>
    %c0_i32_161 = arith.constant 0 : i32
    %165 = vector.broadcast %c0_i32_161 : i32 to vector<16x1xi32>
    %166 = arith.cmpi sge, %164, %165 : vector<16x1xi32>
    %c3_i32_162 = arith.constant 3 : i32
    %167 = vector.broadcast %c3_i32_162 : i32 to vector<16x1xi32>
    %168 = arith.addi %96, %167 : vector<16x1xi32>
    %c15_i32_163 = arith.constant 15 : i32
    %169 = vector.broadcast %c15_i32_163 : i32 to vector<16x1xi32>
    %170 = arith.cmpi slt, %168, %169 : vector<16x1xi32>
    %171 = arith.andi %166, %170 : vector<16x1xi1>
    %172 = arith.extui %171 : vector<16x1xi1> to vector<16x1xi32>
    %173 = arith.sitofp %172 : vector<16x1xi32> to vector<16x1xf32>
    %cst_164 = arith.constant dense<0.000000e+00> : vector<16xf32>
    %174 = vector.multi_reduction <add>, %88, %cst_164 [1] : vector<16x32xf32> to vector<16xf32>
    %175 = vector.shape_cast %174 : vector<16xf32> to vector<16x1xf32>
    %cst_165 = arith.constant 3.200000e+01 : f32
    %176 = vector.broadcast %cst_165 : f32 to vector<16x1xf32>
    %177 = arith.divf %175, %176 : vector<16x1xf32>
    %178 = vector.broadcast %177 : vector<16x1xf32> to vector<16x32xf32>
    %179 = arith.subf %88, %178 : vector<16x32xf32>
    %180 = arith.mulf %179, %179 : vector<16x32xf32>
    %cst_166 = arith.constant dense<0.000000e+00> : vector<16xf32>
    %181 = vector.multi_reduction <add>, %180, %cst_166 [1] : vector<16x32xf32> to vector<16xf32>
    %182 = vector.shape_cast %181 : vector<16xf32> to vector<16x1xf32>
    %cst_167 = arith.constant 3.200000e+01 : f32
    %183 = vector.broadcast %cst_167 : f32 to vector<16x1xf32>
    %184 = arith.divf %182, %183 : vector<16x1xf32>
    %cst_168 = arith.constant 9.99999974E-6 : f32
    %185 = vector.broadcast %cst_168 : f32 to vector<16x1xf32>
    %186 = arith.addf %184, %185 : vector<16x1xf32>
    %187 = math.rsqrt %186 : vector<16x1xf32>
    %188 = vector.broadcast %187 : vector<16x1xf32> to vector<16x32xf32>
    %189 = arith.mulf %179, %188 : vector<16x32xf32>
    %190 = vector.broadcast %18 : vector<1x32xf32> to vector<16x32xf32>
    %191 = arith.mulf %189, %190 : vector<16x32xf32>
    %192 = vector.broadcast %17 : vector<1x32xf32> to vector<16x32xf32>
    %193 = arith.addf %191, %192 : vector<16x32xf32>
    %194 = arith.truncf %193 : vector<16x32xf32> to vector<16x32xbf16>
    %cst_169 = arith.constant dense<0.000000e+00> : vector<16x128xf32>
    %195 = tpu.matmul %194, %19, %cst_169 {dimension_numbers = #tpu.dot_dimension_numbers<[1], [0], [0], [1], [0, 0, 1, 1], [], []>} : vector<16x32xbf16>, vector<32x128xbf16>, vector<16x128xf32> -> vector<16x128xf32>
    %196 = vector.broadcast %15 : vector<1x128xf32> to vector<16x128xf32>
    %197 = arith.addf %195, %196 : vector<16x128xf32>
    %198 = arith.negf %197 : vector<16x128xf32>
    %199 = math.exp %198 : vector<16x128xf32>
    %cst_170 = arith.constant 1.000000e+00 : f32
    %200 = vector.broadcast %cst_170 : f32 to vector<16x128xf32>
    %201 = arith.addf %200, %199 : vector<16x128xf32>
    %202 = arith.divf %200, %201 : vector<16x128xf32>
    %203 = arith.mulf %197, %202 : vector<16x128xf32>
    %204 = arith.truncf %203 : vector<16x128xf32> to vector<16x128xbf16>
    %cst_171 = arith.constant dense<0.000000e+00> : vector<16x32xf32>
    %205 = tpu.matmul %204, %20, %cst_171 {dimension_numbers = #tpu.dot_dimension_numbers<[1], [0], [0], [1], [0, 0, 1, 1], [], []>} : vector<16x128xbf16>, vector<128x32xbf16>, vector<16x32xf32> -> vector<16x32xf32>
    %206 = vector.broadcast %16 : vector<1x32xf32> to vector<16x32xf32>
    %207 = arith.addf %205, %206 : vector<16x32xf32>
    %cst_172 = arith.constant 5.000000e-01 : f32
    %208 = vector.broadcast %cst_172 : f32 to vector<16x32xf32>
    %209 = arith.mulf %208, %207 : vector<16x32xf32>
    %210 = arith.addf %88, %209 : vector<16x32xf32>
    %cst_173 = arith.constant dense<0.000000e+00> : vector<16xf32>
    %211 = vector.multi_reduction <add>, %210, %cst_173 [1] : vector<16x32xf32> to vector<16xf32>
    %212 = vector.shape_cast %211 : vector<16xf32> to vector<16x1xf32>
    %cst_174 = arith.constant 3.200000e+01 : f32
    %213 = vector.broadcast %cst_174 : f32 to vector<16x1xf32>
    %214 = arith.divf %212, %213 : vector<16x1xf32>
    %215 = vector.broadcast %214 : vector<16x1xf32> to vector<16x32xf32>
    %216 = arith.subf %210, %215 : vector<16x32xf32>
    %217 = arith.mulf %216, %216 : vector<16x32xf32>
    %cst_175 = arith.constant dense<0.000000e+00> : vector<16xf32>
    %218 = vector.multi_reduction <add>, %217, %cst_175 [1] : vector<16x32xf32> to vector<16xf32>
    %219 = vector.shape_cast %218 : vector<16xf32> to vector<16x1xf32>
    %cst_176 = arith.constant 3.200000e+01 : f32
    %220 = vector.broadcast %cst_176 : f32 to vector<16x1xf32>
    %221 = arith.divf %219, %220 : vector<16x1xf32>
    %cst_177 = arith.constant 9.99999974E-6 : f32
    %222 = vector.broadcast %cst_177 : f32 to vector<16x1xf32>
    %223 = arith.addf %221, %222 : vector<16x1xf32>
    %224 = math.rsqrt %223 : vector<16x1xf32>
    %225 = vector.broadcast %224 : vector<16x1xf32> to vector<16x32xf32>
    %226 = arith.mulf %216, %225 : vector<16x32xf32>
    %227 = vector.broadcast %32 : vector<1x32xf32> to vector<16x32xf32>
    %228 = arith.mulf %226, %227 : vector<16x32xf32>
    %229 = vector.broadcast %31 : vector<1x32xf32> to vector<16x32xf32>
    %230 = arith.addf %228, %229 : vector<16x32xf32>
    %231 = arith.truncf %230 : vector<16x32xf32> to vector<16x32xbf16>
    %cst_178 = arith.constant dense<0.000000e+00> : vector<16x96xf32>
    %232 = tpu.matmul %231, %34, %cst_178 {dimension_numbers = #tpu.dot_dimension_numbers<[1], [0], [0], [1], [0, 0, 1, 1], [], []>} : vector<16x32xbf16>, vector<32x96xbf16>, vector<16x96xf32> -> vector<16x96xf32>
    %233 = vector.broadcast %30 : vector<1x96xf32> to vector<16x96xf32>
    %234 = arith.addf %232, %233 : vector<16x96xf32>
    %235 = vector.extract_strided_slice %234 {offsets = [0, 0], sizes = [16, 32], strides = [1, 1]} : vector<16x96xf32> to vector<16x32xf32>
    %236 = vector.extract_strided_slice %234 {offsets = [0, 32], sizes = [16, 32], strides = [1, 1]} : vector<16x96xf32> to vector<16x32xf32>
    %237 = vector.extract_strided_slice %234 {offsets = [0, 64], sizes = [16, 32], strides = [1, 1]} : vector<16x96xf32> to vector<16x32xf32>
    %238 = vector.extract_strided_slice %235 {offsets = [0, 0], sizes = [16, 8], strides = [1, 1]} : vector<16x32xf32> to vector<16x8xf32>
    %239 = vector.extract_strided_slice %235 {offsets = [0, 8], sizes = [16, 8], strides = [1, 1]} : vector<16x32xf32> to vector<16x8xf32>
    %240 = vector.extract_strided_slice %235 {offsets = [0, 16], sizes = [16, 8], strides = [1, 1]} : vector<16x32xf32> to vector<16x8xf32>
    %241 = vector.extract_strided_slice %235 {offsets = [0, 24], sizes = [16, 8], strides = [1, 1]} : vector<16x32xf32> to vector<16x8xf32>
    %242 = vector.shape_cast %238 : vector<16x8xf32> to vector<1x16x8xf32>
    %243 = vector.shape_cast %239 : vector<16x8xf32> to vector<1x16x8xf32>
    %244 = vector.shape_cast %240 : vector<16x8xf32> to vector<1x16x8xf32>
    %245 = vector.shape_cast %241 : vector<16x8xf32> to vector<1x16x8xf32>
    %246 = tpu.concatenate %242, %243, %244, %245 in 0 : vector<1x16x8xf32>, vector<1x16x8xf32>, vector<1x16x8xf32>, vector<1x16x8xf32> -> vector<4x16x8xf32>
    %247 = vector.extract_strided_slice %236 {offsets = [0, 0], sizes = [16, 8], strides = [1, 1]} : vector<16x32xf32> to vector<16x8xf32>
    %248 = vector.extract_strided_slice %236 {offsets = [0, 8], sizes = [16, 8], strides = [1, 1]} : vector<16x32xf32> to vector<16x8xf32>
    %249 = vector.extract_strided_slice %236 {offsets = [0, 16], sizes = [16, 8], strides = [1, 1]} : vector<16x32xf32> to vector<16x8xf32>
    %250 = vector.extract_strided_slice %236 {offsets = [0, 24], sizes = [16, 8], strides = [1, 1]} : vector<16x32xf32> to vector<16x8xf32>
    %251 = vector.shape_cast %247 : vector<16x8xf32> to vector<1x16x8xf32>
    %252 = vector.shape_cast %248 : vector<16x8xf32> to vector<1x16x8xf32>
    %253 = vector.shape_cast %249 : vector<16x8xf32> to vector<1x16x8xf32>
    %254 = vector.shape_cast %250 : vector<16x8xf32> to vector<1x16x8xf32>
    %255 = tpu.concatenate %251, %252, %253, %254 in 0 : vector<1x16x8xf32>, vector<1x16x8xf32>, vector<1x16x8xf32>, vector<1x16x8xf32> -> vector<4x16x8xf32>
    %256 = vector.extract_strided_slice %237 {offsets = [0, 0], sizes = [16, 8], strides = [1, 1]} : vector<16x32xf32> to vector<16x8xf32>
    %257 = vector.extract_strided_slice %237 {offsets = [0, 8], sizes = [16, 8], strides = [1, 1]} : vector<16x32xf32> to vector<16x8xf32>
    %258 = vector.extract_strided_slice %237 {offsets = [0, 16], sizes = [16, 8], strides = [1, 1]} : vector<16x32xf32> to vector<16x8xf32>
    %259 = vector.extract_strided_slice %237 {offsets = [0, 24], sizes = [16, 8], strides = [1, 1]} : vector<16x32xf32> to vector<16x8xf32>
    %260 = vector.shape_cast %256 : vector<16x8xf32> to vector<1x16x8xf32>
    %261 = vector.shape_cast %257 : vector<16x8xf32> to vector<1x16x8xf32>
    %262 = vector.shape_cast %258 : vector<16x8xf32> to vector<1x16x8xf32>
    %263 = vector.shape_cast %259 : vector<16x8xf32> to vector<1x16x8xf32>
    %264 = tpu.concatenate %260, %261, %262, %263 in 0 : vector<1x16x8xf32>, vector<1x16x8xf32>, vector<1x16x8xf32>, vector<1x16x8xf32> -> vector<4x16x8xf32>
    %265 = arith.truncf %246 : vector<4x16x8xf32> to vector<4x16x8xbf16>
    %266 = arith.truncf %255 : vector<4x16x8xf32> to vector<4x16x8xbf16>
    %cst_179 = arith.constant dense<0.000000e+00> : vector<4x16x16xf32>
    %267 = tpu.matmul %265, %266, %cst_179 {dimension_numbers = #tpu.dot_dimension_numbers<[2], [2], [1], [1], [0, 0, 0, 1, 1, 1], [0], [0]>} : vector<4x16x8xbf16>, vector<4x16x8xbf16>, vector<4x16x16xf32> -> vector<4x16x16xf32>
    %cst_180 = arith.constant 0.353553385 : f32
    %268 = vector.broadcast %cst_180 : f32 to vector<4x16x16xf32>
    %269 = arith.mulf %267, %268 : vector<4x16x16xf32>
    %270 = vector.shape_cast %95 : vector<1x16xf32> to vector<1x1x16xf32>
    %271 = vector.broadcast %270 : vector<1x1x16xf32> to vector<4x16x16xf32>
    %272 = arith.addf %269, %271 : vector<4x16x16xf32>
    %cst_181 = arith.constant dense<0xFF800000> : vector<4x16xf32>
    %273 = vector.multi_reduction <maximumf>, %272, %cst_181 [2] : vector<4x16x16xf32> to vector<4x16xf32>
    %274 = vector.shape_cast %273 : vector<4x16xf32> to vector<4x16x1xf32>
    %275 = vector.broadcast %274 : vector<4x16x1xf32> to vector<4x16x16xf32>
    %276 = arith.subf %272, %275 : vector<4x16x16xf32>
    %277 = math.exp %276 : vector<4x16x16xf32>
    %cst_182 = arith.constant dense<0.000000e+00> : vector<4x16xf32>
    %278 = vector.multi_reduction <add>, %277, %cst_182 [2] : vector<4x16x16xf32> to vector<4x16xf32>
    %279 = vector.shape_cast %278 : vector<4x16xf32> to vector<4x16x1xf32>
    %280 = tpu.reciprocal %279 {approx = true} : vector<4x16x1xf32> -> vector<4x16x1xf32>
    %281 = vector.broadcast %280 : vector<4x16x1xf32> to vector<4x16x16xf32>
    %282 = arith.mulf %277, %281 : vector<4x16x16xf32>
    %283 = arith.truncf %282 : vector<4x16x16xf32> to vector<4x16x16xbf16>
    %284 = arith.truncf %264 : vector<4x16x8xf32> to vector<4x16x8xbf16>
    %cst_183 = arith.constant dense<0.000000e+00> : vector<4x16x8xf32>
    %285 = tpu.matmul %283, %284, %cst_183 {dimension_numbers = #tpu.dot_dimension_numbers<[2], [1], [1], [2], [0, 0, 0, 1, 1, 2], [0], [0]>} : vector<4x16x16xbf16>, vector<4x16x8xbf16>, vector<4x16x8xf32> -> vector<4x16x8xf32>
    %286 = vector.extract_strided_slice %285 {offsets = [0, 0, 0], sizes = [1, 16, 8], strides = [1, 1, 1]} : vector<4x16x8xf32> to vector<1x16x8xf32>
    %287 = vector.shape_cast %286 : vector<1x16x8xf32> to vector<16x8xf32>
    %288 = vector.extract_strided_slice %285 {offsets = [1, 0, 0], sizes = [1, 16, 8], strides = [1, 1, 1]} : vector<4x16x8xf32> to vector<1x16x8xf32>
    %289 = vector.shape_cast %288 : vector<1x16x8xf32> to vector<16x8xf32>
    %290 = vector.extract_strided_slice %285 {offsets = [2, 0, 0], sizes = [1, 16, 8], strides = [1, 1, 1]} : vector<4x16x8xf32> to vector<1x16x8xf32>
    %291 = vector.shape_cast %290 : vector<1x16x8xf32> to vector<16x8xf32>
    %292 = vector.extract_strided_slice %285 {offsets = [3, 0, 0], sizes = [1, 16, 8], strides = [1, 1, 1]} : vector<4x16x8xf32> to vector<1x16x8xf32>
    %293 = vector.shape_cast %292 : vector<1x16x8xf32> to vector<16x8xf32>
    %294 = tpu.concatenate %287, %289, %291, %293 in 1 : vector<16x8xf32>, vector<16x8xf32>, vector<16x8xf32>, vector<16x8xf32> -> vector<16x32xf32>
    %295 = arith.truncf %294 : vector<16x32xf32> to vector<16x32xbf16>
    %cst_184 = arith.constant dense<0.000000e+00> : vector<16x32xf32>
    %296 = tpu.matmul %295, %33, %cst_184 {dimension_numbers = #tpu.dot_dimension_numbers<[1], [0], [0], [1], [0, 0, 1, 1], [], []>} : vector<16x32xbf16>, vector<32x32xbf16>, vector<16x32xf32> -> vector<16x32xf32>
    %297 = arith.addf %210, %296 : vector<16x32xf32>
    %298 = vector.broadcast %29 : vector<1x32xf32> to vector<16x32xf32>
    %299 = arith.addf %297, %298 : vector<16x32xf32>
    %cst_185 = arith.constant dense<0.000000e+00> : vector<16xf32>
    %300 = vector.multi_reduction <add>, %299, %cst_185 [1] : vector<16x32xf32> to vector<16xf32>
    %301 = vector.shape_cast %300 : vector<16xf32> to vector<16x1xf32>
    %cst_186 = arith.constant 3.200000e+01 : f32
    %302 = vector.broadcast %cst_186 : f32 to vector<16x1xf32>
    %303 = arith.divf %301, %302 : vector<16x1xf32>
    %304 = vector.broadcast %303 : vector<16x1xf32> to vector<16x32xf32>
    %305 = arith.subf %299, %304 : vector<16x32xf32>
    %306 = arith.mulf %305, %305 : vector<16x32xf32>
    %cst_187 = arith.constant dense<0.000000e+00> : vector<16xf32>
    %307 = vector.multi_reduction <add>, %306, %cst_187 [1] : vector<16x32xf32> to vector<16xf32>
    %308 = vector.shape_cast %307 : vector<16xf32> to vector<16x1xf32>
    %cst_188 = arith.constant 3.200000e+01 : f32
    %309 = vector.broadcast %cst_188 : f32 to vector<16x1xf32>
    %310 = arith.divf %308, %309 : vector<16x1xf32>
    %cst_189 = arith.constant 9.99999974E-6 : f32
    %311 = vector.broadcast %cst_189 : f32 to vector<16x1xf32>
    %312 = arith.addf %310, %311 : vector<16x1xf32>
    %313 = math.rsqrt %312 : vector<16x1xf32>
    %314 = vector.broadcast %313 : vector<16x1xf32> to vector<16x32xf32>
    %315 = arith.mulf %305, %314 : vector<16x32xf32>
    %316 = vector.broadcast %10 : vector<1x32xf32> to vector<16x32xf32>
    %317 = arith.mulf %315, %316 : vector<16x32xf32>
    %318 = vector.broadcast %9 : vector<1x32xf32> to vector<16x32xf32>
    %319 = arith.addf %317, %318 : vector<16x32xf32>
    %320 = arith.truncf %319 : vector<16x32xf32> to vector<16x32xbf16>
    %cst_190 = arith.constant dense<0.000000e+00> : vector<16x64xf32>
    %321 = tpu.matmul %320, %12, %cst_190 {dimension_numbers = #tpu.dot_dimension_numbers<[1], [0], [0], [1], [0, 0, 1, 1], [], []>} : vector<16x32xbf16>, vector<32x64xbf16>, vector<16x64xf32> -> vector<16x64xf32>
    %322 = vector.broadcast %11 : vector<1x64xf32> to vector<16x64xf32>
    %323 = arith.addf %321, %322 : vector<16x64xf32>
    %324 = vector.extract_strided_slice %323 {offsets = [0, 0], sizes = [16, 32], strides = [1, 1]} : vector<16x64xf32> to vector<16x32xf32>
    %325 = vector.extract_strided_slice %323 {offsets = [0, 32], sizes = [16, 32], strides = [1, 1]} : vector<16x64xf32> to vector<16x32xf32>
    %326 = arith.negf %325 : vector<16x32xf32>
    %327 = math.exp %326 : vector<16x32xf32>
    %cst_191 = arith.constant 1.000000e+00 : f32
    %328 = vector.broadcast %cst_191 : f32 to vector<16x32xf32>
    %329 = arith.addf %328, %327 : vector<16x32xf32>
    %330 = arith.divf %328, %329 : vector<16x32xf32>
    %331 = arith.mulf %324, %330 : vector<16x32xf32>
    %cst_192 = arith.constant 0.000000e+00 : f32
    %332 = vector.broadcast %cst_192 : f32 to vector<16x32xf32>
    %c3_i32_193 = arith.constant 3 : i32
    %333 = tpu.dynamic_rotate %331 by %c3_i32_193 dim 0 : vector<16x32xf32>, i32 -> vector<16x32xf32>
    %334 = vector.broadcast %107 : vector<16x1xf32> to vector<16x32xf32>
    %335 = arith.mulf %333, %334 : vector<16x32xf32>
    %336 = vector.extract_strided_slice %8 {offsets = [0, 0], sizes = [1, 32], strides = [1, 1]} : vector<7x32xf32> to vector<1x32xf32>
    %337 = vector.broadcast %336 : vector<1x32xf32> to vector<16x32xf32>
    %338 = arith.mulf %335, %337 : vector<16x32xf32>
    %339 = arith.addf %332, %338 : vector<16x32xf32>
    %c2_i32_194 = arith.constant 2 : i32
    %340 = tpu.dynamic_rotate %331 by %c2_i32_194 dim 0 : vector<16x32xf32>, i32 -> vector<16x32xf32>
    %341 = vector.broadcast %118 : vector<16x1xf32> to vector<16x32xf32>
    %342 = arith.mulf %340, %341 : vector<16x32xf32>
    %343 = vector.extract_strided_slice %8 {offsets = [1, 0], sizes = [1, 32], strides = [1, 1]} : vector<7x32xf32> to vector<1x32xf32>
    %344 = vector.broadcast %343 : vector<1x32xf32> to vector<16x32xf32>
    %345 = arith.mulf %342, %344 : vector<16x32xf32>
    %346 = arith.addf %339, %345 : vector<16x32xf32>
    %c1_i32_195 = arith.constant 1 : i32
    %347 = tpu.dynamic_rotate %331 by %c1_i32_195 dim 0 : vector<16x32xf32>, i32 -> vector<16x32xf32>
    %348 = vector.broadcast %129 : vector<16x1xf32> to vector<16x32xf32>
    %349 = arith.mulf %347, %348 : vector<16x32xf32>
    %350 = vector.extract_strided_slice %8 {offsets = [2, 0], sizes = [1, 32], strides = [1, 1]} : vector<7x32xf32> to vector<1x32xf32>
    %351 = vector.broadcast %350 : vector<1x32xf32> to vector<16x32xf32>
    %352 = arith.mulf %349, %351 : vector<16x32xf32>
    %353 = arith.addf %346, %352 : vector<16x32xf32>
    %354 = vector.broadcast %140 : vector<16x1xf32> to vector<16x32xf32>
    %355 = arith.mulf %331, %354 : vector<16x32xf32>
    %356 = vector.extract_strided_slice %8 {offsets = [3, 0], sizes = [1, 32], strides = [1, 1]} : vector<7x32xf32> to vector<1x32xf32>
    %357 = vector.broadcast %356 : vector<1x32xf32> to vector<16x32xf32>
    %358 = arith.mulf %355, %357 : vector<16x32xf32>
    %359 = arith.addf %353, %358 : vector<16x32xf32>
    %c15_i32_196 = arith.constant 15 : i32
    %360 = tpu.dynamic_rotate %331 by %c15_i32_196 dim 0 : vector<16x32xf32>, i32 -> vector<16x32xf32>
    %361 = vector.broadcast %151 : vector<16x1xf32> to vector<16x32xf32>
    %362 = arith.mulf %360, %361 : vector<16x32xf32>
    %363 = vector.extract_strided_slice %8 {offsets = [4, 0], sizes = [1, 32], strides = [1, 1]} : vector<7x32xf32> to vector<1x32xf32>
    %364 = vector.broadcast %363 : vector<1x32xf32> to vector<16x32xf32>
    %365 = arith.mulf %362, %364 : vector<16x32xf32>
    %366 = arith.addf %359, %365 : vector<16x32xf32>
    %c14_i32 = arith.constant 14 : i32
    %367 = tpu.dynamic_rotate %331 by %c14_i32 dim 0 : vector<16x32xf32>, i32 -> vector<16x32xf32>
    %368 = vector.broadcast %162 : vector<16x1xf32> to vector<16x32xf32>
    %369 = arith.mulf %367, %368 : vector<16x32xf32>
    %370 = vector.extract_strided_slice %8 {offsets = [5, 0], sizes = [1, 32], strides = [1, 1]} : vector<7x32xf32> to vector<1x32xf32>
    %371 = vector.broadcast %370 : vector<1x32xf32> to vector<16x32xf32>
    %372 = arith.mulf %369, %371 : vector<16x32xf32>
    %373 = arith.addf %366, %372 : vector<16x32xf32>
    %c13_i32 = arith.constant 13 : i32
    %374 = tpu.dynamic_rotate %331 by %c13_i32 dim 0 : vector<16x32xf32>, i32 -> vector<16x32xf32>
    %375 = vector.broadcast %173 : vector<16x1xf32> to vector<16x32xf32>
    %376 = arith.mulf %374, %375 : vector<16x32xf32>
    %377 = vector.extract_strided_slice %8 {offsets = [6, 0], sizes = [1, 32], strides = [1, 1]} : vector<7x32xf32> to vector<1x32xf32>
    %378 = vector.broadcast %377 : vector<1x32xf32> to vector<16x32xf32>
    %379 = arith.mulf %376, %378 : vector<16x32xf32>
    %380 = arith.addf %373, %379 : vector<16x32xf32>
    %381 = vector.broadcast %7 : vector<1x32xf32> to vector<16x32xf32>
    %382 = arith.addf %380, %381 : vector<16x32xf32>
    %383 = vector.broadcast %5 : vector<1x32xf32> to vector<16x32xf32>
    %384 = arith.mulf %382, %383 : vector<16x32xf32>
    %385 = vector.broadcast %6 : vector<1x32xf32> to vector<16x32xf32>
    %386 = arith.addf %384, %385 : vector<16x32xf32>
    %387 = arith.negf %386 : vector<16x32xf32>
    %388 = math.exp %387 : vector<16x32xf32>
    %cst_197 = arith.constant 1.000000e+00 : f32
    %389 = vector.broadcast %cst_197 : f32 to vector<16x32xf32>
    %390 = arith.addf %389, %388 : vector<16x32xf32>
    %391 = arith.divf %389, %390 : vector<16x32xf32>
    %392 = arith.mulf %386, %391 : vector<16x32xf32>
    %393 = arith.truncf %392 : vector<16x32xf32> to vector<16x32xbf16>
    %cst_198 = arith.constant dense<0.000000e+00> : vector<16x32xf32>
    %394 = tpu.matmul %393, %14, %cst_198 {dimension_numbers = #tpu.dot_dimension_numbers<[1], [0], [0], [1], [0, 0, 1, 1], [], []>} : vector<16x32xbf16>, vector<32x32xbf16>, vector<16x32xf32> -> vector<16x32xf32>
    %395 = vector.broadcast %13 : vector<1x32xf32> to vector<16x32xf32>
    %396 = arith.addf %394, %395 : vector<16x32xf32>
    %397 = arith.addf %299, %396 : vector<16x32xf32>
    %cst_199 = arith.constant dense<0.000000e+00> : vector<16xf32>
    %398 = vector.multi_reduction <add>, %397, %cst_199 [1] : vector<16x32xf32> to vector<16xf32>
    %399 = vector.shape_cast %398 : vector<16xf32> to vector<16x1xf32>
    %cst_200 = arith.constant 3.200000e+01 : f32
    %400 = vector.broadcast %cst_200 : f32 to vector<16x1xf32>
    %401 = arith.divf %399, %400 : vector<16x1xf32>
    %402 = vector.broadcast %401 : vector<16x1xf32> to vector<16x32xf32>
    %403 = arith.subf %397, %402 : vector<16x32xf32>
    %404 = arith.mulf %403, %403 : vector<16x32xf32>
    %cst_201 = arith.constant dense<0.000000e+00> : vector<16xf32>
    %405 = vector.multi_reduction <add>, %404, %cst_201 [1] : vector<16x32xf32> to vector<16xf32>
    %406 = vector.shape_cast %405 : vector<16xf32> to vector<16x1xf32>
    %cst_202 = arith.constant 3.200000e+01 : f32
    %407 = vector.broadcast %cst_202 : f32 to vector<16x1xf32>
    %408 = arith.divf %406, %407 : vector<16x1xf32>
    %cst_203 = arith.constant 9.99999974E-6 : f32
    %409 = vector.broadcast %cst_203 : f32 to vector<16x1xf32>
    %410 = arith.addf %408, %409 : vector<16x1xf32>
    %411 = math.rsqrt %410 : vector<16x1xf32>
    %412 = vector.broadcast %411 : vector<16x1xf32> to vector<16x32xf32>
    %413 = arith.mulf %403, %412 : vector<16x32xf32>
    %414 = vector.broadcast %24 : vector<1x32xf32> to vector<16x32xf32>
    %415 = arith.mulf %413, %414 : vector<16x32xf32>
    %416 = vector.broadcast %23 : vector<1x32xf32> to vector<16x32xf32>
    %417 = arith.addf %415, %416 : vector<16x32xf32>
    %418 = arith.truncf %417 : vector<16x32xf32> to vector<16x32xbf16>
    %cst_204 = arith.constant dense<0.000000e+00> : vector<16x128xf32>
    %419 = tpu.matmul %418, %25, %cst_204 {dimension_numbers = #tpu.dot_dimension_numbers<[1], [0], [0], [1], [0, 0, 1, 1], [], []>} : vector<16x32xbf16>, vector<32x128xbf16>, vector<16x128xf32> -> vector<16x128xf32>
    %420 = vector.broadcast %21 : vector<1x128xf32> to vector<16x128xf32>
    %421 = arith.addf %419, %420 : vector<16x128xf32>
    %422 = arith.negf %421 : vector<16x128xf32>
    %423 = math.exp %422 : vector<16x128xf32>
    %cst_205 = arith.constant 1.000000e+00 : f32
    %424 = vector.broadcast %cst_205 : f32 to vector<16x128xf32>
    %425 = arith.addf %424, %423 : vector<16x128xf32>
    %426 = arith.divf %424, %425 : vector<16x128xf32>
    %427 = arith.mulf %421, %426 : vector<16x128xf32>
    %428 = arith.truncf %427 : vector<16x128xf32> to vector<16x128xbf16>
    %cst_206 = arith.constant dense<0.000000e+00> : vector<16x32xf32>
    %429 = tpu.matmul %428, %26, %cst_206 {dimension_numbers = #tpu.dot_dimension_numbers<[1], [0], [0], [1], [0, 0, 1, 1], [], []>} : vector<16x128xbf16>, vector<128x32xbf16>, vector<16x32xf32> -> vector<16x32xf32>
    %430 = vector.broadcast %22 : vector<1x32xf32> to vector<16x32xf32>
    %431 = arith.addf %429, %430 : vector<16x32xf32>
    %cst_207 = arith.constant 5.000000e-01 : f32
    %432 = vector.broadcast %cst_207 : f32 to vector<16x32xf32>
    %433 = arith.mulf %432, %431 : vector<16x32xf32>
    %434 = arith.addf %397, %433 : vector<16x32xf32>
    %cst_208 = arith.constant dense<0.000000e+00> : vector<16xf32>
    %435 = vector.multi_reduction <add>, %434, %cst_208 [1] : vector<16x32xf32> to vector<16xf32>
    %436 = vector.shape_cast %435 : vector<16xf32> to vector<16x1xf32>
    %cst_209 = arith.constant 3.200000e+01 : f32
    %437 = vector.broadcast %cst_209 : f32 to vector<16x1xf32>
    %438 = arith.divf %436, %437 : vector<16x1xf32>
    %439 = vector.broadcast %438 : vector<16x1xf32> to vector<16x32xf32>
    %440 = arith.subf %434, %439 : vector<16x32xf32>
    %441 = arith.mulf %440, %440 : vector<16x32xf32>
    %cst_210 = arith.constant dense<0.000000e+00> : vector<16xf32>
    %442 = vector.multi_reduction <add>, %441, %cst_210 [1] : vector<16x32xf32> to vector<16xf32>
    %443 = vector.shape_cast %442 : vector<16xf32> to vector<16x1xf32>
    %cst_211 = arith.constant 3.200000e+01 : f32
    %444 = vector.broadcast %cst_211 : f32 to vector<16x1xf32>
    %445 = arith.divf %443, %444 : vector<16x1xf32>
    %cst_212 = arith.constant 9.99999974E-6 : f32
    %446 = vector.broadcast %cst_212 : f32 to vector<16x1xf32>
    %447 = arith.addf %445, %446 : vector<16x1xf32>
    %448 = math.rsqrt %447 : vector<16x1xf32>
    %449 = vector.broadcast %448 : vector<16x1xf32> to vector<16x32xf32>
    %450 = arith.mulf %440, %449 : vector<16x32xf32>
    %451 = vector.broadcast %28 : vector<1x32xf32> to vector<16x32xf32>
    %452 = arith.mulf %450, %451 : vector<16x32xf32>
    %453 = vector.broadcast %27 : vector<1x32xf32> to vector<16x32xf32>
    %454 = arith.addf %452, %453 : vector<16x32xf32>
    %cst_213 = arith.constant dense<0.000000e+00> : vector<16xf32>
    %455 = vector.multi_reduction <add>, %454, %cst_213 [1] : vector<16x32xf32> to vector<16xf32>
    %456 = vector.shape_cast %455 : vector<16xf32> to vector<16x1xf32>
    %cst_214 = arith.constant 3.200000e+01 : f32
    %457 = vector.broadcast %cst_214 : f32 to vector<16x1xf32>
    %458 = arith.divf %456, %457 : vector<16x1xf32>
    %459 = vector.broadcast %458 : vector<16x1xf32> to vector<16x32xf32>
    %460 = arith.subf %454, %459 : vector<16x32xf32>
    %461 = arith.mulf %460, %460 : vector<16x32xf32>
    %cst_215 = arith.constant dense<0.000000e+00> : vector<16xf32>
    %462 = vector.multi_reduction <add>, %461, %cst_215 [1] : vector<16x32xf32> to vector<16xf32>
    %463 = vector.shape_cast %462 : vector<16xf32> to vector<16x1xf32>
    %cst_216 = arith.constant 3.200000e+01 : f32
    %464 = vector.broadcast %cst_216 : f32 to vector<16x1xf32>
    %465 = arith.divf %463, %464 : vector<16x1xf32>
    %cst_217 = arith.constant 9.99999974E-6 : f32
    %466 = vector.broadcast %cst_217 : f32 to vector<16x1xf32>
    %467 = arith.addf %465, %466 : vector<16x1xf32>
    %468 = math.rsqrt %467 : vector<16x1xf32>
    %469 = vector.broadcast %468 : vector<16x1xf32> to vector<16x32xf32>
    %470 = arith.mulf %460, %469 : vector<16x32xf32>
    %471 = vector.broadcast %48 : vector<1x32xf32> to vector<16x32xf32>
    %472 = arith.mulf %470, %471 : vector<16x32xf32>
    %473 = vector.broadcast %47 : vector<1x32xf32> to vector<16x32xf32>
    %474 = arith.addf %472, %473 : vector<16x32xf32>
    %475 = arith.truncf %474 : vector<16x32xf32> to vector<16x32xbf16>
    %cst_218 = arith.constant dense<0.000000e+00> : vector<16x128xf32>
    %476 = tpu.matmul %475, %49, %cst_218 {dimension_numbers = #tpu.dot_dimension_numbers<[1], [0], [0], [1], [0, 0, 1, 1], [], []>} : vector<16x32xbf16>, vector<32x128xbf16>, vector<16x128xf32> -> vector<16x128xf32>
    %477 = vector.broadcast %45 : vector<1x128xf32> to vector<16x128xf32>
    %478 = arith.addf %476, %477 : vector<16x128xf32>
    %479 = arith.negf %478 : vector<16x128xf32>
    %480 = math.exp %479 : vector<16x128xf32>
    %cst_219 = arith.constant 1.000000e+00 : f32
    %481 = vector.broadcast %cst_219 : f32 to vector<16x128xf32>
    %482 = arith.addf %481, %480 : vector<16x128xf32>
    %483 = arith.divf %481, %482 : vector<16x128xf32>
    %484 = arith.mulf %478, %483 : vector<16x128xf32>
    %485 = arith.truncf %484 : vector<16x128xf32> to vector<16x128xbf16>
    %cst_220 = arith.constant dense<0.000000e+00> : vector<16x32xf32>
    %486 = tpu.matmul %485, %50, %cst_220 {dimension_numbers = #tpu.dot_dimension_numbers<[1], [0], [0], [1], [0, 0, 1, 1], [], []>} : vector<16x128xbf16>, vector<128x32xbf16>, vector<16x32xf32> -> vector<16x32xf32>
    %487 = vector.broadcast %46 : vector<1x32xf32> to vector<16x32xf32>
    %488 = arith.addf %486, %487 : vector<16x32xf32>
    %cst_221 = arith.constant 5.000000e-01 : f32
    %489 = vector.broadcast %cst_221 : f32 to vector<16x32xf32>
    %490 = arith.mulf %489, %488 : vector<16x32xf32>
    %491 = arith.addf %454, %490 : vector<16x32xf32>
    %cst_222 = arith.constant dense<0.000000e+00> : vector<16xf32>
    %492 = vector.multi_reduction <add>, %491, %cst_222 [1] : vector<16x32xf32> to vector<16xf32>
    %493 = vector.shape_cast %492 : vector<16xf32> to vector<16x1xf32>
    %cst_223 = arith.constant 3.200000e+01 : f32
    %494 = vector.broadcast %cst_223 : f32 to vector<16x1xf32>
    %495 = arith.divf %493, %494 : vector<16x1xf32>
    %496 = vector.broadcast %495 : vector<16x1xf32> to vector<16x32xf32>
    %497 = arith.subf %491, %496 : vector<16x32xf32>
    %498 = arith.mulf %497, %497 : vector<16x32xf32>
    %cst_224 = arith.constant dense<0.000000e+00> : vector<16xf32>
    %499 = vector.multi_reduction <add>, %498, %cst_224 [1] : vector<16x32xf32> to vector<16xf32>
    %500 = vector.shape_cast %499 : vector<16xf32> to vector<16x1xf32>
    %cst_225 = arith.constant 3.200000e+01 : f32
    %501 = vector.broadcast %cst_225 : f32 to vector<16x1xf32>
    %502 = arith.divf %500, %501 : vector<16x1xf32>
    %cst_226 = arith.constant 9.99999974E-6 : f32
    %503 = vector.broadcast %cst_226 : f32 to vector<16x1xf32>
    %504 = arith.addf %502, %503 : vector<16x1xf32>
    %505 = math.rsqrt %504 : vector<16x1xf32>
    %506 = vector.broadcast %505 : vector<16x1xf32> to vector<16x32xf32>
    %507 = arith.mulf %497, %506 : vector<16x32xf32>
    %508 = vector.broadcast %62 : vector<1x32xf32> to vector<16x32xf32>
    %509 = arith.mulf %507, %508 : vector<16x32xf32>
    %510 = vector.broadcast %61 : vector<1x32xf32> to vector<16x32xf32>
    %511 = arith.addf %509, %510 : vector<16x32xf32>
    %512 = arith.truncf %511 : vector<16x32xf32> to vector<16x32xbf16>
    %cst_227 = arith.constant dense<0.000000e+00> : vector<16x96xf32>
    %513 = tpu.matmul %512, %64, %cst_227 {dimension_numbers = #tpu.dot_dimension_numbers<[1], [0], [0], [1], [0, 0, 1, 1], [], []>} : vector<16x32xbf16>, vector<32x96xbf16>, vector<16x96xf32> -> vector<16x96xf32>
    %514 = vector.broadcast %60 : vector<1x96xf32> to vector<16x96xf32>
    %515 = arith.addf %513, %514 : vector<16x96xf32>
    %516 = vector.extract_strided_slice %515 {offsets = [0, 0], sizes = [16, 32], strides = [1, 1]} : vector<16x96xf32> to vector<16x32xf32>
    %517 = vector.extract_strided_slice %515 {offsets = [0, 32], sizes = [16, 32], strides = [1, 1]} : vector<16x96xf32> to vector<16x32xf32>
    %518 = vector.extract_strided_slice %515 {offsets = [0, 64], sizes = [16, 32], strides = [1, 1]} : vector<16x96xf32> to vector<16x32xf32>
    %519 = vector.extract_strided_slice %516 {offsets = [0, 0], sizes = [16, 8], strides = [1, 1]} : vector<16x32xf32> to vector<16x8xf32>
    %520 = vector.extract_strided_slice %516 {offsets = [0, 8], sizes = [16, 8], strides = [1, 1]} : vector<16x32xf32> to vector<16x8xf32>
    %521 = vector.extract_strided_slice %516 {offsets = [0, 16], sizes = [16, 8], strides = [1, 1]} : vector<16x32xf32> to vector<16x8xf32>
    %522 = vector.extract_strided_slice %516 {offsets = [0, 24], sizes = [16, 8], strides = [1, 1]} : vector<16x32xf32> to vector<16x8xf32>
    %523 = vector.shape_cast %519 : vector<16x8xf32> to vector<1x16x8xf32>
    %524 = vector.shape_cast %520 : vector<16x8xf32> to vector<1x16x8xf32>
    %525 = vector.shape_cast %521 : vector<16x8xf32> to vector<1x16x8xf32>
    %526 = vector.shape_cast %522 : vector<16x8xf32> to vector<1x16x8xf32>
    %527 = tpu.concatenate %523, %524, %525, %526 in 0 : vector<1x16x8xf32>, vector<1x16x8xf32>, vector<1x16x8xf32>, vector<1x16x8xf32> -> vector<4x16x8xf32>
    %528 = vector.extract_strided_slice %517 {offsets = [0, 0], sizes = [16, 8], strides = [1, 1]} : vector<16x32xf32> to vector<16x8xf32>
    %529 = vector.extract_strided_slice %517 {offsets = [0, 8], sizes = [16, 8], strides = [1, 1]} : vector<16x32xf32> to vector<16x8xf32>
    %530 = vector.extract_strided_slice %517 {offsets = [0, 16], sizes = [16, 8], strides = [1, 1]} : vector<16x32xf32> to vector<16x8xf32>
    %531 = vector.extract_strided_slice %517 {offsets = [0, 24], sizes = [16, 8], strides = [1, 1]} : vector<16x32xf32> to vector<16x8xf32>
    %532 = vector.shape_cast %528 : vector<16x8xf32> to vector<1x16x8xf32>
    %533 = vector.shape_cast %529 : vector<16x8xf32> to vector<1x16x8xf32>
    %534 = vector.shape_cast %530 : vector<16x8xf32> to vector<1x16x8xf32>
    %535 = vector.shape_cast %531 : vector<16x8xf32> to vector<1x16x8xf32>
    %536 = tpu.concatenate %532, %533, %534, %535 in 0 : vector<1x16x8xf32>, vector<1x16x8xf32>, vector<1x16x8xf32>, vector<1x16x8xf32> -> vector<4x16x8xf32>
    %537 = vector.extract_strided_slice %518 {offsets = [0, 0], sizes = [16, 8], strides = [1, 1]} : vector<16x32xf32> to vector<16x8xf32>
    %538 = vector.extract_strided_slice %518 {offsets = [0, 8], sizes = [16, 8], strides = [1, 1]} : vector<16x32xf32> to vector<16x8xf32>
    %539 = vector.extract_strided_slice %518 {offsets = [0, 16], sizes = [16, 8], strides = [1, 1]} : vector<16x32xf32> to vector<16x8xf32>
    %540 = vector.extract_strided_slice %518 {offsets = [0, 24], sizes = [16, 8], strides = [1, 1]} : vector<16x32xf32> to vector<16x8xf32>
    %541 = vector.shape_cast %537 : vector<16x8xf32> to vector<1x16x8xf32>
    %542 = vector.shape_cast %538 : vector<16x8xf32> to vector<1x16x8xf32>
    %543 = vector.shape_cast %539 : vector<16x8xf32> to vector<1x16x8xf32>
    %544 = vector.shape_cast %540 : vector<16x8xf32> to vector<1x16x8xf32>
    %545 = tpu.concatenate %541, %542, %543, %544 in 0 : vector<1x16x8xf32>, vector<1x16x8xf32>, vector<1x16x8xf32>, vector<1x16x8xf32> -> vector<4x16x8xf32>
    %546 = arith.truncf %527 : vector<4x16x8xf32> to vector<4x16x8xbf16>
    %547 = arith.truncf %536 : vector<4x16x8xf32> to vector<4x16x8xbf16>
    %cst_228 = arith.constant dense<0.000000e+00> : vector<4x16x16xf32>
    %548 = tpu.matmul %546, %547, %cst_228 {dimension_numbers = #tpu.dot_dimension_numbers<[2], [2], [1], [1], [0, 0, 0, 1, 1, 1], [0], [0]>} : vector<4x16x8xbf16>, vector<4x16x8xbf16>, vector<4x16x16xf32> -> vector<4x16x16xf32>
    %cst_229 = arith.constant 0.353553385 : f32
    %549 = vector.broadcast %cst_229 : f32 to vector<4x16x16xf32>
    %550 = arith.mulf %548, %549 : vector<4x16x16xf32>
    %551 = vector.shape_cast %95 : vector<1x16xf32> to vector<1x1x16xf32>
    %552 = vector.broadcast %551 : vector<1x1x16xf32> to vector<4x16x16xf32>
    %553 = arith.addf %550, %552 : vector<4x16x16xf32>
    %cst_230 = arith.constant dense<0xFF800000> : vector<4x16xf32>
    %554 = vector.multi_reduction <maximumf>, %553, %cst_230 [2] : vector<4x16x16xf32> to vector<4x16xf32>
    %555 = vector.shape_cast %554 : vector<4x16xf32> to vector<4x16x1xf32>
    %556 = vector.broadcast %555 : vector<4x16x1xf32> to vector<4x16x16xf32>
    %557 = arith.subf %553, %556 : vector<4x16x16xf32>
    %558 = math.exp %557 : vector<4x16x16xf32>
    %cst_231 = arith.constant dense<0.000000e+00> : vector<4x16xf32>
    %559 = vector.multi_reduction <add>, %558, %cst_231 [2] : vector<4x16x16xf32> to vector<4x16xf32>
    %560 = vector.shape_cast %559 : vector<4x16xf32> to vector<4x16x1xf32>
    %561 = tpu.reciprocal %560 {approx = true} : vector<4x16x1xf32> -> vector<4x16x1xf32>
    %562 = vector.broadcast %561 : vector<4x16x1xf32> to vector<4x16x16xf32>
    %563 = arith.mulf %558, %562 : vector<4x16x16xf32>
    %564 = arith.truncf %563 : vector<4x16x16xf32> to vector<4x16x16xbf16>
    %565 = arith.truncf %545 : vector<4x16x8xf32> to vector<4x16x8xbf16>
    %cst_232 = arith.constant dense<0.000000e+00> : vector<4x16x8xf32>
    %566 = tpu.matmul %564, %565, %cst_232 {dimension_numbers = #tpu.dot_dimension_numbers<[2], [1], [1], [2], [0, 0, 0, 1, 1, 2], [0], [0]>} : vector<4x16x16xbf16>, vector<4x16x8xbf16>, vector<4x16x8xf32> -> vector<4x16x8xf32>
    %567 = vector.extract_strided_slice %566 {offsets = [0, 0, 0], sizes = [1, 16, 8], strides = [1, 1, 1]} : vector<4x16x8xf32> to vector<1x16x8xf32>
    %568 = vector.shape_cast %567 : vector<1x16x8xf32> to vector<16x8xf32>
    %569 = vector.extract_strided_slice %566 {offsets = [1, 0, 0], sizes = [1, 16, 8], strides = [1, 1, 1]} : vector<4x16x8xf32> to vector<1x16x8xf32>
    %570 = vector.shape_cast %569 : vector<1x16x8xf32> to vector<16x8xf32>
    %571 = vector.extract_strided_slice %566 {offsets = [2, 0, 0], sizes = [1, 16, 8], strides = [1, 1, 1]} : vector<4x16x8xf32> to vector<1x16x8xf32>
    %572 = vector.shape_cast %571 : vector<1x16x8xf32> to vector<16x8xf32>
    %573 = vector.extract_strided_slice %566 {offsets = [3, 0, 0], sizes = [1, 16, 8], strides = [1, 1, 1]} : vector<4x16x8xf32> to vector<1x16x8xf32>
    %574 = vector.shape_cast %573 : vector<1x16x8xf32> to vector<16x8xf32>
    %575 = tpu.concatenate %568, %570, %572, %574 in 1 : vector<16x8xf32>, vector<16x8xf32>, vector<16x8xf32>, vector<16x8xf32> -> vector<16x32xf32>
    %576 = arith.truncf %575 : vector<16x32xf32> to vector<16x32xbf16>
    %cst_233 = arith.constant dense<0.000000e+00> : vector<16x32xf32>
    %577 = tpu.matmul %576, %63, %cst_233 {dimension_numbers = #tpu.dot_dimension_numbers<[1], [0], [0], [1], [0, 0, 1, 1], [], []>} : vector<16x32xbf16>, vector<32x32xbf16>, vector<16x32xf32> -> vector<16x32xf32>
    %578 = arith.addf %491, %577 : vector<16x32xf32>
    %579 = vector.broadcast %59 : vector<1x32xf32> to vector<16x32xf32>
    %580 = arith.addf %578, %579 : vector<16x32xf32>
    %cst_234 = arith.constant dense<0.000000e+00> : vector<16xf32>
    %581 = vector.multi_reduction <add>, %580, %cst_234 [1] : vector<16x32xf32> to vector<16xf32>
    %582 = vector.shape_cast %581 : vector<16xf32> to vector<16x1xf32>
    %cst_235 = arith.constant 3.200000e+01 : f32
    %583 = vector.broadcast %cst_235 : f32 to vector<16x1xf32>
    %584 = arith.divf %582, %583 : vector<16x1xf32>
    %585 = vector.broadcast %584 : vector<16x1xf32> to vector<16x32xf32>
    %586 = arith.subf %580, %585 : vector<16x32xf32>
    %587 = arith.mulf %586, %586 : vector<16x32xf32>
    %cst_236 = arith.constant dense<0.000000e+00> : vector<16xf32>
    %588 = vector.multi_reduction <add>, %587, %cst_236 [1] : vector<16x32xf32> to vector<16xf32>
    %589 = vector.shape_cast %588 : vector<16xf32> to vector<16x1xf32>
    %cst_237 = arith.constant 3.200000e+01 : f32
    %590 = vector.broadcast %cst_237 : f32 to vector<16x1xf32>
    %591 = arith.divf %589, %590 : vector<16x1xf32>
    %cst_238 = arith.constant 9.99999974E-6 : f32
    %592 = vector.broadcast %cst_238 : f32 to vector<16x1xf32>
    %593 = arith.addf %591, %592 : vector<16x1xf32>
    %594 = math.rsqrt %593 : vector<16x1xf32>
    %595 = vector.broadcast %594 : vector<16x1xf32> to vector<16x32xf32>
    %596 = arith.mulf %586, %595 : vector<16x32xf32>
    %597 = vector.broadcast %40 : vector<1x32xf32> to vector<16x32xf32>
    %598 = arith.mulf %596, %597 : vector<16x32xf32>
    %599 = vector.broadcast %39 : vector<1x32xf32> to vector<16x32xf32>
    %600 = arith.addf %598, %599 : vector<16x32xf32>
    %601 = arith.truncf %600 : vector<16x32xf32> to vector<16x32xbf16>
    %cst_239 = arith.constant dense<0.000000e+00> : vector<16x64xf32>
    %602 = tpu.matmul %601, %42, %cst_239 {dimension_numbers = #tpu.dot_dimension_numbers<[1], [0], [0], [1], [0, 0, 1, 1], [], []>} : vector<16x32xbf16>, vector<32x64xbf16>, vector<16x64xf32> -> vector<16x64xf32>
    %603 = vector.broadcast %41 : vector<1x64xf32> to vector<16x64xf32>
    %604 = arith.addf %602, %603 : vector<16x64xf32>
    %605 = vector.extract_strided_slice %604 {offsets = [0, 0], sizes = [16, 32], strides = [1, 1]} : vector<16x64xf32> to vector<16x32xf32>
    %606 = vector.extract_strided_slice %604 {offsets = [0, 32], sizes = [16, 32], strides = [1, 1]} : vector<16x64xf32> to vector<16x32xf32>
    %607 = arith.negf %606 : vector<16x32xf32>
    %608 = math.exp %607 : vector<16x32xf32>
    %cst_240 = arith.constant 1.000000e+00 : f32
    %609 = vector.broadcast %cst_240 : f32 to vector<16x32xf32>
    %610 = arith.addf %609, %608 : vector<16x32xf32>
    %611 = arith.divf %609, %610 : vector<16x32xf32>
    %612 = arith.mulf %605, %611 : vector<16x32xf32>
    %cst_241 = arith.constant 0.000000e+00 : f32
    %613 = vector.broadcast %cst_241 : f32 to vector<16x32xf32>
    %c3_i32_242 = arith.constant 3 : i32
    %614 = tpu.dynamic_rotate %612 by %c3_i32_242 dim 0 : vector<16x32xf32>, i32 -> vector<16x32xf32>
    %615 = vector.broadcast %107 : vector<16x1xf32> to vector<16x32xf32>
    %616 = arith.mulf %614, %615 : vector<16x32xf32>
    %617 = vector.extract_strided_slice %38 {offsets = [0, 0], sizes = [1, 32], strides = [1, 1]} : vector<7x32xf32> to vector<1x32xf32>
    %618 = vector.broadcast %617 : vector<1x32xf32> to vector<16x32xf32>
    %619 = arith.mulf %616, %618 : vector<16x32xf32>
    %620 = arith.addf %613, %619 : vector<16x32xf32>
    %c2_i32_243 = arith.constant 2 : i32
    %621 = tpu.dynamic_rotate %612 by %c2_i32_243 dim 0 : vector<16x32xf32>, i32 -> vector<16x32xf32>
    %622 = vector.broadcast %118 : vector<16x1xf32> to vector<16x32xf32>
    %623 = arith.mulf %621, %622 : vector<16x32xf32>
    %624 = vector.extract_strided_slice %38 {offsets = [1, 0], sizes = [1, 32], strides = [1, 1]} : vector<7x32xf32> to vector<1x32xf32>
    %625 = vector.broadcast %624 : vector<1x32xf32> to vector<16x32xf32>
    %626 = arith.mulf %623, %625 : vector<16x32xf32>
    %627 = arith.addf %620, %626 : vector<16x32xf32>
    %c1_i32_244 = arith.constant 1 : i32
    %628 = tpu.dynamic_rotate %612 by %c1_i32_244 dim 0 : vector<16x32xf32>, i32 -> vector<16x32xf32>
    %629 = vector.broadcast %129 : vector<16x1xf32> to vector<16x32xf32>
    %630 = arith.mulf %628, %629 : vector<16x32xf32>
    %631 = vector.extract_strided_slice %38 {offsets = [2, 0], sizes = [1, 32], strides = [1, 1]} : vector<7x32xf32> to vector<1x32xf32>
    %632 = vector.broadcast %631 : vector<1x32xf32> to vector<16x32xf32>
    %633 = arith.mulf %630, %632 : vector<16x32xf32>
    %634 = arith.addf %627, %633 : vector<16x32xf32>
    %635 = vector.broadcast %140 : vector<16x1xf32> to vector<16x32xf32>
    %636 = arith.mulf %612, %635 : vector<16x32xf32>
    %637 = vector.extract_strided_slice %38 {offsets = [3, 0], sizes = [1, 32], strides = [1, 1]} : vector<7x32xf32> to vector<1x32xf32>
    %638 = vector.broadcast %637 : vector<1x32xf32> to vector<16x32xf32>
    %639 = arith.mulf %636, %638 : vector<16x32xf32>
    %640 = arith.addf %634, %639 : vector<16x32xf32>
    %c15_i32_245 = arith.constant 15 : i32
    %641 = tpu.dynamic_rotate %612 by %c15_i32_245 dim 0 : vector<16x32xf32>, i32 -> vector<16x32xf32>
    %642 = vector.broadcast %151 : vector<16x1xf32> to vector<16x32xf32>
    %643 = arith.mulf %641, %642 : vector<16x32xf32>
    %644 = vector.extract_strided_slice %38 {offsets = [4, 0], sizes = [1, 32], strides = [1, 1]} : vector<7x32xf32> to vector<1x32xf32>
    %645 = vector.broadcast %644 : vector<1x32xf32> to vector<16x32xf32>
    %646 = arith.mulf %643, %645 : vector<16x32xf32>
    %647 = arith.addf %640, %646 : vector<16x32xf32>
    %c14_i32_246 = arith.constant 14 : i32
    %648 = tpu.dynamic_rotate %612 by %c14_i32_246 dim 0 : vector<16x32xf32>, i32 -> vector<16x32xf32>
    %649 = vector.broadcast %162 : vector<16x1xf32> to vector<16x32xf32>
    %650 = arith.mulf %648, %649 : vector<16x32xf32>
    %651 = vector.extract_strided_slice %38 {offsets = [5, 0], sizes = [1, 32], strides = [1, 1]} : vector<7x32xf32> to vector<1x32xf32>
    %652 = vector.broadcast %651 : vector<1x32xf32> to vector<16x32xf32>
    %653 = arith.mulf %650, %652 : vector<16x32xf32>
    %654 = arith.addf %647, %653 : vector<16x32xf32>
    %c13_i32_247 = arith.constant 13 : i32
    %655 = tpu.dynamic_rotate %612 by %c13_i32_247 dim 0 : vector<16x32xf32>, i32 -> vector<16x32xf32>
    %656 = vector.broadcast %173 : vector<16x1xf32> to vector<16x32xf32>
    %657 = arith.mulf %655, %656 : vector<16x32xf32>
    %658 = vector.extract_strided_slice %38 {offsets = [6, 0], sizes = [1, 32], strides = [1, 1]} : vector<7x32xf32> to vector<1x32xf32>
    %659 = vector.broadcast %658 : vector<1x32xf32> to vector<16x32xf32>
    %660 = arith.mulf %657, %659 : vector<16x32xf32>
    %661 = arith.addf %654, %660 : vector<16x32xf32>
    %662 = vector.broadcast %37 : vector<1x32xf32> to vector<16x32xf32>
    %663 = arith.addf %661, %662 : vector<16x32xf32>
    %664 = vector.broadcast %35 : vector<1x32xf32> to vector<16x32xf32>
    %665 = arith.mulf %663, %664 : vector<16x32xf32>
    %666 = vector.broadcast %36 : vector<1x32xf32> to vector<16x32xf32>
    %667 = arith.addf %665, %666 : vector<16x32xf32>
    %668 = arith.negf %667 : vector<16x32xf32>
    %669 = math.exp %668 : vector<16x32xf32>
    %cst_248 = arith.constant 1.000000e+00 : f32
    %670 = vector.broadcast %cst_248 : f32 to vector<16x32xf32>
    %671 = arith.addf %670, %669 : vector<16x32xf32>
    %672 = arith.divf %670, %671 : vector<16x32xf32>
    %673 = arith.mulf %667, %672 : vector<16x32xf32>
    %674 = arith.truncf %673 : vector<16x32xf32> to vector<16x32xbf16>
    %cst_249 = arith.constant dense<0.000000e+00> : vector<16x32xf32>
    %675 = tpu.matmul %674, %44, %cst_249 {dimension_numbers = #tpu.dot_dimension_numbers<[1], [0], [0], [1], [0, 0, 1, 1], [], []>} : vector<16x32xbf16>, vector<32x32xbf16>, vector<16x32xf32> -> vector<16x32xf32>
    %676 = vector.broadcast %43 : vector<1x32xf32> to vector<16x32xf32>
    %677 = arith.addf %675, %676 : vector<16x32xf32>
    %678 = arith.addf %580, %677 : vector<16x32xf32>
    %cst_250 = arith.constant dense<0.000000e+00> : vector<16xf32>
    %679 = vector.multi_reduction <add>, %678, %cst_250 [1] : vector<16x32xf32> to vector<16xf32>
    %680 = vector.shape_cast %679 : vector<16xf32> to vector<16x1xf32>
    %cst_251 = arith.constant 3.200000e+01 : f32
    %681 = vector.broadcast %cst_251 : f32 to vector<16x1xf32>
    %682 = arith.divf %680, %681 : vector<16x1xf32>
    %683 = vector.broadcast %682 : vector<16x1xf32> to vector<16x32xf32>
    %684 = arith.subf %678, %683 : vector<16x32xf32>
    %685 = arith.mulf %684, %684 : vector<16x32xf32>
    %cst_252 = arith.constant dense<0.000000e+00> : vector<16xf32>
    %686 = vector.multi_reduction <add>, %685, %cst_252 [1] : vector<16x32xf32> to vector<16xf32>
    %687 = vector.shape_cast %686 : vector<16xf32> to vector<16x1xf32>
    %cst_253 = arith.constant 3.200000e+01 : f32
    %688 = vector.broadcast %cst_253 : f32 to vector<16x1xf32>
    %689 = arith.divf %687, %688 : vector<16x1xf32>
    %cst_254 = arith.constant 9.99999974E-6 : f32
    %690 = vector.broadcast %cst_254 : f32 to vector<16x1xf32>
    %691 = arith.addf %689, %690 : vector<16x1xf32>
    %692 = math.rsqrt %691 : vector<16x1xf32>
    %693 = vector.broadcast %692 : vector<16x1xf32> to vector<16x32xf32>
    %694 = arith.mulf %684, %693 : vector<16x32xf32>
    %695 = vector.broadcast %54 : vector<1x32xf32> to vector<16x32xf32>
    %696 = arith.mulf %694, %695 : vector<16x32xf32>
    %697 = vector.broadcast %53 : vector<1x32xf32> to vector<16x32xf32>
    %698 = arith.addf %696, %697 : vector<16x32xf32>
    %699 = arith.truncf %698 : vector<16x32xf32> to vector<16x32xbf16>
    %cst_255 = arith.constant dense<0.000000e+00> : vector<16x128xf32>
    %700 = tpu.matmul %699, %55, %cst_255 {dimension_numbers = #tpu.dot_dimension_numbers<[1], [0], [0], [1], [0, 0, 1, 1], [], []>} : vector<16x32xbf16>, vector<32x128xbf16>, vector<16x128xf32> -> vector<16x128xf32>
    %701 = vector.broadcast %51 : vector<1x128xf32> to vector<16x128xf32>
    %702 = arith.addf %700, %701 : vector<16x128xf32>
    %703 = arith.negf %702 : vector<16x128xf32>
    %704 = math.exp %703 : vector<16x128xf32>
    %cst_256 = arith.constant 1.000000e+00 : f32
    %705 = vector.broadcast %cst_256 : f32 to vector<16x128xf32>
    %706 = arith.addf %705, %704 : vector<16x128xf32>
    %707 = arith.divf %705, %706 : vector<16x128xf32>
    %708 = arith.mulf %702, %707 : vector<16x128xf32>
    %709 = arith.truncf %708 : vector<16x128xf32> to vector<16x128xbf16>
    %cst_257 = arith.constant dense<0.000000e+00> : vector<16x32xf32>
    %710 = tpu.matmul %709, %56, %cst_257 {dimension_numbers = #tpu.dot_dimension_numbers<[1], [0], [0], [1], [0, 0, 1, 1], [], []>} : vector<16x128xbf16>, vector<128x32xbf16>, vector<16x32xf32> -> vector<16x32xf32>
    %711 = vector.broadcast %52 : vector<1x32xf32> to vector<16x32xf32>
    %712 = arith.addf %710, %711 : vector<16x32xf32>
    %cst_258 = arith.constant 5.000000e-01 : f32
    %713 = vector.broadcast %cst_258 : f32 to vector<16x32xf32>
    %714 = arith.mulf %713, %712 : vector<16x32xf32>
    %715 = arith.addf %678, %714 : vector<16x32xf32>
    %cst_259 = arith.constant dense<0.000000e+00> : vector<16xf32>
    %716 = vector.multi_reduction <add>, %715, %cst_259 [1] : vector<16x32xf32> to vector<16xf32>
    %717 = vector.shape_cast %716 : vector<16xf32> to vector<16x1xf32>
    %cst_260 = arith.constant 3.200000e+01 : f32
    %718 = vector.broadcast %cst_260 : f32 to vector<16x1xf32>
    %719 = arith.divf %717, %718 : vector<16x1xf32>
    %720 = vector.broadcast %719 : vector<16x1xf32> to vector<16x32xf32>
    %721 = arith.subf %715, %720 : vector<16x32xf32>
    %722 = arith.mulf %721, %721 : vector<16x32xf32>
    %cst_261 = arith.constant dense<0.000000e+00> : vector<16xf32>
    %723 = vector.multi_reduction <add>, %722, %cst_261 [1] : vector<16x32xf32> to vector<16xf32>
    %724 = vector.shape_cast %723 : vector<16xf32> to vector<16x1xf32>
    %cst_262 = arith.constant 3.200000e+01 : f32
    %725 = vector.broadcast %cst_262 : f32 to vector<16x1xf32>
    %726 = arith.divf %724, %725 : vector<16x1xf32>
    %cst_263 = arith.constant 9.99999974E-6 : f32
    %727 = vector.broadcast %cst_263 : f32 to vector<16x1xf32>
    %728 = arith.addf %726, %727 : vector<16x1xf32>
    %729 = math.rsqrt %728 : vector<16x1xf32>
    %730 = vector.broadcast %729 : vector<16x1xf32> to vector<16x32xf32>
    %731 = arith.mulf %721, %730 : vector<16x32xf32>
    %732 = vector.broadcast %58 : vector<1x32xf32> to vector<16x32xf32>
    %733 = arith.mulf %731, %732 : vector<16x32xf32>
    %734 = vector.broadcast %57 : vector<1x32xf32> to vector<16x32xf32>
    %735 = arith.addf %733, %734 : vector<16x32xf32>
    %736 = arith.truncf %735 : vector<16x32xf32> to vector<16x32xbf16>
    %cst_264 = arith.constant dense<0.000000e+00> : vector<16x128xf32>
    %737 = tpu.matmul %736, %2, %cst_264 {dimension_numbers = #tpu.dot_dimension_numbers<[1], [0], [0], [1], [0, 0, 1, 1], [], []>} : vector<16x32xbf16>, vector<32x128xbf16>, vector<16x128xf32> -> vector<16x128xf32>
    %738 = vector.broadcast %1 : vector<1x128xf32> to vector<16x128xf32>
    %739 = arith.addf %737, %738 : vector<16x128xf32>
    %cst_265 = arith.constant dense<0xFF800000> : vector<16xf32>
    %740 = vector.multi_reduction <maximumf>, %739, %cst_265 [1] : vector<16x128xf32> to vector<16xf32>
    %741 = vector.shape_cast %740 : vector<16xf32> to vector<16x1xf32>
    %742 = vector.broadcast %741 : vector<16x1xf32> to vector<16x128xf32>
    %743 = arith.subf %739, %742 : vector<16x128xf32>
    %744 = math.exp %743 : vector<16x128xf32>
    %cst_266 = arith.constant dense<0.000000e+00> : vector<16xf32>
    %745 = vector.multi_reduction <add>, %744, %cst_266 [1] : vector<16x128xf32> to vector<16xf32>
    %746 = vector.shape_cast %745 : vector<16xf32> to vector<16x1xf32>
    %747 = math.log %746 : vector<16x1xf32>
    %748 = vector.broadcast %747 : vector<16x1xf32> to vector<16x128xf32>
    %749 = arith.subf %743, %748 : vector<16x128xf32>
    %c0_267 = arith.constant 0 : index
    %c0_268 = arith.constant 0 : index
    %c0_269 = arith.constant 0 : index
    %750 = vector.load %arg69[%c0_267, %c0_268, %c0_269] : memref<1x16x128xf32, #tpu.memory_space<vmem>>, vector<1x16x128xf32>
    %751 = vector.shape_cast %750 : vector<1x16x128xf32> to vector<16x128xf32>
    %752 = vector.shape_cast %749 : vector<16x128xf32> to vector<1x16x128xf32>
    tpu.vector_store %arg69[%c0_267, %c0_268, %c0_269], %752 {strides = array<i32>} : memref<1x16x128xf32, #tpu.memory_space<vmem>>, vector<1x16x128xf32>,
    return
  }
  func.func @transform_0(%arg0: i32) -> (i32, i32, i32) {
    %c0_i32 = arith.constant 0 : i32
    %c0_i32_0 = arith.constant 0 : i32
    %c0_i32_1 = arith.constant 0 : i32
    return %arg0, %c0_i32, %c0_i32_0 : i32, i32, i32
  }
  func.func @transform_1(%arg0: i32) -> (i32, i32, i32) {
    %c0_i32 = arith.constant 0 : i32
    %c0_i32_0 = arith.constant 0 : i32
    %c0_i32_1 = arith.constant 0 : i32
    return %arg0, %c0_i32, %c0_i32_0 : i32, i32, i32
  }
  func.func @transform_2(%arg0: i32) -> (i32, i32) {
    %c0_i32 = arith.constant 0 : i32
    %c0_i32_0 = arith.constant 0 : i32
    %c0_i32_1 = arith.constant 0 : i32
    return %c0_i32, %c0_i32_0 : i32, i32
  }
  func.func @transform_3(%arg0: i32) -> (i32, i32) {
    %c0_i32 = arith.constant 0 : i32
    %c0_i32_0 = arith.constant 0 : i32
    %c0_i32_1 = arith.constant 0 : i32
    return %c0_i32, %c0_i32_0 : i32, i32
  }
  func.func @transform_4(%arg0: i32) -> (i32, i32) {
    %c0_i32 = arith.constant 0 : i32
    %c0_i32_0 = arith.constant 0 : i32
    %c0_i32_1 = arith.constant 0 : i32
    return %c0_i32, %c0_i32_0 : i32, i32
  }
  func.func @transform_5(%arg0: i32) -> (i32, i32) {
    %c0_i32 = arith.constant 0 : i32
    %c0_i32_0 = arith.constant 0 : i32
    %c0_i32_1 = arith.constant 0 : i32
    return %c0_i32, %c0_i32_0 : i32, i32
  }
  func.func @transform_6(%arg0: i32) -> (i32, i32) {
    %c0_i32 = arith.constant 0 : i32
    %c0_i32_0 = arith.constant 0 : i32
    %c0_i32_1 = arith.constant 0 : i32
    return %c0_i32, %c0_i32_0 : i32, i32
  }
  func.func @transform_7(%arg0: i32) -> (i32, i32) {
    %c0_i32 = arith.constant 0 : i32
    %c0_i32_0 = arith.constant 0 : i32
    %c0_i32_1 = arith.constant 0 : i32
    return %c0_i32, %c0_i32_0 : i32, i32
  }
  func.func @transform_8(%arg0: i32) -> (i32, i32) {
    %c0_i32 = arith.constant 0 : i32
    %c0_i32_0 = arith.constant 0 : i32
    %c0_i32_1 = arith.constant 0 : i32
    return %c0_i32, %c0_i32_0 : i32, i32
  }
  func.func @transform_9(%arg0: i32) -> (i32, i32) {
    %c0_i32 = arith.constant 0 : i32
    %c0_i32_0 = arith.constant 0 : i32
    %c0_i32_1 = arith.constant 0 : i32
    return %c0_i32, %c0_i32_0 : i32, i32
  }
  func.func @transform_10(%arg0: i32) -> (i32, i32) {
    %c0_i32 = arith.constant 0 : i32
    %c0_i32_0 = arith.constant 0 : i32
    %c0_i32_1 = arith.constant 0 : i32
    return %c0_i32, %c0_i32_0 : i32, i32
  }
  func.func @transform_11(%arg0: i32) -> (i32, i32) {
    %c0_i32 = arith.constant 0 : i32
    %c0_i32_0 = arith.constant 0 : i32
    %c0_i32_1 = arith.constant 0 : i32
    return %c0_i32, %c0_i32_0 : i32, i32
  }
  func.func @transform_12(%arg0: i32) -> (i32, i32) {
    %c0_i32 = arith.constant 0 : i32
    %c0_i32_0 = arith.constant 0 : i32
    %c0_i32_1 = arith.constant 0 : i32
    return %c0_i32, %c0_i32_0 : i32, i32
  }
  func.func @transform_13(%arg0: i32) -> (i32, i32) {
    %c0_i32 = arith.constant 0 : i32
    %c0_i32_0 = arith.constant 0 : i32
    %c0_i32_1 = arith.constant 0 : i32
    return %c0_i32, %c0_i32_0 : i32, i32
  }
  func.func @transform_14(%arg0: i32) -> (i32, i32) {
    %c0_i32 = arith.constant 0 : i32
    %c0_i32_0 = arith.constant 0 : i32
    %c0_i32_1 = arith.constant 0 : i32
    return %c0_i32, %c0_i32_0 : i32, i32
  }
  func.func @transform_15(%arg0: i32) -> (i32, i32) {
    %c0_i32 = arith.constant 0 : i32
    %c0_i32_0 = arith.constant 0 : i32
    %c0_i32_1 = arith.constant 0 : i32
    return %c0_i32, %c0_i32_0 : i32, i32
  }
  func.func @transform_16(%arg0: i32) -> (i32, i32) {
    %c0_i32 = arith.constant 0 : i32
    %c0_i32_0 = arith.constant 0 : i32
    %c0_i32_1 = arith.constant 0 : i32
    return %c0_i32, %c0_i32_0 : i32, i32
  }
  func.func @transform_17(%arg0: i32) -> (i32, i32) {
    %c0_i32 = arith.constant 0 : i32
    %c0_i32_0 = arith.constant 0 : i32
    %c0_i32_1 = arith.constant 0 : i32
    return %c0_i32, %c0_i32_0 : i32, i32
  }
  func.func @transform_18(%arg0: i32) -> (i32, i32) {
    %c0_i32 = arith.constant 0 : i32
    %c0_i32_0 = arith.constant 0 : i32
    %c0_i32_1 = arith.constant 0 : i32
    return %c0_i32, %c0_i32_0 : i32, i32
  }
  func.func @transform_19(%arg0: i32) -> (i32, i32) {
    %c0_i32 = arith.constant 0 : i32
    %c0_i32_0 = arith.constant 0 : i32
    %c0_i32_1 = arith.constant 0 : i32
    return %c0_i32, %c0_i32_0 : i32, i32
  }
  func.func @transform_20(%arg0: i32) -> (i32, i32) {
    %c0_i32 = arith.constant 0 : i32
    %c0_i32_0 = arith.constant 0 : i32
    %c0_i32_1 = arith.constant 0 : i32
    return %c0_i32, %c0_i32_0 : i32, i32
  }
  func.func @transform_21(%arg0: i32) -> (i32, i32) {
    %c0_i32 = arith.constant 0 : i32
    %c0_i32_0 = arith.constant 0 : i32
    %c0_i32_1 = arith.constant 0 : i32
    return %c0_i32, %c0_i32_0 : i32, i32
  }
  func.func @transform_22(%arg0: i32) -> (i32, i32) {
    %c0_i32 = arith.constant 0 : i32
    %c0_i32_0 = arith.constant 0 : i32
    %c0_i32_1 = arith.constant 0 : i32
    return %c0_i32, %c0_i32_0 : i32, i32
  }
  func.func @transform_23(%arg0: i32) -> (i32, i32) {
    %c0_i32 = arith.constant 0 : i32
    %c0_i32_0 = arith.constant 0 : i32
    %c0_i32_1 = arith.constant 0 : i32
    return %c0_i32, %c0_i32_0 : i32, i32
  }
  func.func @transform_24(%arg0: i32) -> (i32, i32) {
    %c0_i32 = arith.constant 0 : i32
    %c0_i32_0 = arith.constant 0 : i32
    %c0_i32_1 = arith.constant 0 : i32
    return %c0_i32, %c0_i32_0 : i32, i32
  }
  func.func @transform_25(%arg0: i32) -> (i32, i32) {
    %c0_i32 = arith.constant 0 : i32
    %c0_i32_0 = arith.constant 0 : i32
    %c0_i32_1 = arith.constant 0 : i32
    return %c0_i32, %c0_i32_0 : i32, i32
  }
  func.func @transform_26(%arg0: i32) -> (i32, i32) {
    %c0_i32 = arith.constant 0 : i32
    %c0_i32_0 = arith.constant 0 : i32
    %c0_i32_1 = arith.constant 0 : i32
    return %c0_i32, %c0_i32_0 : i32, i32
  }
  func.func @transform_27(%arg0: i32) -> (i32, i32) {
    %c0_i32 = arith.constant 0 : i32
    %c0_i32_0 = arith.constant 0 : i32
    %c0_i32_1 = arith.constant 0 : i32
    return %c0_i32, %c0_i32_0 : i32, i32
  }
  func.func @transform_28(%arg0: i32) -> (i32, i32) {
    %c0_i32 = arith.constant 0 : i32
    %c0_i32_0 = arith.constant 0 : i32
    %c0_i32_1 = arith.constant 0 : i32
    return %c0_i32, %c0_i32_0 : i32, i32
  }
  func.func @transform_29(%arg0: i32) -> (i32, i32) {
    %c0_i32 = arith.constant 0 : i32
    %c0_i32_0 = arith.constant 0 : i32
    %c0_i32_1 = arith.constant 0 : i32
    return %c0_i32, %c0_i32_0 : i32, i32
  }
  func.func @transform_30(%arg0: i32) -> (i32, i32) {
    %c0_i32 = arith.constant 0 : i32
    %c0_i32_0 = arith.constant 0 : i32
    %c0_i32_1 = arith.constant 0 : i32
    return %c0_i32, %c0_i32_0 : i32, i32
  }
  func.func @transform_31(%arg0: i32) -> (i32, i32) {
    %c0_i32 = arith.constant 0 : i32
    %c0_i32_0 = arith.constant 0 : i32
    %c0_i32_1 = arith.constant 0 : i32
    return %c0_i32, %c0_i32_0 : i32, i32
  }
  func.func @transform_32(%arg0: i32) -> (i32, i32) {
    %c0_i32 = arith.constant 0 : i32
    %c0_i32_0 = arith.constant 0 : i32
    %c0_i32_1 = arith.constant 0 : i32
    return %c0_i32, %c0_i32_0 : i32, i32
  }
  func.func @transform_33(%arg0: i32) -> (i32, i32) {
    %c0_i32 = arith.constant 0 : i32
    %c0_i32_0 = arith.constant 0 : i32
    %c0_i32_1 = arith.constant 0 : i32
    return %c0_i32, %c0_i32_0 : i32, i32
  }
  func.func @transform_34(%arg0: i32) -> (i32, i32) {
    %c0_i32 = arith.constant 0 : i32
    %c0_i32_0 = arith.constant 0 : i32
    %c0_i32_1 = arith.constant 0 : i32
    return %c0_i32, %c0_i32_0 : i32, i32
  }
  func.func @transform_35(%arg0: i32) -> (i32, i32) {
    %c0_i32 = arith.constant 0 : i32
    %c0_i32_0 = arith.constant 0 : i32
    %c0_i32_1 = arith.constant 0 : i32
    return %c0_i32, %c0_i32_0 : i32, i32
  }
  func.func @transform_36(%arg0: i32) -> (i32, i32) {
    %c0_i32 = arith.constant 0 : i32
    %c0_i32_0 = arith.constant 0 : i32
    %c0_i32_1 = arith.constant 0 : i32
    return %c0_i32, %c0_i32_0 : i32, i32
  }
  func.func @transform_37(%arg0: i32) -> (i32, i32) {
    %c0_i32 = arith.constant 0 : i32
    %c0_i32_0 = arith.constant 0 : i32
    %c0_i32_1 = arith.constant 0 : i32
    return %c0_i32, %c0_i32_0 : i32, i32
  }
  func.func @transform_38(%arg0: i32) -> (i32, i32) {
    %c0_i32 = arith.constant 0 : i32
    %c0_i32_0 = arith.constant 0 : i32
    %c0_i32_1 = arith.constant 0 : i32
    return %c0_i32, %c0_i32_0 : i32, i32
  }
  func.func @transform_39(%arg0: i32) -> (i32, i32) {
    %c0_i32 = arith.constant 0 : i32
    %c0_i32_0 = arith.constant 0 : i32
    %c0_i32_1 = arith.constant 0 : i32
    return %c0_i32, %c0_i32_0 : i32, i32
  }
  func.func @transform_40(%arg0: i32) -> (i32, i32) {
    %c0_i32 = arith.constant 0 : i32
    %c0_i32_0 = arith.constant 0 : i32
    %c0_i32_1 = arith.constant 0 : i32
    return %c0_i32, %c0_i32_0 : i32, i32
  }
  func.func @transform_41(%arg0: i32) -> (i32, i32) {
    %c0_i32 = arith.constant 0 : i32
    %c0_i32_0 = arith.constant 0 : i32
    %c0_i32_1 = arith.constant 0 : i32
    return %c0_i32, %c0_i32_0 : i32, i32
  }
  func.func @transform_42(%arg0: i32) -> (i32, i32) {
    %c0_i32 = arith.constant 0 : i32
    %c0_i32_0 = arith.constant 0 : i32
    %c0_i32_1 = arith.constant 0 : i32
    return %c0_i32, %c0_i32_0 : i32, i32
  }
  func.func @transform_43(%arg0: i32) -> (i32, i32) {
    %c0_i32 = arith.constant 0 : i32
    %c0_i32_0 = arith.constant 0 : i32
    %c0_i32_1 = arith.constant 0 : i32
    return %c0_i32, %c0_i32_0 : i32, i32
  }
  func.func @transform_44(%arg0: i32) -> (i32, i32) {
    %c0_i32 = arith.constant 0 : i32
    %c0_i32_0 = arith.constant 0 : i32
    %c0_i32_1 = arith.constant 0 : i32
    return %c0_i32, %c0_i32_0 : i32, i32
  }
  func.func @transform_45(%arg0: i32) -> (i32, i32) {
    %c0_i32 = arith.constant 0 : i32
    %c0_i32_0 = arith.constant 0 : i32
    %c0_i32_1 = arith.constant 0 : i32
    return %c0_i32, %c0_i32_0 : i32, i32
  }
  func.func @transform_46(%arg0: i32) -> (i32, i32) {
    %c0_i32 = arith.constant 0 : i32
    %c0_i32_0 = arith.constant 0 : i32
    %c0_i32_1 = arith.constant 0 : i32
    return %c0_i32, %c0_i32_0 : i32, i32
  }
  func.func @transform_47(%arg0: i32) -> (i32, i32) {
    %c0_i32 = arith.constant 0 : i32
    %c0_i32_0 = arith.constant 0 : i32
    %c0_i32_1 = arith.constant 0 : i32
    return %c0_i32, %c0_i32_0 : i32, i32
  }
  func.func @transform_48(%arg0: i32) -> (i32, i32) {
    %c0_i32 = arith.constant 0 : i32
    %c0_i32_0 = arith.constant 0 : i32
    %c0_i32_1 = arith.constant 0 : i32
    return %c0_i32, %c0_i32_0 : i32, i32
  }
  func.func @transform_49(%arg0: i32) -> (i32, i32) {
    %c0_i32 = arith.constant 0 : i32
    %c0_i32_0 = arith.constant 0 : i32
    %c0_i32_1 = arith.constant 0 : i32
    return %c0_i32, %c0_i32_0 : i32, i32
  }
  func.func @transform_50(%arg0: i32) -> (i32, i32) {
    %c0_i32 = arith.constant 0 : i32
    %c0_i32_0 = arith.constant 0 : i32
    %c0_i32_1 = arith.constant 0 : i32
    return %c0_i32, %c0_i32_0 : i32, i32
  }
  func.func @transform_51(%arg0: i32) -> (i32, i32) {
    %c0_i32 = arith.constant 0 : i32
    %c0_i32_0 = arith.constant 0 : i32
    %c0_i32_1 = arith.constant 0 : i32
    return %c0_i32, %c0_i32_0 : i32, i32
  }
  func.func @transform_52(%arg0: i32) -> (i32, i32) {
    %c0_i32 = arith.constant 0 : i32
    %c0_i32_0 = arith.constant 0 : i32
    %c0_i32_1 = arith.constant 0 : i32
    return %c0_i32, %c0_i32_0 : i32, i32
  }
  func.func @transform_53(%arg0: i32) -> (i32, i32) {
    %c0_i32 = arith.constant 0 : i32
    %c0_i32_0 = arith.constant 0 : i32
    %c0_i32_1 = arith.constant 0 : i32
    return %c0_i32, %c0_i32_0 : i32, i32
  }
  func.func @transform_54(%arg0: i32) -> (i32, i32) {
    %c0_i32 = arith.constant 0 : i32
    %c0_i32_0 = arith.constant 0 : i32
    %c0_i32_1 = arith.constant 0 : i32
    return %c0_i32, %c0_i32_0 : i32, i32
  }
  func.func @transform_55(%arg0: i32) -> (i32, i32) {
    %c0_i32 = arith.constant 0 : i32
    %c0_i32_0 = arith.constant 0 : i32
    %c0_i32_1 = arith.constant 0 : i32
    return %c0_i32, %c0_i32_0 : i32, i32
  }
  func.func @transform_56(%arg0: i32) -> (i32, i32) {
    %c0_i32 = arith.constant 0 : i32
    %c0_i32_0 = arith.constant 0 : i32
    %c0_i32_1 = arith.constant 0 : i32
    return %c0_i32, %c0_i32_0 : i32, i32
  }
  func.func @transform_57(%arg0: i32) -> (i32, i32) {
    %c0_i32 = arith.constant 0 : i32
    %c0_i32_0 = arith.constant 0 : i32
    %c0_i32_1 = arith.constant 0 : i32
    return %c0_i32, %c0_i32_0 : i32, i32
  }
  func.func @transform_58(%arg0: i32) -> (i32, i32) {
    %c0_i32 = arith.constant 0 : i32
    %c0_i32_0 = arith.constant 0 : i32
    %c0_i32_1 = arith.constant 0 : i32
    return %c0_i32, %c0_i32_0 : i32, i32
  }
  func.func @transform_59(%arg0: i32) -> (i32, i32) {
    %c0_i32 = arith.constant 0 : i32
    %c0_i32_0 = arith.constant 0 : i32
    %c0_i32_1 = arith.constant 0 : i32
    return %c0_i32, %c0_i32_0 : i32, i32
  }
  func.func @transform_60(%arg0: i32) -> (i32, i32) {
    %c0_i32 = arith.constant 0 : i32
    %c0_i32_0 = arith.constant 0 : i32
    %c0_i32_1 = arith.constant 0 : i32
    return %c0_i32, %c0_i32_0 : i32, i32
  }
  func.func @transform_61(%arg0: i32) -> (i32, i32) {
    %c0_i32 = arith.constant 0 : i32
    %c0_i32_0 = arith.constant 0 : i32
    %c0_i32_1 = arith.constant 0 : i32
    return %c0_i32, %c0_i32_0 : i32, i32
  }
  func.func @transform_62(%arg0: i32) -> (i32, i32) {
    %c0_i32 = arith.constant 0 : i32
    %c0_i32_0 = arith.constant 0 : i32
    %c0_i32_1 = arith.constant 0 : i32
    return %c0_i32, %c0_i32_0 : i32, i32
  }
  func.func @transform_63(%arg0: i32) -> (i32, i32) {
    %c0_i32 = arith.constant 0 : i32
    %c0_i32_0 = arith.constant 0 : i32
    %c0_i32_1 = arith.constant 0 : i32
    return %c0_i32, %c0_i32_0 : i32, i32
  }
  func.func @transform_64(%arg0: i32) -> (i32, i32) {
    %c0_i32 = arith.constant 0 : i32
    %c0_i32_0 = arith.constant 0 : i32
    %c0_i32_1 = arith.constant 0 : i32
    return %c0_i32, %c0_i32_0 : i32, i32
  }
  func.func @transform_65(%arg0: i32) -> (i32, i32) {
    %c0_i32 = arith.constant 0 : i32
    %c0_i32_0 = arith.constant 0 : i32
    %c0_i32_1 = arith.constant 0 : i32
    return %c0_i32, %c0_i32_0 : i32, i32
  }
  func.func @transform_66(%arg0: i32) -> (i32, i32) {
    %c0_i32 = arith.constant 0 : i32
    %c0_i32_0 = arith.constant 0 : i32
    %c0_i32_1 = arith.constant 0 : i32
    return %c0_i32, %c0_i32_0 : i32, i32
  }
  func.func @transform_67(%arg0: i32) -> (i32, i32) {
    %c0_i32 = arith.constant 0 : i32
    %c0_i32_0 = arith.constant 0 : i32
    %c0_i32_1 = arith.constant 0 : i32
    return %c0_i32, %c0_i32_0 : i32, i32
  }
  func.func @transform_68(%arg0: i32) -> (i32, i32, i32) {
    %c0_i32 = arith.constant 0 : i32
    %c0_i32_0 = arith.constant 0 : i32
    %c0_i32_1 = arith.constant 0 : i32
    return %arg0, %c0_i32, %c0_i32_0 : i32, i32, i32
  }
}

</mosaic_0001>

<llo_original>
// kernel: forward.1
$region0: #{forward.1}
  #allocation0 [shape = 'u32[]', space=smem, size = 0x4, offset = 0x4, fixed_abs, tag = 'smem constant byte address 0x4 - core index']
  #allocation1 [shape = 'u32[72,128]{1,0:T(1,128)}', space=vmem, size = 0x9000, scoped, tag = 'internal scratch']
  %s0 = inlined_call_operand.smem [shape: u32[69], index: -1, kind: input, shape index: {}]
  %s1 = sld [smem:[%s0]]
  %s2 = scalar_lea.smem %s0, 1
  %s3 = sld [smem:[%s2]]
  %s4 = scalar_lea.smem %s0, 2
  %s5 = sld [smem:[%s4]]
  %s6 = scalar_lea.smem %s0, 3
  %s7 = sld [smem:[%s6]]
  %s8 = scalar_lea.smem %s0, 4
  %s9 = sld [smem:[%s8]]
  %s10 = scalar_lea.smem %s0, 5
  %s11 = sld [smem:[%s10]]
  %s12 = scalar_lea.smem %s0, 6
  %s13 = sld [smem:[%s12]]
  %s14 = scalar_lea.smem %s0, 7
  %s15 = sld [smem:[%s14]]
  %s16 = scalar_lea.smem %s0, 8
  %s17 = sld [smem:[%s16]]
  %s18 = scalar_lea.smem %s0, 9
  %s19 = sld [smem:[%s18]]
  %s20 = scalar_lea.smem %s0, 10
  %s21 = sld [smem:[%s20]]
  %s22 = scalar_lea.smem %s0, 11
  %s23 = sld [smem:[%s22]]
  %s24 = scalar_lea.smem %s0, 12
  %s25 = sld [smem:[%s24]]
  %s26 = scalar_lea.smem %s0, 13
  %s27 = sld [smem:[%s26]]
  %s28 = scalar_lea.smem %s0, 14
  %s29 = sld [smem:[%s28]]
  %s30 = scalar_lea.smem %s0, 15
  %s31 = sld [smem:[%s30]]
  %s32 = scalar_lea.smem %s0, 16
  %s33 = sld [smem:[%s32]]
  %s34 = scalar_lea.smem %s0, 17
  %s35 = sld [smem:[%s34]]
  %s36 = scalar_lea.smem %s0, 18
  %s37 = sld [smem:[%s36]]
  %s38 = scalar_lea.smem %s0, 19
  %s39 = sld [smem:[%s38]]
  %s40 = scalar_lea.smem %s0, 20
  %s41 = sld [smem:[%s40]]
  %s42 = scalar_lea.smem %s0, 21
  %s43 = sld [smem:[%s42]]
  %s44 = scalar_lea.smem %s0, 22
  %s45 = sld [smem:[%s44]]
  %s46 = scalar_lea.smem %s0, 23
  %s47 = sld [smem:[%s46]]
  %s48 = scalar_lea.smem %s0, 24
  %s49 = sld [smem:[%s48]]
  %s50 = scalar_lea.smem %s0, 25
  %s51 = sld [smem:[%s50]]
  %s52 = scalar_lea.smem %s0, 26
  %s53 = sld [smem:[%s52]]
  %s54 = scalar_lea.smem %s0, 27
  %s55 = sld [smem:[%s54]]
  %s56 = scalar_lea.smem %s0, 28
  %s57 = sld [smem:[%s56]]
  %s58 = scalar_lea.smem %s0, 29
  %s59 = sld [smem:[%s58]]
  %s60 = scalar_lea.smem %s0, 30
  %s61 = sld [smem:[%s60]]
  %s62 = scalar_lea.smem %s0, 31
  %s63 = sld [smem:[%s62]]
  %s64 = scalar_lea.smem %s0, 32
  %s65 = sld [smem:[%s64]]
  %s66 = scalar_lea.smem %s0, 33
  %s67 = sld [smem:[%s66]]
  %s68 = scalar_lea.smem %s0, 34
  %s69 = sld [smem:[%s68]]
  %s70 = scalar_lea.smem %s0, 35
  %s71 = sld [smem:[%s70]]
  %s72 = scalar_lea.smem %s0, 36
  %s73 = sld [smem:[%s72]]
  %s74 = scalar_lea.smem %s0, 37
  %s75 = sld [smem:[%s74]]
  %s76 = scalar_lea.smem %s0, 38
  %s77 = sld [smem:[%s76]]
  %s78 = scalar_lea.smem %s0, 39
  %s79 = sld [smem:[%s78]]
  %s80 = scalar_lea.smem %s0, 40
  %s81 = sld [smem:[%s80]]
  %s82 = scalar_lea.smem %s0, 41
  %s83 = sld [smem:[%s82]]
  %s84 = scalar_lea.smem %s0, 42
  %s85 = sld [smem:[%s84]]
  %s86 = scalar_lea.smem %s0, 43
  %s87 = sld [smem:[%s86]]
  %s88 = scalar_lea.smem %s0, 44
  %s89 = sld [smem:[%s88]]
  %s90 = scalar_lea.smem %s0, 45
  %s91 = sld [smem:[%s90]]
  %s92 = scalar_lea.smem %s0, 46
  %s93 = sld [smem:[%s92]]
  %s94 = scalar_lea.smem %s0, 47
  %s95 = sld [smem:[%s94]]
  %s96 = scalar_lea.smem %s0, 48
  %s97 = sld [smem:[%s96]]
  %s98 = scalar_lea.smem %s0, 49
  %s99 = sld [smem:[%s98]]
  %s100 = scalar_lea.smem %s0, 50
  %s101 = sld [smem:[%s100]]
  %s102 = scalar_lea.smem %s0, 51
  %s103 = sld [smem:[%s102]]
  %s104 = scalar_lea.smem %s0, 52
  %s105 = sld [smem:[%s104]]
  %s106 = scalar_lea.smem %s0, 53
  %s107 = sld [smem:[%s106]]
  %s108 = scalar_lea.smem %s0, 54
  %s109 = sld [smem:[%s108]]
  %s110 = scalar_lea.smem %s0, 55
  %s111 = sld [smem:[%s110]]
  %s112 = scalar_lea.smem %s0, 56
  %s113 = sld [smem:[%s112]]
  %s114 = scalar_lea.smem %s0, 57
  %s115 = sld [smem:[%s114]]
  %s116 = scalar_lea.smem %s0, 58
  %s117 = sld [smem:[%s116]]
  %s118 = scalar_lea.smem %s0, 59
  %s119 = sld [smem:[%s118]]
  %s120 = scalar_lea.smem %s0, 60
  %s121 = sld [smem:[%s120]]
  %s122 = scalar_lea.smem %s0, 61
  %s123 = sld [smem:[%s122]]
  %s124 = scalar_lea.smem %s0, 62
  %s125 = sld [smem:[%s124]]
  %s126 = scalar_lea.smem %s0, 63
  %s127 = sld [smem:[%s126]]
  %s128 = scalar_lea.smem %s0, 64
  %s129 = sld [smem:[%s128]]
  %s130 = scalar_lea.smem %s0, 65
  %s131 = sld [smem:[%s130]]
  %s132 = scalar_lea.smem %s0, 66
  %s133 = sld [smem:[%s132]]
  %s134 = scalar_lea.smem %s0, 67
  %s135 = sld [smem:[%s134]]
  %s136 = scalar_lea.smem %s0, 68
  %s137 = sld [smem:[%s136]]
  %s138 = sld [smem:[#allocation0]]
  $region409: #{forward.1} parent=0
    _
  %s140 = ssub.s32 1, %s138
  %s141 = scalar_select 0, %s140, %s138
  $region1: #{forward.1} parent=0
    #allocation2 [shape = 'u8[262144]{0}', space=vmem, size = 0x40000, scoped, tag = 'input window, operand 2, single buffered']
    #allocation3 [shape = 's32[2]{0}', space=sflag, size = 0x8, scoped, tag = 'scoped memory for forward.1']
    #allocation4 [shape = 'u8[512]{0}', space=vmem, size = 0x400, scoped, tag = 'input window, operand 31, single buffered']
    #allocation5 [shape = 's32[1]{0}', space=sflag, size = 0x4, scoped, tag = 'scoped memory for forward.1']
    #allocation6 [shape = 'u8[512]{0}', space=vmem, size = 0x400, scoped, tag = 'input window, operand 32, single buffered']
    #allocation7 [shape = 'u8[512]{0}', space=vmem, size = 0x400, scoped, tag = 'input window, operand 33, single buffered']
    #allocation8 [shape = 's32[1]{0}', space=sflag, size = 0x4, scoped, tag = 'scoped memory for forward.1']
    #allocation9 [shape = 'u8[512]{0}', space=vmem, size = 0x400, scoped, tag = 'input window, operand 34, single buffered']
    #allocation10 [shape = 'u8[512]{0}', space=vmem, size = 0x400, scoped, tag = 'input window, operand 37, single buffered']
    #allocation11 [shape = 's32[1]{0}', space=sflag, size = 0x4, scoped, tag = 'scoped memory for forward.1']
    #allocation12 [shape = 'u8[512]{0}', space=vmem, size = 0x400, scoped, tag = 'input window, operand 38, single buffered']
    #allocation13 [shape = 'u8[512]{0}', space=vmem, size = 0x400, scoped, tag = 'input window, operand 39, single buffered']
    #allocation14 [shape = 's32[1]{0}', space=sflag, size = 0x4, scoped, tag = 'scoped memory for forward.1']
    #allocation15 [shape = 'u8[512]{0}', space=vmem, size = 0x400, scoped, tag = 'input window, operand 41, single buffered']
    #allocation16 [shape = 'u8[512]{0}', space=vmem, size = 0x400, scoped, tag = 'input window, operand 42, single buffered']
    #allocation17 [shape = 's32[1]{0}', space=sflag, size = 0x4, scoped, tag = 'scoped memory for forward.1']
    #allocation18 [shape = 'u8[512]{0}', space=vmem, size = 0x400, scoped, tag = 'input window, operand 43, single buffered']
    #allocation19 [shape = 'u8[512]{0}', space=vmem, size = 0x400, scoped, tag = 'input window, operand 45, single buffered']
    #allocation20 [shape = 's32[1]{0}', space=sflag, size = 0x4, scoped, tag = 'scoped memory for forward.1']
    #allocation21 [shape = 'u8[512]{0}', space=vmem, size = 0x400, scoped, tag = 'input window, operand 47, single buffered']
    #allocation22 [shape = 'u8[512]{0}', space=vmem, size = 0x400, scoped, tag = 'input window, operand 48, single buffered']
    #allocation23 [shape = 's32[1]{0}', space=sflag, size = 0x4, scoped, tag = 'scoped memory for forward.1']
    #allocation24 [shape = 'u8[512]{0}', space=vmem, size = 0x400, scoped, tag = 'input window, operand 49, single buffered']
    #allocation25 [shape = 'u8[512]{0}', space=vmem, size = 0x400, scoped, tag = 'input window, operand 50, single buffered']
    #allocation26 [shape = 's32[1]{0}', space=sflag, size = 0x4, scoped, tag = 'scoped memory for forward.1']
    #allocation27 [shape = 'u8[512]{0}', space=vmem, size = 0x400, scoped, tag = 'input window, operand 53, single buffered']
    #allocation28 [shape = 'u8[512]{0}', space=vmem, size = 0x400, scoped, tag = 'input window, operand 54, single buffered']
    #allocation29 [shape = 's32[1]{0}', space=sflag, size = 0x4, scoped, tag = 'scoped memory for forward.1']
    #allocation30 [shape = 'u8[512]{0}', space=vmem, size = 0x400, scoped, tag = 'input window, operand 55, single buffered']
    #allocation31 [shape = 'u8[512]{0}', space=vmem, size = 0x400, scoped, tag = 'input window, operand 56, single buffered']
    #allocation32 [shape = 's32[1]{0}', space=sflag, size = 0x4, scoped, tag = 'scoped memory for forward.1']
    #allocation33 [shape = 'u8[512]{0}', space=vmem, size = 0x400, scoped, tag = 'input window, operand 59, single buffered']
    #allocation34 [shape = 'u8[512]{0}', space=vmem, size = 0x400, scoped, tag = 'input window, operand 60, single buffered']
    #allocation35 [shape = 's32[1]{0}', space=sflag, size = 0x4, scoped, tag = 'scoped memory for forward.1']
    #allocation36 [shape = 'u8[512]{0}', space=vmem, size = 0x400, scoped, tag = 'input window, operand 61, single buffered']
    #allocation37 [shape = 'u8[512]{0}', space=vmem, size = 0x400, scoped, tag = 'input window, operand 62, single buffered']
    #allocation38 [shape = 's32[1]{0}', space=sflag, size = 0x4, scoped, tag = 'scoped memory for forward.1']
    #allocation39 [shape = 'u8[512]{0}', space=vmem, size = 0x400, scoped, tag = 'input window, operand 63, single buffered']
    #allocation40 [shape = 'u8[512]{0}', space=vmem, size = 0x400, scoped, tag = 'input window, operand 64, single buffered']
    #allocation41 [shape = 's32[1]{0}', space=sflag, size = 0x4, scoped, tag = 'scoped memory for forward.1']
    %142 = vsyncpa [#allocation3], 0
    %143 = vsyncpa [#allocation5], 0
    %144 = vsyncpa [#allocation8], 0
    %145 = vsyncpa [#allocation11], 0
    %146 = vsyncpa [#allocation14], 0
    %147 = vsyncpa [#allocation17], 0
    %148 = vsyncpa [#allocation20], 0
    %149 = vsyncpa [#allocation23], 0
    %150 = vsyncpa [#allocation26], 0
    %151 = vsyncpa [#allocation29], 0
    %152 = vsyncpa [#allocation32], 0
    %153 = vsyncpa [#allocation35], 0
    %154 = vsyncpa [#allocation38], 0
    %155 = vsyncpa [#allocation41], 0
    loop: start=0, step=1, limit=4
    $region2: #{forward.1} parent=1 // loop_pre_header
      _
    $region3: #{forward.1} parent=1 // loop_header
      %s157 = sphi 0, %s161
      %p158 = scmp.ge.s32.totalorder %s157, 4
      %s167 = sphi 0, %s169
      %s170 = sphi 0, %s167
      %s171 = sphi 0, %s170
      %s187 = sphi 0, %s171
      %s193 = sphi 0, %s195
      %s196 = sphi 0, %s193
      %s197 = sphi 0, %s196
      %s213 = sphi 0, %s197
      %s217 = sphi 0, %s217
      %s219 = sphi 0, %s217
      %s220 = sphi 0, %s219
      %s234 = sphi 0, %s220
      %s238 = sphi 0, %s238
      %s240 = sphi 0, %s238
      %s241 = sphi 0, %s240
      %s255 = sphi 0, %s241
      %s259 = sphi 0, %s259
      %s261 = sphi 0, %s259
      %s262 = sphi 0, %s261
      %s276 = sphi 0, %s262
      %s280 = sphi 0, %s280
      %s282 = sphi 0, %s280
      %s283 = sphi 0, %s282
      %s297 = sphi 0, %s283
      %s301 = sphi 0, %s301
      %s303 = sphi 0, %s301
      %s304 = sphi 0, %s303
      %s318 = sphi 0, %s304
      %s322 = sphi 0, %s322
      %s324 = sphi 0, %s322
      %s325 = sphi 0, %s324
      %s339 = sphi 0, %s325
      %s343 = sphi 0, %s343
      %s345 = sphi 0, %s343
      %s346 = sphi 0, %s345
      %s360 = sphi 0, %s346
      %s364 = sphi 0, %s364
      %s366 = sphi 0, %s364
      %s367 = sphi 0, %s366
      %s381 = sphi 0, %s367
      %s385 = sphi 0, %s385
      %s387 = sphi 0, %s385
      %s388 = sphi 0, %s387
      %s402 = sphi 0, %s388
      %s406 = sphi 0, %s406
      %s408 = sphi 0, %s406
      %s409 = sphi 0, %s408
      %s423 = sphi 0, %s409
      %s427 = sphi 0, %s427
      %s429 = sphi 0, %s427
      %s430 = sphi 0, %s429
      %s444 = sphi 0, %s430
      %s448 = sphi 0, %s448
      %s450 = sphi 0, %s448
      %s451 = sphi 0, %s450
      %s465 = sphi 0, %s451
      %s469 = sphi 0, %s469
      %s471 = sphi 0, %s469
      %s472 = sphi 0, %s471
      %s486 = sphi 0, %s472
      %s490 = sphi 0, %s490
      %s492 = sphi 0, %s490
      %s493 = sphi 0, %s492
      %s507 = sphi 0, %s493
      %s511 = sphi 0, %s511
      %s513 = sphi 0, %s511
      %s514 = sphi 0, %s513
      %s528 = sphi 0, %s514
      %s532 = sphi 0, %s532
      %s534 = sphi 0, %s532
      %s535 = sphi 0, %s534
      %s549 = sphi 0, %s535
      %s553 = sphi 0, %s553
      %s555 = sphi 0, %s553
      %s556 = sphi 0, %s555
      %s570 = sphi 0, %s556
      %s574 = sphi 0, %s574
      %s576 = sphi 0, %s574
      %s577 = sphi 0, %s576
      %s591 = sphi 0, %s577
      %s595 = sphi 0, %s595
      %s597 = sphi 0, %s595
      %s598 = sphi 0, %s597
      %s612 = sphi 0, %s598
      %s616 = sphi 0, %s616
      %s618 = sphi 0, %s616
      %s619 = sphi 0, %s618
      %s633 = sphi 0, %s619
      %s637 = sphi 0, %s637
      %s639 = sphi 0, %s637
      %s640 = sphi 0, %s639
      %s654 = sphi 0, %s640
      %s658 = sphi 0, %s658
      %s660 = sphi 0, %s658
      %s661 = sphi 0, %s660
      %s675 = sphi 0, %s661
      %s679 = sphi 0, %s679
      %s681 = sphi 0, %s679
      %s682 = sphi 0, %s681
      %s696 = sphi 0, %s682
      %s700 = sphi 0, %s700
      %s702 = sphi 0, %s700
      %s703 = sphi 0, %s702
      %s717 = sphi 0, %s703
      %s721 = sphi 0, %s721
      %s723 = sphi 0, %s721
      %s724 = sphi 0, %s723
      %s738 = sphi 0, %s724
      %s742 = sphi 0, %s742
      %s744 = sphi 0, %s742
      %s745 = sphi 0, %s744
      %s759 = sphi 0, %s745
      %s763 = sphi 0, %s763
      %s765 = sphi 0, %s763
      %s766 = sphi 0, %s765
      %s780 = sphi 0, %s766
      %s784 = sphi 0, %s784
      %s786 = sphi 0, %s784
      %s787 = sphi 0, %s786
      %s801 = sphi 0, %s787
      %s805 = sphi 0, %s805
      %s807 = sphi 0, %s805
      %s808 = sphi 0, %s807
      %s822 = sphi 0, %s808
      %s826 = sphi 0, %s826
      %s828 = sphi 0, %s826
      %s829 = sphi 0, %s828
      %s843 = sphi 0, %s829
      %s847 = sphi 0, %s847
      %s849 = sphi 0, %s847
      %s850 = sphi 0, %s849
      %s864 = sphi 0, %s850
      %s868 = sphi 0, %s868
      %s870 = sphi 0, %s868
      %s871 = sphi 0, %s870
      %s885 = sphi 0, %s871
      %s889 = sphi 0, %s889
      %s891 = sphi 0, %s889
      %s892 = sphi 0, %s891
      %s906 = sphi 0, %s892
      %s910 = sphi 0, %s910
      %s912 = sphi 0, %s910
      %s913 = sphi 0, %s912
      %s927 = sphi 0, %s913
      %s931 = sphi 0, %s931
      %s933 = sphi 0, %s931
      %s934 = sphi 0, %s933
      %s948 = sphi 0, %s934
      %s952 = sphi 0, %s952
      %s954 = sphi 0, %s952
      %s955 = sphi 0, %s954
      %s969 = sphi 0, %s955
      %s973 = sphi 0, %s973
      %s975 = sphi 0, %s973
      %s976 = sphi 0, %s975
      %s990 = sphi 0, %s976
      %s994 = sphi 0, %s994
      %s996 = sphi 0, %s994
      %s997 = sphi 0, %s996
      %s1011 = sphi 0, %s997
      %s1015 = sphi 0, %s1015
      %s1017 = sphi 0, %s1015
      %s1018 = sphi 0, %s1017
      %s1032 = sphi 0, %s1018
      %s1036 = sphi 0, %s1036
      %s1038 = sphi 0, %s1036
      %s1039 = sphi 0, %s1038
      %s1053 = sphi 0, %s1039
      %s1057 = sphi 0, %s1057
      %s1059 = sphi 0, %s1057
      %s1060 = sphi 0, %s1059
      %s1074 = sphi 0, %s1060
      %s1078 = sphi 0, %s1078
      %s1080 = sphi 0, %s1078
      %s1081 = sphi 0, %s1080
      %s1095 = sphi 0, %s1081
      %s1099 = sphi 0, %s1099
      %s1101 = sphi 0, %s1099
      %s1102 = sphi 0, %s1101
      %s1116 = sphi 0, %s1102
      %s1120 = sphi 0, %s1120
      %s1122 = sphi 0, %s1120
      %s1123 = sphi 0, %s1122
      %s1137 = sphi 0, %s1123
      %s1141 = sphi 0, %s1141
      %s1143 = sphi 0, %s1141
      %s1144 = sphi 0, %s1143
      %s1158 = sphi 0, %s1144
      %s1162 = sphi 0, %s1162
      %s1164 = sphi 0, %s1162
      %s1165 = sphi 0, %s1164
      %s1179 = sphi 0, %s1165
      %s1183 = sphi 0, %s1183
      %s1185 = sphi 0, %s1183
      %s1186 = sphi 0, %s1185
      %s1200 = sphi 0, %s1186
      %s1204 = sphi 0, %s1204
      %s1206 = sphi 0, %s1204
      %s1207 = sphi 0, %s1206
      %s1221 = sphi 0, %s1207
      %s1225 = sphi 0, %s1225
      %s1227 = sphi 0, %s1225
      %s1228 = sphi 0, %s1227
      %s1242 = sphi 0, %s1228
      %s1246 = sphi 0, %s1246
      %s1248 = sphi 0, %s1246
      %s1249 = sphi 0, %s1248
      %s1263 = sphi 0, %s1249
      %s1267 = sphi 0, %s1267
      %s1269 = sphi 0, %s1267
      %s1270 = sphi 0, %s1269
      %s1284 = sphi 0, %s1270
      %s1288 = sphi 0, %s1288
      %s1290 = sphi 0, %s1288
      %s1291 = sphi 0, %s1290
      %s1305 = sphi 0, %s1291
      %s1309 = sphi 0, %s1309
      %s1311 = sphi 0, %s1309
      %s1312 = sphi 0, %s1311
      %s1326 = sphi 0, %s1312
      %s1330 = sphi 0, %s1330
      %s1332 = sphi 0, %s1330
      %s1333 = sphi 0, %s1332
      %s1347 = sphi 0, %s1333
      %s1351 = sphi 0, %s1351
      %s1353 = sphi 0, %s1351
      %s1354 = sphi 0, %s1353
      %s1368 = sphi 0, %s1354
      %s1372 = sphi 0, %s1372
      %s1374 = sphi 0, %s1372
      %s1375 = sphi 0, %s1374
      %s1389 = sphi 0, %s1375
      %s1393 = sphi 0, %s1393
      %s1395 = sphi 0, %s1393
      %s1396 = sphi 0, %s1395
      %s1410 = sphi 0, %s1396
      %s1414 = sphi 0, %s1414
      %s1416 = sphi 0, %s1414
      %s1417 = sphi 0, %s1416
      %s1431 = sphi 0, %s1417
      %s1435 = sphi 0, %s1435
      %s1437 = sphi 0, %s1435
      %s1438 = sphi 0, %s1437
      %s1452 = sphi 0, %s1438
      %s1456 = sphi 0, %s1456
      %s1458 = sphi 0, %s1456
      %s1459 = sphi 0, %s1458
      %s1473 = sphi 0, %s1459
      %s1477 = sphi 0, %s1477
      %s1479 = sphi 0, %s1477
      %s1480 = sphi 0, %s1479
      %s1494 = sphi 0, %s1480
      %s1498 = sphi 0, %s1498
      %s1500 = sphi 0, %s1498
      %s1501 = sphi 0, %s1500
      %s1515 = sphi 0, %s1501
      %s1519 = sphi 0, %s1519
      %s1521 = sphi 0, %s1519
      %s1522 = sphi 0, %s1521
      %s1536 = sphi 0, %s1522
      %s1540 = sphi 0, %s1540
      %s1542 = sphi 0, %s1540
      %s1543 = sphi 0, %s1542
      %s1557 = sphi 0, %s1543
      %s1561 = sphi 0, %s1561
      %s1563 = sphi 0, %s1561
      %s1564 = sphi 0, %s1563
      %s1578 = sphi 0, %s1564
      %s1582 = sphi 0, %s1582
      %s1584 = sphi 0, %s1582
      %s1585 = sphi 0, %s1584
      %s1599 = sphi 0, %s1585
      %s1605 = sphi 0, %s1607
      %s1608 = sphi 0, %s1605
      %s1609 = sphi 0, %s1608
      %s1625 = sphi 0, %s1609
    $region4: #{forward.1} parent=1 // loop_header_branch
      %160 = sbr.rel (%p158) target = $region8
    $region5: #{forward.1} parent=1 // loop_body
      %s162 = ssub.s32 %s157, 1
      %s163 = ssub.s32 %s157, 2
      %s164 = sadd.s32 %s157, 1
      %s165 = ssub.s32 %s157, %s164
      %p166 = scmp.eq.s32.totalorder %s165, 0
      %s168 = sadd.s32 %s167, 1
      %s169 = scalar_select %p166, %s167, %s168
      %p172 = pneg %p166
      %p173 = scmp.eq.s32.totalorder %s157, 1
      %p174 = por %p172, %p173
      %p175 = scmp.ne.s32.totalorder %s167, %s170
      %p176 = scmp.eq.s32.totalorder %s157, 0
      %p177 = por %p175, %p176
      %p178 = scmp.ne.s32.totalorder %s167, %s170
      %p179 = scmp.eq.s32.totalorder %s162, 1
      %p180 = por %p178, %p179
      %p181 = scmp.ne.s32.totalorder %s170, %s171
      %p182 = scmp.eq.s32.totalorder %s162, 0
      %p183 = por %p181, %p182
      %p184 = scmp.ne.s32.totalorder %s170, %s171
      %p185 = scmp.eq.s32.totalorder %s163, 1
      %p186 = por %p184, %p185
      %p188 = scmp.ne.s32.totalorder %s171, %s187
      %p189 = scmp.eq.s32.totalorder %s163, 0
      %p190 = por %p188, %p189
      %s191 = ssub.s32 %s157, %s164
      %p192 = scmp.eq.s32.totalorder %s191, 0
      %s194 = sadd.s32 %s193, 1
      %s195 = scalar_select %p192, %s193, %s194
      %p198 = pneg %p192
      %p199 = scmp.eq.s32.totalorder %s157, 1
      %p200 = por %p198, %p199
      %p201 = scmp.ne.s32.totalorder %s193, %s196
      %p202 = scmp.eq.s32.totalorder %s157, 0
      %p203 = por %p201, %p202
      %p204 = scmp.ne.s32.totalorder %s193, %s196
      %p205 = scmp.eq.s32.totalorder %s162, 1
      %p206 = por %p204, %p205
      %p207 = scmp.ne.s32.totalorder %s196, %s197
      %p208 = scmp.eq.s32.totalorder %s162, 0
      %p209 = por %p207, %p208
      %p210 = scmp.ne.s32.totalorder %s196, %s197
      %p211 = scmp.eq.s32.totalorder %s163, 1
      %p212 = por %p210, %p211
      %p214 = scmp.ne.s32.totalorder %s197, %s213
      %p215 = scmp.eq.s32.totalorder %s163, 0
      %p216 = por %p214, %p215
      %s218 = sadd.s32 %s217, 1
      %p221 = scmp.eq.s32.totalorder %s157, 1
      %p222 = scmp.ne.s32.totalorder %s217, %s219
      %p223 = scmp.eq.s32.totalorder %s157, 0
      %p224 = por %p222, %p223
      %p225 = scmp.ne.s32.totalorder %s217, %s219
      %p226 = scmp.eq.s32.totalorder %s162, 1
      %p227 = por %p225, %p226
      %p228 = scmp.ne.s32.totalorder %s219, %s220
      %p229 = scmp.eq.s32.totalorder %s162, 0
      %p230 = por %p228, %p229
      %p231 = scmp.ne.s32.totalorder %s219, %s220
      %p232 = scmp.eq.s32.totalorder %s163, 1
      %p233 = por %p231, %p232
      %p235 = scmp.ne.s32.totalorder %s220, %s234
      %p236 = scmp.eq.s32.totalorder %s163, 0
      %p237 = por %p235, %p236
      %s239 = sadd.s32 %s238, 1
      %p242 = scmp.eq.s32.totalorder %s157, 1
      %p243 = scmp.ne.s32.totalorder %s238, %s240
      %p244 = scmp.eq.s32.totalorder %s157, 0
      %p245 = por %p243, %p244
      %p246 = scmp.ne.s32.totalorder %s238, %s240
      %p247 = scmp.eq.s32.totalorder %s162, 1
      %p248 = por %p246, %p247
      %p249 = scmp.ne.s32.totalorder %s240, %s241
      %p250 = scmp.eq.s32.totalorder %s162, 0
      %p251 = por %p249, %p250
      %p252 = scmp.ne.s32.totalorder %s240, %s241
      %p253 = scmp.eq.s32.totalorder %s163, 1
      %p254 = por %p252, %p253
      %p256 = scmp.ne.s32.totalorder %s241, %s255
      %p257 = scmp.eq.s32.totalorder %s163, 0
      %p258 = por %p256, %p257
      %s260 = sadd.s32 %s259, 1
      %p263 = scmp.eq.s32.totalorder %s157, 1
      %p264 = scmp.ne.s32.totalorder %s259, %s261
      %p265 = scmp.eq.s32.totalorder %s157, 0
      %p266 = por %p264, %p265
      %p267 = scmp.ne.s32.totalorder %s259, %s261
      %p268 = scmp.eq.s32.totalorder %s162, 1
      %p269 = por %p267, %p268
      %p270 = scmp.ne.s32.totalorder %s261, %s262
      %p271 = scmp.eq.s32.totalorder %s162, 0
      %p272 = por %p270, %p271
      %p273 = scmp.ne.s32.totalorder %s261, %s262
      %p274 = scmp.eq.s32.totalorder %s163, 1
      %p275 = por %p273, %p274
      %p277 = scmp.ne.s32.totalorder %s262, %s276
      %p278 = scmp.eq.s32.totalorder %s163, 0
      %p279 = por %p277, %p278
      %s281 = sadd.s32 %s280, 1
      %p284 = scmp.eq.s32.totalorder %s157, 1
      %p285 = scmp.ne.s32.totalorder %s280, %s282
      %p286 = scmp.eq.s32.totalorder %s157, 0
      %p287 = por %p285, %p286
      %p288 = scmp.ne.s32.totalorder %s280, %s282
      %p289 = scmp.eq.s32.totalorder %s162, 1
      %p290 = por %p288, %p289
      %p291 = scmp.ne.s32.totalorder %s282, %s283
      %p292 = scmp.eq.s32.totalorder %s162, 0
      %p293 = por %p291, %p292
      %p294 = scmp.ne.s32.totalorder %s282, %s283
      %p295 = scmp.eq.s32.totalorder %s163, 1
      %p296 = por %p294, %p295
      %p298 = scmp.ne.s32.totalorder %s283, %s297
      %p299 = scmp.eq.s32.totalorder %s163, 0
      %p300 = por %p298, %p299
      %s302 = sadd.s32 %s301, 1
      %p305 = scmp.eq.s32.totalorder %s157, 1
      %p306 = scmp.ne.s32.totalorder %s301, %s303
      %p307 = scmp.eq.s32.totalorder %s157, 0
      %p308 = por %p306, %p307
      %p309 = scmp.ne.s32.totalorder %s301, %s303
      %p310 = scmp.eq.s32.totalorder %s162, 1
      %p311 = por %p309, %p310
      %p312 = scmp.ne.s32.totalorder %s303, %s304
      %p313 = scmp.eq.s32.totalorder %s162, 0
      %p314 = por %p312, %p313
      %p315 = scmp.ne.s32.totalorder %s303, %s304
      %p316 = scmp.eq.s32.totalorder %s163, 1
      %p317 = por %p315, %p316
      %p319 = scmp.ne.s32.totalorder %s304, %s318
      %p320 = scmp.eq.s32.totalorder %s163, 0
      %p321 = por %p319, %p320
      %s323 = sadd.s32 %s322, 1
      %p326 = scmp.eq.s32.totalorder %s157, 1
      %p327 = scmp.ne.s32.totalorder %s322, %s324
      %p328 = scmp.eq.s32.totalorder %s157, 0
      %p329 = por %p327, %p328
      %p330 = scmp.ne.s32.totalorder %s322, %s324
      %p331 = scmp.eq.s32.totalorder %s162, 1
      %p332 = por %p330, %p331
      %p333 = scmp.ne.s32.totalorder %s324, %s325
      %p334 = scmp.eq.s32.totalorder %s162, 0
      %p335 = por %p333, %p334
      %p336 = scmp.ne.s32.totalorder %s324, %s325
      %p337 = scmp.eq.s32.totalorder %s163, 1
      %p338 = por %p336, %p337
      %p340 = scmp.ne.s32.totalorder %s325, %s339
      %p341 = scmp.eq.s32.totalorder %s163, 0
      %p342 = por %p340, %p341
      %s344 = sadd.s32 %s343, 1
      %p347 = scmp.eq.s32.totalorder %s157, 1
      %p348 = scmp.ne.s32.totalorder %s343, %s345
      %p349 = scmp.eq.s32.totalorder %s157, 0
      %p350 = por %p348, %p349
      %p351 = scmp.ne.s32.totalorder %s343, %s345
      %p352 = scmp.eq.s32.totalorder %s162, 1
      %p353 = por %p351, %p352
      %p354 = scmp.ne.s32.totalorder %s345, %s346
      %p355 = scmp.eq.s32.totalorder %s162, 0
      %p356 = por %p354, %p355
      %p357 = scmp.ne.s32.totalorder %s345, %s346
      %p358 = scmp.eq.s32.totalorder %s163, 1
      %p359 = por %p357, %p358
      %p361 = scmp.ne.s32.totalorder %s346, %s360
      %p362 = scmp.eq.s32.totalorder %s163, 0
      %p363 = por %p361, %p362
      %s365 = sadd.s32 %s364, 1
      %p368 = scmp.eq.s32.totalorder %s157, 1
      %p369 = scmp.ne.s32.totalorder %s364, %s366
      %p370 = scmp.eq.s32.totalorder %s157, 0
      %p371 = por %p369, %p370
      %p372 = scmp.ne.s32.totalorder %s364, %s366
      %p373 = scmp.eq.s32.totalorder %s162, 1
      %p374 = por %p372, %p373
      %p375 = scmp.ne.s32.totalorder %s366, %s367
      %p376 = scmp.eq.s32.totalorder %s162, 0
      %p377 = por %p375, %p376
      %p378 = scmp.ne.s32.totalorder %s366, %s367
      %p379 = scmp.eq.s32.totalorder %s163, 1
      %p380 = por %p378, %p379
      %p382 = scmp.ne.s32.totalorder %s367, %s381
      %p383 = scmp.eq.s32.totalorder %s163, 0
      %p384 = por %p382, %p383
      %s386 = sadd.s32 %s385, 1
      %p389 = scmp.eq.s32.totalorder %s157, 1
      %p390 = scmp.ne.s32.totalorder %s385, %s387
      %p391 = scmp.eq.s32.totalorder %s157, 0
      %p392 = por %p390, %p391
      %p393 = scmp.ne.s32.totalorder %s385, %s387
      %p394 = scmp.eq.s32.totalorder %s162, 1
      %p395 = por %p393, %p394
      %p396 = scmp.ne.s32.totalorder %s387, %s388
      %p397 = scmp.eq.s32.totalorder %s162, 0
      %p398 = por %p396, %p397
      %p399 = scmp.ne.s32.totalorder %s387, %s388
      %p400 = scmp.eq.s32.totalorder %s163, 1
      %p401 = por %p399, %p400
      %p403 = scmp.ne.s32.totalorder %s388, %s402
      %p404 = scmp.eq.s32.totalorder %s163, 0
      %p405 = por %p403, %p404
      %s407 = sadd.s32 %s406, 1
      %p410 = scmp.eq.s32.totalorder %s157, 1
      %p411 = scmp.ne.s32.totalorder %s406, %s408
      %p412 = scmp.eq.s32.totalorder %s157, 0
      %p413 = por %p411, %p412
      %p414 = scmp.ne.s32.totalorder %s406, %s408
      %p415 = scmp.eq.s32.totalorder %s162, 1
      %p416 = por %p414, %p415
      %p417 = scmp.ne.s32.totalorder %s408, %s409
      %p418 = scmp.eq.s32.totalorder %s162, 0
      %p419 = por %p417, %p418
      %p420 = scmp.ne.s32.totalorder %s408, %s409
      %p421 = scmp.eq.s32.totalorder %s163, 1
      %p422 = por %p420, %p421
      %p424 = scmp.ne.s32.totalorder %s409, %s423
      %p425 = scmp.eq.s32.totalorder %s163, 0
      %p426 = por %p424, %p425
      %s428 = sadd.s32 %s427, 1
      %p431 = scmp.eq.s32.totalorder %s157, 1
      %p432 = scmp.ne.s32.totalorder %s427, %s429
      %p433 = scmp.eq.s32.totalorder %s157, 0
      %p434 = por %p432, %p433
      %p435 = scmp.ne.s32.totalorder %s427, %s429
      %p436 = scmp.eq.s32.totalorder %s162, 1
      %p437 = por %p435, %p436
      %p438 = scmp.ne.s32.totalorder %s429, %s430
      %p439 = scmp.eq.s32.totalorder %s162, 0
      %p440 = por %p438, %p439
      %p441 = scmp.ne.s32.totalorder %s429, %s430
      %p442 = scmp.eq.s32.totalorder %s163, 1
      %p443 = por %p441, %p442
      %p445 = scmp.ne.s32.totalorder %s430, %s444
      %p446 = scmp.eq.s32.totalorder %s163, 0
      %p447 = por %p445, %p446
      %s449 = sadd.s32 %s448, 1
      %p452 = scmp.eq.s32.totalorder %s157, 1
      %p453 = scmp.ne.s32.totalorder %s448, %s450
      %p454 = scmp.eq.s32.totalorder %s157, 0
      %p455 = por %p453, %p454
      %p456 = scmp.ne.s32.totalorder %s448, %s450
      %p457 = scmp.eq.s32.totalorder %s162, 1
      %p458 = por %p456, %p457
      %p459 = scmp.ne.s32.totalorder %s450, %s451
      %p460 = scmp.eq.s32.totalorder %s162, 0
      %p461 = por %p459, %p460
      %p462 = scmp.ne.s32.totalorder %s450, %s451
      %p463 = scmp.eq.s32.totalorder %s163, 1
      %p464 = por %p462, %p463
      %p466 = scmp.ne.s32.totalorder %s451, %s465
      %p467 = scmp.eq.s32.totalorder %s163, 0
      %p468 = por %p466, %p467
      %s470 = sadd.s32 %s469, 1
      %p473 = scmp.eq.s32.totalorder %s157, 1
      %p474 = scmp.ne.s32.totalorder %s469, %s471
      %p475 = scmp.eq.s32.totalorder %s157, 0
      %p476 = por %p474, %p475
      %p477 = scmp.ne.s32.totalorder %s469, %s471
      %p478 = scmp.eq.s32.totalorder %s162, 1
      %p479 = por %p477, %p478
      %p480 = scmp.ne.s32.totalorder %s471, %s472
      %p481 = scmp.eq.s32.totalorder %s162, 0
      %p482 = por %p480, %p481
      %p483 = scmp.ne.s32.totalorder %s471, %s472
      %p484 = scmp.eq.s32.totalorder %s163, 1
      %p485 = por %p483, %p484
      %p487 = scmp.ne.s32.totalorder %s472, %s486
      %p488 = scmp.eq.s32.totalorder %s163, 0
      %p489 = por %p487, %p488
      %s491 = sadd.s32 %s490, 1
      %p494 = scmp.eq.s32.totalorder %s157, 1
      %p495 = scmp.ne.s32.totalorder %s490, %s492
      %p496 = scmp.eq.s32.totalorder %s157, 0
      %p497 = por %p495, %p496
      %p498 = scmp.ne.s32.totalorder %s490, %s492
      %p499 = scmp.eq.s32.totalorder %s162, 1
      %p500 = por %p498, %p499
      %p501 = scmp.ne.s32.totalorder %s492, %s493
      %p502 = scmp.eq.s32.totalorder %s162, 0
      %p503 = por %p501, %p502
      %p504 = scmp.ne.s32.totalorder %s492, %s493
      %p505 = scmp.eq.s32.totalorder %s163, 1
      %p506 = por %p504, %p505
      %p508 = scmp.ne.s32.totalorder %s493, %s507
      %p509 = scmp.eq.s32.totalorder %s163, 0
      %p510 = por %p508, %p509
      %s512 = sadd.s32 %s511, 1
      %p515 = scmp.eq.s32.totalorder %s157, 1
      %p516 = scmp.ne.s32.totalorder %s511, %s513
      %p517 = scmp.eq.s32.totalorder %s157, 0
      %p518 = por %p516, %p517
      %p519 = scmp.ne.s32.totalorder %s511, %s513
      %p520 = scmp.eq.s32.totalorder %s162, 1
      %p521 = por %p519, %p520
      %p522 = scmp.ne.s32.totalorder %s513, %s514
      %p523 = scmp.eq.s32.totalorder %s162, 0
      %p524 = por %p522, %p523
      %p525 = scmp.ne.s32.totalorder %s513, %s514
      %p526 = scmp.eq.s32.totalorder %s163, 1
      %p527 = por %p525, %p526
      %p529 = scmp.ne.s32.totalorder %s514, %s528
      %p530 = scmp.eq.s32.totalorder %s163, 0
      %p531 = por %p529, %p530
      %s533 = sadd.s32 %s532, 1
      %p536 = scmp.eq.s32.totalorder %s157, 1
      %p537 = scmp.ne.s32.totalorder %s532, %s534
      %p538 = scmp.eq.s32.totalorder %s157, 0
      %p539 = por %p537, %p538
      %p540 = scmp.ne.s32.totalorder %s532, %s534
      %p541 = scmp.eq.s32.totalorder %s162, 1
      %p542 = por %p540, %p541
      %p543 = scmp.ne.s32.totalorder %s534, %s535
      %p544 = scmp.eq.s32.totalorder %s162, 0
      %p545 = por %p543, %p544
      %p546 = scmp.ne.s32.totalorder %s534, %s535
      %p547 = scmp.eq.s32.totalorder %s163, 1
      %p548 = por %p546, %p547
      %p550 = scmp.ne.s32.totalorder %s535, %s549
      %p551 = scmp.eq.s32.totalorder %s163, 0
      %p552 = por %p550, %p551
      %s554 = sadd.s32 %s553, 1
      %p557 = scmp.eq.s32.totalorder %s157, 1
      %p558 = scmp.ne.s32.totalorder %s553, %s555
      %p559 = scmp.eq.s32.totalorder %s157, 0
      %p560 = por %p558, %p559
      %p561 = scmp.ne.s32.totalorder %s553, %s555
      %p562 = scmp.eq.s32.totalorder %s162, 1
      %p563 = por %p561, %p562
      %p564 = scmp.ne.s32.totalorder %s555, %s556
      %p565 = scmp.eq.s32.totalorder %s162, 0
      %p566 = por %p564, %p565
      %p567 = scmp.ne.s32.totalorder %s555, %s556
      %p568 = scmp.eq.s32.totalorder %s163, 1
      %p569 = por %p567, %p568
      %p571 = scmp.ne.s32.totalorder %s556, %s570
      %p572 = scmp.eq.s32.totalorder %s163, 0
      %p573 = por %p571, %p572
      %s575 = sadd.s32 %s574, 1
      %p578 = scmp.eq.s32.totalorder %s157, 1
      %p579 = scmp.ne.s32.totalorder %s574, %s576
      %p580 = scmp.eq.s32.totalorder %s157, 0
      %p581 = por %p579, %p580
      %p582 = scmp.ne.s32.totalorder %s574, %s576
      %p583 = scmp.eq.s32.totalorder %s162, 1
      %p584 = por %p582, %p583
      %p585 = scmp.ne.s32.totalorder %s576, %s577
      %p586 = scmp.eq.s32.totalorder %s162, 0
      %p587 = por %p585, %p586
      %p588 = scmp.ne.s32.totalorder %s576, %s577
      %p589 = scmp.eq.s32.totalorder %s163, 1
      %p590 = por %p588, %p589
      %p592 = scmp.ne.s32.totalorder %s577, %s591
      %p593 = scmp.eq.s32.totalorder %s163, 0
      %p594 = por %p592, %p593
      %s596 = sadd.s32 %s595, 1
      %p599 = scmp.eq.s32.totalorder %s157, 1
      %p600 = scmp.ne.s32.totalorder %s595, %s597
      %p601 = scmp.eq.s32.totalorder %s157, 0
      %p602 = por %p600, %p601
      %p603 = scmp.ne.s32.totalorder %s595, %s597
      %p604 = scmp.eq.s32.totalorder %s162, 1
      %p605 = por %p603, %p604
      %p606 = scmp.ne.s32.totalorder %s597, %s598
      %p607 = scmp.eq.s32.totalorder %s162, 0
      %p608 = por %p606, %p607
      %p609 = scmp.ne.s32.totalorder %s597, %s598
      %p610 = scmp.eq.s32.totalorder %s163, 1
      %p611 = por %p609, %p610
      %p613 = scmp.ne.s32.totalorder %s598, %s612
      %p614 = scmp.eq.s32.totalorder %s163, 0
      %p615 = por %p613, %p614
      %s617 = sadd.s32 %s616, 1
      %p620 = scmp.eq.s32.totalorder %s157, 1
      %p621 = scmp.ne.s32.totalorder %s616, %s618
      %p622 = scmp.eq.s32.totalorder %s157, 0
      %p623 = por %p621, %p622
      %p624 = scmp.ne.s32.totalorder %s616, %s618
      %p625 = scmp.eq.s32.totalorder %s162, 1
      %p626 = por %p624, %p625
      %p627 = scmp.ne.s32.totalorder %s618, %s619
      %p628 = scmp.eq.s32.totalorder %s162, 0
      %p629 = por %p627, %p628
      %p630 = scmp.ne.s32.totalorder %s618, %s619
      %p631 = scmp.eq.s32.totalorder %s163, 1
      %p632 = por %p630, %p631
      %p634 = scmp.ne.s32.totalorder %s619, %s633
      %p635 = scmp.eq.s32.totalorder %s163, 0
      %p636 = por %p634, %p635
      %s638 = sadd.s32 %s637, 1
      %p641 = scmp.eq.s32.totalorder %s157, 1
      %p642 = scmp.ne.s32.totalorder %s637, %s639
      %p643 = scmp.eq.s32.totalorder %s157, 0
      %p644 = por %p642, %p643
      %p645 = scmp.ne.s32.totalorder %s637, %s639
      %p646 = scmp.eq.s32.totalorder %s162, 1
      %p647 = por %p645, %p646
      %p648 = scmp.ne.s32.totalorder %s639, %s640
      %p649 = scmp.eq.s32.totalorder %s162, 0
      %p650 = por %p648, %p649
      %p651 = scmp.ne.s32.totalorder %s639, %s640
      %p652 = scmp.eq.s32.totalorder %s163, 1
      %p653 = por %p651, %p652
      %p655 = scmp.ne.s32.totalorder %s640, %s654
      %p656 = scmp.eq.s32.totalorder %s163, 0
      %p657 = por %p655, %p656
      %s659 = sadd.s32 %s658, 1
      %p662 = scmp.eq.s32.totalorder %s157, 1
      %p663 = scmp.ne.s32.totalorder %s658, %s660
      %p664 = scmp.eq.s32.totalorder %s157, 0
      %p665 = por %p663, %p664
      %p666 = scmp.ne.s32.totalorder %s658, %s660
      %p667 = scmp.eq.s32.totalorder %s162, 1
      %p668 = por %p666, %p667
      %p669 = scmp.ne.s32.totalorder %s660, %s661
      %p670 = scmp.eq.s32.totalorder %s162, 0
      %p671 = por %p669, %p670
      %p672 = scmp.ne.s32.totalorder %s660, %s661
      %p673 = scmp.eq.s32.totalorder %s163, 1
      %p674 = por %p672, %p673
      %p676 = scmp.ne.s32.totalorder %s661, %s675
      %p677 = scmp.eq.s32.totalorder %s163, 0
      %p678 = por %p676, %p677
      %s680 = sadd.s32 %s679, 1
      %p683 = scmp.eq.s32.totalorder %s157, 1
      %p684 = scmp.ne.s32.totalorder %s679, %s681
      %p685 = scmp.eq.s32.totalorder %s157, 0
      %p686 = por %p684, %p685
      %p687 = scmp.ne.s32.totalorder %s679, %s681
      %p688 = scmp.eq.s32.totalorder %s162, 1
      %p689 = por %p687, %p688
      %p690 = scmp.ne.s32.totalorder %s681, %s682
      %p691 = scmp.eq.s32.totalorder %s162, 0
      %p692 = por %p690, %p691
      %p693 = scmp.ne.s32.totalorder %s681, %s682
      %p694 = scmp.eq.s32.totalorder %s163, 1
      %p695 = por %p693, %p694
      %p697 = scmp.ne.s32.totalorder %s682, %s696
      %p698 = scmp.eq.s32.totalorder %s163, 0
      %p699 = por %p697, %p698
      %s701 = sadd.s32 %s700, 1
      %p704 = scmp.eq.s32.totalorder %s157, 1
      %p705 = scmp.ne.s32.totalorder %s700, %s702
      %p706 = scmp.eq.s32.totalorder %s157, 0
      %p707 = por %p705, %p706
      %p708 = scmp.ne.s32.totalorder %s700, %s702
      %p709 = scmp.eq.s32.totalorder %s162, 1
      %p710 = por %p708, %p709
      %p711 = scmp.ne.s32.totalorder %s702, %s703
      %p712 = scmp.eq.s32.totalorder %s162, 0
      %p713 = por %p711, %p712
      %p714 = scmp.ne.s32.totalorder %s702, %s703
      %p715 = scmp.eq.s32.totalorder %s163, 1
      %p716 = por %p714, %p715
      %p718 = scmp.ne.s32.totalorder %s703, %s717
      %p719 = scmp.eq.s32.totalorder %s163, 0
      %p720 = por %p718, %p719
      %s722 = sadd.s32 %s721, 1
      %p725 = scmp.eq.s32.totalorder %s157, 1
      %p726 = scmp.ne.s32.totalorder %s721, %s723
      %p727 = scmp.eq.s32.totalorder %s157, 0
      %p728 = por %p726, %p727
      %p729 = scmp.ne.s32.totalorder %s721, %s723
      %p730 = scmp.eq.s32.totalorder %s162, 1
      %p731 = por %p729, %p730
      %p732 = scmp.ne.s32.totalorder %s723, %s724
      %p733 = scmp.eq.s32.totalorder %s162, 0
      %p734 = por %p732, %p733
      %p735 = scmp.ne.s32.totalorder %s723, %s724
      %p736 = scmp.eq.s32.totalorder %s163, 1
      %p737 = por %p735, %p736
      %p739 = scmp.ne.s32.totalorder %s724, %s738
      %p740 = scmp.eq.s32.totalorder %s163, 0
      %p741 = por %p739, %p740
      %s743 = sadd.s32 %s742, 1
      %p746 = scmp.eq.s32.totalorder %s157, 1
      %p747 = scmp.ne.s32.totalorder %s742, %s744
      %p748 = scmp.eq.s32.totalorder %s157, 0
      %p749 = por %p747, %p748
      %p750 = scmp.ne.s32.totalorder %s742, %s744
      %p751 = scmp.eq.s32.totalorder %s162, 1
      %p752 = por %p750, %p751
      %p753 = scmp.ne.s32.totalorder %s744, %s745
      %p754 = scmp.eq.s32.totalorder %s162, 0
      %p755 = por %p753, %p754
      %p756 = scmp.ne.s32.totalorder %s744, %s745
      %p757 = scmp.eq.s32.totalorder %s163, 1
      %p758 = por %p756, %p757
      %p760 = scmp.ne.s32.totalorder %s745, %s759
      %p761 = scmp.eq.s32.totalorder %s163, 0
      %p762 = por %p760, %p761
      %s764 = sadd.s32 %s763, 1
      %p767 = scmp.eq.s32.totalorder %s157, 1
      %p768 = scmp.ne.s32.totalorder %s763, %s765
      %p769 = scmp.eq.s32.totalorder %s157, 0
      %p770 = por %p768, %p769
      %p771 = scmp.ne.s32.totalorder %s763, %s765
      %p772 = scmp.eq.s32.totalorder %s162, 1
      %p773 = por %p771, %p772
      %p774 = scmp.ne.s32.totalorder %s765, %s766
      %p775 = scmp.eq.s32.totalorder %s162, 0
      %p776 = por %p774, %p775
      %p777 = scmp.ne.s32.totalorder %s765, %s766
      %p778 = scmp.eq.s32.totalorder %s163, 1
      %p779 = por %p777, %p778
      %p781 = scmp.ne.s32.totalorder %s766, %s780
      %p782 = scmp.eq.s32.totalorder %s163, 0
      %p783 = por %p781, %p782
      %s785 = sadd.s32 %s784, 1
      %p788 = scmp.eq.s32.totalorder %s157, 1
      %p789 = scmp.ne.s32.totalorder %s784, %s786
      %p790 = scmp.eq.s32.totalorder %s157, 0
      %p791 = por %p789, %p790
      %p792 = scmp.ne.s32.totalorder %s784, %s786
      %p793 = scmp.eq.s32.totalorder %s162, 1
      %p794 = por %p792, %p793
      %p795 = scmp.ne.s32.totalorder %s786, %s787
      %p796 = scmp.eq.s32.totalorder %s162, 0
      %p797 = por %p795, %p796
      %p798 = scmp.ne.s32.totalorder %s786, %s787
      %p799 = scmp.eq.s32.totalorder %s163, 1
      %p800 = por %p798, %p799
      %p802 = scmp.ne.s32.totalorder %s787, %s801
      %p803 = scmp.eq.s32.totalorder %s163, 0
      %p804 = por %p802, %p803
      %s806 = sadd.s32 %s805, 1
      %p809 = scmp.eq.s32.totalorder %s157, 1
      %p810 = scmp.ne.s32.totalorder %s805, %s807
      %p811 = scmp.eq.s32.totalorder %s157, 0
      %p812 = por %p810, %p811
      %p813 = scmp.ne.s32.totalorder %s805, %s807
      %p814 = scmp.eq.s32.totalorder %s162, 1
      %p815 = por %p813, %p814
      %p816 = scmp.ne.s32.totalorder %s807, %s808
      %p817 = scmp.eq.s32.totalorder %s162, 0
      %p818 = por %p816, %p817
      %p819 = scmp.ne.s32.totalorder %s807, %s808
      %p820 = scmp.eq.s32.totalorder %s163, 1
      %p821 = por %p819, %p820
      %p823 = scmp.ne.s32.totalorder %s808, %s822
      %p824 = scmp.eq.s32.totalorder %s163, 0
      %p825 = por %p823, %p824
      %s827 = sadd.s32 %s826, 1
      %p830 = scmp.eq.s32.totalorder %s157, 1
      %p831 = scmp.ne.s32.totalorder %s826, %s828
      %p832 = scmp.eq.s32.totalorder %s157, 0
      %p833 = por %p831, %p832
      %p834 = scmp.ne.s32.totalorder %s826, %s828
      %p835 = scmp.eq.s32.totalorder %s162, 1
      %p836 = por %p834, %p835
      %p837 = scmp.ne.s32.totalorder %s828, %s829
      %p838 = scmp.eq.s32.totalorder %s162, 0
      %p839 = por %p837, %p838
      %p840 = scmp.ne.s32.totalorder %s828, %s829
      %p841 = scmp.eq.s32.totalorder %s163, 1
      %p842 = por %p840, %p841
      %p844 = scmp.ne.s32.totalorder %s829, %s843
      %p845 = scmp.eq.s32.totalorder %s163, 0
      %p846 = por %p844, %p845
      %s848 = sadd.s32 %s847, 1
      %p851 = scmp.eq.s32.totalorder %s157, 1
      %p852 = scmp.ne.s32.totalorder %s847, %s849
      %p853 = scmp.eq.s32.totalorder %s157, 0
      %p854 = por %p852, %p853
      %p855 = scmp.ne.s32.totalorder %s847, %s849
      %p856 = scmp.eq.s32.totalorder %s162, 1
      %p857 = por %p855, %p856
      %p858 = scmp.ne.s32.totalorder %s849, %s850
      %p859 = scmp.eq.s32.totalorder %s162, 0
      %p860 = por %p858, %p859
      %p861 = scmp.ne.s32.totalorder %s849, %s850
      %p862 = scmp.eq.s32.totalorder %s163, 1
      %p863 = por %p861, %p862
      %p865 = scmp.ne.s32.totalorder %s850, %s864
      %p866 = scmp.eq.s32.totalorder %s163, 0
      %p867 = por %p865, %p866
      %s869 = sadd.s32 %s868, 1
      %p872 = scmp.eq.s32.totalorder %s157, 1
      %p873 = scmp.ne.s32.totalorder %s868, %s870
      %p874 = scmp.eq.s32.totalorder %s157, 0
      %p875 = por %p873, %p874
      %p876 = scmp.ne.s32.totalorder %s868, %s870
      %p877 = scmp.eq.s32.totalorder %s162, 1
      %p878 = por %p876, %p877
      %p879 = scmp.ne.s32.totalorder %s870, %s871
      %p880 = scmp.eq.s32.totalorder %s162, 0
      %p881 = por %p879, %p880
      %p882 = scmp.ne.s32.totalorder %s870, %s871
      %p883 = scmp.eq.s32.totalorder %s163, 1
      %p884 = por %p882, %p883
      %p886 = scmp.ne.s32.totalorder %s871, %s885
      %p887 = scmp.eq.s32.totalorder %s163, 0
      %p888 = por %p886, %p887
      %s890 = sadd.s32 %s889, 1
      %p893 = scmp.eq.s32.totalorder %s157, 1
      %p894 = scmp.ne.s32.totalorder %s889, %s891
      %p895 = scmp.eq.s32.totalorder %s157, 0
      %p896 = por %p894, %p895
      %p897 = scmp.ne.s32.totalorder %s889, %s891
      %p898 = scmp.eq.s32.totalorder %s162, 1
      %p899 = por %p897, %p898
      %p900 = scmp.ne.s32.totalorder %s891, %s892
      %p901 = scmp.eq.s32.totalorder %s162, 0
      %p902 = por %p900, %p901
      %p903 = scmp.ne.s32.totalorder %s891, %s892
      %p904 = scmp.eq.s32.totalorder %s163, 1
      %p905 = por %p903, %p904
      %p907 = scmp.ne.s32.totalorder %s892, %s906
      %p908 = scmp.eq.s32.totalorder %s163, 0
      %p909 = por %p907, %p908
      %s911 = sadd.s32 %s910, 1
      %p914 = scmp.eq.s32.totalorder %s157, 1
      %p915 = scmp.ne.s32.totalorder %s910, %s912
      %p916 = scmp.eq.s32.totalorder %s157, 0
      %p917 = por %p915, %p916
      %p918 = scmp.ne.s32.totalorder %s910, %s912
      %p919 = scmp.eq.s32.totalorder %s162, 1
      %p920 = por %p918, %p919
      %p921 = scmp.ne.s32.totalorder %s912, %s913
      %p922 = scmp.eq.s32.totalorder %s162, 0
      %p923 = por %p921, %p922
      %p924 = scmp.ne.s32.totalorder %s912, %s913
      %p925 = scmp.eq.s32.totalorder %s163, 1
      %p926 = por %p924, %p925
      %p928 = scmp.ne.s32.totalorder %s913, %s927
      %p929 = scmp.eq.s32.totalorder %s163, 0
      %p930 = por %p928, %p929
      %s932 = sadd.s32 %s931, 1
      %p935 = scmp.eq.s32.totalorder %s157, 1
      %p936 = scmp.ne.s32.totalorder %s931, %s933
      %p937 = scmp.eq.s32.totalorder %s157, 0
      %p938 = por %p936, %p937
      %p939 = scmp.ne.s32.totalorder %s931, %s933
      %p940 = scmp.eq.s32.totalorder %s162, 1
      %p941 = por %p939, %p940
      %p942 = scmp.ne.s32.totalorder %s933, %s934
      %p943 = scmp.eq.s32.totalorder %s162, 0
      %p944 = por %p942, %p943
      %p945 = scmp.ne.s32.totalorder %s933, %s934
      %p946 = scmp.eq.s32.totalorder %s163, 1
      %p947 = por %p945, %p946
      %p949 = scmp.ne.s32.totalorder %s934, %s948
      %p950 = scmp.eq.s32.totalorder %s163, 0
      %p951 = por %p949, %p950
      %s953 = sadd.s32 %s952, 1
      %p956 = scmp.eq.s32.totalorder %s157, 1
      %p957 = scmp.ne.s32.totalorder %s952, %s954
      %p958 = scmp.eq.s32.totalorder %s157, 0
      %p959 = por %p957, %p958
      %p960 = scmp.ne.s32.totalorder %s952, %s954
      %p961 = scmp.eq.s32.totalorder %s162, 1
      %p962 = por %p960, %p961
      %p963 = scmp.ne.s32.totalorder %s954, %s955
      %p964 = scmp.eq.s32.totalorder %s162, 0
      %p965 = por %p963, %p964
      %p966 = scmp.ne.s32.totalorder %s954, %s955
      %p967 = scmp.eq.s32.totalorder %s163, 1
      %p968 = por %p966, %p967
      %p970 = scmp.ne.s32.totalorder %s955, %s969
      %p971 = scmp.eq.s32.totalorder %s163, 0
      %p972 = por %p970, %p971
      %s974 = sadd.s32 %s973, 1
      %p977 = scmp.eq.s32.totalorder %s157, 1
      %p978 = scmp.ne.s32.totalorder %s973, %s975
      %p979 = scmp.eq.s32.totalorder %s157, 0
      %p980 = por %p978, %p979
      %p981 = scmp.ne.s32.totalorder %s973, %s975
      %p982 = scmp.eq.s32.totalorder %s162, 1
      %p983 = por %p981, %p982
      %p984 = scmp.ne.s32.totalorder %s975, %s976
      %p985 = scmp.eq.s32.totalorder %s162, 0
      %p986 = por %p984, %p985
      %p987 = scmp.ne.s32.totalorder %s975, %s976
      %p988 = scmp.eq.s32.totalorder %s163, 1
      %p989 = por %p987, %p988
      %p991 = scmp.ne.s32.totalorder %s976, %s990
      %p992 = scmp.eq.s32.totalorder %s163, 0
      %p993 = por %p991, %p992
      %s995 = sadd.s32 %s994, 1
      %p998 = scmp.eq.s32.totalorder %s157, 1
      %p999 = scmp.ne.s32.totalorder %s994, %s996
      %p1000 = scmp.eq.s32.totalorder %s157, 0
      %p1001 = por %p999, %p1000
      %p1002 = scmp.ne.s32.totalorder %s994, %s996
      %p1003 = scmp.eq.s32.totalorder %s162, 1
      %p1004 = por %p1002, %p1003
      %p1005 = scmp.ne.s32.totalorder %s996, %s997
      %p1006 = scmp.eq.s32.totalorder %s162, 0
      %p1007 = por %p1005, %p1006
      %p1008 = scmp.ne.s32.totalorder %s996, %s997
      %p1009 = scmp.eq.s32.totalorder %s163, 1
      %p1010 = por %p1008, %p1009
      %p1012 = scmp.ne.s32.totalorder %s997, %s1011
      %p1013 = scmp.eq.s32.totalorder %s163, 0
      %p1014 = por %p1012, %p1013
      %s1016 = sadd.s32 %s1015, 1
      %p1019 = scmp.eq.s32.totalorder %s157, 1
      %p1020 = scmp.ne.s32.totalorder %s1015, %s1017
      %p1021 = scmp.eq.s32.totalorder %s157, 0
      %p1022 = por %p1020, %p1021
      %p1023 = scmp.ne.s32.totalorder %s1015, %s1017
      %p1024 = scmp.eq.s32.totalorder %s162, 1
      %p1025 = por %p1023, %p1024
      %p1026 = scmp.ne.s32.totalorder %s1017, %s1018
      %p1027 = scmp.eq.s32.totalorder %s162, 0
      %p1028 = por %p1026, %p1027
      %p1029 = scmp.ne.s32.totalorder %s1017, %s1018
      %p1030 = scmp.eq.s32.totalorder %s163, 1
      %p1031 = por %p1029, %p1030
      %p1033 = scmp.ne.s32.totalorder %s1018, %s1032
      %p1034 = scmp.eq.s32.totalorder %s163, 0
      %p1035 = por %p1033, %p1034
      %s1037 = sadd.s32 %s1036, 1
      %p1040 = scmp.eq.s32.totalorder %s157, 1
      %p1041 = scmp.ne.s32.totalorder %s1036, %s1038
      %p1042 = scmp.eq.s32.totalorder %s157, 0
      %p1043 = por %p1041, %p1042
      %p1044 = scmp.ne.s32.totalorder %s1036, %s1038
      %p1045 = scmp.eq.s32.totalorder %s162, 1
      %p1046 = por %p1044, %p1045
      %p1047 = scmp.ne.s32.totalorder %s1038, %s1039
      %p1048 = scmp.eq.s32.totalorder %s162, 0
      %p1049 = por %p1047, %p1048
      %p1050 = scmp.ne.s32.totalorder %s1038, %s1039
      %p1051 = scmp.eq.s32.totalorder %s163, 1
      %p1052 = por %p1050, %p1051
      %p1054 = scmp.ne.s32.totalorder %s1039, %s1053
      %p1055 = scmp.eq.s32.totalorder %s163, 0
      %p1056 = por %p1054, %p1055
      %s1058 = sadd.s32 %s1057, 1
      %p1061 = scmp.eq.s32.totalorder %s157, 1
      %p1062 = scmp.ne.s32.totalorder %s1057, %s1059
      %p1063 = scmp.eq.s32.totalorder %s157, 0
      %p1064 = por %p1062, %p1063
      %p1065 = scmp.ne.s32.totalorder %s1057, %s1059
      %p1066 = scmp.eq.s32.totalorder %s162, 1
      %p1067 = por %p1065, %p1066
      %p1068 = scmp.ne.s32.totalorder %s1059, %s1060
      %p1069 = scmp.eq.s32.totalorder %s162, 0
      %p1070 = por %p1068, %p1069
      %p1071 = scmp.ne.s32.totalorder %s1059, %s1060
      %p1072 = scmp.eq.s32.totalorder %s163, 1
      %p1073 = por %p1071, %p1072
      %p1075 = scmp.ne.s32.totalorder %s1060, %s1074
      %p1076 = scmp.eq.s32.totalorder %s163, 0
      %p1077 = por %p1075, %p1076
      %s1079 = sadd.s32 %s1078, 1
      %p1082 = scmp.eq.s32.totalorder %s157, 1
      %p1083 = scmp.ne.s32.totalorder %s1078, %s1080
      %p1084 = scmp.eq.s32.totalorder %s157, 0
      %p1085 = por %p1083, %p1084
      %p1086 = scmp.ne.s32.totalorder %s1078, %s1080
      %p1087 = scmp.eq.s32.totalorder %s162, 1
      %p1088 = por %p1086, %p1087
      %p1089 = scmp.ne.s32.totalorder %s1080, %s1081
      %p1090 = scmp.eq.s32.totalorder %s162, 0
      %p1091 = por %p1089, %p1090
      %p1092 = scmp.ne.s32.totalorder %s1080, %s1081
      %p1093 = scmp.eq.s32.totalorder %s163, 1
      %p1094 = por %p1092, %p1093
      %p1096 = scmp.ne.s32.totalorder %s1081, %s1095
      %p1097 = scmp.eq.s32.totalorder %s163, 0
      %p1098 = por %p1096, %p1097
      %s1100 = sadd.s32 %s1099, 1
      %p1103 = scmp.eq.s32.totalorder %s157, 1
      %p1104 = scmp.ne.s32.totalorder %s1099, %s1101
      %p1105 = scmp.eq.s32.totalorder %s157, 0
      %p1106 = por %p1104, %p1105
      %p1107 = scmp.ne.s32.totalorder %s1099, %s1101
      %p1108 = scmp.eq.s32.totalorder %s162, 1
      %p1109 = por %p1107, %p1108
      %p1110 = scmp.ne.s32.totalorder %s1101, %s1102
      %p1111 = scmp.eq.s32.totalorder %s162, 0
      %p1112 = por %p1110, %p1111
      %p1113 = scmp.ne.s32.totalorder %s1101, %s1102
      %p1114 = scmp.eq.s32.totalorder %s163, 1
      %p1115 = por %p1113, %p1114
      %p1117 = scmp.ne.s32.totalorder %s1102, %s1116
      %p1118 = scmp.eq.s32.totalorder %s163, 0
      %p1119 = por %p1117, %p1118
      %s1121 = sadd.s32 %s1120, 1
      %p1124 = scmp.eq.s32.totalorder %s157, 1
      %p1125 = scmp.ne.s32.totalorder %s1120, %s1122
      %p1126 = scmp.eq.s32.totalorder %s157, 0
      %p1127 = por %p1125, %p1126
      %p1128 = scmp.ne.s32.totalorder %s1120, %s1122
      %p1129 = scmp.eq.s32.totalorder %s162, 1
      %p1130 = por %p1128, %p1129
      %p1131 = scmp.ne.s32.totalorder %s1122, %s1123
      %p1132 = scmp.eq.s32.totalorder %s162, 0
      %p1133 = por %p1131, %p1132
      %p1134 = scmp.ne.s32.totalorder %s1122, %s1123
      %p1135 = scmp.eq.s32.totalorder %s163, 1
      %p1136 = por %p1134, %p1135
      %p1138 = scmp.ne.s32.totalorder %s1123, %s1137
      %p1139 = scmp.eq.s32.totalorder %s163, 0
      %p1140 = por %p1138, %p1139
      %s1142 = sadd.s32 %s1141, 1
      %p1145 = scmp.eq.s32.totalorder %s157, 1
      %p1146 = scmp.ne.s32.totalorder %s1141, %s1143
      %p1147 = scmp.eq.s32.totalorder %s157, 0
      %p1148 = por %p1146, %p1147
      %p1149 = scmp.ne.s32.totalorder %s1141, %s1143
      %p1150 = scmp.eq.s32.totalorder %s162, 1
      %p1151 = por %p1149, %p1150
      %p1152 = scmp.ne.s32.totalorder %s1143, %s1144
      %p1153 = scmp.eq.s32.totalorder %s162, 0
      %p1154 = por %p1152, %p1153
      %p1155 = scmp.ne.s32.totalorder %s1143, %s1144
      %p1156 = scmp.eq.s32.totalorder %s163, 1
      %p1157 = por %p1155, %p1156
      %p1159 = scmp.ne.s32.totalorder %s1144, %s1158
      %p1160 = scmp.eq.s32.totalorder %s163, 0
      %p1161 = por %p1159, %p1160
      %s1163 = sadd.s32 %s1162, 1
      %p1166 = scmp.eq.s32.totalorder %s157, 1
      %p1167 = scmp.ne.s32.totalorder %s1162, %s1164
      %p1168 = scmp.eq.s32.totalorder %s157, 0
      %p1169 = por %p1167, %p1168
      %p1170 = scmp.ne.s32.totalorder %s1162, %s1164
      %p1171 = scmp.eq.s32.totalorder %s162, 1
      %p1172 = por %p1170, %p1171
      %p1173 = scmp.ne.s32.totalorder %s1164, %s1165
      %p1174 = scmp.eq.s32.totalorder %s162, 0
      %p1175 = por %p1173, %p1174
      %p1176 = scmp.ne.s32.totalorder %s1164, %s1165
      %p1177 = scmp.eq.s32.totalorder %s163, 1
      %p1178 = por %p1176, %p1177
      %p1180 = scmp.ne.s32.totalorder %s1165, %s1179
      %p1181 = scmp.eq.s32.totalorder %s163, 0
      %p1182 = por %p1180, %p1181
      %s1184 = sadd.s32 %s1183, 1
      %p1187 = scmp.eq.s32.totalorder %s157, 1
      %p1188 = scmp.ne.s32.totalorder %s1183, %s1185
      %p1189 = scmp.eq.s32.totalorder %s157, 0
      %p1190 = por %p1188, %p1189
      %p1191 = scmp.ne.s32.totalorder %s1183, %s1185
      %p1192 = scmp.eq.s32.totalorder %s162, 1
      %p1193 = por %p1191, %p1192
      %p1194 = scmp.ne.s32.totalorder %s1185, %s1186
      %p1195 = scmp.eq.s32.totalorder %s162, 0
      %p1196 = por %p1194, %p1195
      %p1197 = scmp.ne.s32.totalorder %s1185, %s1186
      %p1198 = scmp.eq.s32.totalorder %s163, 1
      %p1199 = por %p1197, %p1198
      %p1201 = scmp.ne.s32.totalorder %s1186, %s1200
      %p1202 = scmp.eq.s32.totalorder %s163, 0
      %p1203 = por %p1201, %p1202
      %s1205 = sadd.s32 %s1204, 1
      %p1208 = scmp.eq.s32.totalorder %s157, 1
      %p1209 = scmp.ne.s32.totalorder %s1204, %s1206
      %p1210 = scmp.eq.s32.totalorder %s157, 0
      %p1211 = por %p1209, %p1210
      %p1212 = scmp.ne.s32.totalorder %s1204, %s1206
      %p1213 = scmp.eq.s32.totalorder %s162, 1
      %p1214 = por %p1212, %p1213
      %p1215 = scmp.ne.s32.totalorder %s1206, %s1207
      %p1216 = scmp.eq.s32.totalorder %s162, 0
      %p1217 = por %p1215, %p1216
      %p1218 = scmp.ne.s32.totalorder %s1206, %s1207
      %p1219 = scmp.eq.s32.totalorder %s163, 1
      %p1220 = por %p1218, %p1219
      %p1222 = scmp.ne.s32.totalorder %s1207, %s1221
      %p1223 = scmp.eq.s32.totalorder %s163, 0
      %p1224 = por %p1222, %p1223
      %s1226 = sadd.s32 %s1225, 1
      %p1229 = scmp.eq.s32.totalorder %s157, 1
      %p1230 = scmp.ne.s32.totalorder %s1225, %s1227
      %p1231 = scmp.eq.s32.totalorder %s157, 0
      %p1232 = por %p1230, %p1231
      %p1233 = scmp.ne.s32.totalorder %s1225, %s1227
      %p1234 = scmp.eq.s32.totalorder %s162, 1
      %p1235 = por %p1233, %p1234
      %p1236 = scmp.ne.s32.totalorder %s1227, %s1228
      %p1237 = scmp.eq.s32.totalorder %s162, 0
      %p1238 = por %p1236, %p1237
      %p1239 = scmp.ne.s32.totalorder %s1227, %s1228
      %p1240 = scmp.eq.s32.totalorder %s163, 1
      %p1241 = por %p1239, %p1240
      %p1243 = scmp.ne.s32.totalorder %s1228, %s1242
      %p1244 = scmp.eq.s32.totalorder %s163, 0
      %p1245 = por %p1243, %p1244
      %s1247 = sadd.s32 %s1246, 1
      %p1250 = scmp.eq.s32.totalorder %s157, 1
      %p1251 = scmp.ne.s32.totalorder %s1246, %s1248
      %p1252 = scmp.eq.s32.totalorder %s157, 0
      %p1253 = por %p1251, %p1252
      %p1254 = scmp.ne.s32.totalorder %s1246, %s1248
      %p1255 = scmp.eq.s32.totalorder %s162, 1
      %p1256 = por %p1254, %p1255
      %p1257 = scmp.ne.s32.totalorder %s1248, %s1249
      %p1258 = scmp.eq.s32.totalorder %s162, 0
      %p1259 = por %p1257, %p1258
      %p1260 = scmp.ne.s32.totalorder %s1248, %s1249
      %p1261 = scmp.eq.s32.totalorder %s163, 1
      %p1262 = por %p1260, %p1261
      %p1264 = scmp.ne.s32.totalorder %s1249, %s1263
      %p1265 = scmp.eq.s32.totalorder %s163, 0
      %p1266 = por %p1264, %p1265
      %s1268 = sadd.s32 %s1267, 1
      %p1271 = scmp.eq.s32.totalorder %s157, 1
      %p1272 = scmp.ne.s32.totalorder %s1267, %s1269
      %p1273 = scmp.eq.s32.totalorder %s157, 0
      %p1274 = por %p1272, %p1273
      %p1275 = scmp.ne.s32.totalorder %s1267, %s1269
      %p1276 = scmp.eq.s32.totalorder %s162, 1
      %p1277 = por %p1275, %p1276
      %p1278 = scmp.ne.s32.totalorder %s1269, %s1270
      %p1279 = scmp.eq.s32.totalorder %s162, 0
      %p1280 = por %p1278, %p1279
      %p1281 = scmp.ne.s32.totalorder %s1269, %s1270
      %p1282 = scmp.eq.s32.totalorder %s163, 1
      %p1283 = por %p1281, %p1282
      %p1285 = scmp.ne.s32.totalorder %s1270, %s1284
      %p1286 = scmp.eq.s32.totalorder %s163, 0
      %p1287 = por %p1285, %p1286
      %s1289 = sadd.s32 %s1288, 1
      %p1292 = scmp.eq.s32.totalorder %s157, 1
      %p1293 = scmp.ne.s32.totalorder %s1288, %s1290
      %p1294 = scmp.eq.s32.totalorder %s157, 0
      %p1295 = por %p1293, %p1294
      %p1296 = scmp.ne.s32.totalorder %s1288, %s1290
      %p1297 = scmp.eq.s32.totalorder %s162, 1
      %p1298 = por %p1296, %p1297
      %p1299 = scmp.ne.s32.totalorder %s1290, %s1291
      %p1300 = scmp.eq.s32.totalorder %s162, 0
      %p1301 = por %p1299, %p1300
      %p1302 = scmp.ne.s32.totalorder %s1290, %s1291
      %p1303 = scmp.eq.s32.totalorder %s163, 1
      %p1304 = por %p1302, %p1303
      %p1306 = scmp.ne.s32.totalorder %s1291, %s1305
      %p1307 = scmp.eq.s32.totalorder %s163, 0
      %p1308 = por %p1306, %p1307
      %s1310 = sadd.s32 %s1309, 1
      %p1313 = scmp.eq.s32.totalorder %s157, 1
      %p1314 = scmp.ne.s32.totalorder %s1309, %s1311
      %p1315 = scmp.eq.s32.totalorder %s157, 0
      %p1316 = por %p1314, %p1315
      %p1317 = scmp.ne.s32.totalorder %s1309, %s1311
      %p1318 = scmp.eq.s32.totalorder %s162, 1
      %p1319 = por %p1317, %p1318
      %p1320 = scmp.ne.s32.totalorder %s1311, %s1312
      %p1321 = scmp.eq.s32.totalorder %s162, 0
      %p1322 = por %p1320, %p1321
      %p1323 = scmp.ne.s32.totalorder %s1311, %s1312
      %p1324 = scmp.eq.s32.totalorder %s163, 1
      %p1325 = por %p1323, %p1324
      %p1327 = scmp.ne.s32.totalorder %s1312, %s1326
      %p1328 = scmp.eq.s32.totalorder %s163, 0
      %p1329 = por %p1327, %p1328
      %s1331 = sadd.s32 %s1330, 1
      %p1334 = scmp.eq.s32.totalorder %s157, 1
      %p1335 = scmp.ne.s32.totalorder %s1330, %s1332
      %p1336 = scmp.eq.s32.totalorder %s157, 0
      %p1337 = por %p1335, %p1336
      %p1338 = scmp.ne.s32.totalorder %s1330, %s1332
      %p1339 = scmp.eq.s32.totalorder %s162, 1
      %p1340 = por %p1338, %p1339
      %p1341 = scmp.ne.s32.totalorder %s1332, %s1333
      %p1342 = scmp.eq.s32.totalorder %s162, 0
      %p1343 = por %p1341, %p1342
      %p1344 = scmp.ne.s32.totalorder %s1332, %s1333
      %p1345 = scmp.eq.s32.totalorder %s163, 1
      %p1346 = por %p1344, %p1345
      %p1348 = scmp.ne.s32.totalorder %s1333, %s1347
      %p1349 = scmp.eq.s32.totalorder %s163, 0
      %p1350 = por %p1348, %p1349
      %s1352 = sadd.s32 %s1351, 1
      %p1355 = scmp.eq.s32.totalorder %s157, 1
      %p1356 = scmp.ne.s32.totalorder %s1351, %s1353
      %p1357 = scmp.eq.s32.totalorder %s157, 0
      %p1358 = por %p1356, %p1357
      %p1359 = scmp.ne.s32.totalorder %s1351, %s1353
      %p1360 = scmp.eq.s32.totalorder %s162, 1
      %p1361 = por %p1359, %p1360
      %p1362 = scmp.ne.s32.totalorder %s1353, %s1354
      %p1363 = scmp.eq.s32.totalorder %s162, 0
      %p1364 = por %p1362, %p1363
      %p1365 = scmp.ne.s32.totalorder %s1353, %s1354
      %p1366 = scmp.eq.s32.totalorder %s163, 1
      %p1367 = por %p1365, %p1366
      %p1369 = scmp.ne.s32.totalorder %s1354, %s1368
      %p1370 = scmp.eq.s32.totalorder %s163, 0
      %p1371 = por %p1369, %p1370
      %s1373 = sadd.s32 %s1372, 1
      %p1376 = scmp.eq.s32.totalorder %s157, 1
      %p1377 = scmp.ne.s32.totalorder %s1372, %s1374
      %p1378 = scmp.eq.s32.totalorder %s157, 0
      %p1379 = por %p1377, %p1378
      %p1380 = scmp.ne.s32.totalorder %s1372, %s1374
      %p1381 = scmp.eq.s32.totalorder %s162, 1
      %p1382 = por %p1380, %p1381
      %p1383 = scmp.ne.s32.totalorder %s1374, %s1375
      %p1384 = scmp.eq.s32.totalorder %s162, 0
      %p1385 = por %p1383, %p1384
      %p1386 = scmp.ne.s32.totalorder %s1374, %s1375
      %p1387 = scmp.eq.s32.totalorder %s163, 1
      %p1388 = por %p1386, %p1387
      %p1390 = scmp.ne.s32.totalorder %s1375, %s1389
      %p1391 = scmp.eq.s32.totalorder %s163, 0
      %p1392 = por %p1390, %p1391
      %s1394 = sadd.s32 %s1393, 1
      %p1397 = scmp.eq.s32.totalorder %s157, 1
      %p1398 = scmp.ne.s32.totalorder %s1393, %s1395
      %p1399 = scmp.eq.s32.totalorder %s157, 0
      %p1400 = por %p1398, %p1399
      %p1401 = scmp.ne.s32.totalorder %s1393, %s1395
      %p1402 = scmp.eq.s32.totalorder %s162, 1
      %p1403 = por %p1401, %p1402
      %p1404 = scmp.ne.s32.totalorder %s1395, %s1396
      %p1405 = scmp.eq.s32.totalorder %s162, 0
      %p1406 = por %p1404, %p1405
      %p1407 = scmp.ne.s32.totalorder %s1395, %s1396
      %p1408 = scmp.eq.s32.totalorder %s163, 1
      %p1409 = por %p1407, %p1408
      %p1411 = scmp.ne.s32.totalorder %s1396, %s1410
      %p1412 = scmp.eq.s32.totalorder %s163, 0
      %p1413 = por %p1411, %p1412
      %s1415 = sadd.s32 %s1414, 1
      %p1418 = scmp.eq.s32.totalorder %s157, 1
      %p1419 = scmp.ne.s32.totalorder %s1414, %s1416
      %p1420 = scmp.eq.s32.totalorder %s157, 0
      %p1421 = por %p1419, %p1420
      %p1422 = scmp.ne.s32.totalorder %s1414, %s1416
      %p1423 = scmp.eq.s32.totalorder %s162, 1
      %p1424 = por %p1422, %p1423
      %p1425 = scmp.ne.s32.totalorder %s1416, %s1417
      %p1426 = scmp.eq.s32.totalorder %s162, 0
      %p1427 = por %p1425, %p1426
      %p1428 = scmp.ne.s32.totalorder %s1416, %s1417
      %p1429 = scmp.eq.s32.totalorder %s163, 1
      %p1430 = por %p1428, %p1429
      %p1432 = scmp.ne.s32.totalorder %s1417, %s1431
      %p1433 = scmp.eq.s32.totalorder %s163, 0
      %p1434 = por %p1432, %p1433
      %s1436 = sadd.s32 %s1435, 1
      %p1439 = scmp.eq.s32.totalorder %s157, 1
      %p1440 = scmp.ne.s32.totalorder %s1435, %s1437
      %p1441 = scmp.eq.s32.totalorder %s157, 0
      %p1442 = por %p1440, %p1441
      %p1443 = scmp.ne.s32.totalorder %s1435, %s1437
      %p1444 = scmp.eq.s32.totalorder %s162, 1
      %p1445 = por %p1443, %p1444
      %p1446 = scmp.ne.s32.totalorder %s1437, %s1438
      %p1447 = scmp.eq.s32.totalorder %s162, 0
      %p1448 = por %p1446, %p1447
      %p1449 = scmp.ne.s32.totalorder %s1437, %s1438
      %p1450 = scmp.eq.s32.totalorder %s163, 1
      %p1451 = por %p1449, %p1450
      %p1453 = scmp.ne.s32.totalorder %s1438, %s1452
      %p1454 = scmp.eq.s32.totalorder %s163, 0
      %p1455 = por %p1453, %p1454
      %s1457 = sadd.s32 %s1456, 1
      %p1460 = scmp.eq.s32.totalorder %s157, 1
      %p1461 = scmp.ne.s32.totalorder %s1456, %s1458
      %p1462 = scmp.eq.s32.totalorder %s157, 0
      %p1463 = por %p1461, %p1462
      %p1464 = scmp.ne.s32.totalorder %s1456, %s1458
      %p1465 = scmp.eq.s32.totalorder %s162, 1
      %p1466 = por %p1464, %p1465
      %p1467 = scmp.ne.s32.totalorder %s1458, %s1459
      %p1468 = scmp.eq.s32.totalorder %s162, 0
      %p1469 = por %p1467, %p1468
      %p1470 = scmp.ne.s32.totalorder %s1458, %s1459
      %p1471 = scmp.eq.s32.totalorder %s163, 1
      %p1472 = por %p1470, %p1471
      %p1474 = scmp.ne.s32.totalorder %s1459, %s1473
      %p1475 = scmp.eq.s32.totalorder %s163, 0
      %p1476 = por %p1474, %p1475
      %s1478 = sadd.s32 %s1477, 1
      %p1481 = scmp.eq.s32.totalorder %s157, 1
      %p1482 = scmp.ne.s32.totalorder %s1477, %s1479
      %p1483 = scmp.eq.s32.totalorder %s157, 0
      %p1484 = por %p1482, %p1483
      %p1485 = scmp.ne.s32.totalorder %s1477, %s1479
      %p1486 = scmp.eq.s32.totalorder %s162, 1
      %p1487 = por %p1485, %p1486
      %p1488 = scmp.ne.s32.totalorder %s1479, %s1480
      %p1489 = scmp.eq.s32.totalorder %s162, 0
      %p1490 = por %p1488, %p1489
      %p1491 = scmp.ne.s32.totalorder %s1479, %s1480
      %p1492 = scmp.eq.s32.totalorder %s163, 1
      %p1493 = por %p1491, %p1492
      %p1495 = scmp.ne.s32.totalorder %s1480, %s1494
      %p1496 = scmp.eq.s32.totalorder %s163, 0
      %p1497 = por %p1495, %p1496
      %s1499 = sadd.s32 %s1498, 1
      %p1502 = scmp.eq.s32.totalorder %s157, 1
      %p1503 = scmp.ne.s32.totalorder %s1498, %s1500
      %p1504 = scmp.eq.s32.totalorder %s157, 0
      %p1505 = por %p1503, %p1504
      %p1506 = scmp.ne.s32.totalorder %s1498, %s1500
      %p1507 = scmp.eq.s32.totalorder %s162, 1
      %p1508 = por %p1506, %p1507
      %p1509 = scmp.ne.s32.totalorder %s1500, %s1501
      %p1510 = scmp.eq.s32.totalorder %s162, 0
      %p1511 = por %p1509, %p1510
      %p1512 = scmp.ne.s32.totalorder %s1500, %s1501
      %p1513 = scmp.eq.s32.totalorder %s163, 1
      %p1514 = por %p1512, %p1513
      %p1516 = scmp.ne.s32.totalorder %s1501, %s1515
      %p1517 = scmp.eq.s32.totalorder %s163, 0
      %p1518 = por %p1516, %p1517
      %s1520 = sadd.s32 %s1519, 1
      %p1523 = scmp.eq.s32.totalorder %s157, 1
      %p1524 = scmp.ne.s32.totalorder %s1519, %s1521
      %p1525 = scmp.eq.s32.totalorder %s157, 0
      %p1526 = por %p1524, %p1525
      %p1527 = scmp.ne.s32.totalorder %s1519, %s1521
      %p1528 = scmp.eq.s32.totalorder %s162, 1
      %p1529 = por %p1527, %p1528
      %p1530 = scmp.ne.s32.totalorder %s1521, %s1522
      %p1531 = scmp.eq.s32.totalorder %s162, 0
      %p1532 = por %p1530, %p1531
      %p1533 = scmp.ne.s32.totalorder %s1521, %s1522
      %p1534 = scmp.eq.s32.totalorder %s163, 1
      %p1535 = por %p1533, %p1534
      %p1537 = scmp.ne.s32.totalorder %s1522, %s1536
      %p1538 = scmp.eq.s32.totalorder %s163, 0
      %p1539 = por %p1537, %p1538
      %s1541 = sadd.s32 %s1540, 1
      %p1544 = scmp.eq.s32.totalorder %s157, 1
      %p1545 = scmp.ne.s32.totalorder %s1540, %s1542
      %p1546 = scmp.eq.s32.totalorder %s157, 0
      %p1547 = por %p1545, %p1546
      %p1548 = scmp.ne.s32.totalorder %s1540, %s1542
      %p1549 = scmp.eq.s32.totalorder %s162, 1
      %p1550 = por %p1548, %p1549
      %p1551 = scmp.ne.s32.totalorder %s1542, %s1543
      %p1552 = scmp.eq.s32.totalorder %s162, 0
      %p1553 = por %p1551, %p1552
      %p1554 = scmp.ne.s32.totalorder %s1542, %s1543
      %p1555 = scmp.eq.s32.totalorder %s163, 1
      %p1556 = por %p1554, %p1555
      %p1558 = scmp.ne.s32.totalorder %s1543, %s1557
      %p1559 = scmp.eq.s32.totalorder %s163, 0
      %p1560 = por %p1558, %p1559
      %s1562 = sadd.s32 %s1561, 1
      %p1565 = scmp.eq.s32.totalorder %s157, 1
      %p1566 = scmp.ne.s32.totalorder %s1561, %s1563
      %p1567 = scmp.eq.s32.totalorder %s157, 0
      %p1568 = por %p1566, %p1567
      %p1569 = scmp.ne.s32.totalorder %s1561, %s1563
      %p1570 = scmp.eq.s32.totalorder %s162, 1
      %p1571 = por %p1569, %p1570
      %p1572 = scmp.ne.s32.totalorder %s1563, %s1564
      %p1573 = scmp.eq.s32.totalorder %s162, 0
      %p1574 = por %p1572, %p1573
      %p1575 = scmp.ne.s32.totalorder %s1563, %s1564
      %p1576 = scmp.eq.s32.totalorder %s163, 1
      %p1577 = por %p1575, %p1576
      %p1579 = scmp.ne.s32.totalorder %s1564, %s1578
      %p1580 = scmp.eq.s32.totalorder %s163, 0
      %p1581 = por %p1579, %p1580
      %s1583 = sadd.s32 %s1582, 1
      %p1586 = scmp.eq.s32.totalorder %s157, 1
      %p1587 = scmp.ne.s32.totalorder %s1582, %s1584
      %p1588 = scmp.eq.s32.totalorder %s157, 0
      %p1589 = por %p1587, %p1588
      %p1590 = scmp.ne.s32.totalorder %s1582, %s1584
      %p1591 = scmp.eq.s32.totalorder %s162, 1
      %p1592 = por %p1590, %p1591
      %p1593 = scmp.ne.s32.totalorder %s1584, %s1585
      %p1594 = scmp.eq.s32.totalorder %s162, 0
      %p1595 = por %p1593, %p1594
      %p1596 = scmp.ne.s32.totalorder %s1584, %s1585
      %p1597 = scmp.eq.s32.totalorder %s163, 1
      %p1598 = por %p1596, %p1597
      %p1600 = scmp.ne.s32.totalorder %s1585, %s1599
      %p1601 = scmp.eq.s32.totalorder %s163, 0
      %p1602 = por %p1600, %p1601
      %s1603 = ssub.s32 %s157, %s164
      %p1604 = scmp.eq.s32.totalorder %s1603, 0
      %s1606 = sadd.s32 %s1605, 1
      %s1607 = scalar_select %p1604, %s1605, %s1606
      %p1610 = pneg %p1604
      %p1611 = scmp.eq.s32.totalorder %s157, 1
      %p1612 = por %p1610, %p1611
      %p1613 = scmp.ne.s32.totalorder %s1605, %s1608
      %p1614 = scmp.eq.s32.totalorder %s157, 0
      %p1615 = por %p1613, %p1614
      %p1616 = scmp.ne.s32.totalorder %s1605, %s1608
      %p1617 = scmp.eq.s32.totalorder %s162, 1
      %p1618 = por %p1616, %p1617
      %p1619 = scmp.ne.s32.totalorder %s1608, %s1609
      %p1620 = scmp.eq.s32.totalorder %s162, 0
      %p1621 = por %p1619, %p1620
      %p1622 = scmp.ne.s32.totalorder %s1608, %s1609
      %p1623 = scmp.eq.s32.totalorder %s163, 1
      %p1624 = por %p1622, %p1623
      %p1626 = scmp.ne.s32.totalorder %s1609, %s1625
      %p1627 = scmp.eq.s32.totalorder %s163, 0
      %p1628 = por %p1626, %p1627
      %p1629 = scmp.le.s32.totalorder 1, %s157
      %p1630 = scmp.lt.s32.totalorder %s157, 3
      %p1631 = pnand %p1629, %p1630
      %p1632 = pneg %p1631
      // Predicated region
      $region9: #{forward.1} parent=5 // pred_check
        _
      $region10: #{forward.1} parent=5 // pred_check_branch
        %1634 = sbr.rel (%p1631) target = $region12
      $region11: #{forward.1} parent=5 // pred_region
        %s1635 = ssub.s32 %s157, 1
        // Predicated region
        $region13: #{forward.1} parent=11 // pred_check
          %p1636 = pneg %p230
        $region14: #{forward.1} parent=11 // pred_check_branch
          %1638 = sbr.rel (%p1636) target = $region16
        $region15: #{forward.1} parent=11 // pred_region
          %1640 = vsyncadd [#allocation3], 0
          %s1641 = sshll.u32 %s5, 4
          %s1642 = int_to_ptr.hbm [resolvable:$true] %s1641
          %s1643 = sshll.u32 [#allocation2], 4
          %s1644 = int_to_ptr.vmem [resolvable:$true] %s1643
          %1649 = dma.hbm_to_vmem [thread:$0]  %s1642, 8192, %s1644, [#allocation3], 256, 256, 16
        $region16: #{forward.1} parent=11 // pred_fallthru
          _
        // Predicated region
        $region17: #{forward.1} parent=11 // pred_check
          %p1650 = pneg %p251
        $region18: #{forward.1} parent=11 // pred_check_branch
          %1652 = sbr.rel (%p1650) target = $region20
        $region19: #{forward.1} parent=11 // pred_region
          _
        $region20: #{forward.1} parent=11 // pred_fallthru
          _
        // Predicated region
        $region21: #{forward.1} parent=11 // pred_check
          %p1653 = pneg %p272
        $region22: #{forward.1} parent=11 // pred_check_branch
          %1655 = sbr.rel (%p1653) target = $region24
        $region23: #{forward.1} parent=11 // pred_region
          _
        $region24: #{forward.1} parent=11 // pred_fallthru
          _
        // Predicated region
        $region25: #{forward.1} parent=11 // pred_check
          %p1656 = pneg %p293
        $region26: #{forward.1} parent=11 // pred_check_branch
          %1658 = sbr.rel (%p1656) target = $region28
        $region27: #{forward.1} parent=11 // pred_region
          _
        $region28: #{forward.1} parent=11 // pred_fallthru
          _
        // Predicated region
        $region29: #{forward.1} parent=11 // pred_check
          %p1659 = pneg %p314
        $region30: #{forward.1} parent=11 // pred_check_branch
          %1661 = sbr.rel (%p1659) target = $region32
        $region31: #{forward.1} parent=11 // pred_region
          _
        $region32: #{forward.1} parent=11 // pred_fallthru
          _
        // Predicated region
        $region33: #{forward.1} parent=11 // pred_check
          %p1662 = pneg %p335
        $region34: #{forward.1} parent=11 // pred_check_branch
          %1664 = sbr.rel (%p1662) target = $region36
        $region35: #{forward.1} parent=11 // pred_region
          _
        $region36: #{forward.1} parent=11 // pred_fallthru
          _
        // Predicated region
        $region37: #{forward.1} parent=11 // pred_check
          %p1665 = pneg %p356
        $region38: #{forward.1} parent=11 // pred_check_branch
          %1667 = sbr.rel (%p1665) target = $region40
        $region39: #{forward.1} parent=11 // pred_region
          _
        $region40: #{forward.1} parent=11 // pred_fallthru
          _
        // Predicated region
        $region41: #{forward.1} parent=11 // pred_check
          %p1668 = pneg %p377
        $region42: #{forward.1} parent=11 // pred_check_branch
          %1670 = sbr.rel (%p1668) target = $region44
        $region43: #{forward.1} parent=11 // pred_region
          _
        $region44: #{forward.1} parent=11 // pred_fallthru
          _
        // Predicated region
        $region45: #{forward.1} parent=11 // pred_check
          %p1671 = pneg %p398
        $region46: #{forward.1} parent=11 // pred_check_branch
          %1673 = sbr.rel (%p1671) target = $region48
        $region47: #{forward.1} parent=11 // pred_region
          _
        $region48: #{forward.1} parent=11 // pred_fallthru
          _
        // Predicated region
        $region49: #{forward.1} parent=11 // pred_check
          %p1674 = pneg %p419
        $region50: #{forward.1} parent=11 // pred_check_branch
          %1676 = sbr.rel (%p1674) target = $region52
        $region51: #{forward.1} parent=11 // pred_region
          _
        $region52: #{forward.1} parent=11 // pred_fallthru
          _
        // Predicated region
        $region53: #{forward.1} parent=11 // pred_check
          %p1677 = pneg %p440
        $region54: #{forward.1} parent=11 // pred_check_branch
          %1679 = sbr.rel (%p1677) target = $region56
        $region55: #{forward.1} parent=11 // pred_region
          _
        $region56: #{forward.1} parent=11 // pred_fallthru
          _
        // Predicated region
        $region57: #{forward.1} parent=11 // pred_check
          %p1680 = pneg %p461
        $region58: #{forward.1} parent=11 // pred_check_branch
          %1682 = sbr.rel (%p1680) target = $region60
        $region59: #{forward.1} parent=11 // pred_region
          _
        $region60: #{forward.1} parent=11 // pred_fallthru
          _
        // Predicated region
        $region61: #{forward.1} parent=11 // pred_check
          %p1683 = pneg %p482
        $region62: #{forward.1} parent=11 // pred_check_branch
          %1685 = sbr.rel (%p1683) target = $region64
        $region63: #{forward.1} parent=11 // pred_region
          _
        $region64: #{forward.1} parent=11 // pred_fallthru
          _
        // Predicated region
        $region65: #{forward.1} parent=11 // pred_check
          %p1686 = pneg %p503
        $region66: #{forward.1} parent=11 // pred_check_branch
          %1688 = sbr.rel (%p1686) target = $region68
        $region67: #{forward.1} parent=11 // pred_region
          _
        $region68: #{forward.1} parent=11 // pred_fallthru
          _
        // Predicated region
        $region69: #{forward.1} parent=11 // pred_check
          %p1689 = pneg %p524
        $region70: #{forward.1} parent=11 // pred_check_branch
          %1691 = sbr.rel (%p1689) target = $region72
        $region71: #{forward.1} parent=11 // pred_region
          _
        $region72: #{forward.1} parent=11 // pred_fallthru
          _
        // Predicated region
        $region73: #{forward.1} parent=11 // pred_check
          %p1692 = pneg %p545
        $region74: #{forward.1} parent=11 // pred_check_branch
          %1694 = sbr.rel (%p1692) target = $region76
        $region75: #{forward.1} parent=11 // pred_region
          _
        $region76: #{forward.1} parent=11 // pred_fallthru
          _
        // Predicated region
        $region77: #{forward.1} parent=11 // pred_check
          %p1695 = pneg %p566
        $region78: #{forward.1} parent=11 // pred_check_branch
          %1697 = sbr.rel (%p1695) target = $region80
        $region79: #{forward.1} parent=11 // pred_region
          _
        $region80: #{forward.1} parent=11 // pred_fallthru
          _
        // Predicated region
        $region81: #{forward.1} parent=11 // pred_check
          %p1698 = pneg %p587
        $region82: #{forward.1} parent=11 // pred_check_branch
          %1700 = sbr.rel (%p1698) target = $region84
        $region83: #{forward.1} parent=11 // pred_region
          _
        $region84: #{forward.1} parent=11 // pred_fallthru
          _
        // Predicated region
        $region85: #{forward.1} parent=11 // pred_check
          %p1701 = pneg %p608
        $region86: #{forward.1} parent=11 // pred_check_branch
          %1703 = sbr.rel (%p1701) target = $region88
        $region87: #{forward.1} parent=11 // pred_region
          _
        $region88: #{forward.1} parent=11 // pred_fallthru
          _
        // Predicated region
        $region89: #{forward.1} parent=11 // pred_check
          %p1704 = pneg %p629
        $region90: #{forward.1} parent=11 // pred_check_branch
          %1706 = sbr.rel (%p1704) target = $region92
        $region91: #{forward.1} parent=11 // pred_region
          _
        $region92: #{forward.1} parent=11 // pred_fallthru
          _
        // Predicated region
        $region93: #{forward.1} parent=11 // pred_check
          %p1707 = pneg %p650
        $region94: #{forward.1} parent=11 // pred_check_branch
          %1709 = sbr.rel (%p1707) target = $region96
        $region95: #{forward.1} parent=11 // pred_region
          _
        $region96: #{forward.1} parent=11 // pred_fallthru
          _
        // Predicated region
        $region97: #{forward.1} parent=11 // pred_check
          %p1710 = pneg %p671
        $region98: #{forward.1} parent=11 // pred_check_branch
          %1712 = sbr.rel (%p1710) target = $region100
        $region99: #{forward.1} parent=11 // pred_region
          _
        $region100: #{forward.1} parent=11 // pred_fallthru
          _
        // Predicated region
        $region101: #{forward.1} parent=11 // pred_check
          %p1713 = pneg %p692
        $region102: #{forward.1} parent=11 // pred_check_branch
          %1715 = sbr.rel (%p1713) target = $region104
        $region103: #{forward.1} parent=11 // pred_region
          _
        $region104: #{forward.1} parent=11 // pred_fallthru
          _
        // Predicated region
        $region105: #{forward.1} parent=11 // pred_check
          %p1716 = pneg %p713
        $region106: #{forward.1} parent=11 // pred_check_branch
          %1718 = sbr.rel (%p1716) target = $region108
        $region107: #{forward.1} parent=11 // pred_region
          _
        $region108: #{forward.1} parent=11 // pred_fallthru
          _
        // Predicated region
        $region109: #{forward.1} parent=11 // pred_check
          %p1719 = pneg %p734
        $region110: #{forward.1} parent=11 // pred_check_branch
          %1721 = sbr.rel (%p1719) target = $region112
        $region111: #{forward.1} parent=11 // pred_region
          _
        $region112: #{forward.1} parent=11 // pred_fallthru
          _
        // Predicated region
        $region113: #{forward.1} parent=11 // pred_check
          %p1722 = pneg %p755
        $region114: #{forward.1} parent=11 // pred_check_branch
          %1724 = sbr.rel (%p1722) target = $region116
        $region115: #{forward.1} parent=11 // pred_region
          _
        $region116: #{forward.1} parent=11 // pred_fallthru
          _
        // Predicated region
        $region117: #{forward.1} parent=11 // pred_check
          %p1725 = pneg %p776
        $region118: #{forward.1} parent=11 // pred_check_branch
          %1727 = sbr.rel (%p1725) target = $region120
        $region119: #{forward.1} parent=11 // pred_region
          _
        $region120: #{forward.1} parent=11 // pred_fallthru
          _
        // Predicated region
        $region121: #{forward.1} parent=11 // pred_check
          %p1728 = pneg %p797
        $region122: #{forward.1} parent=11 // pred_check_branch
          %1730 = sbr.rel (%p1728) target = $region124
        $region123: #{forward.1} parent=11 // pred_region
          _
        $region124: #{forward.1} parent=11 // pred_fallthru
          _
        // Predicated region
        $region125: #{forward.1} parent=11 // pred_check
          %p1731 = pneg %p818
        $region126: #{forward.1} parent=11 // pred_check_branch
          %1733 = sbr.rel (%p1731) target = $region128
        $region127: #{forward.1} parent=11 // pred_region
          _
        $region128: #{forward.1} parent=11 // pred_fallthru
          _
        // Predicated region
        $region129: #{forward.1} parent=11 // pred_check
          %p1734 = pneg %p839
        $region130: #{forward.1} parent=11 // pred_check_branch
          %1736 = sbr.rel (%p1734) target = $region132
        $region131: #{forward.1} parent=11 // pred_region
          %1738 = vsyncadd [#allocation5], 0
          %s1740 = sshll.u32 %s63, 4
          %s1741 = int_to_ptr.hbm [resolvable:$true] %s1740
          %s1742 = sshll.u32 [#allocation4], 4
          %s1743 = int_to_ptr.vmem [resolvable:$true] %s1742
          %1745 = dma.hbm_to_vmem [thread:$0]  %s1741, 16, %s1743, [#allocation5]
        $region132: #{forward.1} parent=11 // pred_fallthru
          _
        // Predicated region
        $region133: #{forward.1} parent=11 // pred_check
          %p1746 = pneg %p860
        $region134: #{forward.1} parent=11 // pred_check_branch
          %1748 = sbr.rel (%p1746) target = $region136
        $region135: #{forward.1} parent=11 // pred_region
          %1750 = vsyncadd [#allocation5], 0
          %s1752 = sshll.u32 %s65, 4
          %s1753 = int_to_ptr.hbm [resolvable:$true] %s1752
          %s1754 = sshll.u32 [#allocation6], 4
          %s1755 = int_to_ptr.vmem [resolvable:$true] %s1754
          %1757 = dma.hbm_to_vmem [thread:$0]  %s1753, 16, %s1755, [#allocation5]
        $region136: #{forward.1} parent=11 // pred_fallthru
          _
        // Predicated region
        $region137: #{forward.1} parent=11 // pred_check
          %p1758 = pneg %p881
        $region138: #{forward.1} parent=11 // pred_check_branch
          %1760 = sbr.rel (%p1758) target = $region140
        $region139: #{forward.1} parent=11 // pred_region
          %1762 = vsyncadd [#allocation8], 0
          %s1764 = sshll.u32 %s67, 4
          %s1765 = int_to_ptr.hbm [resolvable:$true] %s1764
          %s1766 = sshll.u32 [#allocation7], 4
          %s1767 = int_to_ptr.vmem [resolvable:$true] %s1766
          %1769 = dma.hbm_to_vmem [thread:$0]  %s1765, 16, %s1767, [#allocation8]
        $region140: #{forward.1} parent=11 // pred_fallthru
          _
        // Predicated region
        $region141: #{forward.1} parent=11 // pred_check
          %p1770 = pneg %p902
        $region142: #{forward.1} parent=11 // pred_check_branch
          %1772 = sbr.rel (%p1770) target = $region144
        $region143: #{forward.1} parent=11 // pred_region
          %1774 = vsyncadd [#allocation8], 0
          %s1776 = sshll.u32 %s69, 4
          %s1777 = int_to_ptr.hbm [resolvable:$true] %s1776
          %s1778 = sshll.u32 [#allocation9], 4
          %s1779 = int_to_ptr.vmem [resolvable:$true] %s1778
          %1781 = dma.hbm_to_vmem [thread:$0]  %s1777, 16, %s1779, [#allocation8]
        $region144: #{forward.1} parent=11 // pred_fallthru
          _
        // Predicated region
        $region145: #{forward.1} parent=11 // pred_check
          %p1782 = pneg %p923
        $region146: #{forward.1} parent=11 // pred_check_branch
          %1784 = sbr.rel (%p1782) target = $region148
        $region147: #{forward.1} parent=11 // pred_region
          _
        $region148: #{forward.1} parent=11 // pred_fallthru
          _
        // Predicated region
        $region149: #{forward.1} parent=11 // pred_check
          %p1785 = pneg %p944
        $region150: #{forward.1} parent=11 // pred_check_branch
          %1787 = sbr.rel (%p1785) target = $region152
        $region151: #{forward.1} parent=11 // pred_region
          _
        $region152: #{forward.1} parent=11 // pred_fallthru
          _
        // Predicated region
        $region153: #{forward.1} parent=11 // pred_check
          %p1788 = pneg %p965
        $region154: #{forward.1} parent=11 // pred_check_branch
          %1790 = sbr.rel (%p1788) target = $region156
        $region155: #{forward.1} parent=11 // pred_region
          %1792 = vsyncadd [#allocation11], 0
          %s1794 = sshll.u32 %s75, 4
          %s1795 = int_to_ptr.hbm [resolvable:$true] %s1794
          %s1796 = sshll.u32 [#allocation10], 4
          %s1797 = int_to_ptr.vmem [resolvable:$true] %s1796
          %1799 = dma.hbm_to_vmem [thread:$0]  %s1795, 16, %s1797, [#allocation11]
        $region156: #{forward.1} parent=11 // pred_fallthru
          _
        // Predicated region
        $region157: #{forward.1} parent=11 // pred_check
          %p1800 = pneg %p986
        $region158: #{forward.1} parent=11 // pred_check_branch
          %1802 = sbr.rel (%p1800) target = $region160
        $region159: #{forward.1} parent=11 // pred_region
          %1804 = vsyncadd [#allocation11], 0
          %s1806 = sshll.u32 %s77, 4
          %s1807 = int_to_ptr.hbm [resolvable:$true] %s1806
          %s1808 = sshll.u32 [#allocation12], 4
          %s1809 = int_to_ptr.vmem [resolvable:$true] %s1808
          %1811 = dma.hbm_to_vmem [thread:$0]  %s1807, 16, %s1809, [#allocation11]
        $region160: #{forward.1} parent=11 // pred_fallthru
          _
        // Predicated region
        $region161: #{forward.1} parent=11 // pred_check
          %p1812 = pneg %p1007
        $region162: #{forward.1} parent=11 // pred_check_branch
          %1814 = sbr.rel (%p1812) target = $region164
        $region163: #{forward.1} parent=11 // pred_region
          %1816 = vsyncadd [#allocation14], 0
          %s1818 = sshll.u32 %s79, 4
          %s1819 = int_to_ptr.hbm [resolvable:$true] %s1818
          %s1820 = sshll.u32 [#allocation13], 4
          %s1821 = int_to_ptr.vmem [resolvable:$true] %s1820
          %1823 = dma.hbm_to_vmem [thread:$0]  %s1819, 16, %s1821, [#allocation14]
        $region164: #{forward.1} parent=11 // pred_fallthru
          _
        // Predicated region
        $region165: #{forward.1} parent=11 // pred_check
          %p1824 = pneg %p1028
        $region166: #{forward.1} parent=11 // pred_check_branch
          %1826 = sbr.rel (%p1824) target = $region168
        $region167: #{forward.1} parent=11 // pred_region
          _
        $region168: #{forward.1} parent=11 // pred_fallthru
          _
        // Predicated region
        $region169: #{forward.1} parent=11 // pred_check
          %p1827 = pneg %p1049
        $region170: #{forward.1} parent=11 // pred_check_branch
          %1829 = sbr.rel (%p1827) target = $region172
        $region171: #{forward.1} parent=11 // pred_region
          %1831 = vsyncadd [#allocation14], 0
          %s1833 = sshll.u32 %s83, 4
          %s1834 = int_to_ptr.hbm [resolvable:$true] %s1833
          %s1835 = sshll.u32 [#allocation15], 4
          %s1836 = int_to_ptr.vmem [resolvable:$true] %s1835
          %1838 = dma.hbm_to_vmem [thread:$0]  %s1834, 16, %s1836, [#allocation14]
        $region172: #{forward.1} parent=11 // pred_fallthru
          _
        // Predicated region
        $region173: #{forward.1} parent=11 // pred_check
          %p1839 = pneg %p1070
        $region174: #{forward.1} parent=11 // pred_check_branch
          %1841 = sbr.rel (%p1839) target = $region176
        $region175: #{forward.1} parent=11 // pred_region
          %1843 = vsyncadd [#allocation17], 0
          %s1845 = sshll.u32 %s85, 4
          %s1846 = int_to_ptr.hbm [resolvable:$true] %s1845
          %s1847 = sshll.u32 [#allocation16], 4
          %s1848 = int_to_ptr.vmem [resolvable:$true] %s1847
          %1850 = dma.hbm_to_vmem [thread:$0]  %s1846, 16, %s1848, [#allocation17]
        $region176: #{forward.1} parent=11 // pred_fallthru
          _
        // Predicated region
        $region177: #{forward.1} parent=11 // pred_check
          %p1851 = pneg %p1091
        $region178: #{forward.1} parent=11 // pred_check_branch
          %1853 = sbr.rel (%p1851) target = $region180
        $region179: #{forward.1} parent=11 // pred_region
          %1855 = vsyncadd [#allocation17], 0
          %s1857 = sshll.u32 %s87, 4
          %s1858 = int_to_ptr.hbm [resolvable:$true] %s1857
          %s1859 = sshll.u32 [#allocation18], 4
          %s1860 = int_to_ptr.vmem [resolvable:$true] %s1859
          %1862 = dma.hbm_to_vmem [thread:$0]  %s1858, 16, %s1860, [#allocation17]
        $region180: #{forward.1} parent=11 // pred_fallthru
          _
        // Predicated region
        $region181: #{forward.1} parent=11 // pred_check
          %p1863 = pneg %p1112
        $region182: #{forward.1} parent=11 // pred_check_branch
          %1865 = sbr.rel (%p1863) target = $region184
        $region183: #{forward.1} parent=11 // pred_region
          _
        $region184: #{forward.1} parent=11 // pred_fallthru
          _
        // Predicated region
        $region185: #{forward.1} parent=11 // pred_check
          %p1866 = pneg %p1133
        $region186: #{forward.1} parent=11 // pred_check_branch
          %1868 = sbr.rel (%p1866) target = $region188
        $region187: #{forward.1} parent=11 // pred_region
          %1870 = vsyncadd [#allocation20], 0
          %s1872 = sshll.u32 %s91, 4
          %s1873 = int_to_ptr.hbm [resolvable:$true] %s1872
          %s1874 = sshll.u32 [#allocation19], 4
          %s1875 = int_to_ptr.vmem [resolvable:$true] %s1874
          %1877 = dma.hbm_to_vmem [thread:$0]  %s1873, 16, %s1875, [#allocation20]
        $region188: #{forward.1} parent=11 // pred_fallthru
          _
        // Predicated region
        $region189: #{forward.1} parent=11 // pred_check
          %p1878 = pneg %p1154
        $region190: #{forward.1} parent=11 // pred_check_branch
          %1880 = sbr.rel (%p1878) target = $region192
        $region191: #{forward.1} parent=11 // pred_region
          _
        $region192: #{forward.1} parent=11 // pred_fallthru
          _
        // Predicated region
        $region193: #{forward.1} parent=11 // pred_check
          %p1881 = pneg %p1175
        $region194: #{forward.1} parent=11 // pred_check_branch
          %1883 = sbr.rel (%p1881) target = $region196
        $region195: #{forward.1} parent=11 // pred_region
          %1885 = vsyncadd [#allocation20], 0
          %s1887 = sshll.u32 %s95, 4
          %s1888 = int_to_ptr.hbm [resolvable:$true] %s1887
          %s1889 = sshll.u32 [#allocation21], 4
          %s1890 = int_to_ptr.vmem [resolvable:$true] %s1889
          %1892 = dma.hbm_to_vmem [thread:$0]  %s1888, 16, %s1890, [#allocation20]
        $region196: #{forward.1} parent=11 // pred_fallthru
          _
        // Predicated region
        $region197: #{forward.1} parent=11 // pred_check
          %p1893 = pneg %p1196
        $region198: #{forward.1} parent=11 // pred_check_branch
          %1895 = sbr.rel (%p1893) target = $region200
        $region199: #{forward.1} parent=11 // pred_region
          %1897 = vsyncadd [#allocation23], 0
          %s1899 = sshll.u32 %s97, 4
          %s1900 = int_to_ptr.hbm [resolvable:$true] %s1899
          %s1901 = sshll.u32 [#allocation22], 4
          %s1902 = int_to_ptr.vmem [resolvable:$true] %s1901
          %1904 = dma.hbm_to_vmem [thread:$0]  %s1900, 16, %s1902, [#allocation23]
        $region200: #{forward.1} parent=11 // pred_fallthru
          _
        // Predicated region
        $region201: #{forward.1} parent=11 // pred_check
          %p1905 = pneg %p1217
        $region202: #{forward.1} parent=11 // pred_check_branch
          %1907 = sbr.rel (%p1905) target = $region204
        $region203: #{forward.1} parent=11 // pred_region
          %1909 = vsyncadd [#allocation23], 0
          %s1911 = sshll.u32 %s99, 4
          %s1912 = int_to_ptr.hbm [resolvable:$true] %s1911
          %s1913 = sshll.u32 [#allocation24], 4
          %s1914 = int_to_ptr.vmem [resolvable:$true] %s1913
          %1916 = dma.hbm_to_vmem [thread:$0]  %s1912, 16, %s1914, [#allocation23]
        $region204: #{forward.1} parent=11 // pred_fallthru
          _
        // Predicated region
        $region205: #{forward.1} parent=11 // pred_check
          %p1917 = pneg %p1238
        $region206: #{forward.1} parent=11 // pred_check_branch
          %1919 = sbr.rel (%p1917) target = $region208
        $region207: #{forward.1} parent=11 // pred_region
          %1921 = vsyncadd [#allocation26], 0
          %s1923 = sshll.u32 %s101, 4
          %s1924 = int_to_ptr.hbm [resolvable:$true] %s1923
          %s1925 = sshll.u32 [#allocation25], 4
          %s1926 = int_to_ptr.vmem [resolvable:$true] %s1925
          %1928 = dma.hbm_to_vmem [thread:$0]  %s1924, 16, %s1926, [#allocation26]
        $region208: #{forward.1} parent=11 // pred_fallthru
          _
        // Predicated region
        $region209: #{forward.1} parent=11 // pred_check
          %p1929 = pneg %p1259
        $region210: #{forward.1} parent=11 // pred_check_branch
          %1931 = sbr.rel (%p1929) target = $region212
        $region211: #{forward.1} parent=11 // pred_region
          _
        $region212: #{forward.1} parent=11 // pred_fallthru
          _
        // Predicated region
        $region213: #{forward.1} parent=11 // pred_check
          %p1932 = pneg %p1280
        $region214: #{forward.1} parent=11 // pred_check_branch
          %1934 = sbr.rel (%p1932) target = $region216
        $region215: #{forward.1} parent=11 // pred_region
          _
        $region216: #{forward.1} parent=11 // pred_fallthru
          _
        // Predicated region
        $region217: #{forward.1} parent=11 // pred_check
          %p1935 = pneg %p1301
        $region218: #{forward.1} parent=11 // pred_check_branch
          %1937 = sbr.rel (%p1935) target = $region220
        $region219: #{forward.1} parent=11 // pred_region
          %1939 = vsyncadd [#allocation26], 0
          %s1941 = sshll.u32 %s107, 4
          %s1942 = int_to_ptr.hbm [resolvable:$true] %s1941
          %s1943 = sshll.u32 [#allocation27], 4
          %s1944 = int_to_ptr.vmem [resolvable:$true] %s1943
          %1946 = dma.hbm_to_vmem [thread:$0]  %s1942, 16, %s1944, [#allocation26]
        $region220: #{forward.1} parent=11 // pred_fallthru
          _
        // Predicated region
        $region221: #{forward.1} parent=11 // pred_check
          %p1947 = pneg %p1322
        $region222: #{forward.1} parent=11 // pred_check_branch
          %1949 = sbr.rel (%p1947) target = $region224
        $region223: #{forward.1} parent=11 // pred_region
          %1951 = vsyncadd [#allocation29], 0
          %s1953 = sshll.u32 %s109, 4
          %s1954 = int_to_ptr.hbm [resolvable:$true] %s1953
          %s1955 = sshll.u32 [#allocation28], 4
          %s1956 = int_to_ptr.vmem [resolvable:$true] %s1955
          %1958 = dma.hbm_to_vmem [thread:$0]  %s1954, 16, %s1956, [#allocation29]
        $region224: #{forward.1} parent=11 // pred_fallthru
          _
        // Predicated region
        $region225: #{forward.1} parent=11 // pred_check
          %p1959 = pneg %p1343
        $region226: #{forward.1} parent=11 // pred_check_branch
          %1961 = sbr.rel (%p1959) target = $region228
        $region227: #{forward.1} parent=11 // pred_region
          %1963 = vsyncadd [#allocation29], 0
          %s1965 = sshll.u32 %s111, 4
          %s1966 = int_to_ptr.hbm [resolvable:$true] %s1965
          %s1967 = sshll.u32 [#allocation30], 4
          %s1968 = int_to_ptr.vmem [resolvable:$true] %s1967
          %1970 = dma.hbm_to_vmem [thread:$0]  %s1966, 16, %s1968, [#allocation29]
        $region228: #{forward.1} parent=11 // pred_fallthru
          _
        // Predicated region
        $region229: #{forward.1} parent=11 // pred_check
          %p1971 = pneg %p1364
        $region230: #{forward.1} parent=11 // pred_check_branch
          %1973 = sbr.rel (%p1971) target = $region232
        $region231: #{forward.1} parent=11 // pred_region
          %1975 = vsyncadd [#allocation32], 0
          %s1977 = sshll.u32 %s113, 4
          %s1978 = int_to_ptr.hbm [resolvable:$true] %s1977
          %s1979 = sshll.u32 [#allocation31], 4
          %s1980 = int_to_ptr.vmem [resolvable:$true] %s1979
          %1982 = dma.hbm_to_vmem [thread:$0]  %s1978, 16, %s1980, [#allocation32]
        $region232: #{forward.1} parent=11 // pred_fallthru
          _
        // Predicated region
        $region233: #{forward.1} parent=11 // pred_check
          %p1983 = pneg %p1385
        $region234: #{forward.1} parent=11 // pred_check_branch
          %1985 = sbr.rel (%p1983) target = $region236
        $region235: #{forward.1} parent=11 // pred_region
          _
        $region236: #{forward.1} parent=11 // pred_fallthru
          _
        // Predicated region
        $region237: #{forward.1} parent=11 // pred_check
          %p1986 = pneg %p1406
        $region238: #{forward.1} parent=11 // pred_check_branch
          %1988 = sbr.rel (%p1986) target = $region240
        $region239: #{forward.1} parent=11 // pred_region
          _
        $region240: #{forward.1} parent=11 // pred_fallthru
          _
        // Predicated region
        $region241: #{forward.1} parent=11 // pred_check
          %p1989 = pneg %p1427
        $region242: #{forward.1} parent=11 // pred_check_branch
          %1991 = sbr.rel (%p1989) target = $region244
        $region243: #{forward.1} parent=11 // pred_region
          %1993 = vsyncadd [#allocation32], 0
          %s1995 = sshll.u32 %s119, 4
          %s1996 = int_to_ptr.hbm [resolvable:$true] %s1995
          %s1997 = sshll.u32 [#allocation33], 4
          %s1998 = int_to_ptr.vmem [resolvable:$true] %s1997
          %2000 = dma.hbm_to_vmem [thread:$0]  %s1996, 16, %s1998, [#allocation32]
        $region244: #{forward.1} parent=11 // pred_fallthru
          _
        // Predicated region
        $region245: #{forward.1} parent=11 // pred_check
          %p2001 = pneg %p1448
        $region246: #{forward.1} parent=11 // pred_check_branch
          %2003 = sbr.rel (%p2001) target = $region248
        $region247: #{forward.1} parent=11 // pred_region
          %2005 = vsyncadd [#allocation35], 0
          %s2007 = sshll.u32 %s121, 4
          %s2008 = int_to_ptr.hbm [resolvable:$true] %s2007
          %s2009 = sshll.u32 [#allocation34], 4
          %s2010 = int_to_ptr.vmem [resolvable:$true] %s2009
          %2012 = dma.hbm_to_vmem [thread:$0]  %s2008, 16, %s2010, [#allocation35]
        $region248: #{forward.1} parent=11 // pred_fallthru
          _
        // Predicated region
        $region249: #{forward.1} parent=11 // pred_check
          %p2013 = pneg %p1469
        $region250: #{forward.1} parent=11 // pred_check_branch
          %2015 = sbr.rel (%p2013) target = $region252
        $region251: #{forward.1} parent=11 // pred_region
          %2017 = vsyncadd [#allocation35], 0
          %s2019 = sshll.u32 %s123, 4
          %s2020 = int_to_ptr.hbm [resolvable:$true] %s2019
          %s2021 = sshll.u32 [#allocation36], 4
          %s2022 = int_to_ptr.vmem [resolvable:$true] %s2021
          %2024 = dma.hbm_to_vmem [thread:$0]  %s2020, 16, %s2022, [#allocation35]
        $region252: #{forward.1} parent=11 // pred_fallthru
          _
        // Predicated region
        $region253: #{forward.1} parent=11 // pred_check
          %p2025 = pneg %p1490
        $region254: #{forward.1} parent=11 // pred_check_branch
          %2027 = sbr.rel (%p2025) target = $region256
        $region255: #{forward.1} parent=11 // pred_region
          %2029 = vsyncadd [#allocation38], 0
          %s2031 = sshll.u32 %s125, 4
          %s2032 = int_to_ptr.hbm [resolvable:$true] %s2031
          %s2033 = sshll.u32 [#allocation37], 4
          %s2034 = int_to_ptr.vmem [resolvable:$true] %s2033
          %2036 = dma.hbm_to_vmem [thread:$0]  %s2032, 16, %s2034, [#allocation38]
        $region256: #{forward.1} parent=11 // pred_fallthru
          _
        // Predicated region
        $region257: #{forward.1} parent=11 // pred_check
          %p2037 = pneg %p1511
        $region258: #{forward.1} parent=11 // pred_check_branch
          %2039 = sbr.rel (%p2037) target = $region260
        $region259: #{forward.1} parent=11 // pred_region
          %2041 = vsyncadd [#allocation38], 0
          %s2043 = sshll.u32 %s127, 4
          %s2044 = int_to_ptr.hbm [resolvable:$true] %s2043
          %s2045 = sshll.u32 [#allocation39], 4
          %s2046 = int_to_ptr.vmem [resolvable:$true] %s2045
          %2048 = dma.hbm_to_vmem [thread:$0]  %s2044, 16, %s2046, [#allocation38]
        $region260: #{forward.1} parent=11 // pred_fallthru
          _
        // Predicated region
        $region261: #{forward.1} parent=11 // pred_check
          %p2049 = pneg %p1532
        $region262: #{forward.1} parent=11 // pred_check_branch
          %2051 = sbr.rel (%p2049) target = $region264
        $region263: #{forward.1} parent=11 // pred_region
          %2053 = vsyncadd [#allocation41], 0
          %s2055 = sshll.u32 %s129, 4
          %s2056 = int_to_ptr.hbm [resolvable:$true] %s2055
          %s2057 = sshll.u32 [#allocation40], 4
          %s2058 = int_to_ptr.vmem [resolvable:$true] %s2057
          %2060 = dma.hbm_to_vmem [thread:$0]  %s2056, 16, %s2058, [#allocation41]
        $region264: #{forward.1} parent=11 // pred_fallthru
          _
        // Predicated region
        $region265: #{forward.1} parent=11 // pred_check
          %p2061 = pneg %p1553
        $region266: #{forward.1} parent=11 // pred_check_branch
          %2063 = sbr.rel (%p2061) target = $region268
        $region267: #{forward.1} parent=11 // pred_region
          _
        $region268: #{forward.1} parent=11 // pred_fallthru
          _
        // Predicated region
        $region269: #{forward.1} parent=11 // pred_check
          %p2064 = pneg %p1574
        $region270: #{forward.1} parent=11 // pred_check_branch
          %2066 = sbr.rel (%p2064) target = $region272
        $region271: #{forward.1} parent=11 // pred_region
          _
        $region272: #{forward.1} parent=11 // pred_fallthru
          _
        // Predicated region
        $region273: #{forward.1} parent=11 // pred_check
          %p2067 = pneg %p1595
        $region274: #{forward.1} parent=11 // pred_check_branch
          %2069 = sbr.rel (%p2067) target = $region276
        $region275: #{forward.1} parent=11 // pred_region
          _
        $region276: #{forward.1} parent=11 // pred_fallthru
          _
      $region12: #{forward.1} parent=5 // pred_fallthru
        _
      %p2070 = scmp.lt.s32.totalorder %s157, 2
      // Predicated region
      $region277: #{forward.1} parent=5 // pred_check
        %p2071 = pneg %p2070
      $region278: #{forward.1} parent=5 // pred_check_branch
        %2073 = sbr.rel (%p2071) target = $region280
      $region279: #{forward.1} parent=5 // pred_region
        // Predicated region
        $region281: #{forward.1} parent=279 // pred_check
          %p2074 = pneg %p177
        $region282: #{forward.1} parent=279 // pred_check_branch
          %2076 = sbr.rel (%p2074) target = $region284
        $region283: #{forward.1} parent=279 // pred_region
          %p2077 = scmp.lt.s32.totalorder %s157, 1
          %s2078 = scalar_select %p2077, %s157, 1
          %s2079 = smul.addr %s2078, 3
          %s2080 = smul.addr %s2079, 8
          %s2081 = scalar_lea.vmem %s1, %s2080
        $region284: #{forward.1} parent=279 // pred_fallthru
          _
        // Predicated region
        $region285: #{forward.1} parent=279 // pred_check
          %p2082 = pneg %p203
        $region286: #{forward.1} parent=279 // pred_check_branch
          %2084 = sbr.rel (%p2082) target = $region288
        $region287: #{forward.1} parent=279 // pred_region
          %p2085 = scmp.lt.s32.totalorder %s157, 1
          %s2086 = scalar_select %p2085, %s157, 1
          %s2087 = scalar_lea.vmem %s3, %s2086
        $region288: #{forward.1} parent=279 // pred_fallthru
          _
      $region280: #{forward.1} parent=5 // pred_fallthru
        _
      %p2088 = scmp.le.s32.totalorder 1, %s157
      %p2089 = scmp.lt.s32.totalorder %s157, 3
      %p2090 = pnand %p2088, %p2089
      %p2091 = pneg %p2090
      // Predicated region
      $region289: #{forward.1} parent=5 // pred_check
        _
      $region290: #{forward.1} parent=5 // pred_check_branch
        %2093 = sbr.rel (%p2090) target = $region292
      $region291: #{forward.1} parent=5 // pred_region
        %s2094 = ssub.s32 %s157, 1
        // Predicated region
        $region293: #{forward.1} parent=291 // pred_check
          %p2095 = pneg %p230
        $region294: #{forward.1} parent=291 // pred_check_branch
          %2097 = sbr.rel (%p2095) target = $region296
        $region295: #{forward.1} parent=291 // pred_region
          %2099 = dma.done [#allocation3], 8192
        $region296: #{forward.1} parent=291 // pred_fallthru
          _
        // Predicated region
        $region297: #{forward.1} parent=291 // pred_check
          %p2100 = pneg %p839
        $region298: #{forward.1} parent=291 // pred_check_branch
          %2102 = sbr.rel (%p2100) target = $region300
        $region299: #{forward.1} parent=291 // pred_region
          %2104 = dma.done [#allocation5], 16
        $region300: #{forward.1} parent=291 // pred_fallthru
          _
        // Predicated region
        $region301: #{forward.1} parent=291 // pred_check
          %p2105 = pneg %p860
        $region302: #{forward.1} parent=291 // pred_check_branch
          %2107 = sbr.rel (%p2105) target = $region304
        $region303: #{forward.1} parent=291 // pred_region
          %2109 = dma.done [#allocation5], 16
        $region304: #{forward.1} parent=291 // pred_fallthru
          _
        // Predicated region
        $region305: #{forward.1} parent=291 // pred_check
          %p2110 = pneg %p881
        $region306: #{forward.1} parent=291 // pred_check_branch
          %2112 = sbr.rel (%p2110) target = $region308
        $region307: #{forward.1} parent=291 // pred_region
          %2114 = dma.done [#allocation8], 16
        $region308: #{forward.1} parent=291 // pred_fallthru
          _
        // Predicated region
        $region309: #{forward.1} parent=291 // pred_check
          %p2115 = pneg %p902
        $region310: #{forward.1} parent=291 // pred_check_branch
          %2117 = sbr.rel (%p2115) target = $region312
        $region311: #{forward.1} parent=291 // pred_region
          %2119 = dma.done [#allocation8], 16
        $region312: #{forward.1} parent=291 // pred_fallthru
          _
        // Predicated region
        $region313: #{forward.1} parent=291 // pred_check
          %p2120 = pneg %p965
        $region314: #{forward.1} parent=291 // pred_check_branch
          %2122 = sbr.rel (%p2120) target = $region316
        $region315: #{forward.1} parent=291 // pred_region
          %2124 = dma.done [#allocation11], 16
        $region316: #{forward.1} parent=291 // pred_fallthru
          _
        // Predicated region
        $region317: #{forward.1} parent=291 // pred_check
          %p2125 = pneg %p986
        $region318: #{forward.1} parent=291 // pred_check_branch
          %2127 = sbr.rel (%p2125) target = $region320
        $region319: #{forward.1} parent=291 // pred_region
          %2129 = dma.done [#allocation11], 16
        $region320: #{forward.1} parent=291 // pred_fallthru
          _
        // Predicated region
        $region321: #{forward.1} parent=291 // pred_check
          %p2130 = pneg %p1007
        $region322: #{forward.1} parent=291 // pred_check_branch
          %2132 = sbr.rel (%p2130) target = $region324
        $region323: #{forward.1} parent=291 // pred_region
          %2134 = dma.done [#allocation14], 16
        $region324: #{forward.1} parent=291 // pred_fallthru
          _
        // Predicated region
        $region325: #{forward.1} parent=291 // pred_check
          %p2135 = pneg %p1049
        $region326: #{forward.1} parent=291 // pred_check_branch
          %2137 = sbr.rel (%p2135) target = $region328
        $region327: #{forward.1} parent=291 // pred_region
          %2139 = dma.done [#allocation14], 16
        $region328: #{forward.1} parent=291 // pred_fallthru
          _
        // Predicated region
        $region329: #{forward.1} parent=291 // pred_check
          %p2140 = pneg %p1070
        $region330: #{forward.1} parent=291 // pred_check_branch
          %2142 = sbr.rel (%p2140) target = $region332
        $region331: #{forward.1} parent=291 // pred_region
          %2144 = dma.done [#allocation17], 16
        $region332: #{forward.1} parent=291 // pred_fallthru
          _
        // Predicated region
        $region333: #{forward.1} parent=291 // pred_check
          %p2145 = pneg %p1091
        $region334: #{forward.1} parent=291 // pred_check_branch
          %2147 = sbr.rel (%p2145) target = $region336
        $region335: #{forward.1} parent=291 // pred_region
          %2149 = dma.done [#allocation17], 16
        $region336: #{forward.1} parent=291 // pred_fallthru
          _
        // Predicated region
        $region337: #{forward.1} parent=291 // pred_check
          %p2150 = pneg %p1133
        $region338: #{forward.1} parent=291 // pred_check_branch
          %2152 = sbr.rel (%p2150) target = $region340
        $region339: #{forward.1} parent=291 // pred_region
          %2154 = dma.done [#allocation20], 16
        $region340: #{forward.1} parent=291 // pred_fallthru
          _
        // Predicated region
        $region341: #{forward.1} parent=291 // pred_check
          %p2155 = pneg %p1175
        $region342: #{forward.1} parent=291 // pred_check_branch
          %2157 = sbr.rel (%p2155) target = $region344
        $region343: #{forward.1} parent=291 // pred_region
          %2159 = dma.done [#allocation20], 16
        $region344: #{forward.1} parent=291 // pred_fallthru
          _
        // Predicated region
        $region345: #{forward.1} parent=291 // pred_check
          %p2160 = pneg %p1196
        $region346: #{forward.1} parent=291 // pred_check_branch
          %2162 = sbr.rel (%p2160) target = $region348
        $region347: #{forward.1} parent=291 // pred_region
          %2164 = dma.done [#allocation23], 16
        $region348: #{forward.1} parent=291 // pred_fallthru
          _
        // Predicated region
        $region349: #{forward.1} parent=291 // pred_check
          %p2165 = pneg %p1217
        $region350: #{forward.1} parent=291 // pred_check_branch
          %2167 = sbr.rel (%p2165) target = $region352
        $region351: #{forward.1} parent=291 // pred_region
          %2169 = dma.done [#allocation23], 16
        $region352: #{forward.1} parent=291 // pred_fallthru
          _
        // Predicated region
        $region353: #{forward.1} parent=291 // pred_check
          %p2170 = pneg %p1238
        $region354: #{forward.1} parent=291 // pred_check_branch
          %2172 = sbr.rel (%p2170) target = $region356
        $region355: #{forward.1} parent=291 // pred_region
          %2174 = dma.done [#allocation26], 16
        $region356: #{forward.1} parent=291 // pred_fallthru
          _
        // Predicated region
        $region357: #{forward.1} parent=291 // pred_check
          %p2175 = pneg %p1301
        $region358: #{forward.1} parent=291 // pred_check_branch
          %2177 = sbr.rel (%p2175) target = $region360
        $region359: #{forward.1} parent=291 // pred_region
          %2179 = dma.done [#allocation26], 16
        $region360: #{forward.1} parent=291 // pred_fallthru
          _
        // Predicated region
        $region361: #{forward.1} parent=291 // pred_check
          %p2180 = pneg %p1322
        $region362: #{forward.1} parent=291 // pred_check_branch
          %2182 = sbr.rel (%p2180) target = $region364
        $region363: #{forward.1} parent=291 // pred_region
          %2184 = dma.done [#allocation29], 16
        $region364: #{forward.1} parent=291 // pred_fallthru
          _
        // Predicated region
        $region365: #{forward.1} parent=291 // pred_check
          %p2185 = pneg %p1343
        $region366: #{forward.1} parent=291 // pred_check_branch
          %2187 = sbr.rel (%p2185) target = $region368
        $region367: #{forward.1} parent=291 // pred_region
          %2189 = dma.done [#allocation29], 16
        $region368: #{forward.1} parent=291 // pred_fallthru
          _
        // Predicated region
        $region369: #{forward.1} parent=291 // pred_check
          %p2190 = pneg %p1364
        $region370: #{forward.1} parent=291 // pred_check_branch
          %2192 = sbr.rel (%p2190) target = $region372
        $region371: #{forward.1} parent=291 // pred_region
          %2194 = dma.done [#allocation32], 16
        $region372: #{forward.1} parent=291 // pred_fallthru
          _
        // Predicated region
        $region373: #{forward.1} parent=291 // pred_check
          %p2195 = pneg %p1427
        $region374: #{forward.1} parent=291 // pred_check_branch
          %2197 = sbr.rel (%p2195) target = $region376
        $region375: #{forward.1} parent=291 // pred_region
          %2199 = dma.done [#allocation32], 16
        $region376: #{forward.1} parent=291 // pred_fallthru
          _
        // Predicated region
        $region377: #{forward.1} parent=291 // pred_check
          %p2200 = pneg %p1448
        $region378: #{forward.1} parent=291 // pred_check_branch
          %2202 = sbr.rel (%p2200) target = $region380
        $region379: #{forward.1} parent=291 // pred_region
          %2204 = dma.done [#allocation35], 16
        $region380: #{forward.1} parent=291 // pred_fallthru
          _
        // Predicated region
        $region381: #{forward.1} parent=291 // pred_check
          %p2205 = pneg %p1469
        $region382: #{forward.1} parent=291 // pred_check_branch
          %2207 = sbr.rel (%p2205) target = $region384
        $region383: #{forward.1} parent=291 // pred_region
          %2209 = dma.done [#allocation35], 16
        $region384: #{forward.1} parent=291 // pred_fallthru
          _
        // Predicated region
        $region385: #{forward.1} parent=291 // pred_check
          %p2210 = pneg %p1490
        $region386: #{forward.1} parent=291 // pred_check_branch
          %2212 = sbr.rel (%p2210) target = $region388
        $region387: #{forward.1} parent=291 // pred_region
          %2214 = dma.done [#allocation38], 16
        $region388: #{forward.1} parent=291 // pred_fallthru
          _
        // Predicated region
        $region389: #{forward.1} parent=291 // pred_check
          %p2215 = pneg %p1511
        $region390: #{forward.1} parent=291 // pred_check_branch
          %2217 = sbr.rel (%p2215) target = $region392
        $region391: #{forward.1} parent=291 // pred_region
          %2219 = dma.done [#allocation38], 16
        $region392: #{forward.1} parent=291 // pred_fallthru
          _
        // Predicated region
        $region393: #{forward.1} parent=291 // pred_check
          %p2220 = pneg %p1532
        $region394: #{forward.1} parent=291 // pred_check_branch
          %2222 = sbr.rel (%p2220) target = $region396
        $region395: #{forward.1} parent=291 // pred_region
          %2224 = dma.done [#allocation41], 16
        $region396: #{forward.1} parent=291 // pred_fallthru
          _
        %p2225 = scmp.lt.s32.totalorder %s162, 1
        %s2226 = scalar_select %p2225, %s162, 1
        %s2227 = smul.addr %s2226, 3
        %s2228 = smul.addr %s2227, 8
        %s2229 = scalar_lea.vmem %s1, %s2228
        %p2230 = pneg %p183
        %p2231 = pneg %p180
        %p2232 = scmp.lt.s32.totalorder %s162, 1
        %s2233 = scalar_select %p2232, %s162, 1
        %s2234 = scalar_lea.vmem %s3, %s2233
        %p2235 = pneg %p209
        %p2236 = pneg %p206
        %p2237 = pneg %p230
        %p2238 = pneg %p227
        %p2239 = pneg %p251
        %p2240 = pneg %p248
        %p2241 = pneg %p272
        %p2242 = pneg %p269
        %p2243 = pneg %p293
        %p2244 = pneg %p290
        %p2245 = pneg %p314
        %p2246 = pneg %p311
        %p2247 = pneg %p335
        %p2248 = pneg %p332
        %p2249 = pneg %p356
        %p2250 = pneg %p353
        %p2251 = pneg %p377
        %p2252 = pneg %p374
        %p2253 = pneg %p398
        %p2254 = pneg %p395
        %p2255 = pneg %p419
        %p2256 = pneg %p416
        %p2257 = pneg %p440
        %p2258 = pneg %p437
        %p2259 = pneg %p461
        %p2260 = pneg %p458
        %p2261 = pneg %p482
        %p2262 = pneg %p479
        %p2263 = pneg %p503
        %p2264 = pneg %p500
        %p2265 = pneg %p524
        %p2266 = pneg %p521
        %p2267 = pneg %p545
        %p2268 = pneg %p542
        %p2269 = pneg %p566
        %p2270 = pneg %p563
        %p2271 = pneg %p587
        %p2272 = pneg %p584
        %p2273 = pneg %p608
        %p2274 = pneg %p605
        %p2275 = pneg %p629
        %p2276 = pneg %p626
        %p2277 = pneg %p650
        %p2278 = pneg %p647
        %p2279 = pneg %p671
        %p2280 = pneg %p668
        %p2281 = pneg %p692
        %p2282 = pneg %p689
        %p2283 = pneg %p713
        %p2284 = pneg %p710
        %p2285 = pneg %p734
        %p2286 = pneg %p731
        %p2287 = pneg %p755
        %p2288 = pneg %p752
        %p2289 = pneg %p776
        %p2290 = pneg %p773
        %p2291 = pneg %p797
        %p2292 = pneg %p794
        %p2293 = pneg %p818
        %p2294 = pneg %p815
        %p2295 = pneg %p839
        %p2296 = pneg %p836
        %p2297 = pneg %p860
        %p2298 = pneg %p857
        %p2299 = pneg %p881
        %p2300 = pneg %p878
        %p2301 = pneg %p902
        %p2302 = pneg %p899
        %p2303 = pneg %p923
        %p2304 = pneg %p920
        %p2305 = pneg %p944
        %p2306 = pneg %p941
        %p2307 = pneg %p965
        %p2308 = pneg %p962
        %p2309 = pneg %p986
        %p2310 = pneg %p983
        %p2311 = pneg %p1007
        %p2312 = pneg %p1004
        %p2313 = pneg %p1028
        %p2314 = pneg %p1025
        %p2315 = pneg %p1049
        %p2316 = pneg %p1046
        %p2317 = pneg %p1070
        %p2318 = pneg %p1067
        %p2319 = pneg %p1091
        %p2320 = pneg %p1088
        %p2321 = pneg %p1112
        %p2322 = pneg %p1109
        %p2323 = pneg %p1133
        %p2324 = pneg %p1130
        %p2325 = pneg %p1154
        %p2326 = pneg %p1151
        %p2327 = pneg %p1175
        %p2328 = pneg %p1172
        %p2329 = pneg %p1196
        %p2330 = pneg %p1193
        %p2331 = pneg %p1217
        %p2332 = pneg %p1214
        %p2333 = pneg %p1238
        %p2334 = pneg %p1235
        %p2335 = pneg %p1259
        %p2336 = pneg %p1256
        %p2337 = pneg %p1280
        %p2338 = pneg %p1277
        %p2339 = pneg %p1301
        %p2340 = pneg %p1298
        %p2341 = pneg %p1322
        %p2342 = pneg %p1319
        %p2343 = pneg %p1343
        %p2344 = pneg %p1340
        %p2345 = pneg %p1364
        %p2346 = pneg %p1361
        %p2347 = pneg %p1385
        %p2348 = pneg %p1382
        %p2349 = pneg %p1406
        %p2350 = pneg %p1403
        %p2351 = pneg %p1427
        %p2352 = pneg %p1424
        %p2353 = pneg %p1448
        %p2354 = pneg %p1445
        %p2355 = pneg %p1469
        %p2356 = pneg %p1466
        %p2357 = pneg %p1490
        %p2358 = pneg %p1487
        %p2359 = pneg %p1511
        %p2360 = pneg %p1508
        %p2361 = pneg %p1532
        %p2362 = pneg %p1529
        %p2363 = pneg %p1553
        %p2364 = pneg %p1550
        %p2365 = pneg %p1574
        %p2366 = pneg %p1571
        %p2367 = pneg %p1595
        %p2368 = pneg %p1592
        %p2369 = pneg %p1621
        %p2370 = pneg %p1618
        %p2371 = scmp.lt.s32.totalorder %s162, 1
        %s2372 = scalar_select %p2371, %s162, 1
        %s2373 = smul.addr %s2372, 2
        %s2374 = smul.addr %s2373, 8
        %s2375 = scalar_lea.vmem %s137, %s2374
        %p2376 = scmp.lt.s32.totalorder %s162, 1
        %s2377 = scalar_select %p2376, %s162, 1
        %s2378 = smul.addr %s2377, 3
        %s2379 = smul.addr %s2378, 8
        %s2380 = scalar_lea.vmem %s1, %s2379
        %p2381 = scmp.lt.s32.totalorder %s162, 1
        %s2382 = scalar_select %p2381, %s162, 1
        %s2383 = scalar_lea.vmem %s3, %s2382
        %p2384 = scmp.lt.s32.totalorder %s162, 1
        %s2385 = scalar_select %p2384, %s162, 1
        %s2386 = smul.addr %s2385, 2
        %s2387 = smul.addr %s2386, 8
        %s2388 = scalar_lea.vmem %s137, %s2387
        %v2390 = vld [vmem:[#allocation2] sm:$0xff]
        %v2391 = vld [vmem:[#allocation2 + $0x8] sm:$0xff]
        %v2392 = vld [vmem:[#allocation2 + $0x10] sm:$0xff]
        %v2393 = vld [vmem:[#allocation2 + $0x18] sm:$0xff]
        %v2394 = vld [vmem:[#allocation2 + $0x20] sm:$0xff]
        %v2395 = vld [vmem:[#allocation2 + $0x28] sm:$0xff]
        %v2396 = vld [vmem:[#allocation2 + $0x30] sm:$0xff]
        %v2397 = vld [vmem:[#allocation2 + $0x38] sm:$0xff]
        %v2398 = vld [vmem:[#allocation2 + $0x40] sm:$0xff]
        %v2399 = vld [vmem:[#allocation2 + $0x48] sm:$0xff]
        %v2400 = vld [vmem:[#allocation2 + $0x50] sm:$0xff]
        %v2401 = vld [vmem:[#allocation2 + $0x58] sm:$0xff]
        %v2402 = vld [vmem:[#allocation2 + $0x60] sm:$0xff]
        %v2403 = vld [vmem:[#allocation2 + $0x68] sm:$0xff]
        %v2404 = vld [vmem:[#allocation2 + $0x70] sm:$0xff]
        %v2405 = vld [vmem:[#allocation2 + $0x78] sm:$0xff]
        %v2406 = vld [vmem:[#allocation2 + $0x80] sm:$0xff]
        %v2407 = vld [vmem:[#allocation2 + $0x88] sm:$0xff]
        %v2408 = vld [vmem:[#allocation2 + $0x90] sm:$0xff]
        %v2409 = vld [vmem:[#allocation2 + $0x98] sm:$0xff]
        %v2410 = vld [vmem:[#allocation2 + $0xa0] sm:$0xff]
        %v2411 = vld [vmem:[#allocation2 + $0xa8] sm:$0xff]
        %v2412 = vld [vmem:[#allocation2 + $0xb0] sm:$0xff]
        %v2413 = vld [vmem:[#allocation2 + $0xb8] sm:$0xff]
        %v2414 = vld [vmem:[#allocation2 + $0xc0] sm:$0xff]
        %v2415 = vld [vmem:[#allocation2 + $0xc8] sm:$0xff]
        %v2416 = vld [vmem:[#allocation2 + $0xd0] sm:$0xff]
        %v2417 = vld [vmem:[#allocation2 + $0xd8] sm:$0xff]
        %v2418 = vld [vmem:[#allocation2 + $0xe0] sm:$0xff]
        %v2419 = vld [vmem:[#allocation2 + $0xe8] sm:$0xff]
        %v2420 = vld [vmem:[#allocation2 + $0xf0] sm:$0xff]
        %v2421 = vld [vmem:[#allocation2 + $0xf8] sm:$0xff]
        %v2422 = vld [vmem:[#allocation2 + $0x100] sm:$0xff]
        %v2423 = vld [vmem:[#allocation2 + $0x108] sm:$0xff]
        %v2424 = vld [vmem:[#allocation2 + $0x110] sm:$0xff]
        %v2425 = vld [vmem:[#allocation2 + $0x118] sm:$0xff]
        %v2426 = vld [vmem:[#allocation2 + $0x120] sm:$0xff]
        %v2427 = vld [vmem:[#allocation2 + $0x128] sm:$0xff]
        %v2428 = vld [vmem:[#allocation2 + $0x130] sm:$0xff]
        %v2429 = vld [vmem:[#allocation2 + $0x138] sm:$0xff]
        %v2430 = vld [vmem:[#allocation2 + $0x140] sm:$0xff]
        %v2431 = vld [vmem:[#allocation2 + $0x148] sm:$0xff]
        %v2432 = vld [vmem:[#allocation2 + $0x150] sm:$0xff]
        %v2433 = vld [vmem:[#allocation2 + $0x158] sm:$0xff]
        %v2434 = vld [vmem:[#allocation2 + $0x160] sm:$0xff]
        %v2435 = vld [vmem:[#allocation2 + $0x168] sm:$0xff]
        %v2436 = vld [vmem:[#allocation2 + $0x170] sm:$0xff]
        %v2437 = vld [vmem:[#allocation2 + $0x178] sm:$0xff]
        %v2438 = vld [vmem:[#allocation2 + $0x180] sm:$0xff]
        %v2439 = vld [vmem:[#allocation2 + $0x188] sm:$0xff]
        %v2440 = vld [vmem:[#allocation2 + $0x190] sm:$0xff]
        %v2441 = vld [vmem:[#allocation2 + $0x198] sm:$0xff]
        %v2442 = vld [vmem:[#allocation2 + $0x1a0] sm:$0xff]
        %v2443 = vld [vmem:[#allocation2 + $0x1a8] sm:$0xff]
        %v2444 = vld [vmem:[#allocation2 + $0x1b0] sm:$0xff]
        %v2445 = vld [vmem:[#allocation2 + $0x1b8] sm:$0xff]
        %v2446 = vld [vmem:[#allocation2 + $0x1c0] sm:$0xff]
        %v2447 = vld [vmem:[#allocation2 + $0x1c8] sm:$0xff]
        %v2448 = vld [vmem:[#allocation2 + $0x1d0] sm:$0xff]
        %v2449 = vld [vmem:[#allocation2 + $0x1d8] sm:$0xff]
        %v2450 = vld [vmem:[#allocation2 + $0x1e0] sm:$0xff]
        %v2451 = vld [vmem:[#allocation2 + $0x1e8] sm:$0xff]
        %v2452 = vld [vmem:[#allocation2 + $0x1f0] sm:$0xff]
        %v2453 = vld [vmem:[#allocation2 + $0x1f8] sm:$0xff]
        %v2454 = vld [vmem:[%s7] sm:$0x1]
        %v2455 = vld [vmem:[%s9] sm:$0xf]
        %v2456 = vld [vmem:[%s9 + $0x4] sm:$0xf]
        %v2457 = vld [vmem:[%s9 + $0x8] sm:$0xf]
        %v2458 = vld [vmem:[%s9 + $0xc] sm:$0xf]
        %v2459 = vld [vmem:[%s11] sm:$0x1]
        %v2460 = vld [vmem:[%s13] sm:$0xf]
        %v2461 = vld [vmem:[%s13 + $0x4] sm:$0xf]
        %v2462 = vld [vmem:[%s13 + $0x8] sm:$0xf]
        %v2463 = vld [vmem:[%s13 + $0xc] sm:$0xf]
        %v2464 = vld [vmem:[%s13 + $0x10] sm:$0xf]
        %v2465 = vld [vmem:[%s13 + $0x14] sm:$0xf]
        %v2466 = vld [vmem:[%s13 + $0x18] sm:$0xf]
        %v2467 = vld [vmem:[%s13 + $0x1c] sm:$0xf]
        %v2468 = vld [vmem:[%s13 + $0x20] sm:$0xf]
        %v2469 = vld [vmem:[%s13 + $0x24] sm:$0xf]
        %v2470 = vld [vmem:[%s13 + $0x28] sm:$0xf]
        %v2471 = vld [vmem:[%s13 + $0x2c] sm:$0xf]
        %v2472 = vld [vmem:[%s13 + $0x30] sm:$0xf]
        %v2473 = vld [vmem:[%s13 + $0x34] sm:$0xf]
        %v2474 = vld [vmem:[%s13 + $0x38] sm:$0xf]
        %v2475 = vld [vmem:[%s13 + $0x3c] sm:$0xf]
        %v2476 = vld [vmem:[%s15] sm:$0x1]
        %v2477 = vld [vmem:[%s17] sm:$0x1]
        %v2478 = vld [vmem:[%s19] sm:$0x1]
        %v2479 = vld [vmem:[%s21] sm:$0x7f]
        %v2480 = vld [vmem:[%s23] sm:$0x1]
        %v2481 = vld [vmem:[%s25] sm:$0x1]
        %v2482 = vld [vmem:[%s27] sm:$0x1]
        %v2483 = vld [vmem:[%s29] sm:$0xf]
        %v2484 = vld [vmem:[%s29 + $0x4] sm:$0xf]
        %v2485 = vld [vmem:[%s29 + $0x8] sm:$0xf]
        %v2486 = vld [vmem:[%s29 + $0xc] sm:$0xf]
        %v2487 = vld [vmem:[%s31] sm:$0x1]
        %v2488 = vld [vmem:[%s33] sm:$0xf]
        %v2489 = vld [vmem:[%s33 + $0x4] sm:$0xf]
        %v2490 = vld [vmem:[%s33 + $0x8] sm:$0xf]
        %v2491 = vld [vmem:[%s33 + $0xc] sm:$0xf]
        %v2492 = vld [vmem:[%s35] sm:$0x1]
        %v2493 = vld [vmem:[%s37] sm:$0x1]
        %v2494 = vld [vmem:[%s39] sm:$0x1]
        %v2495 = vld [vmem:[%s41] sm:$0x1]
        %v2496 = vld [vmem:[%s43] sm:$0xf]
        %v2497 = vld [vmem:[%s43 + $0x4] sm:$0xf]
        %v2498 = vld [vmem:[%s43 + $0x8] sm:$0xf]
        %v2499 = vld [vmem:[%s43 + $0xc] sm:$0xf]
        %v2500 = vld [vmem:[%s45] sm:$0xf]
        %v2501 = vld [vmem:[%s45 + $0x4] sm:$0xf]
        %v2502 = vld [vmem:[%s45 + $0x8] sm:$0xf]
        %v2503 = vld [vmem:[%s45 + $0xc] sm:$0xf]
        %v2504 = vld [vmem:[%s45 + $0x10] sm:$0xf]
        %v2505 = vld [vmem:[%s45 + $0x14] sm:$0xf]
        %v2506 = vld [vmem:[%s45 + $0x18] sm:$0xf]
        %v2507 = vld [vmem:[%s45 + $0x1c] sm:$0xf]
        %v2508 = vld [vmem:[%s45 + $0x20] sm:$0xf]
        %v2509 = vld [vmem:[%s45 + $0x24] sm:$0xf]
        %v2510 = vld [vmem:[%s45 + $0x28] sm:$0xf]
        %v2511 = vld [vmem:[%s45 + $0x2c] sm:$0xf]
        %v2512 = vld [vmem:[%s45 + $0x30] sm:$0xf]
        %v2513 = vld [vmem:[%s45 + $0x34] sm:$0xf]
        %v2514 = vld [vmem:[%s45 + $0x38] sm:$0xf]
        %v2515 = vld [vmem:[%s45 + $0x3c] sm:$0xf]
        %v2516 = vld [vmem:[%s47] sm:$0x1]
        %v2517 = vld [vmem:[%s49] sm:$0x1]
        %v2518 = vld [vmem:[%s51] sm:$0x1]
        %v2519 = vld [vmem:[%s53] sm:$0x1]
        %v2520 = vld [vmem:[%s55] sm:$0xf]
        %v2521 = vld [vmem:[%s55 + $0x4] sm:$0xf]
        %v2522 = vld [vmem:[%s55 + $0x8] sm:$0xf]
        %v2523 = vld [vmem:[%s55 + $0xc] sm:$0xf]
        %v2524 = vld [vmem:[%s57] sm:$0xf]
        %v2525 = vld [vmem:[%s57 + $0x4] sm:$0xf]
        %v2526 = vld [vmem:[%s57 + $0x8] sm:$0xf]
        %v2527 = vld [vmem:[%s57 + $0xc] sm:$0xf]
        %v2528 = vld [vmem:[%s57 + $0x10] sm:$0xf]
        %v2529 = vld [vmem:[%s57 + $0x14] sm:$0xf]
        %v2530 = vld [vmem:[%s57 + $0x18] sm:$0xf]
        %v2531 = vld [vmem:[%s57 + $0x1c] sm:$0xf]
        %v2532 = vld [vmem:[%s57 + $0x20] sm:$0xf]
        %v2533 = vld [vmem:[%s57 + $0x24] sm:$0xf]
        %v2534 = vld [vmem:[%s57 + $0x28] sm:$0xf]
        %v2535 = vld [vmem:[%s57 + $0x2c] sm:$0xf]
        %v2536 = vld [vmem:[%s57 + $0x30] sm:$0xf]
        %v2537 = vld [vmem:[%s57 + $0x34] sm:$0xf]
        %v2538 = vld [vmem:[%s57 + $0x38] sm:$0xf]
        %v2539 = vld [vmem:[%s57 + $0x3c] sm:$0xf]
        %v2540 = vld [vmem:[%s59] sm:$0x1]
        %v2541 = vld [vmem:[%s61] sm:$0x1]
        %v2542 = vld [vmem:[#allocation4] sm:$0x1]
        %v2543 = vld [vmem:[#allocation6] sm:$0x1]
        %v2544 = vld [vmem:[#allocation7] sm:$0x1]
        %v2545 = vld [vmem:[#allocation9] sm:$0x1]
        %v2546 = vld [vmem:[%s71] sm:$0xf]
        %v2547 = vld [vmem:[%s71 + $0x4] sm:$0xf]
        %v2548 = vld [vmem:[%s71 + $0x8] sm:$0xf]
        %v2549 = vld [vmem:[%s71 + $0xc] sm:$0xf]
        %v2550 = vld [vmem:[%s73] sm:$0xf]
        %v2551 = vld [vmem:[%s73 + $0x4] sm:$0xf]
        %v2552 = vld [vmem:[%s73 + $0x8] sm:$0xf]
        %v2553 = vld [vmem:[%s73 + $0xc] sm:$0xf]
        %v2554 = vld [vmem:[#allocation10] sm:$0x1]
        %v2555 = vld [vmem:[#allocation12] sm:$0x1]
        %v2556 = vld [vmem:[#allocation13] sm:$0x1]
        %v2557 = vld [vmem:[%s81] sm:$0x7f]
        %v2558 = vld [vmem:[#allocation15] sm:$0x1]
        %v2559 = vld [vmem:[#allocation16] sm:$0x1]
        %v2560 = vld [vmem:[#allocation18] sm:$0x1]
        %v2561 = vld [vmem:[%s89] sm:$0xf]
        %v2562 = vld [vmem:[%s89 + $0x4] sm:$0xf]
        %v2563 = vld [vmem:[%s89 + $0x8] sm:$0xf]
        %v2564 = vld [vmem:[%s89 + $0xc] sm:$0xf]
        %v2565 = vld [vmem:[#allocation19] sm:$0x1]
        %v2566 = vld [vmem:[%s93] sm:$0xf]
        %v2567 = vld [vmem:[%s93 + $0x4] sm:$0xf]
        %v2568 = vld [vmem:[%s93 + $0x8] sm:$0xf]
        %v2569 = vld [vmem:[%s93 + $0xc] sm:$0xf]
        %v2570 = vld [vmem:[#allocation21] sm:$0x1]
        %v2571 = vld [vmem:[#allocation22] sm:$0x1]
        %v2572 = vld [vmem:[#allocation24] sm:$0x1]
        %v2573 = vld [vmem:[#allocation25] sm:$0x1]
        %v2574 = vld [vmem:[%s103] sm:$0xf]
        %v2575 = vld [vmem:[%s103 + $0x4] sm:$0xf]
        %v2576 = vld [vmem:[%s103 + $0x8] sm:$0xf]
        %v2577 = vld [vmem:[%s103 + $0xc] sm:$0xf]
        %v2578 = vld [vmem:[%s105] sm:$0xf]
        %v2579 = vld [vmem:[%s105 + $0x4] sm:$0xf]
        %v2580 = vld [vmem:[%s105 + $0x8] sm:$0xf]
        %v2581 = vld [vmem:[%s105 + $0xc] sm:$0xf]
        %v2582 = vld [vmem:[%s105 + $0x10] sm:$0xf]
        %v2583 = vld [vmem:[%s105 + $0x14] sm:$0xf]
        %v2584 = vld [vmem:[%s105 + $0x18] sm:$0xf]
        %v2585 = vld [vmem:[%s105 + $0x1c] sm:$0xf]
        %v2586 = vld [vmem:[%s105 + $0x20] sm:$0xf]
        %v2587 = vld [vmem:[%s105 + $0x24] sm:$0xf]
        %v2588 = vld [vmem:[%s105 + $0x28] sm:$0xf]
        %v2589 = vld [vmem:[%s105 + $0x2c] sm:$0xf]
        %v2590 = vld [vmem:[%s105 + $0x30] sm:$0xf]
        %v2591 = vld [vmem:[%s105 + $0x34] sm:$0xf]
        %v2592 = vld [vmem:[%s105 + $0x38] sm:$0xf]
        %v2593 = vld [vmem:[%s105 + $0x3c] sm:$0xf]
        %v2594 = vld [vmem:[#allocation27] sm:$0x1]
        %v2595 = vld [vmem:[#allocation28] sm:$0x1]
        %v2596 = vld [vmem:[#allocation30] sm:$0x1]
        %v2597 = vld [vmem:[#allocation31] sm:$0x1]
        %v2598 = vld [vmem:[%s115] sm:$0xf]
        %v2599 = vld [vmem:[%s115 + $0x4] sm:$0xf]
        %v2600 = vld [vmem:[%s115 + $0x8] sm:$0xf]
        %v2601 = vld [vmem:[%s115 + $0xc] sm:$0xf]
        %v2602 = vld [vmem:[%s117] sm:$0xf]
        %v2603 = vld [vmem:[%s117 + $0x4] sm:$0xf]
        %v2604 = vld [vmem:[%s117 + $0x8] sm:$0xf]
        %v2605 = vld [vmem:[%s117 + $0xc] sm:$0xf]
        %v2606 = vld [vmem:[%s117 + $0x10] sm:$0xf]
        %v2607 = vld [vmem:[%s117 + $0x14] sm:$0xf]
        %v2608 = vld [vmem:[%s117 + $0x18] sm:$0xf]
        %v2609 = vld [vmem:[%s117 + $0x1c] sm:$0xf]
        %v2610 = vld [vmem:[%s117 + $0x20] sm:$0xf]
        %v2611 = vld [vmem:[%s117 + $0x24] sm:$0xf]
        %v2612 = vld [vmem:[%s117 + $0x28] sm:$0xf]
        %v2613 = vld [vmem:[%s117 + $0x2c] sm:$0xf]
        %v2614 = vld [vmem:[%s117 + $0x30] sm:$0xf]
        %v2615 = vld [vmem:[%s117 + $0x34] sm:$0xf]
        %v2616 = vld [vmem:[%s117 + $0x38] sm:$0xf]
        %v2617 = vld [vmem:[%s117 + $0x3c] sm:$0xf]
        %v2618 = vld [vmem:[#allocation33] sm:$0x1]
        %v2619 = vld [vmem:[#allocation34] sm:$0x1]
        %v2620 = vld [vmem:[#allocation36] sm:$0x1]
        %v2621 = vld [vmem:[#allocation37] sm:$0x1]
        %v2622 = vld [vmem:[#allocation39] sm:$0x1]
        %v2623 = vld [vmem:[#allocation40] sm:$0x1]
        %v2624 = vld [vmem:[%s131] sm:$0xf]
        %v2625 = vld [vmem:[%s131 + $0x4] sm:$0xf]
        %v2626 = vld [vmem:[%s131 + $0x8] sm:$0xf]
        %v2627 = vld [vmem:[%s131 + $0xc] sm:$0xf]
        %v2628 = vld [vmem:[%s133] sm:$0xf]
        %v2629 = vld [vmem:[%s133 + $0x4] sm:$0xf]
        %v2630 = vld [vmem:[%s133 + $0x8] sm:$0xf]
        %v2631 = vld [vmem:[%s133 + $0xc] sm:$0xf]
        %v2632 = vld [vmem:[%s135] sm:$0xf]
        %v2633 = vld [vmem:[%s135 + $0x4] sm:$0xf]
        %v2634 = vld [vmem:[%s135 + $0x8] sm:$0xf]
        %v2635 = vld [vmem:[%s135 + $0xc] sm:$0xf]
        %v2636 = vld [vmem:[%s135 + $0x10] sm:$0xf]
        %v2637 = vld [vmem:[%s135 + $0x14] sm:$0xf]
        %v2638 = vld [vmem:[%s135 + $0x18] sm:$0xf]
        %v2639 = vld [vmem:[%s135 + $0x1c] sm:$0xf]
        %v2640 = vld [vmem:[%s135 + $0x20] sm:$0xf]
        %v2641 = vld [vmem:[%s135 + $0x24] sm:$0xf]
        %v2642 = vld [vmem:[%s135 + $0x28] sm:$0xf]
        %v2643 = vld [vmem:[%s135 + $0x2c] sm:$0xf]
        %v2644 = vld [vmem:[%s135 + $0x30] sm:$0xf]
        %v2645 = vld [vmem:[%s135 + $0x34] sm:$0xf]
        %v2646 = vld [vmem:[%s135 + $0x38] sm:$0xf]
        %v2647 = vld [vmem:[%s135 + $0x3c] sm:$0xf]
        %v2648 = vld [vmem:[%s135 + $0x40] sm:$0xf]
        %v2649 = vld [vmem:[%s135 + $0x44] sm:$0xf]
        %v2650 = vld [vmem:[%s135 + $0x48] sm:$0xf]
        %v2651 = vld [vmem:[%s135 + $0x4c] sm:$0xf]
        %v2652 = vld [vmem:[%s135 + $0x50] sm:$0xf]
        %v2653 = vld [vmem:[%s135 + $0x54] sm:$0xf]
        %v2654 = vld [vmem:[%s135 + $0x58] sm:$0xf]
        %v2655 = vld [vmem:[%s135 + $0x5c] sm:$0xf]
        %v2656 = vld [vmem:[%s135 + $0x60] sm:$0xf]
        %v2657 = vld [vmem:[%s135 + $0x64] sm:$0xf]
        %v2658 = vld [vmem:[%s135 + $0x68] sm:$0xf]
        %v2659 = vld [vmem:[%s135 + $0x6c] sm:$0xf]
        %v2660 = vld [vmem:[%s135 + $0x70] sm:$0xf]
        %v2661 = vld [vmem:[%s135 + $0x74] sm:$0xf]
        %v2662 = vld [vmem:[%s135 + $0x78] sm:$0xf]
        %v2663 = vld [vmem:[%s135 + $0x7c] sm:$0xf]
        %v2664 = vld [vmem:[%s2380] sm:$0xff]
        %v2665 = vld [vmem:[%s2380 + $0x8] sm:$0xff]
        %v2666 = vld [vmem:[%s2380 + $0x10] sm:$0x1]
        %vm2670 = vcmask 1046528
        %v2671 = vrot.slane %v2664, 1
        %v2672 = vrot.slane %v2665, 1
        %v2673 = vsel %vm2670, %v2671, %v2672
        %v2674 = vrot.slane %v2666, 1
        %v2675 = vsel %vm2670, %v2672, %v2674
        %v2678 = vpack.c.bf16 %v2665, %v2664
        %v2679 = vpack.c.bf16 %v2675, %v2673
        %v2744 = vunpack.c.l.b16 %v2390
        %v2745 = vunpack.c.h.b16 %v2390
        %v2746 = vunpack.c.l.b16 %v2391
        %v2747 = vunpack.c.h.b16 %v2391
        %v2748 = vunpack.c.l.b16 %v2392
        %v2749 = vunpack.c.h.b16 %v2392
        %v2750 = vunpack.c.l.b16 %v2393
        %v2751 = vunpack.c.h.b16 %v2393
        %v2752 = vunpack.c.l.b16 %v2394
        %v2753 = vunpack.c.h.b16 %v2394
        %v2754 = vunpack.c.l.b16 %v2395
        %v2755 = vunpack.c.h.b16 %v2395
        %v2756 = vunpack.c.l.b16 %v2396
        %v2757 = vunpack.c.h.b16 %v2396
        %v2758 = vunpack.c.l.b16 %v2397
        %v2759 = vunpack.c.h.b16 %v2397
        %v2760 = vunpack.c.l.b16 %v2398
        %v2761 = vunpack.c.h.b16 %v2398
        %v2762 = vunpack.c.l.b16 %v2399
        %v2763 = vunpack.c.h.b16 %v2399
        %v2764 = vunpack.c.l.b16 %v2400
        %v2765 = vunpack.c.h.b16 %v2400
        %v2766 = vunpack.c.l.b16 %v2401
        %v2767 = vunpack.c.h.b16 %v2401
        %v2768 = vunpack.c.l.b16 %v2402
        %v2769 = vunpack.c.h.b16 %v2402
        %v2770 = vunpack.c.l.b16 %v2403
        %v2771 = vunpack.c.h.b16 %v2403
        %v2772 = vunpack.c.l.b16 %v2404
        %v2773 = vunpack.c.h.b16 %v2404
        %v2774 = vunpack.c.l.b16 %v2405
        %v2775 = vunpack.c.h.b16 %v2405
        %v2776 = vunpack.c.l.b16 %v2406
        %v2777 = vunpack.c.h.b16 %v2406
        %v2778 = vunpack.c.l.b16 %v2407
        %v2779 = vunpack.c.h.b16 %v2407
        %v2780 = vunpack.c.l.b16 %v2408
        %v2781 = vunpack.c.h.b16 %v2408
        %v2782 = vunpack.c.l.b16 %v2409
        %v2783 = vunpack.c.h.b16 %v2409
        %v2784 = vunpack.c.l.b16 %v2410
        %v2785 = vunpack.c.h.b16 %v2410
        %v2786 = vunpack.c.l.b16 %v2411
        %v2787 = vunpack.c.h.b16 %v2411
        %v2788 = vunpack.c.l.b16 %v2412
        %v2789 = vunpack.c.h.b16 %v2412
        %v2790 = vunpack.c.l.b16 %v2413
        %v2791 = vunpack.c.h.b16 %v2413
        %v2792 = vunpack.c.l.b16 %v2414
        %v2793 = vunpack.c.h.b16 %v2414
        %v2794 = vunpack.c.l.b16 %v2415
        %v2795 = vunpack.c.h.b16 %v2415
        %v2796 = vunpack.c.l.b16 %v2416
        %v2797 = vunpack.c.h.b16 %v2416
        %v2798 = vunpack.c.l.b16 %v2417
        %v2799 = vunpack.c.h.b16 %v2417
        %v2800 = vunpack.c.l.b16 %v2418
        %v2801 = vunpack.c.h.b16 %v2418
        %v2802 = vunpack.c.l.b16 %v2419
        %v2803 = vunpack.c.h.b16 %v2419
        %v2804 = vunpack.c.l.b16 %v2420
        %v2805 = vunpack.c.h.b16 %v2420
        %v2806 = vunpack.c.l.b16 %v2421
        %v2807 = vunpack.c.h.b16 %v2421
        %v2808 = vunpack.c.l.b16 %v2422
        %v2809 = vunpack.c.h.b16 %v2422
        %v2810 = vunpack.c.l.b16 %v2423
        %v2811 = vunpack.c.h.b16 %v2423
        %v2812 = vunpack.c.l.b16 %v2424
        %v2813 = vunpack.c.h.b16 %v2424
        %v2814 = vunpack.c.l.b16 %v2425
        %v2815 = vunpack.c.h.b16 %v2425
        %v2816 = vunpack.c.l.b16 %v2426
        %v2817 = vunpack.c.h.b16 %v2426
        %v2818 = vunpack.c.l.b16 %v2427
        %v2819 = vunpack.c.h.b16 %v2427
        %v2820 = vunpack.c.l.b16 %v2428
        %v2821 = vunpack.c.h.b16 %v2428
        %v2822 = vunpack.c.l.b16 %v2429
        %v2823 = vunpack.c.h.b16 %v2429
        %v2824 = vunpack.c.l.b16 %v2430
        %v2825 = vunpack.c.h.b16 %v2430
        %v2826 = vunpack.c.l.b16 %v2431
        %v2827 = vunpack.c.h.b16 %v2431
        %v2828 = vunpack.c.l.b16 %v2432
        %v2829 = vunpack.c.h.b16 %v2432
        %v2830 = vunpack.c.l.b16 %v2433
        %v2831 = vunpack.c.h.b16 %v2433
        %v2832 = vunpack.c.l.b16 %v2434
        %v2833 = vunpack.c.h.b16 %v2434
        %v2834 = vunpack.c.l.b16 %v2435
        %v2835 = vunpack.c.h.b16 %v2435
        %v2836 = vunpack.c.l.b16 %v2436
        %v2837 = vunpack.c.h.b16 %v2436
        %v2838 = vunpack.c.l.b16 %v2437
        %v2839 = vunpack.c.h.b16 %v2437
        %v2840 = vunpack.c.l.b16 %v2438
        %v2841 = vunpack.c.h.b16 %v2438
        %v2842 = vunpack.c.l.b16 %v2439
        %v2843 = vunpack.c.h.b16 %v2439
        %v2844 = vunpack.c.l.b16 %v2440
        %v2845 = vunpack.c.h.b16 %v2440
        %v2846 = vunpack.c.l.b16 %v2441
        %v2847 = vunpack.c.h.b16 %v2441
        %v2848 = vunpack.c.l.b16 %v2442
        %v2849 = vunpack.c.h.b16 %v2442
        %v2850 = vunpack.c.l.b16 %v2443
        %v2851 = vunpack.c.h.b16 %v2443
        %v2852 = vunpack.c.l.b16 %v2444
        %v2853 = vunpack.c.h.b16 %v2444
        %v2854 = vunpack.c.l.b16 %v2445
        %v2855 = vunpack.c.h.b16 %v2445
        %v2856 = vunpack.c.l.b16 %v2446
        %v2857 = vunpack.c.h.b16 %v2446
        %v2858 = vunpack.c.l.b16 %v2447
        %v2859 = vunpack.c.h.b16 %v2447
        %v2860 = vunpack.c.l.b16 %v2448
        %v2861 = vunpack.c.h.b16 %v2448
        %v2862 = vunpack.c.l.b16 %v2449
        %v2863 = vunpack.c.h.b16 %v2449
        %v2864 = vunpack.c.l.b16 %v2450
        %v2865 = vunpack.c.h.b16 %v2450
        %v2866 = vunpack.c.l.b16 %v2451
        %v2867 = vunpack.c.h.b16 %v2451
        %v2868 = vunpack.c.l.b16 %v2452
        %v2869 = vunpack.c.h.b16 %v2452
        %v2870 = vunpack.c.l.b16 %v2453
        %v2871 = vunpack.c.h.b16 %v2453
        %v2872 = vpack.c.b16 %v2748, %v2744
        %v2873 = vpack.c.b16 %v2749, %v2745
        %v2874 = vpack.c.b16 %v2750, %v2746
        %v2875 = vpack.c.b16 %v2751, %v2747
        %v2876 = vpack.c.b16 %v2756, %v2752
        %v2877 = vpack.c.b16 %v2757, %v2753
        %v2878 = vpack.c.b16 %v2758, %v2754
        %v2879 = vpack.c.b16 %v2759, %v2755
        %v2880 = vpack.c.b16 %v2764, %v2760
        %v2881 = vpack.c.b16 %v2765, %v2761
        %v2882 = vpack.c.b16 %v2766, %v2762
        %v2883 = vpack.c.b16 %v2767, %v2763
        %v2884 = vpack.c.b16 %v2772, %v2768
        %v2885 = vpack.c.b16 %v2773, %v2769
        %v2886 = vpack.c.b16 %v2774, %v2770
        %v2887 = vpack.c.b16 %v2775, %v2771
        %v2888 = vpack.c.b16 %v2780, %v2776
        %v2889 = vpack.c.b16 %v2781, %v2777
        %v2890 = vpack.c.b16 %v2782, %v2778
        %v2891 = vpack.c.b16 %v2783, %v2779
        %v2892 = vpack.c.b16 %v2788, %v2784
        %v2893 = vpack.c.b16 %v2789, %v2785
        %v2894 = vpack.c.b16 %v2790, %v2786
        %v2895 = vpack.c.b16 %v2791, %v2787
        %v2896 = vpack.c.b16 %v2796, %v2792
        %v2897 = vpack.c.b16 %v2797, %v2793
        %v2898 = vpack.c.b16 %v2798, %v2794
        %v2899 = vpack.c.b16 %v2799, %v2795
        %v2900 = vpack.c.b16 %v2804, %v2800
        %v2901 = vpack.c.b16 %v2805, %v2801
        %v2902 = vpack.c.b16 %v2806, %v2802
        %v2903 = vpack.c.b16 %v2807, %v2803
        %v2904 = vpack.c.b16 %v2812, %v2808
        %v2905 = vpack.c.b16 %v2813, %v2809
        %v2906 = vpack.c.b16 %v2814, %v2810
        %v2907 = vpack.c.b16 %v2815, %v2811
        %v2908 = vpack.c.b16 %v2820, %v2816
        %v2909 = vpack.c.b16 %v2821, %v2817
        %v2910 = vpack.c.b16 %v2822, %v2818
        %v2911 = vpack.c.b16 %v2823, %v2819
        %v2912 = vpack.c.b16 %v2828, %v2824
        %v2913 = vpack.c.b16 %v2829, %v2825
        %v2914 = vpack.c.b16 %v2830, %v2826
        %v2915 = vpack.c.b16 %v2831, %v2827
        %v2916 = vpack.c.b16 %v2836, %v2832
        %v2917 = vpack.c.b16 %v2837, %v2833
        %v2918 = vpack.c.b16 %v2838, %v2834
        %v2919 = vpack.c.b16 %v2839, %v2835
        %v2920 = vpack.c.b16 %v2844, %v2840
        %v2921 = vpack.c.b16 %v2845, %v2841
        %v2922 = vpack.c.b16 %v2846, %v2842
        %v2923 = vpack.c.b16 %v2847, %v2843
        %v2924 = vpack.c.b16 %v2852, %v2848
        %v2925 = vpack.c.b16 %v2853, %v2849
        %v2926 = vpack.c.b16 %v2854, %v2850
        %v2927 = vpack.c.b16 %v2855, %v2851
        %v2928 = vpack.c.b16 %v2860, %v2856
        %v2929 = vpack.c.b16 %v2861, %v2857
        %v2930 = vpack.c.b16 %v2862, %v2858
        %v2931 = vpack.c.b16 %v2863, %v2859
        %v2932 = vpack.c.b16 %v2868, %v2864
        %v2933 = vpack.c.b16 %v2869, %v2865
        %v2934 = vpack.c.b16 %v2870, %v2866
        %v2935 = vpack.c.b16 %v2871, %v2867
        %3000 = vmatpush.bf16.msra.mxu0 %v2900
        %3001 = vmatpush.bf16.msra.mxu0 %v2896
        %3002 = vmatpush.bf16.msra.mxu0 %v2892
        %3003 = vmatpush.bf16.msra.mxu0 %v2888
        %3004 = vmatpush.bf16.msra.mxu0 %v2884
        %3005 = vmatpush.bf16.msra.mxu0 %v2880
        %3006 = vmatpush.bf16.msra.mxu0 %v2876
        %3007 = vmatpush.bf16.msra.mxu0 %v2872
        %3008 = vmatmul.bf16.gmra.mxu0 %v2678
        %v3009 = vpop.f32.mrf.mxu0
        %v3010 = vadd.f32 0.0, %v3009
        %v3011 = vpop.f32.mrf.mxu0
        %v3012 = vadd.f32 0.0, %v3011
        %3013 = vdwg.mxu0
        %3014 = vmatpush.bf16.msra.mxu0 %v2932
        %3015 = vmatpush.bf16.msra.mxu0 %v2928
        %3016 = vmatpush.bf16.msra.mxu0 %v2924
        %3017 = vmatpush.bf16.msra.mxu0 %v2920
        %3018 = vmatpush.bf16.msra.mxu0 %v2916
        %3019 = vmatpush.bf16.msra.mxu0 %v2912
        %3020 = vmatpush.bf16.msra.mxu0 %v2908
        %3021 = vmatpush.bf16.msra.mxu0 %v2904
        %3022 = vmatmul.bf16.gmra.mxu0 %v2679
        %v3023 = vpop.f32.mrf.mxu0
        %v3024 = vadd.f32 %v3010, %v3023
        %v3025 = vpop.f32.mrf.mxu0
        %v3026 = vadd.f32 %v3012, %v3025
        %3027 = vdwg.mxu0
        %3028 = vmatpush.bf16.msra.mxu0 %v2901
        %3029 = vmatpush.bf16.msra.mxu0 %v2897
        %3030 = vmatpush.bf16.msra.mxu0 %v2893
        %3031 = vmatpush.bf16.msra.mxu0 %v2889
        %3032 = vmatpush.bf16.msra.mxu0 %v2885
        %3033 = vmatpush.bf16.msra.mxu0 %v2881
        %3034 = vmatpush.bf16.msra.mxu0 %v2877
        %3035 = vmatpush.bf16.msra.mxu0 %v2873
        %3036 = vmatmul.bf16.gmra.mxu0 %v2678
        %v3037 = vpop.f32.mrf.mxu0
        %v3038 = vadd.f32 0.0, %v3037
        %v3039 = vpop.f32.mrf.mxu0
        %v3040 = vadd.f32 0.0, %v3039
        %3041 = vdwg.mxu0
        %3042 = vmatpush.bf16.msra.mxu0 %v2933
        %3043 = vmatpush.bf16.msra.mxu0 %v2929
        %3044 = vmatpush.bf16.msra.mxu0 %v2925
        %3045 = vmatpush.bf16.msra.mxu0 %v2921
        %3046 = vmatpush.bf16.msra.mxu0 %v2917
        %3047 = vmatpush.bf16.msra.mxu0 %v2913
        %3048 = vmatpush.bf16.msra.mxu0 %v2909
        %3049 = vmatpush.bf16.msra.mxu0 %v2905
        %3050 = vmatmul.bf16.gmra.mxu0 %v2679
        %v3051 = vpop.f32.mrf.mxu0
        %v3052 = vadd.f32 %v3038, %v3051
        %v3053 = vpop.f32.mrf.mxu0
        %v3054 = vadd.f32 %v3040, %v3053
        %3055 = vdwg.mxu0
        %3056 = vmatpush.bf16.msra.mxu0 %v2902
        %3057 = vmatpush.bf16.msra.mxu0 %v2898
        %3058 = vmatpush.bf16.msra.mxu0 %v2894
        %3059 = vmatpush.bf16.msra.mxu0 %v2890
        %3060 = vmatpush.bf16.msra.mxu0 %v2886
        %3061 = vmatpush.bf16.msra.mxu0 %v2882
        %3062 = vmatpush.bf16.msra.mxu0 %v2878
        %3063 = vmatpush.bf16.msra.mxu0 %v2874
        %3064 = vmatmul.bf16.gmra.mxu0 %v2678
        %v3065 = vpop.f32.mrf.mxu0
        %v3066 = vadd.f32 0.0, %v3065
        %v3067 = vpop.f32.mrf.mxu0
        %v3068 = vadd.f32 0.0, %v3067
        %3069 = vdwg.mxu0
        %3070 = vmatpush.bf16.msra.mxu0 %v2934
        %3071 = vmatpush.bf16.msra.mxu0 %v2930
        %3072 = vmatpush.bf16.msra.mxu0 %v2926
        %3073 = vmatpush.bf16.msra.mxu0 %v2922
        %3074 = vmatpush.bf16.msra.mxu0 %v2918
        %3075 = vmatpush.bf16.msra.mxu0 %v2914
        %3076 = vmatpush.bf16.msra.mxu0 %v2910
        %3077 = vmatpush.bf16.msra.mxu0 %v2906
        %3078 = vmatmul.bf16.gmra.mxu0 %v2679
        %v3079 = vpop.f32.mrf.mxu0
        %v3080 = vadd.f32 %v3066, %v3079
        %v3081 = vpop.f32.mrf.mxu0
        %v3082 = vadd.f32 %v3068, %v3081
        %3083 = vdwg.mxu0
        %3084 = vmatpush.bf16.msra.mxu0 %v2903
        %3085 = vmatpush.bf16.msra.mxu0 %v2899
        %3086 = vmatpush.bf16.msra.mxu0 %v2895
        %3087 = vmatpush.bf16.msra.mxu0 %v2891
        %3088 = vmatpush.bf16.msra.mxu0 %v2887
        %3089 = vmatpush.bf16.msra.mxu0 %v2883
        %3090 = vmatpush.bf16.msra.mxu0 %v2879
        %3091 = vmatpush.bf16.msra.mxu0 %v2875
        %3092 = vmatmul.bf16.gmra.mxu0 %v2678
        %v3093 = vpop.f32.mrf.mxu0
        %v3094 = vadd.f32 0.0, %v3093
        %v3095 = vpop.f32.mrf.mxu0
        %v3096 = vadd.f32 0.0, %v3095
        %3097 = vdwg.mxu0
        %3098 = vmatpush.bf16.msra.mxu0 %v2935
        %3099 = vmatpush.bf16.msra.mxu0 %v2931
        %3100 = vmatpush.bf16.msra.mxu0 %v2927
        %3101 = vmatpush.bf16.msra.mxu0 %v2923
        %3102 = vmatpush.bf16.msra.mxu0 %v2919
        %3103 = vmatpush.bf16.msra.mxu0 %v2915
        %3104 = vmatpush.bf16.msra.mxu0 %v2911
        %3105 = vmatpush.bf16.msra.mxu0 %v2907
        %3106 = vmatmul.bf16.gmra.mxu0 %v2679
        %v3107 = vpop.f32.mrf.mxu0
        %v3108 = vadd.f32 %v3094, %v3107
        %v3109 = vpop.f32.mrf.mxu0
        %v3110 = vadd.f32 %v3096, %v3109
        %3111 = vdwg.mxu0
        %v3112 = vmul.f32 %v3024, %v3024
        %v3113 = vmul.f32 %v3052, %v3052
        %v3114 = vmul.f32 %v3026, %v3026
        %v3115 = vmul.f32 %v3054, %v3054
        %v3116 = vmul.f32 %v3080, %v3080
        %v3117 = vmul.f32 %v3108, %v3108
        %v3118 = vmul.f32 %v3082, %v3082
        %v3119 = vmul.f32 %v3110, %v3110
        %v3120 = vadd.f32 %v3112, %v3116
        %v3121 = vadd.f32 %v3113, %v3117
        %v3122 = vadd.f32 %v3114, %v3118
        %v3123 = vadd.f32 %v3115, %v3119
        %v3124 = vpack.c.bf16 %v3122, %v3120
        %v3125 = vpack.c.bf16 %v3123, %v3121
        %v3158 = vunpack.c.l.b16 %v2632
        %v3159 = vunpack.c.l.b16 %v2633
        %v3160 = vunpack.c.l.b16 %v2634
        %v3161 = vunpack.c.l.b16 %v2635
        %v3162 = vunpack.c.l.b16 %v2636
        %v3163 = vunpack.c.l.b16 %v2637
        %v3164 = vunpack.c.l.b16 %v2638
        %v3165 = vunpack.c.l.b16 %v2639
        %v3166 = vunpack.c.l.b16 %v2640
        %v3167 = vunpack.c.l.b16 %v2641
        %v3168 = vunpack.c.l.b16 %v2642
        %v3169 = vunpack.c.l.b16 %v2643
        %v3170 = vunpack.c.l.b16 %v2644
        %v3171 = vunpack.c.l.b16 %v2645
        %v3172 = vunpack.c.l.b16 %v2646
        %v3173 = vunpack.c.l.b16 %v2647
        %v3174 = vunpack.c.l.b16 %v2648
        %v3175 = vunpack.c.l.b16 %v2649
        %v3176 = vunpack.c.l.b16 %v2650
        %v3177 = vunpack.c.l.b16 %v2651
        %v3178 = vunpack.c.l.b16 %v2652
        %v3179 = vunpack.c.l.b16 %v2653
        %v3180 = vunpack.c.l.b16 %v2654
        %v3181 = vunpack.c.l.b16 %v2655
        %v3182 = vunpack.c.l.b16 %v2656
        %v3183 = vunpack.c.l.b16 %v2657
        %v3184 = vunpack.c.l.b16 %v2658
        %v3185 = vunpack.c.l.b16 %v2659
        %v3186 = vunpack.c.l.b16 %v2660
        %v3187 = vunpack.c.l.b16 %v2661
        %v3188 = vunpack.c.l.b16 %v2662
        %v3189 = vunpack.c.l.b16 %v2663
        %v3190 = vpack.c.b16 %v3159, %v3158
        %v3191 = vpack.c.b16 %v3161, %v3160
        %v3192 = vpack.c.b16 %v3163, %v3162
        %v3193 = vpack.c.b16 %v3165, %v3164
        %v3194 = vpack.c.b16 %v3167, %v3166
        %v3195 = vpack.c.b16 %v3169, %v3168
        %v3196 = vpack.c.b16 %v3171, %v3170
        %v3197 = vpack.c.b16 %v3173, %v3172
        %v3198 = vpack.c.b16 %v3175, %v3174
        %v3199 = vpack.c.b16 %v3177, %v3176
        %v3200 = vpack.c.b16 %v3179, %v3178
        %v3201 = vpack.c.b16 %v3181, %v3180
        %v3202 = vpack.c.b16 %v3183, %v3182
        %v3203 = vpack.c.b16 %v3185, %v3184
        %v3204 = vpack.c.b16 %v3187, %v3186
        %v3205 = vpack.c.b16 %v3189, %v3188
        %3222 = vmatpush.bf16.msra.mxu0 %v3197
        %3223 = vmatpush.bf16.msra.mxu0 %v3196
        %3224 = vmatpush.bf16.msra.mxu0 %v3195
        %3225 = vmatpush.bf16.msra.mxu0 %v3194
        %3226 = vmatpush.bf16.msra.mxu0 %v3193
        %3227 = vmatpush.bf16.msra.mxu0 %v3192
        %3228 = vmatpush.bf16.msra.mxu0 %v3191
        %3229 = vmatpush.bf16.msra.mxu0 %v3190
        %3230 = vmatmul.bf16.gmra.mxu0 %v3124
        %v3231 = vpop.f32.mrf.mxu0
        %v3232 = vadd.f32 0.0, %v3231
        %v3233 = vpop.f32.mrf.mxu0
        %v3234 = vadd.f32 0.0, %v3233
        %3235 = vdwg.mxu0
        %3236 = vmatpush.bf16.msra.mxu0 %v3205
        %3237 = vmatpush.bf16.msra.mxu0 %v3204
        %3238 = vmatpush.bf16.msra.mxu0 %v3203
        %3239 = vmatpush.bf16.msra.mxu0 %v3202
        %3240 = vmatpush.bf16.msra.mxu0 %v3201
        %3241 = vmatpush.bf16.msra.mxu0 %v3200
        %3242 = vmatpush.bf16.msra.mxu0 %v3199
        %3243 = vmatpush.bf16.msra.mxu0 %v3198
        %3244 = vmatmul.bf16.gmra.mxu0 %v3125
        %v3245 = vpop.f32.mrf.mxu0
        %v3246 = vadd.f32 %v3232, %v3245
        %v3247 = vpop.f32.mrf.mxu0
        %v3248 = vadd.f32 %v3234, %v3247
        %3249 = vdwg.mxu0
        %v3250 = vmax.f32 %v3246, 1e-10
        %v3251 = vmax.f32 %v3248, 1e-10
        %v3252 = vlog2.pop %v3250
        %v3253 = vmul.f32 %v3252, 0.6931472
        %v3254 = vlog2.pop %v3251
        %v3255 = vmul.f32 %v3254, 0.6931472
        %v3256 = vmul.f32 %v3253, 0.4342945
        %v3257 = vmul.f32 %v3255, 0.4342945
        %v3258 = vpack.c.bf16 %v3257, %v3256
        %v3260 = vperm.slane %v2459, 0
        %v3278 = vunpack.c.l.b16 %v2460
        %v3279 = vunpack.c.l.b16 %v2461
        %v3280 = vunpack.c.l.b16 %v2462
        %v3281 = vunpack.c.l.b16 %v2463
        %v3282 = vunpack.c.l.b16 %v2464
        %v3283 = vunpack.c.l.b16 %v2465
        %v3284 = vunpack.c.l.b16 %v2466
        %v3285 = vunpack.c.l.b16 %v2467
        %v3286 = vunpack.c.l.b16 %v2468
        %v3287 = vunpack.c.l.b16 %v2469
        %v3288 = vunpack.c.l.b16 %v2470
        %v3289 = vunpack.c.l.b16 %v2471
        %v3290 = vunpack.c.l.b16 %v2472
        %v3291 = vunpack.c.l.b16 %v2473
        %v3292 = vunpack.c.l.b16 %v2474
        %v3293 = vunpack.c.l.b16 %v2475
        %v3294 = vpack.c.b16 %v3279, %v3278
        %v3295 = vpack.c.b16 %v3281, %v3280
        %v3296 = vpack.c.b16 %v3283, %v3282
        %v3297 = vpack.c.b16 %v3285, %v3284
        %v3298 = vpack.c.b16 %v3287, %v3286
        %v3299 = vpack.c.b16 %v3289, %v3288
        %v3300 = vpack.c.b16 %v3291, %v3290
        %v3301 = vpack.c.b16 %v3293, %v3292
        %3310 = vmatpush.bf16.msra.mxu0 %v3301
        %3311 = vmatpush.bf16.msra.mxu0 %v3300
        %3312 = vmatpush.bf16.msra.mxu0 %v3299
        %3313 = vmatpush.bf16.msra.mxu0 %v3298
        %3314 = vmatpush.bf16.msra.mxu0 %v3297
        %3315 = vmatpush.bf16.msra.mxu0 %v3296
        %3316 = vmatpush.bf16.msra.mxu0 %v3295
        %3317 = vmatpush.bf16.msra.mxu0 %v3294
        %3318 = vmatmul.bf16.gmra.mxu0 %v3258
        %v3319 = vpop.f32.mrf.mxu0
        %v3320 = vadd.f32 %v3260, %v3319
        %v3321 = vpop.f32.mrf.mxu0
        %v3322 = vadd.f32 %v3260, %v3321
        %3323 = vdwg.mxu0
        %v3324 = vld [vmem:[%s2383] sm:$0x1]
        %vm3325 = vcmp.gt.f32.partialorder %v3324, 0.5
        %v3326 = vsel %vm3325, 0.0, -1e+09
        %v3327 = vlaneseq
        %v3328 = vshrl.u32 %v3327, 7
        %v3329 = vadd.s32 %v3328, 8
        %v3330 = vadd.s32 %v3328, 4294967293
        %v3331 = vadd.s32 %v3329, 4294967293
        %vm3332 = vcmp.ge.s32.totalorder %v3330, 0
        %vm3333 = vcmp.ge.s32.totalorder %v3331, 0
        %vm3334 = vcmp.lt.s32.totalorder %v3330, 15
        %vm3335 = vcmp.lt.s32.totalorder %v3331, 15
        %vm3336 = vmand %vm3332, %vm3334
        %vm3337 = vmand %vm3333, %vm3335
        %v3338 = vsel %vm3336, 1, 0
        %v3339 = vsel %vm3337, 1, 0
        %v3340 = vcvt.s32.f32 %v3338
        %v3341 = vcvt.s32.f32 %v3339
        %v3342 = vadd.s32 %v3328, 4294967294
        %v3343 = vadd.s32 %v3329, 4294967294
        %vm3344 = vcmp.ge.s32.totalorder %v3342, 0
        %vm3345 = vcmp.ge.s32.totalorder %v3343, 0
        %vm3346 = vcmp.lt.s32.totalorder %v3342, 15
        %vm3347 = vcmp.lt.s32.totalorder %v3343, 15
        %vm3348 = vmand %vm3344, %vm3346
        %vm3349 = vmand %vm3345, %vm3347
        %v3350 = vsel %vm3348, 1, 0
        %v3351 = vsel %vm3349, 1, 0
        %v3352 = vcvt.s32.f32 %v3350
        %v3353 = vcvt.s32.f32 %v3351
        %v3354 = vadd.s32 %v3328, 4294967295
        %v3355 = vadd.s32 %v3329, 4294967295
        %vm3356 = vcmp.ge.s32.totalorder %v3354, 0
        %vm3357 = vcmp.ge.s32.totalorder %v3355, 0
        %vm3358 = vcmp.lt.s32.totalorder %v3354, 15
        %vm3359 = vcmp.lt.s32.totalorder %v3355, 15
        %vm3360 = vmand %vm3356, %vm3358
        %vm3361 = vmand %vm3357, %vm3359
        %v3362 = vsel %vm3360, 1, 0
        %v3363 = vsel %vm3361, 1, 0
        %v3364 = vcvt.s32.f32 %v3362
        %v3365 = vcvt.s32.f32 %v3363
        %vm3366 = vcmp.ge.s32.totalorder %v3328, 0
        %vm3367 = vcmp.ge.s32.totalorder %v3329, 0
        %vm3368 = vcmp.lt.s32.totalorder %v3328, 15
        %vm3369 = vcmp.lt.s32.totalorder %v3329, 15
        %vm3370 = vmand %vm3366, %vm3368
        %vm3371 = vmand %vm3367, %vm3369
        %v3372 = vsel %vm3370, 1, 0
        %v3373 = vsel %vm3371, 1, 0
        %v3374 = vcvt.s32.f32 %v3372
        %v3375 = vcvt.s32.f32 %v3373
        %v3376 = vadd.s32 %v3328, 1
        %v3377 = vadd.s32 %v3329, 1
        %vm3378 = vcmp.ge.s32.totalorder %v3376, 0
        %vm3379 = vcmp.ge.s32.totalorder %v3377, 0
        %vm3380 = vcmp.lt.s32.totalorder %v3376, 15
        %vm3381 = vcmp.lt.s32.totalorder %v3377, 15
        %vm3382 = vmand %vm3378, %vm3380
        %vm3383 = vmand %vm3379, %vm3381
        %v3384 = vsel %vm3382, 1, 0
        %v3385 = vsel %vm3383, 1, 0
        %v3386 = vcvt.s32.f32 %v3384
        %v3387 = vcvt.s32.f32 %v3385
        %v3388 = vadd.s32 %v3328, 2
        %v3389 = vadd.s32 %v3329, 2
        %vm3390 = vcmp.ge.s32.totalorder %v3388, 0
        %vm3391 = vcmp.ge.s32.totalorder %v3389, 0
        %vm3392 = vcmp.lt.s32.totalorder %v3388, 15
        %vm3393 = vcmp.lt.s32.totalorder %v3389, 15
        %vm3394 = vmand %vm3390, %vm3392
        %vm3395 = vmand %vm3391, %vm3393
        %v3396 = vsel %vm3394, 1, 0
        %v3397 = vsel %vm3395, 1, 0
        %v3398 = vcvt.s32.f32 %v3396
        %v3399 = vcvt.s32.f32 %v3397
        %v3400 = vadd.s32 %v3328, 3
        %v3401 = vadd.s32 %v3329, 3
        %vm3402 = vcmp.ge.s32.totalorder %v3400, 0
        %vm3403 = vcmp.ge.s32.totalorder %v3401, 0
        %vm3404 = vcmp.lt.s32.totalorder %v3400, 15
        %vm3405 = vcmp.lt.s32.totalorder %v3401, 15
        %vm3406 = vmand %vm3402, %vm3404
        %vm3407 = vmand %vm3403, %vm3405
        %v3408 = vsel %vm3406, 1, 0
        %v3409 = vsel %vm3407, 1, 0
        %v3410 = vcvt.s32.f32 %v3408
        %v3411 = vcvt.s32.f32 %v3409
        %vm3412 = vcmask 261120
        %v3413 = vsel %vm3412, %v3320, 0.0
        %3414 = vadd.xlane.f32.xlu0 %v3413
        %v3415 = vpop.xlane.xlu0 %3414
        %v3416 = vsel %vm3412, %v3322, 0.0
        %3417 = vadd.xlane.f32.xlu0 %v3416
        %v3418 = vpop.xlane.xlu0 %3417
        %v3419 = vrcp.pop 32.0
        %v3420 = vmul.f32 32.0, %v3419
        %v3421 = vsub.f32 1.0, %v3420
        %v3422 = vmul.f32 %v3419, %v3421
        %v3423 = vadd.f32 %v3419, %v3422
        %vm3424 = vweird.f32 %v3419
        %v3425 = vsel %vm3424, %v3419, %v3423
        %v3426 = vmul.f32 %v3415, %v3425
        %v3427 = vmul.f32 %v3418, %v3425
        %v3428 = vsub.f32 %v3320, %v3426
        %v3429 = vsub.f32 %v3322, %v3427
        %v3430 = vmul.f32 %v3428, %v3428
        %v3431 = vmul.f32 %v3429, %v3429
        %v3432 = vsel %vm3412, %v3430, 0.0
        %3433 = vadd.xlane.f32.xlu0 %v3432
        %v3434 = vpop.xlane.xlu0 %3433
        %v3435 = vsel %vm3412, %v3431, 0.0
        %3436 = vadd.xlane.f32.xlu0 %v3435
        %v3437 = vpop.xlane.xlu0 %3436
        %v3438 = vmul.f32 %v3434, %v3425
        %v3439 = vmul.f32 %v3437, %v3425
        %v3440 = vadd.f32 %v3438, 1e-05
        %v3441 = vadd.f32 %v3439, 1e-05
        %v3442 = vrsqrt.pop %v3440
        %v3443 = vmul.f32 %v3442, %v3440
        %v3444 = vmul.f32 %v3443, %v3442
        %v3445 = vmul.f32 0.5, %v3444
        %v3446 = vsub.f32 1.5, %v3445
        %v3447 = vmul.f32 %v3442, %v3446
        %vm3448 = vweird.f32 %v3440
        %vm3449 = vweird.f32 %v3442
        %vm3450 = vmor %vm3448, %vm3449
        %v3451 = vsel %vm3450, %v3442, %v3447
        %v3452 = vrsqrt.pop %v3441
        %v3453 = vmul.f32 %v3452, %v3441
        %v3454 = vmul.f32 %v3453, %v3452
        %v3455 = vmul.f32 0.5, %v3454
        %v3456 = vsub.f32 1.5, %v3455
        %v3457 = vmul.f32 %v3452, %v3456
        %vm3458 = vweird.f32 %v3441
        %vm3459 = vweird.f32 %v3452
        %vm3460 = vmor %vm3458, %vm3459
        %v3461 = vsel %vm3460, %v3452, %v3457
        %v3462 = vmul.f32 %v3428, %v3451
        %v3463 = vmul.f32 %v3429, %v3461
        %v3465 = vperm.slane %v2495, 0
        %v3467 = vmul.f32 %v3462, %v3465
        %v3468 = vmul.f32 %v3463, %v3465
        %v3470 = vperm.slane %v2494, 0
        %v3472 = vadd.f32 %v3467, %v3470
        %v3473 = vadd.f32 %v3468, %v3470
        %v3474 = vpack.c.bf16 %v3473, %v3472
        %v3476 = vperm.slane %v2492, 0
        %v3482 = vunpack.c.l.b16 %v2496
        %v3483 = vunpack.c.l.b16 %v2497
        %v3484 = vunpack.c.l.b16 %v2498
        %v3485 = vunpack.c.l.b16 %v2499
        %v3486 = vpack.c.b16 %v3483, %v3482
        %v3487 = vpack.c.b16 %v3485, %v3484
        %v3491 = vsel %vm3412, %v3474, 0
        %3493 = vmatpush.bf16.msra.mxu0 0
        %3494 = vmatpush.bf16.msra.mxu0 0
        %3495 = vmatpush.bf16.msra.mxu0 0
        %3496 = vmatpush.bf16.msra.mxu0 0
        %3497 = vmatpush.bf16.msra.mxu0 0
        %3498 = vmatpush.bf16.msra.mxu0 0
        %3499 = vmatpush.bf16.msra.mxu0 %v3487
        %3500 = vmatpush.bf16.msra.mxu0 %v3486
        %3501 = vmatmul.bf16.gmra.mxu0 %v3491
        %v3502 = vpop.f32.mrf.mxu0
        %v3503 = vadd.f32 %v3476, %v3502
        %v3504 = vpop.f32.mrf.mxu0
        %v3505 = vadd.f32 %v3476, %v3504
        %3506 = vdwg.mxu0
        %v3507 = vxor.u32 %v3503, 2147483648
        %v3508 = vxor.u32 %v3505, 2147483648
        %v3509 = vmul.f32 %v3507, 1.442695
        %v3510 = vpow.pop %v3509
        %v3511 = vmul.f32 %v3508, 1.442695
        %v3512 = vpow.pop %v3511
        %v3513 = vadd.f32 %v3510, 1.0
        %v3514 = vadd.f32 %v3512, 1.0
        %v3515 = vrcp.pop %v3513
        %v3516 = vmul.f32 %v3513, %v3515
        %v3517 = vsub.f32 1.0, %v3516
        %v3518 = vmul.f32 %v3515, %v3517
        %v3519 = vadd.f32 %v3515, %v3518
        %vm3520 = vweird.f32 %v3513
        %vm3521 = vweird.f32 %v3515
        %vm3522 = vmor %vm3520, %vm3521
        %v3523 = vsel %vm3522, %v3515, %v3519
        %v3524 = vand.u32 2147483647, %v3513
        %vm3525 = vcmp.eq.f32.partialorder %v3524, 8.507059e+37
        %v3526 = vand.u32 %v3513, 2147483648
        %v3527 = vor.u32 1.1754944e-38, %v3526
        %v3528 = vsel %vm3525, %v3527, %v3523
        %v3529 = vmul.f32 1.0, %v3528
        %v3530 = vrcp.pop %v3514
        %v3531 = vmul.f32 %v3514, %v3530
        %v3532 = vsub.f32 1.0, %v3531
        %v3533 = vmul.f32 %v3530, %v3532
        %v3534 = vadd.f32 %v3530, %v3533
        %vm3535 = vweird.f32 %v3514
        %vm3536 = vweird.f32 %v3530
        %vm3537 = vmor %vm3535, %vm3536
        %v3538 = vsel %vm3537, %v3530, %v3534
        %v3539 = vand.u32 2147483647, %v3514
        %vm3540 = vcmp.eq.f32.partialorder %v3539, 8.507059e+37
        %v3541 = vand.u32 %v3514, 2147483648
        %v3542 = vor.u32 1.1754944e-38, %v3541
        %v3543 = vsel %vm3540, %v3542, %v3538
        %v3544 = vmul.f32 1.0, %v3543
        %v3545 = vmul.f32 %v3503, %v3529
        %v3546 = vmul.f32 %v3505, %v3544
        %v3547 = vpack.c.bf16 %v3546, %v3545
        %v3549 = vperm.slane %v2493, 0
        %v3567 = vunpack.c.l.b16 %v2500
        %v3568 = vunpack.c.l.b16 %v2501
        %v3569 = vunpack.c.l.b16 %v2502
        %v3570 = vunpack.c.l.b16 %v2503
        %v3571 = vunpack.c.l.b16 %v2504
        %v3572 = vunpack.c.l.b16 %v2505
        %v3573 = vunpack.c.l.b16 %v2506
        %v3574 = vunpack.c.l.b16 %v2507
        %v3575 = vunpack.c.l.b16 %v2508
        %v3576 = vunpack.c.l.b16 %v2509
        %v3577 = vunpack.c.l.b16 %v2510
        %v3578 = vunpack.c.l.b16 %v2511
        %v3579 = vunpack.c.l.b16 %v2512
        %v3580 = vunpack.c.l.b16 %v2513
        %v3581 = vunpack.c.l.b16 %v2514
        %v3582 = vunpack.c.l.b16 %v2515
        %v3583 = vpack.c.b16 %v3568, %v3567
        %v3584 = vpack.c.b16 %v3570, %v3569
        %v3585 = vpack.c.b16 %v3572, %v3571
        %v3586 = vpack.c.b16 %v3574, %v3573
        %v3587 = vpack.c.b16 %v3576, %v3575
        %v3588 = vpack.c.b16 %v3578, %v3577
        %v3589 = vpack.c.b16 %v3580, %v3579
        %v3590 = vpack.c.b16 %v3582, %v3581
        %3599 = vmatpush.bf16.msra.mxu0 %v3590
        %3600 = vmatpush.bf16.msra.mxu0 %v3589
        %3601 = vmatpush.bf16.msra.mxu0 %v3588
        %3602 = vmatpush.bf16.msra.mxu0 %v3587
        %3603 = vmatpush.bf16.msra.mxu0 %v3586
        %3604 = vmatpush.bf16.msra.mxu0 %v3585
        %3605 = vmatpush.bf16.msra.mxu0 %v3584
        %3606 = vmatpush.bf16.msra.mxu0 %v3583
        %3607 = vmatmul.bf16.gmra.mxu0 %v3547
        %v3608 = vpop.f32.mrf.mxu0
        %v3609 = vadd.f32 %v3549, %v3608
        %v3610 = vpop.f32.mrf.mxu0
        %v3611 = vadd.f32 %v3549, %v3610
        %3612 = vdwg.mxu0
        %v3613 = vmul.f32 %v3609, 0.5
        %v3614 = vmul.f32 %v3611, 0.5
        %v3615 = vadd.f32 %v3320, %v3613
        %v3616 = vadd.f32 %v3322, %v3614
        %v3617 = vsel %vm3412, %v3615, 0.0
        %3618 = vadd.xlane.f32.xlu0 %v3617
        %v3619 = vpop.xlane.xlu0 %3618
        %v3620 = vsel %vm3412, %v3616, 0.0
        %3621 = vadd.xlane.f32.xlu0 %v3620
        %v3622 = vpop.xlane.xlu0 %3621
        %v3623 = vmul.f32 %v3619, %v3425
        %v3624 = vmul.f32 %v3622, %v3425
        %v3625 = vsub.f32 %v3615, %v3623
        %v3626 = vsub.f32 %v3616, %v3624
        %v3627 = vmul.f32 %v3625, %v3625
        %v3628 = vmul.f32 %v3626, %v3626
        %v3629 = vsel %vm3412, %v3627, 0.0
        %3630 = vadd.xlane.f32.xlu0 %v3629
        %v3631 = vpop.xlane.xlu0 %3630
        %v3632 = vsel %vm3412, %v3628, 0.0
        %3633 = vadd.xlane.f32.xlu0 %v3632
        %v3634 = vpop.xlane.xlu0 %3633
        %v3635 = vmul.f32 %v3631, %v3425
        %v3636 = vmul.f32 %v3634, %v3425
        %v3637 = vadd.f32 %v3635, 1e-05
        %v3638 = vadd.f32 %v3636, 1e-05
        %v3639 = vrsqrt.pop %v3637
        %v3640 = vmul.f32 %v3639, %v3637
        %v3641 = vmul.f32 %v3640, %v3639
        %v3642 = vmul.f32 0.5, %v3641
        %v3643 = vsub.f32 1.5, %v3642
        %v3644 = vmul.f32 %v3639, %v3643
        %vm3645 = vweird.f32 %v3637
        %vm3646 = vweird.f32 %v3639
        %vm3647 = vmor %vm3645, %vm3646
        %v3648 = vsel %vm3647, %v3639, %v3644
        %v3649 = vrsqrt.pop %v3638
        %v3650 = vmul.f32 %v3649, %v3638
        %v3651 = vmul.f32 %v3650, %v3649
        %v3652 = vmul.f32 0.5, %v3651
        %v3653 = vsub.f32 1.5, %v3652
        %v3654 = vmul.f32 %v3649, %v3653
        %vm3655 = vweird.f32 %v3638
        %vm3656 = vweird.f32 %v3649
        %vm3657 = vmor %vm3655, %vm3656
        %v3658 = vsel %vm3657, %v3649, %v3654
        %v3659 = vmul.f32 %v3625, %v3648
        %v3660 = vmul.f32 %v3626, %v3658
        %v3662 = vperm.slane %v2545, 0
        %v3664 = vmul.f32 %v3659, %v3662
        %v3665 = vmul.f32 %v3660, %v3662
        %v3667 = vperm.slane %v2544, 0
        %v3669 = vadd.f32 %v3664, %v3667
        %v3670 = vadd.f32 %v3665, %v3667
        %v3671 = vpack.c.bf16 %v3670, %v3669
        %v3673 = vperm.slane %v2543, 0
        %v3679 = vunpack.c.l.b16 %v2550
        %v3680 = vunpack.c.l.b16 %v2551
        %v3681 = vunpack.c.l.b16 %v2552
        %v3682 = vunpack.c.l.b16 %v2553
        %v3683 = vpack.c.b16 %v3680, %v3679
        %v3684 = vpack.c.b16 %v3682, %v3681
        %v3688 = vsel %vm3412, %v3671, 0
        %3690 = vmatpush.bf16.msra.mxu0 0
        %3691 = vmatpush.bf16.msra.mxu0 0
        %3692 = vmatpush.bf16.msra.mxu0 0
        %3693 = vmatpush.bf16.msra.mxu0 0
        %3694 = vmatpush.bf16.msra.mxu0 0
        %3695 = vmatpush.bf16.msra.mxu0 0
        %3696 = vmatpush.bf16.msra.mxu0 %v3684
        %3697 = vmatpush.bf16.msra.mxu0 %v3683
        %3698 = vmatmul.bf16.gmra.mxu0 %v3688
        %v3699 = vpop.f32.mrf.mxu0
        %v3700 = vadd.f32 %v3673, %v3699
        %v3701 = vpop.f32.mrf.mxu0
        %v3702 = vadd.f32 %v3673, %v3701
        %3703 = vdwg.mxu0
        %3706 = vrot.lane.b32.xlu0 %v3700, 120
        %v3707 = vpop.permute.xlu0 %3706
        %3708 = vrot.lane.b32.xlu0 %v3702, 120
        %v3709 = vpop.permute.xlu0 %3708
        %3712 = vrot.lane.b32.xlu0 %v3700, 112
        %v3713 = vpop.permute.xlu0 %3712
        %3714 = vrot.lane.b32.xlu0 %v3702, 112
        %v3715 = vpop.permute.xlu0 %3714
        %3718 = vrot.lane.b32.xlu0 %v3700, 104
        %v3719 = vpop.permute.xlu0 %3718
        %3720 = vrot.lane.b32.xlu0 %v3702, 104
        %v3721 = vpop.permute.xlu0 %3720
        %v3724 = vpack.c.bf16 %v3700, %v3700
        %v3725 = vpack.c.bf16 %v3702, %v3702
        %v3726 = vpack.c.bf16 %v3707, %v3707
        %v3727 = vpack.c.bf16 %v3709, %v3709
        %v3728 = vpack.c.bf16 %v3713, %v3713
        %v3729 = vpack.c.bf16 %v3715, %v3715
        %v3730 = vpack.c.bf16 %v3719, %v3719
        %v3731 = vpack.c.bf16 %v3721, %v3721
        %v3734 = vunpack.c.l.b16 %v3724
        %v3735 = vunpack.c.l.b16 %v3725
        %v3736 = vpack.c.b16 %v3735, %v3734
        %3737 = vrot.lane.b32.xlu0 %v3736, 96
        %v3738 = vpop.permute.xlu0 %3737
        %vm3739 = vcmask 64512
        %v3741 = vsel %vm3739, %v3736, 0
        %v3744 = vsel %vm3739, %v3738, 0
        %3746 = vmatpush.bf16.xpose.msra.mxu0 0
        %3747 = vmatpush.bf16.xpose.msra.mxu0 0
        %3748 = vmatpush.bf16.xpose.msra.mxu0 0
        %3749 = vmatpush.bf16.xpose.msra.mxu0 0
        %3750 = vmatpush.bf16.xpose.msra.mxu0 0
        %3751 = vmatpush.bf16.xpose.msra.mxu0 0
        %3752 = vmatpush.bf16.xpose.msra.mxu0 0
        %3753 = vmatpush.bf16.xpose.msra.mxu0 %v3744
        %3754 = vmatmul.bf16.gmra.mxu0 %v3741
        %v3755 = vpop.f32.mrf.mxu0
        %v3756 = vadd.f32 0.0, %v3755
        %v3757 = vpop.f32.mrf.mxu0
        %v3758 = vadd.f32 0.0, %v3757
        %3759 = vdwg.mxu0
        %v3762 = vunpack.c.l.b16 %v3726
        %v3763 = vunpack.c.l.b16 %v3727
        %v3764 = vpack.c.b16 %v3763, %v3762
        %3765 = vrot.lane.b32.xlu0 %v3764, 96
        %v3766 = vpop.permute.xlu0 %3765
        %v3768 = vsel %vm3739, %v3764, 0
        %v3771 = vsel %vm3739, %v3766, 0
        %3773 = vmatpush.bf16.xpose.msra.mxu0 0
        %3774 = vmatpush.bf16.xpose.msra.mxu0 0
        %3775 = vmatpush.bf16.xpose.msra.mxu0 0
        %3776 = vmatpush.bf16.xpose.msra.mxu0 0
        %3777 = vmatpush.bf16.xpose.msra.mxu0 0
        %3778 = vmatpush.bf16.xpose.msra.mxu0 0
        %3779 = vmatpush.bf16.xpose.msra.mxu0 0
        %3780 = vmatpush.bf16.xpose.msra.mxu0 %v3771
        %3781 = vmatmul.bf16.gmra.mxu0 %v3768
        %v3782 = vpop.f32.mrf.mxu0
        %v3783 = vadd.f32 0.0, %v3782
        %v3784 = vpop.f32.mrf.mxu0
        %v3785 = vadd.f32 0.0, %v3784
        %3786 = vdwg.mxu0
        %v3789 = vunpack.c.l.b16 %v3728
        %v3790 = vunpack.c.l.b16 %v3729
        %v3791 = vpack.c.b16 %v3790, %v3789
        %3792 = vrot.lane.b32.xlu0 %v3791, 96
        %v3793 = vpop.permute.xlu0 %3792
        %v3795 = vsel %vm3739, %v3791, 0
        %v3798 = vsel %vm3739, %v3793, 0
        %3800 = vmatpush.bf16.xpose.msra.mxu0 0
        %3801 = vmatpush.bf16.xpose.msra.mxu0 0
        %3802 = vmatpush.bf16.xpose.msra.mxu0 0
        %3803 = vmatpush.bf16.xpose.msra.mxu0 0
        %3804 = vmatpush.bf16.xpose.msra.mxu0 0
        %3805 = vmatpush.bf16.xpose.msra.mxu0 0
        %3806 = vmatpush.bf16.xpose.msra.mxu0 0
        %3807 = vmatpush.bf16.xpose.msra.mxu0 %v3798
        %3808 = vmatmul.bf16.gmra.mxu0 %v3795
        %v3809 = vpop.f32.mrf.mxu0
        %v3810 = vadd.f32 0.0, %v3809
        %v3811 = vpop.f32.mrf.mxu0
        %v3812 = vadd.f32 0.0, %v3811
        %3813 = vdwg.mxu0
        %v3816 = vunpack.c.l.b16 %v3730
        %v3817 = vunpack.c.l.b16 %v3731
        %v3818 = vpack.c.b16 %v3817, %v3816
        %3819 = vrot.lane.b32.xlu0 %v3818, 96
        %v3820 = vpop.permute.xlu0 %3819
        %v3822 = vsel %vm3739, %v3818, 0
        %v3825 = vsel %vm3739, %v3820, 0
        %3827 = vmatpush.bf16.xpose.msra.mxu0 0
        %3828 = vmatpush.bf16.xpose.msra.mxu0 0
        %3829 = vmatpush.bf16.xpose.msra.mxu0 0
        %3830 = vmatpush.bf16.xpose.msra.mxu0 0
        %3831 = vmatpush.bf16.xpose.msra.mxu0 0
        %3832 = vmatpush.bf16.xpose.msra.mxu0 0
        %3833 = vmatpush.bf16.xpose.msra.mxu0 0
        %3834 = vmatpush.bf16.xpose.msra.mxu0 %v3825
        %3835 = vmatmul.bf16.gmra.mxu0 %v3822
        %v3836 = vpop.f32.mrf.mxu0
        %v3837 = vadd.f32 0.0, %v3836
        %v3838 = vpop.f32.mrf.mxu0
        %v3839 = vadd.f32 0.0, %v3838
        %3840 = vdwg.mxu0
        %v3841 = vmul.f32 %v3756, 0.35355338
        %v3842 = vmul.f32 %v3758, 0.35355338
        %v3843 = vmul.f32 %v3783, 0.35355338
        %v3844 = vmul.f32 %v3785, 0.35355338
        %v3845 = vmul.f32 %v3810, 0.35355338
        %v3846 = vmul.f32 %v3812, 0.35355338
        %v3847 = vmul.f32 %v3837, 0.35355338
        %v3848 = vmul.f32 %v3839, 0.35355338
        %v3850 = vperm.slane %v3326, 0
        %v3852 = vadd.f32 %v3841, %v3850
        %v3853 = vadd.f32 %v3842, %v3850
        %v3854 = vadd.f32 %v3843, %v3850
        %v3855 = vadd.f32 %v3844, %v3850
        %v3856 = vadd.f32 %v3845, %v3850
        %v3857 = vadd.f32 %v3846, %v3850
        %v3858 = vadd.f32 %v3847, %v3850
        %v3859 = vadd.f32 %v3848, %v3850
        %vm3860 = vcmask 130048
        %v3861 = vsel %vm3860, %v3852, -inf
        %3862 = vmax.xlane.f32.xlu0 %v3861
        %v3863 = vpop.xlane.xlu0 %3862
        %v3864 = vsel %vm3860, %v3853, -inf
        %3865 = vmax.xlane.f32.xlu0 %v3864
        %v3866 = vpop.xlane.xlu0 %3865
        %v3867 = vsel %vm3860, %v3854, -inf
        %3868 = vmax.xlane.f32.xlu0 %v3867
        %v3869 = vpop.xlane.xlu0 %3868
        %v3870 = vsel %vm3860, %v3855, -inf
        %3871 = vmax.xlane.f32.xlu0 %v3870
        %v3872 = vpop.xlane.xlu0 %3871
        %v3873 = vsel %vm3860, %v3856, -inf
        %3874 = vmax.xlane.f32.xlu0 %v3873
        %v3875 = vpop.xlane.xlu0 %3874
        %v3876 = vsel %vm3860, %v3857, -inf
        %3877 = vmax.xlane.f32.xlu0 %v3876
        %v3878 = vpop.xlane.xlu0 %3877
        %v3879 = vsel %vm3860, %v3858, -inf
        %3880 = vmax.xlane.f32.xlu0 %v3879
        %v3881 = vpop.xlane.xlu0 %3880
        %v3882 = vsel %vm3860, %v3859, -inf
        %3883 = vmax.xlane.f32.xlu0 %v3882
        %v3884 = vpop.xlane.xlu0 %3883
        %v3885 = vsub.f32 %v3852, %v3863
        %v3886 = vsub.f32 %v3853, %v3866
        %v3887 = vsub.f32 %v3854, %v3869
        %v3888 = vsub.f32 %v3855, %v3872
        %v3889 = vsub.f32 %v3856, %v3875
        %v3890 = vsub.f32 %v3857, %v3878
        %v3891 = vsub.f32 %v3858, %v3881
        %v3892 = vsub.f32 %v3859, %v3884
        %v3893 = vmul.f32 %v3885, 1.442695
        %v3894 = vpow.pop %v3893
        %v3895 = vmul.f32 %v3886, 1.442695
        %v3896 = vpow.pop %v3895
        %v3897 = vmul.f32 %v3887, 1.442695
        %v3898 = vpow.pop %v3897
        %v3899 = vmul.f32 %v3888, 1.442695
        %v3900 = vpow.pop %v3899
        %v3901 = vmul.f32 %v3889, 1.442695
        %v3902 = vpow.pop %v3901
        %v3903 = vmul.f32 %v3890, 1.442695
        %v3904 = vpow.pop %v3903
        %v3905 = vmul.f32 %v3891, 1.442695
        %v3906 = vpow.pop %v3905
        %v3907 = vmul.f32 %v3892, 1.442695
        %v3908 = vpow.pop %v3907
        %v3909 = vsel %vm3860, %v3894, 0.0
        %3910 = vadd.xlane.f32.xlu0 %v3909
        %v3911 = vpop.xlane.xlu0 %3910
        %v3912 = vsel %vm3860, %v3896, 0.0
        %3913 = vadd.xlane.f32.xlu0 %v3912
        %v3914 = vpop.xlane.xlu0 %3913
        %v3915 = vsel %vm3860, %v3898, 0.0
        %3916 = vadd.xlane.f32.xlu0 %v3915
        %v3917 = vpop.xlane.xlu0 %3916
        %v3918 = vsel %vm3860, %v3900, 0.0
        %3919 = vadd.xlane.f32.xlu0 %v3918
        %v3920 = vpop.xlane.xlu0 %3919
        %v3921 = vsel %vm3860, %v3902, 0.0
        %3922 = vadd.xlane.f32.xlu0 %v3921
        %v3923 = vpop.xlane.xlu0 %3922
        %v3924 = vsel %vm3860, %v3904, 0.0
        %3925 = vadd.xlane.f32.xlu0 %v3924
        %v3926 = vpop.xlane.xlu0 %3925
        %v3927 = vsel %vm3860, %v3906, 0.0
        %3928 = vadd.xlane.f32.xlu0 %v3927
        %v3929 = vpop.xlane.xlu0 %3928
        %v3930 = vsel %vm3860, %v3908, 0.0
        %3931 = vadd.xlane.f32.xlu0 %v3930
        %v3932 = vpop.xlane.xlu0 %3931
        %v3933 = vrcp.pop %v3911
        %v3934 = vrcp.pop %v3914
        %v3935 = vrcp.pop %v3917
        %v3936 = vrcp.pop %v3920
        %v3937 = vrcp.pop %v3923
        %v3938 = vrcp.pop %v3926
        %v3939 = vrcp.pop %v3929
        %v3940 = vrcp.pop %v3932
        %v3941 = vmul.f32 %v3894, %v3933
        %v3942 = vmul.f32 %v3896, %v3934
        %v3943 = vmul.f32 %v3898, %v3935
        %v3944 = vmul.f32 %v3900, %v3936
        %v3945 = vmul.f32 %v3902, %v3937
        %v3946 = vmul.f32 %v3904, %v3938
        %v3947 = vmul.f32 %v3906, %v3939
        %v3948 = vmul.f32 %v3908, %v3940
        %v3949 = vpack.c.bf16 %v3941, %v3941
        %v3950 = vpack.c.bf16 %v3942, %v3942
        %v3951 = vpack.c.bf16 %v3943, %v3943
        %v3952 = vpack.c.bf16 %v3944, %v3944
        %v3953 = vpack.c.bf16 %v3945, %v3945
        %v3954 = vpack.c.bf16 %v3946, %v3946
        %v3955 = vpack.c.bf16 %v3947, %v3947
        %v3956 = vpack.c.bf16 %v3948, %v3948
        %v3959 = vunpack.c.l.b16 %v3949
        %v3960 = vunpack.c.l.b16 %v3950
        %v3961 = vpack.c.b16 %v3960, %v3959
        %3962 = vrot.lane.b32.xlu0 %v3736, 64
        %v3963 = vpop.permute.xlu0 %3962
        %v3966 = vsel %vm3860, %v3961, 0
        %3968 = vmatpush.bf16.msra.mxu0 0
        %3969 = vmatpush.bf16.msra.mxu0 0
        %3970 = vmatpush.bf16.msra.mxu0 0
        %3971 = vmatpush.bf16.msra.mxu0 0
        %3972 = vmatpush.bf16.msra.mxu0 0
        %3973 = vmatpush.bf16.msra.mxu0 0
        %3974 = vmatpush.bf16.msra.mxu0 0
        %3975 = vmatpush.bf16.msra.mxu0 %v3963
        %3976 = vmatmul.bf16.gmra.mxu0 %v3966
        %v3977 = vpop.f32.mrf.mxu0
        %v3978 = vadd.f32 0.0, %v3977
        %v3979 = vpop.f32.mrf.mxu0
        %v3980 = vadd.f32 0.0, %v3979
        %3981 = vdwg.mxu0
        %v3984 = vunpack.c.l.b16 %v3951
        %v3985 = vunpack.c.l.b16 %v3952
        %v3986 = vpack.c.b16 %v3985, %v3984
        %3987 = vrot.lane.b32.xlu0 %v3764, 64
        %v3988 = vpop.permute.xlu0 %3987
        %v3991 = vsel %vm3860, %v3986, 0
        %3993 = vmatpush.bf16.msra.mxu0 0
        %3994 = vmatpush.bf16.msra.mxu0 0
        %3995 = vmatpush.bf16.msra.mxu0 0
        %3996 = vmatpush.bf16.msra.mxu0 0
        %3997 = vmatpush.bf16.msra.mxu0 0
        %3998 = vmatpush.bf16.msra.mxu0 0
        %3999 = vmatpush.bf16.msra.mxu0 0
        %4000 = vmatpush.bf16.msra.mxu0 %v3988
        %4001 = vmatmul.bf16.gmra.mxu0 %v3991
        %v4002 = vpop.f32.mrf.mxu0
        %v4003 = vadd.f32 0.0, %v4002
        %v4004 = vpop.f32.mrf.mxu0
        %v4005 = vadd.f32 0.0, %v4004
        %4006 = vdwg.mxu0
        %v4009 = vunpack.c.l.b16 %v3953
        %v4010 = vunpack.c.l.b16 %v3954
        %v4011 = vpack.c.b16 %v4010, %v4009
        %4012 = vrot.lane.b32.xlu0 %v3791, 64
        %v4013 = vpop.permute.xlu0 %4012
        %v4016 = vsel %vm3860, %v4011, 0
        %4018 = vmatpush.bf16.msra.mxu0 0
        %4019 = vmatpush.bf16.msra.mxu0 0
        %4020 = vmatpush.bf16.msra.mxu0 0
        %4021 = vmatpush.bf16.msra.mxu0 0
        %4022 = vmatpush.bf16.msra.mxu0 0
        %4023 = vmatpush.bf16.msra.mxu0 0
        %4024 = vmatpush.bf16.msra.mxu0 0
        %4025 = vmatpush.bf16.msra.mxu0 %v4013
        %4026 = vmatmul.bf16.gmra.mxu0 %v4016
        %v4027 = vpop.f32.mrf.mxu0
        %v4028 = vadd.f32 0.0, %v4027
        %v4029 = vpop.f32.mrf.mxu0
        %v4030 = vadd.f32 0.0, %v4029
        %4031 = vdwg.mxu0
        %v4034 = vunpack.c.l.b16 %v3955
        %v4035 = vunpack.c.l.b16 %v3956
        %v4036 = vpack.c.b16 %v4035, %v4034
        %4037 = vrot.lane.b32.xlu0 %v3818, 64
        %v4038 = vpop.permute.xlu0 %4037
        %v4041 = vsel %vm3860, %v4036, 0
        %4043 = vmatpush.bf16.msra.mxu0 0
        %4044 = vmatpush.bf16.msra.mxu0 0
        %4045 = vmatpush.bf16.msra.mxu0 0
        %4046 = vmatpush.bf16.msra.mxu0 0
        %4047 = vmatpush.bf16.msra.mxu0 0
        %4048 = vmatpush.bf16.msra.mxu0 0
        %4049 = vmatpush.bf16.msra.mxu0 0
        %4050 = vmatpush.bf16.msra.mxu0 %v4038
        %4051 = vmatmul.bf16.gmra.mxu0 %v4041
        %v4052 = vpop.f32.mrf.mxu0
        %v4053 = vadd.f32 0.0, %v4052
        %v4054 = vpop.f32.mrf.mxu0
        %v4055 = vadd.f32 0.0, %v4054
        %4056 = vdwg.mxu0
        %4059 = vrot.lane.b32.xlu0 %v4003, 8
        %v4060 = vpop.permute.xlu0 %4059
        %4061 = vrot.lane.b32.xlu0 %v4005, 8
        %v4062 = vpop.permute.xlu0 %4061
        %4067 = vrot.lane.b32.xlu0 %v4028, 16
        %v4068 = vpop.permute.xlu0 %4067
        %4069 = vrot.lane.b32.xlu0 %v4030, 16
        %v4070 = vpop.permute.xlu0 %4069
        %4075 = vrot.lane.b32.xlu0 %v4053, 24
        %v4076 = vpop.permute.xlu0 %4075
        %4077 = vrot.lane.b32.xlu0 %v4055, 24
        %v4078 = vpop.permute.xlu0 %4077
        %v4081 = vsel %vm3739, %v3978, %v4060
        %v4082 = vsel %vm3739, %v3980, %v4062
        %v4083 = vsel %vm3860, %v4081, %v4068
        %v4084 = vsel %vm3860, %v4082, %v4070
        %vm4085 = vcmask 195584
        %v4086 = vsel %vm4085, %v4083, %v4076
        %v4087 = vsel %vm4085, %v4084, %v4078
        %v4088 = vpack.c.bf16 %v4087, %v4086
        %v4093 = vunpack.c.l.b16 %v2546
        %v4094 = vunpack.c.l.b16 %v2547
        %v4095 = vunpack.c.l.b16 %v2548
        %v4096 = vunpack.c.l.b16 %v2549
        %v4097 = vpack.c.b16 %v4094, %v4093
        %v4098 = vpack.c.b16 %v4096, %v4095
        %v4102 = vsel %vm3412, %v4088, 0
        %4104 = vmatpush.bf16.msra.mxu0 0
        %4105 = vmatpush.bf16.msra.mxu0 0
        %4106 = vmatpush.bf16.msra.mxu0 0
        %4107 = vmatpush.bf16.msra.mxu0 0
        %4108 = vmatpush.bf16.msra.mxu0 0
        %4109 = vmatpush.bf16.msra.mxu0 0
        %4110 = vmatpush.bf16.msra.mxu0 %v4098
        %4111 = vmatpush.bf16.msra.mxu0 %v4097
        %4112 = vmatmul.bf16.gmra.mxu0 %v4102
        %v4113 = vpop.f32.mrf.mxu0
        %v4114 = vadd.f32 0.0, %v4113
        %v4115 = vpop.f32.mrf.mxu0
        %v4116 = vadd.f32 0.0, %v4115
        %4117 = vdwg.mxu0
        %v4118 = vadd.f32 %v3615, %v4114
        %v4119 = vadd.f32 %v3616, %v4116
        %v4121 = vperm.slane %v2542, 0
        %v4123 = vadd.f32 %v4118, %v4121
        %v4124 = vadd.f32 %v4119, %v4121
        %v4125 = vsel %vm3412, %v4123, 0.0
        %4126 = vadd.xlane.f32.xlu0 %v4125
        %v4127 = vpop.xlane.xlu0 %4126
        %v4128 = vsel %vm3412, %v4124, 0.0
        %4129 = vadd.xlane.f32.xlu0 %v4128
        %v4130 = vpop.xlane.xlu0 %4129
        %v4131 = vmul.f32 %v4127, %v3425
        %v4132 = vmul.f32 %v4130, %v3425
        %v4133 = vsub.f32 %v4123, %v4131
        %v4134 = vsub.f32 %v4124, %v4132
        %v4135 = vmul.f32 %v4133, %v4133
        %v4136 = vmul.f32 %v4134, %v4134
        %v4137 = vsel %vm3412, %v4135, 0.0
        %4138 = vadd.xlane.f32.xlu0 %v4137
        %v4139 = vpop.xlane.xlu0 %4138
        %v4140 = vsel %vm3412, %v4136, 0.0
        %4141 = vadd.xlane.f32.xlu0 %v4140
        %v4142 = vpop.xlane.xlu0 %4141
        %v4143 = vmul.f32 %v4139, %v3425
        %v4144 = vmul.f32 %v4142, %v3425
        %v4145 = vadd.f32 %v4143, 1e-05
        %v4146 = vadd.f32 %v4144, 1e-05
        %v4147 = vrsqrt.pop %v4145
        %v4148 = vmul.f32 %v4147, %v4145
        %v4149 = vmul.f32 %v4148, %v4147
        %v4150 = vmul.f32 0.5, %v4149
        %v4151 = vsub.f32 1.5, %v4150
        %v4152 = vmul.f32 %v4147, %v4151
        %vm4153 = vweird.f32 %v4145
        %vm4154 = vweird.f32 %v4147
        %vm4155 = vmor %vm4153, %vm4154
        %v4156 = vsel %vm4155, %v4147, %v4152
        %v4157 = vrsqrt.pop %v4146
        %v4158 = vmul.f32 %v4157, %v4146
        %v4159 = vmul.f32 %v4158, %v4157
        %v4160 = vmul.f32 0.5, %v4159
        %v4161 = vsub.f32 1.5, %v4160
        %v4162 = vmul.f32 %v4157, %v4161
        %vm4163 = vweird.f32 %v4146
        %vm4164 = vweird.f32 %v4157
        %vm4165 = vmor %vm4163, %vm4164
        %v4166 = vsel %vm4165, %v4157, %v4162
        %v4167 = vmul.f32 %v4133, %v4156
        %v4168 = vmul.f32 %v4134, %v4166
        %v4170 = vperm.slane %v2481, 0
        %v4172 = vmul.f32 %v4167, %v4170
        %v4173 = vmul.f32 %v4168, %v4170
        %v4175 = vperm.slane %v2480, 0
        %v4177 = vadd.f32 %v4172, %v4175
        %v4178 = vadd.f32 %v4173, %v4175
        %v4179 = vpack.c.bf16 %v4178, %v4177
        %v4181 = vperm.slane %v2482, 0
        %v4187 = vunpack.c.l.b16 %v2483
        %v4188 = vunpack.c.l.b16 %v2484
        %v4189 = vunpack.c.l.b16 %v2485
        %v4190 = vunpack.c.l.b16 %v2486
        %v4191 = vpack.c.b16 %v4188, %v4187
        %v4192 = vpack.c.b16 %v4190, %v4189
        %v4196 = vsel %vm3412, %v4179, 0
        %4198 = vmatpush.bf16.msra.mxu0 0
        %4199 = vmatpush.bf16.msra.mxu0 0
        %4200 = vmatpush.bf16.msra.mxu0 0
        %4201 = vmatpush.bf16.msra.mxu0 0
        %4202 = vmatpush.bf16.msra.mxu0 0
        %4203 = vmatpush.bf16.msra.mxu0 0
        %4204 = vmatpush.bf16.msra.mxu0 %v4192
        %4205 = vmatpush.bf16.msra.mxu0 %v4191
        %4206 = vmatmul.bf16.gmra.mxu0 %v4196
        %v4207 = vpop.f32.mrf.mxu0
        %v4208 = vadd.f32 %v4181, %v4207
        %v4209 = vpop.f32.mrf.mxu0
        %v4210 = vadd.f32 %v4181, %v4209
        %4211 = vdwg.mxu0
        %v4212 = vxor.u32 %v4208, 2147483648
        %v4213 = vxor.u32 %v4210, 2147483648
        %v4214 = vmul.f32 %v4212, 1.442695
        %v4215 = vpow.pop %v4214
        %v4216 = vmul.f32 %v4213, 1.442695
        %v4217 = vpow.pop %v4216
        %v4218 = vadd.f32 %v4215, 1.0
        %v4219 = vadd.f32 %v4217, 1.0
        %v4220 = vrcp.pop %v4218
        %v4221 = vmul.f32 %v4218, %v4220
        %v4222 = vsub.f32 1.0, %v4221
        %v4223 = vmul.f32 %v4220, %v4222
        %v4224 = vadd.f32 %v4220, %v4223
        %vm4225 = vweird.f32 %v4218
        %vm4226 = vweird.f32 %v4220
        %vm4227 = vmor %vm4225, %vm4226
        %v4228 = vsel %vm4227, %v4220, %v4224
        %v4229 = vand.u32 2147483647, %v4218
        %vm4230 = vcmp.eq.f32.partialorder %v4229, 8.507059e+37
        %v4231 = vand.u32 %v4218, 2147483648
        %v4232 = vor.u32 1.1754944e-38, %v4231
        %v4233 = vsel %vm4230, %v4232, %v4228
        %v4234 = vmul.f32 1.0, %v4233
        %v4235 = vrcp.pop %v4219
        %v4236 = vmul.f32 %v4219, %v4235
        %v4237 = vsub.f32 1.0, %v4236
        %v4238 = vmul.f32 %v4235, %v4237
        %v4239 = vadd.f32 %v4235, %v4238
        %vm4240 = vweird.f32 %v4219
        %vm4241 = vweird.f32 %v4235
        %vm4242 = vmor %vm4240, %vm4241
        %v4243 = vsel %vm4242, %v4235, %v4239
        %v4244 = vand.u32 2147483647, %v4219
        %vm4245 = vcmp.eq.f32.partialorder %v4244, 8.507059e+37
        %v4246 = vand.u32 %v4219, 2147483648
        %v4247 = vor.u32 1.1754944e-38, %v4246
        %v4248 = vsel %vm4245, %v4247, %v4243
        %v4249 = vmul.f32 1.0, %v4248
        %4252 = vrot.lane.b32.xlu0 %v4234, 96
        %v4253 = vpop.permute.xlu0 %4252
        %4254 = vrot.lane.b32.xlu0 %v4249, 96
        %v4255 = vpop.permute.xlu0 %4254
        %v4258 = vmul.f32 %v4208, %v4253
        %v4259 = vmul.f32 %v4210, %v4255
        %v4260 = vrot.slane %v4258, 5
        %v4261 = vrot.slane %v4259, 5
        %vm4262 = vcmp.lt.s32.totalorder %v3328, 3
        %v4263 = vsel %vm4262, %v4260, %v4261
        %v4264 = vsel %vm4262, %v4261, %v4260
        %v4265 = vmul.f32 %v4264, %v3340
        %v4266 = vmul.f32 %v4263, %v3341
        %v4267 = vperm.slane %v2479, 0
        %v4268 = vmul.f32 %v4265, %v4267
        %v4269 = vmul.f32 %v4266, %v4267
        %v4270 = vadd.f32 %v4268, 0.0
        %v4271 = vadd.f32 %v4269, 0.0
        %v4272 = vrot.slane %v4258, 6
        %v4273 = vrot.slane %v4259, 6
        %vm4274 = vcmp.lt.s32.totalorder %v3328, 2
        %v4275 = vsel %vm4274, %v4272, %v4273
        %v4276 = vsel %vm4274, %v4273, %v4272
        %v4277 = vmul.f32 %v4276, %v3352
        %v4278 = vmul.f32 %v4275, %v3353
        %v4279 = vperm.slane %v2479, 1
        %v4280 = vmul.f32 %v4277, %v4279
        %v4281 = vmul.f32 %v4278, %v4279
        %v4282 = vadd.f32 %v4270, %v4280
        %v4283 = vadd.f32 %v4271, %v4281
        %v4284 = vrot.slane %v4258, 7
        %v4285 = vrot.slane %v4259, 7
        %vm4286 = vcmp.lt.s32.totalorder %v3328, 1
        %v4287 = vsel %vm4286, %v4284, %v4285
        %v4288 = vsel %vm4286, %v4285, %v4284
        %v4289 = vmul.f32 %v4288, %v3364
        %v4290 = vmul.f32 %v4287, %v3365
        %v4291 = vperm.slane %v2479, 2
        %v4292 = vmul.f32 %v4289, %v4291
        %v4293 = vmul.f32 %v4290, %v4291
        %v4294 = vadd.f32 %v4282, %v4292
        %v4295 = vadd.f32 %v4283, %v4293
        %v4296 = vmul.f32 %v4258, %v3374
        %v4297 = vmul.f32 %v4259, %v3375
        %v4298 = vperm.slane %v2479, 3
        %v4299 = vmul.f32 %v4296, %v4298
        %v4300 = vmul.f32 %v4297, %v4298
        %v4301 = vadd.f32 %v4294, %v4299
        %v4302 = vadd.f32 %v4295, %v4300
        %v4303 = vrot.slane %v4258, 1
        %v4304 = vrot.slane %v4259, 1
        %vm4305 = vcmp.lt.s32.totalorder %v3328, 7
        %v4306 = vsel %vm4305, %v4303, %v4304
        %v4307 = vsel %vm4305, %v4304, %v4303
        %v4308 = vmul.f32 %v4306, %v3386
        %v4309 = vmul.f32 %v4307, %v3387
        %v4310 = vperm.slane %v2479, 4
        %v4311 = vmul.f32 %v4308, %v4310
        %v4312 = vmul.f32 %v4309, %v4310
        %v4313 = vadd.f32 %v4301, %v4311
        %v4314 = vadd.f32 %v4302, %v4312
        %v4315 = vrot.slane %v4258, 2
        %v4316 = vrot.slane %v4259, 2
        %vm4317 = vcmp.lt.s32.totalorder %v3328, 6
        %v4318 = vsel %vm4317, %v4315, %v4316
        %v4319 = vsel %vm4317, %v4316, %v4315
        %v4320 = vmul.f32 %v4318, %v3398
        %v4321 = vmul.f32 %v4319, %v3399
        %v4322 = vperm.slane %v2479, 5
        %v4323 = vmul.f32 %v4320, %v4322
        %v4324 = vmul.f32 %v4321, %v4322
        %v4325 = vadd.f32 %v4313, %v4323
        %v4326 = vadd.f32 %v4314, %v4324
        %v4327 = vrot.slane %v4258, 3
        %v4328 = vrot.slane %v4259, 3
        %vm4329 = vcmp.lt.s32.totalorder %v3328, 5
        %v4330 = vsel %vm4329, %v4327, %v4328
        %v4331 = vsel %vm4329, %v4328, %v4327
        %v4332 = vmul.f32 %v4330, %v3410
        %v4333 = vmul.f32 %v4331, %v3411
        %v4334 = vperm.slane %v2479, 6
        %v4335 = vmul.f32 %v4332, %v4334
        %v4336 = vmul.f32 %v4333, %v4334
        %v4337 = vadd.f32 %v4325, %v4335
        %v4338 = vadd.f32 %v4326, %v4336
        %v4340 = vperm.slane %v2478, 0
        %v4342 = vadd.f32 %v4337, %v4340
        %v4343 = vadd.f32 %v4338, %v4340
        %v4345 = vperm.slane %v2476, 0
        %v4347 = vmul.f32 %v4342, %v4345
        %v4348 = vmul.f32 %v4343, %v4345
        %v4350 = vperm.slane %v2477, 0
        %v4352 = vadd.f32 %v4347, %v4350
        %v4353 = vadd.f32 %v4348, %v4350
        %v4354 = vxor.u32 %v4352, 2147483648
        %v4355 = vxor.u32 %v4353, 2147483648
        %v4356 = vmul.f32 %v4354, 1.442695
        %v4357 = vpow.pop %v4356
        %v4358 = vmul.f32 %v4355, 1.442695
        %v4359 = vpow.pop %v4358
        %v4360 = vadd.f32 %v4357, 1.0
        %v4361 = vadd.f32 %v4359, 1.0
        %v4362 = vrcp.pop %v4360
        %v4363 = vmul.f32 %v4360, %v4362
        %v4364 = vsub.f32 1.0, %v4363
        %v4365 = vmul.f32 %v4362, %v4364
        %v4366 = vadd.f32 %v4362, %v4365
        %vm4367 = vweird.f32 %v4360
        %vm4368 = vweird.f32 %v4362
        %vm4369 = vmor %vm4367, %vm4368
        %v4370 = vsel %vm4369, %v4362, %v4366
        %v4371 = vand.u32 2147483647, %v4360
        %vm4372 = vcmp.eq.f32.partialorder %v4371, 8.507059e+37
        %v4373 = vand.u32 %v4360, 2147483648
        %v4374 = vor.u32 1.1754944e-38, %v4373
        %v4375 = vsel %vm4372, %v4374, %v4370
        %v4376 = vmul.f32 1.0, %v4375
        %v4377 = vrcp.pop %v4361
        %v4378 = vmul.f32 %v4361, %v4377
        %v4379 = vsub.f32 1.0, %v4378
        %v4380 = vmul.f32 %v4377, %v4379
        %v4381 = vadd.f32 %v4377, %v4380
        %vm4382 = vweird.f32 %v4361
        %vm4383 = vweird.f32 %v4377
        %vm4384 = vmor %vm4382, %vm4383
        %v4385 = vsel %vm4384, %v4377, %v4381
        %v4386 = vand.u32 2147483647, %v4361
        %vm4387 = vcmp.eq.f32.partialorder %v4386, 8.507059e+37
        %v4388 = vand.u32 %v4361, 2147483648
        %v4389 = vor.u32 1.1754944e-38, %v4388
        %v4390 = vsel %vm4387, %v4389, %v4385
        %v4391 = vmul.f32 1.0, %v4390
        %v4392 = vmul.f32 %v4352, %v4376
        %v4393 = vmul.f32 %v4353, %v4391
        %v4394 = vpack.c.bf16 %v4393, %v4392
        %v4396 = vperm.slane %v2487, 0
        %v4402 = vunpack.c.l.b16 %v2488
        %v4403 = vunpack.c.l.b16 %v2489
        %v4404 = vunpack.c.l.b16 %v2490
        %v4405 = vunpack.c.l.b16 %v2491
        %v4406 = vpack.c.b16 %v4403, %v4402
        %v4407 = vpack.c.b16 %v4405, %v4404
        %v4411 = vsel %vm3412, %v4394, 0
        %4413 = vmatpush.bf16.msra.mxu0 0
        %4414 = vmatpush.bf16.msra.mxu0 0
        %4415 = vmatpush.bf16.msra.mxu0 0
        %4416 = vmatpush.bf16.msra.mxu0 0
        %4417 = vmatpush.bf16.msra.mxu0 0
        %4418 = vmatpush.bf16.msra.mxu0 0
        %4419 = vmatpush.bf16.msra.mxu0 %v4407
        %4420 = vmatpush.bf16.msra.mxu0 %v4406
        %4421 = vmatmul.bf16.gmra.mxu0 %v4411
        %v4422 = vpop.f32.mrf.mxu0
        %v4423 = vadd.f32 %v4396, %v4422
        %v4424 = vpop.f32.mrf.mxu0
        %v4425 = vadd.f32 %v4396, %v4424
        %4426 = vdwg.mxu0
        %v4427 = vadd.f32 %v4123, %v4423
        %v4428 = vadd.f32 %v4124, %v4425
        %v4429 = vsel %vm3412, %v4427, 0.0
        %4430 = vadd.xlane.f32.xlu0 %v4429
        %v4431 = vpop.xlane.xlu0 %4430
        %v4432 = vsel %vm3412, %v4428, 0.0
        %4433 = vadd.xlane.f32.xlu0 %v4432
        %v4434 = vpop.xlane.xlu0 %4433
        %v4435 = vmul.f32 %v4431, %v3425
        %v4436 = vmul.f32 %v4434, %v3425
        %v4437 = vsub.f32 %v4427, %v4435
        %v4438 = vsub.f32 %v4428, %v4436
        %v4439 = vmul.f32 %v4437, %v4437
        %v4440 = vmul.f32 %v4438, %v4438
        %v4441 = vsel %vm3412, %v4439, 0.0
        %4442 = vadd.xlane.f32.xlu0 %v4441
        %v4443 = vpop.xlane.xlu0 %4442
        %v4444 = vsel %vm3412, %v4440, 0.0
        %4445 = vadd.xlane.f32.xlu0 %v4444
        %v4446 = vpop.xlane.xlu0 %4445
        %v4447 = vmul.f32 %v4443, %v3425
        %v4448 = vmul.f32 %v4446, %v3425
        %v4449 = vadd.f32 %v4447, 1e-05
        %v4450 = vadd.f32 %v4448, 1e-05
        %v4451 = vrsqrt.pop %v4449
        %v4452 = vmul.f32 %v4451, %v4449
        %v4453 = vmul.f32 %v4452, %v4451
        %v4454 = vmul.f32 0.5, %v4453
        %v4455 = vsub.f32 1.5, %v4454
        %v4456 = vmul.f32 %v4451, %v4455
        %vm4457 = vweird.f32 %v4449
        %vm4458 = vweird.f32 %v4451
        %vm4459 = vmor %vm4457, %vm4458
        %v4460 = vsel %vm4459, %v4451, %v4456
        %v4461 = vrsqrt.pop %v4450
        %v4462 = vmul.f32 %v4461, %v4450
        %v4463 = vmul.f32 %v4462, %v4461
        %v4464 = vmul.f32 0.5, %v4463
        %v4465 = vsub.f32 1.5, %v4464
        %v4466 = vmul.f32 %v4461, %v4465
        %vm4467 = vweird.f32 %v4450
        %vm4468 = vweird.f32 %v4461
        %vm4469 = vmor %vm4467, %vm4468
        %v4470 = vsel %vm4469, %v4461, %v4466
        %v4471 = vmul.f32 %v4437, %v4460
        %v4472 = vmul.f32 %v4438, %v4470
        %v4474 = vperm.slane %v2519, 0
        %v4476 = vmul.f32 %v4471, %v4474
        %v4477 = vmul.f32 %v4472, %v4474
        %v4479 = vperm.slane %v2518, 0
        %v4481 = vadd.f32 %v4476, %v4479
        %v4482 = vadd.f32 %v4477, %v4479
        %v4483 = vpack.c.bf16 %v4482, %v4481
        %v4485 = vperm.slane %v2516, 0
        %v4491 = vunpack.c.l.b16 %v2520
        %v4492 = vunpack.c.l.b16 %v2521
        %v4493 = vunpack.c.l.b16 %v2522
        %v4494 = vunpack.c.l.b16 %v2523
        %v4495 = vpack.c.b16 %v4492, %v4491
        %v4496 = vpack.c.b16 %v4494, %v4493
        %v4500 = vsel %vm3412, %v4483, 0
        %4502 = vmatpush.bf16.msra.mxu0 0
        %4503 = vmatpush.bf16.msra.mxu0 0
        %4504 = vmatpush.bf16.msra.mxu0 0
        %4505 = vmatpush.bf16.msra.mxu0 0
        %4506 = vmatpush.bf16.msra.mxu0 0
        %4507 = vmatpush.bf16.msra.mxu0 0
        %4508 = vmatpush.bf16.msra.mxu0 %v4496
        %4509 = vmatpush.bf16.msra.mxu0 %v4495
        %4510 = vmatmul.bf16.gmra.mxu0 %v4500
        %v4511 = vpop.f32.mrf.mxu0
        %v4512 = vadd.f32 %v4485, %v4511
        %v4513 = vpop.f32.mrf.mxu0
        %v4514 = vadd.f32 %v4485, %v4513
        %4515 = vdwg.mxu0
        %v4516 = vxor.u32 %v4512, 2147483648
        %v4517 = vxor.u32 %v4514, 2147483648
        %v4518 = vmul.f32 %v4516, 1.442695
        %v4519 = vpow.pop %v4518
        %v4520 = vmul.f32 %v4517, 1.442695
        %v4521 = vpow.pop %v4520
        %v4522 = vadd.f32 %v4519, 1.0
        %v4523 = vadd.f32 %v4521, 1.0
        %v4524 = vrcp.pop %v4522
        %v4525 = vmul.f32 %v4522, %v4524
        %v4526 = vsub.f32 1.0, %v4525
        %v4527 = vmul.f32 %v4524, %v4526
        %v4528 = vadd.f32 %v4524, %v4527
        %vm4529 = vweird.f32 %v4522
        %vm4530 = vweird.f32 %v4524
        %vm4531 = vmor %vm4529, %vm4530
        %v4532 = vsel %vm4531, %v4524, %v4528
        %v4533 = vand.u32 2147483647, %v4522
        %vm4534 = vcmp.eq.f32.partialorder %v4533, 8.507059e+37
        %v4535 = vand.u32 %v4522, 2147483648
        %v4536 = vor.u32 1.1754944e-38, %v4535
        %v4537 = vsel %vm4534, %v4536, %v4532
        %v4538 = vmul.f32 1.0, %v4537
        %v4539 = vrcp.pop %v4523
        %v4540 = vmul.f32 %v4523, %v4539
        %v4541 = vsub.f32 1.0, %v4540
        %v4542 = vmul.f32 %v4539, %v4541
        %v4543 = vadd.f32 %v4539, %v4542
        %vm4544 = vweird.f32 %v4523
        %vm4545 = vweird.f32 %v4539
        %vm4546 = vmor %vm4544, %vm4545
        %v4547 = vsel %vm4546, %v4539, %v4543
        %v4548 = vand.u32 2147483647, %v4523
        %vm4549 = vcmp.eq.f32.partialorder %v4548, 8.507059e+37
        %v4550 = vand.u32 %v4523, 2147483648
        %v4551 = vor.u32 1.1754944e-38, %v4550
        %v4552 = vsel %vm4549, %v4551, %v4547
        %v4553 = vmul.f32 1.0, %v4552
        %v4554 = vmul.f32 %v4512, %v4538
        %v4555 = vmul.f32 %v4514, %v4553
        %v4556 = vpack.c.bf16 %v4555, %v4554
        %v4558 = vperm.slane %v2517, 0
        %v4576 = vunpack.c.l.b16 %v2524
        %v4577 = vunpack.c.l.b16 %v2525
        %v4578 = vunpack.c.l.b16 %v2526
        %v4579 = vunpack.c.l.b16 %v2527
        %v4580 = vunpack.c.l.b16 %v2528
        %v4581 = vunpack.c.l.b16 %v2529
        %v4582 = vunpack.c.l.b16 %v2530
        %v4583 = vunpack.c.l.b16 %v2531
        %v4584 = vunpack.c.l.b16 %v2532
        %v4585 = vunpack.c.l.b16 %v2533
        %v4586 = vunpack.c.l.b16 %v2534
        %v4587 = vunpack.c.l.b16 %v2535
        %v4588 = vunpack.c.l.b16 %v2536
        %v4589 = vunpack.c.l.b16 %v2537
        %v4590 = vunpack.c.l.b16 %v2538
        %v4591 = vunpack.c.l.b16 %v2539
        %v4592 = vpack.c.b16 %v4577, %v4576
        %v4593 = vpack.c.b16 %v4579, %v4578
        %v4594 = vpack.c.b16 %v4581, %v4580
        %v4595 = vpack.c.b16 %v4583, %v4582
        %v4596 = vpack.c.b16 %v4585, %v4584
        %v4597 = vpack.c.b16 %v4587, %v4586
        %v4598 = vpack.c.b16 %v4589, %v4588
        %v4599 = vpack.c.b16 %v4591, %v4590
        %4608 = vmatpush.bf16.msra.mxu0 %v4599
        %4609 = vmatpush.bf16.msra.mxu0 %v4598
        %4610 = vmatpush.bf16.msra.mxu0 %v4597
        %4611 = vmatpush.bf16.msra.mxu0 %v4596
        %4612 = vmatpush.bf16.msra.mxu0 %v4595
        %4613 = vmatpush.bf16.msra.mxu0 %v4594
        %4614 = vmatpush.bf16.msra.mxu0 %v4593
        %4615 = vmatpush.bf16.msra.mxu0 %v4592
        %4616 = vmatmul.bf16.gmra.mxu0 %v4556
        %v4617 = vpop.f32.mrf.mxu0
        %v4618 = vadd.f32 %v4558, %v4617
        %v4619 = vpop.f32.mrf.mxu0
        %v4620 = vadd.f32 %v4558, %v4619
        %4621 = vdwg.mxu0
        %v4622 = vmul.f32 %v4618, 0.5
        %v4623 = vmul.f32 %v4620, 0.5
        %v4624 = vadd.f32 %v4427, %v4622
        %v4625 = vadd.f32 %v4428, %v4623
        %v4626 = vsel %vm3412, %v4624, 0.0
        %4627 = vadd.xlane.f32.xlu0 %v4626
        %v4628 = vpop.xlane.xlu0 %4627
        %v4629 = vsel %vm3412, %v4625, 0.0
        %4630 = vadd.xlane.f32.xlu0 %v4629
        %v4631 = vpop.xlane.xlu0 %4630
        %v4632 = vmul.f32 %v4628, %v3425
        %v4633 = vmul.f32 %v4631, %v3425
        %v4634 = vsub.f32 %v4624, %v4632
        %v4635 = vsub.f32 %v4625, %v4633
        %v4636 = vmul.f32 %v4634, %v4634
        %v4637 = vmul.f32 %v4635, %v4635
        %v4638 = vsel %vm3412, %v4636, 0.0
        %4639 = vadd.xlane.f32.xlu0 %v4638
        %v4640 = vpop.xlane.xlu0 %4639
        %v4641 = vsel %vm3412, %v4637, 0.0
        %4642 = vadd.xlane.f32.xlu0 %v4641
        %v4643 = vpop.xlane.xlu0 %4642
        %v4644 = vmul.f32 %v4640, %v3425
        %v4645 = vmul.f32 %v4643, %v3425
        %v4646 = vadd.f32 %v4644, 1e-05
        %v4647 = vadd.f32 %v4645, 1e-05
        %v4648 = vrsqrt.pop %v4646
        %v4649 = vmul.f32 %v4648, %v4646
        %v4650 = vmul.f32 %v4649, %v4648
        %v4651 = vmul.f32 0.5, %v4650
        %v4652 = vsub.f32 1.5, %v4651
        %v4653 = vmul.f32 %v4648, %v4652
        %vm4654 = vweird.f32 %v4646
        %vm4655 = vweird.f32 %v4648
        %vm4656 = vmor %vm4654, %vm4655
        %v4657 = vsel %vm4656, %v4648, %v4653
        %v4658 = vrsqrt.pop %v4647
        %v4659 = vmul.f32 %v4658, %v4647
        %v4660 = vmul.f32 %v4659, %v4658
        %v4661 = vmul.f32 0.5, %v4660
        %v4662 = vsub.f32 1.5, %v4661
        %v4663 = vmul.f32 %v4658, %v4662
        %vm4664 = vweird.f32 %v4647
        %vm4665 = vweird.f32 %v4658
        %vm4666 = vmor %vm4664, %vm4665
        %v4667 = vsel %vm4666, %v4658, %v4663
        %v4668 = vmul.f32 %v4634, %v4657
        %v4669 = vmul.f32 %v4635, %v4667
        %v4671 = vperm.slane %v2541, 0
        %v4673 = vmul.f32 %v4668, %v4671
        %v4674 = vmul.f32 %v4669, %v4671
        %v4676 = vperm.slane %v2540, 0
        %v4678 = vadd.f32 %v4673, %v4676
        %v4679 = vadd.f32 %v4674, %v4676
        %v4680 = vsel %vm3412, %v4678, 0.0
        %4681 = vadd.xlane.f32.xlu0 %v4680
        %v4682 = vpop.xlane.xlu0 %4681
        %v4683 = vsel %vm3412, %v4679, 0.0
        %4684 = vadd.xlane.f32.xlu0 %v4683
        %v4685 = vpop.xlane.xlu0 %4684
        %v4686 = vmul.f32 %v4682, %v3425
        %v4687 = vmul.f32 %v4685, %v3425
        %v4688 = vsub.f32 %v4678, %v4686
        %v4689 = vsub.f32 %v4679, %v4687
        %v4690 = vmul.f32 %v4688, %v4688
        %v4691 = vmul.f32 %v4689, %v4689
        %v4692 = vsel %vm3412, %v4690, 0.0
        %4693 = vadd.xlane.f32.xlu0 %v4692
        %v4694 = vpop.xlane.xlu0 %4693
        %v4695 = vsel %vm3412, %v4691, 0.0
        %4696 = vadd.xlane.f32.xlu0 %v4695
        %v4697 = vpop.xlane.xlu0 %4696
        %v4698 = vmul.f32 %v4694, %v3425
        %v4699 = vmul.f32 %v4697, %v3425
        %v4700 = vadd.f32 %v4698, 1e-05
        %v4701 = vadd.f32 %v4699, 1e-05
        %v4702 = vrsqrt.pop %v4700
        %v4703 = vmul.f32 %v4702, %v4700
        %v4704 = vmul.f32 %v4703, %v4702
        %v4705 = vmul.f32 0.5, %v4704
        %v4706 = vsub.f32 1.5, %v4705
        %v4707 = vmul.f32 %v4702, %v4706
        %vm4708 = vweird.f32 %v4700
        %vm4709 = vweird.f32 %v4702
        %vm4710 = vmor %vm4708, %vm4709
        %v4711 = vsel %vm4710, %v4702, %v4707
        %v4712 = vrsqrt.pop %v4701
        %v4713 = vmul.f32 %v4712, %v4701
        %v4714 = vmul.f32 %v4713, %v4712
        %v4715 = vmul.f32 0.5, %v4714
        %v4716 = vsub.f32 1.5, %v4715
        %v4717 = vmul.f32 %v4712, %v4716
        %vm4718 = vweird.f32 %v4701
        %vm4719 = vweird.f32 %v4712
        %vm4720 = vmor %vm4718, %vm4719
        %v4721 = vsel %vm4720, %v4712, %v4717
        %v4722 = vmul.f32 %v4688, %v4711
        %v4723 = vmul.f32 %v4689, %v4721
        %v4725 = vperm.slane %v2573, 0
        %v4727 = vmul.f32 %v4722, %v4725
        %v4728 = vmul.f32 %v4723, %v4725
        %v4730 = vperm.slane %v2572, 0
        %v4732 = vadd.f32 %v4727, %v4730
        %v4733 = vadd.f32 %v4728, %v4730
        %v4734 = vpack.c.bf16 %v4733, %v4732
        %v4736 = vperm.slane %v2570, 0
        %v4742 = vunpack.c.l.b16 %v2574
        %v4743 = vunpack.c.l.b16 %v2575
        %v4744 = vunpack.c.l.b16 %v2576
        %v4745 = vunpack.c.l.b16 %v2577
        %v4746 = vpack.c.b16 %v4743, %v4742
        %v4747 = vpack.c.b16 %v4745, %v4744
        %v4751 = vsel %vm3412, %v4734, 0
        %4753 = vmatpush.bf16.msra.mxu0 0
        %4754 = vmatpush.bf16.msra.mxu0 0
        %4755 = vmatpush.bf16.msra.mxu0 0
        %4756 = vmatpush.bf16.msra.mxu0 0
        %4757 = vmatpush.bf16.msra.mxu0 0
        %4758 = vmatpush.bf16.msra.mxu0 0
        %4759 = vmatpush.bf16.msra.mxu0 %v4747
        %4760 = vmatpush.bf16.msra.mxu0 %v4746
        %4761 = vmatmul.bf16.gmra.mxu0 %v4751
        %v4762 = vpop.f32.mrf.mxu0
        %v4763 = vadd.f32 %v4736, %v4762
        %v4764 = vpop.f32.mrf.mxu0
        %v4765 = vadd.f32 %v4736, %v4764
        %4766 = vdwg.mxu0
        %v4767 = vxor.u32 %v4763, 2147483648
        %v4768 = vxor.u32 %v4765, 2147483648
        %v4769 = vmul.f32 %v4767, 1.442695
        %v4770 = vpow.pop %v4769
        %v4771 = vmul.f32 %v4768, 1.442695
        %v4772 = vpow.pop %v4771
        %v4773 = vadd.f32 %v4770, 1.0
        %v4774 = vadd.f32 %v4772, 1.0
        %v4775 = vrcp.pop %v4773
        %v4776 = vmul.f32 %v4773, %v4775
        %v4777 = vsub.f32 1.0, %v4776
        %v4778 = vmul.f32 %v4775, %v4777
        %v4779 = vadd.f32 %v4775, %v4778
        %vm4780 = vweird.f32 %v4773
        %vm4781 = vweird.f32 %v4775
        %vm4782 = vmor %vm4780, %vm4781
        %v4783 = vsel %vm4782, %v4775, %v4779
        %v4784 = vand.u32 2147483647, %v4773
        %vm4785 = vcmp.eq.f32.partialorder %v4784, 8.507059e+37
        %v4786 = vand.u32 %v4773, 2147483648
        %v4787 = vor.u32 1.1754944e-38, %v4786
        %v4788 = vsel %vm4785, %v4787, %v4783
        %v4789 = vmul.f32 1.0, %v4788
        %v4790 = vrcp.pop %v4774
        %v4791 = vmul.f32 %v4774, %v4790
        %v4792 = vsub.f32 1.0, %v4791
        %v4793 = vmul.f32 %v4790, %v4792
        %v4794 = vadd.f32 %v4790, %v4793
        %vm4795 = vweird.f32 %v4774
        %vm4796 = vweird.f32 %v4790
        %vm4797 = vmor %vm4795, %vm4796
        %v4798 = vsel %vm4797, %v4790, %v4794
        %v4799 = vand.u32 2147483647, %v4774
        %vm4800 = vcmp.eq.f32.partialorder %v4799, 8.507059e+37
        %v4801 = vand.u32 %v4774, 2147483648
        %v4802 = vor.u32 1.1754944e-38, %v4801
        %v4803 = vsel %vm4800, %v4802, %v4798
        %v4804 = vmul.f32 1.0, %v4803
        %v4805 = vmul.f32 %v4763, %v4789
        %v4806 = vmul.f32 %v4765, %v4804
        %v4807 = vpack.c.bf16 %v4806, %v4805
        %v4809 = vperm.slane %v2571, 0
        %v4827 = vunpack.c.l.b16 %v2578
        %v4828 = vunpack.c.l.b16 %v2579
        %v4829 = vunpack.c.l.b16 %v2580
        %v4830 = vunpack.c.l.b16 %v2581
        %v4831 = vunpack.c.l.b16 %v2582
        %v4832 = vunpack.c.l.b16 %v2583
        %v4833 = vunpack.c.l.b16 %v2584
        %v4834 = vunpack.c.l.b16 %v2585
        %v4835 = vunpack.c.l.b16 %v2586
        %v4836 = vunpack.c.l.b16 %v2587
        %v4837 = vunpack.c.l.b16 %v2588
        %v4838 = vunpack.c.l.b16 %v2589
        %v4839 = vunpack.c.l.b16 %v2590
        %v4840 = vunpack.c.l.b16 %v2591
        %v4841 = vunpack.c.l.b16 %v2592
        %v4842 = vunpack.c.l.b16 %v2593
        %v4843 = vpack.c.b16 %v4828, %v4827
        %v4844 = vpack.c.b16 %v4830, %v4829
        %v4845 = vpack.c.b16 %v4832, %v4831
        %v4846 = vpack.c.b16 %v4834, %v4833
        %v4847 = vpack.c.b16 %v4836, %v4835
        %v4848 = vpack.c.b16 %v4838, %v4837
        %v4849 = vpack.c.b16 %v4840, %v4839
        %v4850 = vpack.c.b16 %v4842, %v4841
        %4859 = vmatpush.bf16.msra.mxu0 %v4850
        %4860 = vmatpush.bf16.msra.mxu0 %v4849
        %4861 = vmatpush.bf16.msra.mxu0 %v4848
        %4862 = vmatpush.bf16.msra.mxu0 %v4847
        %4863 = vmatpush.bf16.msra.mxu0 %v4846
        %4864 = vmatpush.bf16.msra.mxu0 %v4845
        %4865 = vmatpush.bf16.msra.mxu0 %v4844
        %4866 = vmatpush.bf16.msra.mxu0 %v4843
        %4867 = vmatmul.bf16.gmra.mxu0 %v4807
        %v4868 = vpop.f32.mrf.mxu0
        %v4869 = vadd.f32 %v4809, %v4868
        %v4870 = vpop.f32.mrf.mxu0
        %v4871 = vadd.f32 %v4809, %v4870
        %4872 = vdwg.mxu0
        %v4873 = vmul.f32 %v4869, 0.5
        %v4874 = vmul.f32 %v4871, 0.5
        %v4875 = vadd.f32 %v4678, %v4873
        %v4876 = vadd.f32 %v4679, %v4874
        %v4877 = vsel %vm3412, %v4875, 0.0
        %4878 = vadd.xlane.f32.xlu0 %v4877
        %v4879 = vpop.xlane.xlu0 %4878
        %v4880 = vsel %vm3412, %v4876, 0.0
        %4881 = vadd.xlane.f32.xlu0 %v4880
        %v4882 = vpop.xlane.xlu0 %4881
        %v4883 = vmul.f32 %v4879, %v3425
        %v4884 = vmul.f32 %v4882, %v3425
        %v4885 = vsub.f32 %v4875, %v4883
        %v4886 = vsub.f32 %v4876, %v4884
        %v4887 = vmul.f32 %v4885, %v4885
        %v4888 = vmul.f32 %v4886, %v4886
        %v4889 = vsel %vm3412, %v4887, 0.0
        %4890 = vadd.xlane.f32.xlu0 %v4889
        %v4891 = vpop.xlane.xlu0 %4890
        %v4892 = vsel %vm3412, %v4888, 0.0
        %4893 = vadd.xlane.f32.xlu0 %v4892
        %v4894 = vpop.xlane.xlu0 %4893
        %v4895 = vmul.f32 %v4891, %v3425
        %v4896 = vmul.f32 %v4894, %v3425
        %v4897 = vadd.f32 %v4895, 1e-05
        %v4898 = vadd.f32 %v4896, 1e-05
        %v4899 = vrsqrt.pop %v4897
        %v4900 = vmul.f32 %v4899, %v4897
        %v4901 = vmul.f32 %v4900, %v4899
        %v4902 = vmul.f32 0.5, %v4901
        %v4903 = vsub.f32 1.5, %v4902
        %v4904 = vmul.f32 %v4899, %v4903
        %vm4905 = vweird.f32 %v4897
        %vm4906 = vweird.f32 %v4899
        %vm4907 = vmor %vm4905, %vm4906
        %v4908 = vsel %vm4907, %v4899, %v4904
        %v4909 = vrsqrt.pop %v4898
        %v4910 = vmul.f32 %v4909, %v4898
        %v4911 = vmul.f32 %v4910, %v4909
        %v4912 = vmul.f32 0.5, %v4911
        %v4913 = vsub.f32 1.5, %v4912
        %v4914 = vmul.f32 %v4909, %v4913
        %vm4915 = vweird.f32 %v4898
        %vm4916 = vweird.f32 %v4909
        %vm4917 = vmor %vm4915, %vm4916
        %v4918 = vsel %vm4917, %v4909, %v4914
        %v4919 = vmul.f32 %v4885, %v4908
        %v4920 = vmul.f32 %v4886, %v4918
        %v4922 = vperm.slane %v2623, 0
        %v4924 = vmul.f32 %v4919, %v4922
        %v4925 = vmul.f32 %v4920, %v4922
        %v4927 = vperm.slane %v2622, 0
        %v4929 = vadd.f32 %v4924, %v4927
        %v4930 = vadd.f32 %v4925, %v4927
        %v4931 = vpack.c.bf16 %v4930, %v4929
        %v4933 = vperm.slane %v2621, 0
        %v4939 = vunpack.c.l.b16 %v2628
        %v4940 = vunpack.c.l.b16 %v2629
        %v4941 = vunpack.c.l.b16 %v2630
        %v4942 = vunpack.c.l.b16 %v2631
        %v4943 = vpack.c.b16 %v4940, %v4939
        %v4944 = vpack.c.b16 %v4942, %v4941
        %v4948 = vsel %vm3412, %v4931, 0
        %4950 = vmatpush.bf16.msra.mxu0 0
        %4951 = vmatpush.bf16.msra.mxu0 0
        %4952 = vmatpush.bf16.msra.mxu0 0
        %4953 = vmatpush.bf16.msra.mxu0 0
        %4954 = vmatpush.bf16.msra.mxu0 0
        %4955 = vmatpush.bf16.msra.mxu0 0
        %4956 = vmatpush.bf16.msra.mxu0 %v4944
        %4957 = vmatpush.bf16.msra.mxu0 %v4943
        %4958 = vmatmul.bf16.gmra.mxu0 %v4948
        %v4959 = vpop.f32.mrf.mxu0
        %v4960 = vadd.f32 %v4933, %v4959
        %v4961 = vpop.f32.mrf.mxu0
        %v4962 = vadd.f32 %v4933, %v4961
        %4963 = vdwg.mxu0
        %4966 = vrot.lane.b32.xlu0 %v4960, 120
        %v4967 = vpop.permute.xlu0 %4966
        %4968 = vrot.lane.b32.xlu0 %v4962, 120
        %v4969 = vpop.permute.xlu0 %4968
        %4972 = vrot.lane.b32.xlu0 %v4960, 112
        %v4973 = vpop.permute.xlu0 %4972
        %4974 = vrot.lane.b32.xlu0 %v4962, 112
        %v4975 = vpop.permute.xlu0 %4974
        %4978 = vrot.lane.b32.xlu0 %v4960, 104
        %v4979 = vpop.permute.xlu0 %4978
        %4980 = vrot.lane.b32.xlu0 %v4962, 104
        %v4981 = vpop.permute.xlu0 %4980
        %v4984 = vpack.c.bf16 %v4960, %v4960
        %v4985 = vpack.c.bf16 %v4962, %v4962
        %v4986 = vpack.c.bf16 %v4967, %v4967
        %v4987 = vpack.c.bf16 %v4969, %v4969
        %v4988 = vpack.c.bf16 %v4973, %v4973
        %v4989 = vpack.c.bf16 %v4975, %v4975
        %v4990 = vpack.c.bf16 %v4979, %v4979
        %v4991 = vpack.c.bf16 %v4981, %v4981
        %v4994 = vunpack.c.l.b16 %v4984
        %v4995 = vunpack.c.l.b16 %v4985
        %v4996 = vpack.c.b16 %v4995, %v4994
        %4997 = vrot.lane.b32.xlu0 %v4996, 96
        %v4998 = vpop.permute.xlu0 %4997
        %v5000 = vsel %vm3739, %v4996, 0
        %v5003 = vsel %vm3739, %v4998, 0
        %5005 = vmatpush.bf16.xpose.msra.mxu0 0
        %5006 = vmatpush.bf16.xpose.msra.mxu0 0
        %5007 = vmatpush.bf16.xpose.msra.mxu0 0
        %5008 = vmatpush.bf16.xpose.msra.mxu0 0
        %5009 = vmatpush.bf16.xpose.msra.mxu0 0
        %5010 = vmatpush.bf16.xpose.msra.mxu0 0
        %5011 = vmatpush.bf16.xpose.msra.mxu0 0
        %5012 = vmatpush.bf16.xpose.msra.mxu0 %v5003
        %5013 = vmatmul.bf16.gmra.mxu0 %v5000
        %v5014 = vpop.f32.mrf.mxu0
        %v5015 = vadd.f32 0.0, %v5014
        %v5016 = vpop.f32.mrf.mxu0
        %v5017 = vadd.f32 0.0, %v5016
        %5018 = vdwg.mxu0
        %v5021 = vunpack.c.l.b16 %v4986
        %v5022 = vunpack.c.l.b16 %v4987
        %v5023 = vpack.c.b16 %v5022, %v5021
        %5024 = vrot.lane.b32.xlu0 %v5023, 96
        %v5025 = vpop.permute.xlu0 %5024
        %v5027 = vsel %vm3739, %v5023, 0
        %v5030 = vsel %vm3739, %v5025, 0
        %5032 = vmatpush.bf16.xpose.msra.mxu0 0
        %5033 = vmatpush.bf16.xpose.msra.mxu0 0
        %5034 = vmatpush.bf16.xpose.msra.mxu0 0
        %5035 = vmatpush.bf16.xpose.msra.mxu0 0
        %5036 = vmatpush.bf16.xpose.msra.mxu0 0
        %5037 = vmatpush.bf16.xpose.msra.mxu0 0
        %5038 = vmatpush.bf16.xpose.msra.mxu0 0
        %5039 = vmatpush.bf16.xpose.msra.mxu0 %v5030
        %5040 = vmatmul.bf16.gmra.mxu0 %v5027
        %v5041 = vpop.f32.mrf.mxu0
        %v5042 = vadd.f32 0.0, %v5041
        %v5043 = vpop.f32.mrf.mxu0
        %v5044 = vadd.f32 0.0, %v5043
        %5045 = vdwg.mxu0
        %v5048 = vunpack.c.l.b16 %v4988
        %v5049 = vunpack.c.l.b16 %v4989
        %v5050 = vpack.c.b16 %v5049, %v5048
        %5051 = vrot.lane.b32.xlu0 %v5050, 96
        %v5052 = vpop.permute.xlu0 %5051
        %v5054 = vsel %vm3739, %v5050, 0
        %v5057 = vsel %vm3739, %v5052, 0
        %5059 = vmatpush.bf16.xpose.msra.mxu0 0
        %5060 = vmatpush.bf16.xpose.msra.mxu0 0
        %5061 = vmatpush.bf16.xpose.msra.mxu0 0
        %5062 = vmatpush.bf16.xpose.msra.mxu0 0
        %5063 = vmatpush.bf16.xpose.msra.mxu0 0
        %5064 = vmatpush.bf16.xpose.msra.mxu0 0
        %5065 = vmatpush.bf16.xpose.msra.mxu0 0
        %5066 = vmatpush.bf16.xpose.msra.mxu0 %v5057
        %5067 = vmatmul.bf16.gmra.mxu0 %v5054
        %v5068 = vpop.f32.mrf.mxu0
        %v5069 = vadd.f32 0.0, %v5068
        %v5070 = vpop.f32.mrf.mxu0
        %v5071 = vadd.f32 0.0, %v5070
        %5072 = vdwg.mxu0
        %v5075 = vunpack.c.l.b16 %v4990
        %v5076 = vunpack.c.l.b16 %v4991
        %v5077 = vpack.c.b16 %v5076, %v5075
        %5078 = vrot.lane.b32.xlu0 %v5077, 96
        %v5079 = vpop.permute.xlu0 %5078
        %v5081 = vsel %vm3739, %v5077, 0
        %v5084 = vsel %vm3739, %v5079, 0
        %5086 = vmatpush.bf16.xpose.msra.mxu0 0
        %5087 = vmatpush.bf16.xpose.msra.mxu0 0
        %5088 = vmatpush.bf16.xpose.msra.mxu0 0
        %5089 = vmatpush.bf16.xpose.msra.mxu0 0
        %5090 = vmatpush.bf16.xpose.msra.mxu0 0
        %5091 = vmatpush.bf16.xpose.msra.mxu0 0
        %5092 = vmatpush.bf16.xpose.msra.mxu0 0
        %5093 = vmatpush.bf16.xpose.msra.mxu0 %v5084
        %5094 = vmatmul.bf16.gmra.mxu0 %v5081
        %v5095 = vpop.f32.mrf.mxu0
        %v5096 = vadd.f32 0.0, %v5095
        %v5097 = vpop.f32.mrf.mxu0
        %v5098 = vadd.f32 0.0, %v5097
        %5099 = vdwg.mxu0
        %v5100 = vmul.f32 %v5015, 0.35355338
        %v5101 = vmul.f32 %v5017, 0.35355338
        %v5102 = vmul.f32 %v5042, 0.35355338
        %v5103 = vmul.f32 %v5044, 0.35355338
        %v5104 = vmul.f32 %v5069, 0.35355338
        %v5105 = vmul.f32 %v5071, 0.35355338
        %v5106 = vmul.f32 %v5096, 0.35355338
        %v5107 = vmul.f32 %v5098, 0.35355338
        %v5108 = vadd.f32 %v5100, %v3850
        %v5109 = vadd.f32 %v5101, %v3850
        %v5110 = vadd.f32 %v5102, %v3850
        %v5111 = vadd.f32 %v5103, %v3850
        %v5112 = vadd.f32 %v5104, %v3850
        %v5113 = vadd.f32 %v5105, %v3850
        %v5114 = vadd.f32 %v5106, %v3850
        %v5115 = vadd.f32 %v5107, %v3850
        %v5116 = vsel %vm3860, %v5108, -inf
        %5117 = vmax.xlane.f32.xlu0 %v5116
        %v5118 = vpop.xlane.xlu0 %5117
        %v5119 = vsel %vm3860, %v5109, -inf
        %5120 = vmax.xlane.f32.xlu0 %v5119
        %v5121 = vpop.xlane.xlu0 %5120
        %v5122 = vsel %vm3860, %v5110, -inf
        %5123 = vmax.xlane.f32.xlu0 %v5122
        %v5124 = vpop.xlane.xlu0 %5123
        %v5125 = vsel %vm3860, %v5111, -inf
        %5126 = vmax.xlane.f32.xlu0 %v5125
        %v5127 = vpop.xlane.xlu0 %5126
        %v5128 = vsel %vm3860, %v5112, -inf
        %5129 = vmax.xlane.f32.xlu0 %v5128
        %v5130 = vpop.xlane.xlu0 %5129
        %v5131 = vsel %vm3860, %v5113, -inf
        %5132 = vmax.xlane.f32.xlu0 %v5131
        %v5133 = vpop.xlane.xlu0 %5132
        %v5134 = vsel %vm3860, %v5114, -inf
        %5135 = vmax.xlane.f32.xlu0 %v5134
        %v5136 = vpop.xlane.xlu0 %5135
        %v5137 = vsel %vm3860, %v5115, -inf
        %5138 = vmax.xlane.f32.xlu0 %v5137
        %v5139 = vpop.xlane.xlu0 %5138
        %v5140 = vsub.f32 %v5108, %v5118
        %v5141 = vsub.f32 %v5109, %v5121
        %v5142 = vsub.f32 %v5110, %v5124
        %v5143 = vsub.f32 %v5111, %v5127
        %v5144 = vsub.f32 %v5112, %v5130
        %v5145 = vsub.f32 %v5113, %v5133
        %v5146 = vsub.f32 %v5114, %v5136
        %v5147 = vsub.f32 %v5115, %v5139
        %v5148 = vmul.f32 %v5140, 1.442695
        %v5149 = vpow.pop %v5148
        %v5150 = vmul.f32 %v5141, 1.442695
        %v5151 = vpow.pop %v5150
        %v5152 = vmul.f32 %v5142, 1.442695
        %v5153 = vpow.pop %v5152
        %v5154 = vmul.f32 %v5143, 1.442695
        %v5155 = vpow.pop %v5154
        %v5156 = vmul.f32 %v5144, 1.442695
        %v5157 = vpow.pop %v5156
        %v5158 = vmul.f32 %v5145, 1.442695
        %v5159 = vpow.pop %v5158
        %v5160 = vmul.f32 %v5146, 1.442695
        %v5161 = vpow.pop %v5160
        %v5162 = vmul.f32 %v5147, 1.442695
        %v5163 = vpow.pop %v5162
        %v5164 = vsel %vm3860, %v5149, 0.0
        %5165 = vadd.xlane.f32.xlu0 %v5164
        %v5166 = vpop.xlane.xlu0 %5165
        %v5167 = vsel %vm3860, %v5151, 0.0
        %5168 = vadd.xlane.f32.xlu0 %v5167
        %v5169 = vpop.xlane.xlu0 %5168
        %v5170 = vsel %vm3860, %v5153, 0.0
        %5171 = vadd.xlane.f32.xlu0 %v5170
        %v5172 = vpop.xlane.xlu0 %5171
        %v5173 = vsel %vm3860, %v5155, 0.0
        %5174 = vadd.xlane.f32.xlu0 %v5173
        %v5175 = vpop.xlane.xlu0 %5174
        %v5176 = vsel %vm3860, %v5157, 0.0
        %5177 = vadd.xlane.f32.xlu0 %v5176
        %v5178 = vpop.xlane.xlu0 %5177
        %v5179 = vsel %vm3860, %v5159, 0.0
        %5180 = vadd.xlane.f32.xlu0 %v5179
        %v5181 = vpop.xlane.xlu0 %5180
        %v5182 = vsel %vm3860, %v5161, 0.0
        %5183 = vadd.xlane.f32.xlu0 %v5182
        %v5184 = vpop.xlane.xlu0 %5183
        %v5185 = vsel %vm3860, %v5163, 0.0
        %5186 = vadd.xlane.f32.xlu0 %v5185
        %v5187 = vpop.xlane.xlu0 %5186
        %v5188 = vrcp.pop %v5166
        %v5189 = vrcp.pop %v5169
        %v5190 = vrcp.pop %v5172
        %v5191 = vrcp.pop %v5175
        %v5192 = vrcp.pop %v5178
        %v5193 = vrcp.pop %v5181
        %v5194 = vrcp.pop %v5184
        %v5195 = vrcp.pop %v5187
        %v5196 = vmul.f32 %v5149, %v5188
        %v5197 = vmul.f32 %v5151, %v5189
        %v5198 = vmul.f32 %v5153, %v5190
        %v5199 = vmul.f32 %v5155, %v5191
        %v5200 = vmul.f32 %v5157, %v5192
        %v5201 = vmul.f32 %v5159, %v5193
        %v5202 = vmul.f32 %v5161, %v5194
        %v5203 = vmul.f32 %v5163, %v5195
        %v5204 = vpack.c.bf16 %v5196, %v5196
        %v5205 = vpack.c.bf16 %v5197, %v5197
        %v5206 = vpack.c.bf16 %v5198, %v5198
        %v5207 = vpack.c.bf16 %v5199, %v5199
        %v5208 = vpack.c.bf16 %v5200, %v5200
        %v5209 = vpack.c.bf16 %v5201, %v5201
        %v5210 = vpack.c.bf16 %v5202, %v5202
        %v5211 = vpack.c.bf16 %v5203, %v5203
        %v5214 = vunpack.c.l.b16 %v5204
        %v5215 = vunpack.c.l.b16 %v5205
        %v5216 = vpack.c.b16 %v5215, %v5214
        %5217 = vrot.lane.b32.xlu0 %v4996, 64
        %v5218 = vpop.permute.xlu0 %5217
        %v5221 = vsel %vm3860, %v5216, 0
        %5223 = vmatpush.bf16.msra.mxu0 0
        %5224 = vmatpush.bf16.msra.mxu0 0
        %5225 = vmatpush.bf16.msra.mxu0 0
        %5226 = vmatpush.bf16.msra.mxu0 0
        %5227 = vmatpush.bf16.msra.mxu0 0
        %5228 = vmatpush.bf16.msra.mxu0 0
        %5229 = vmatpush.bf16.msra.mxu0 0
        %5230 = vmatpush.bf16.msra.mxu0 %v5218
        %5231 = vmatmul.bf16.gmra.mxu0 %v5221
        %v5232 = vpop.f32.mrf.mxu0
        %v5233 = vadd.f32 0.0, %v5232
        %v5234 = vpop.f32.mrf.mxu0
        %v5235 = vadd.f32 0.0, %v5234
        %5236 = vdwg.mxu0
        %v5239 = vunpack.c.l.b16 %v5206
        %v5240 = vunpack.c.l.b16 %v5207
        %v5241 = vpack.c.b16 %v5240, %v5239
        %5242 = vrot.lane.b32.xlu0 %v5023, 64
        %v5243 = vpop.permute.xlu0 %5242
        %v5246 = vsel %vm3860, %v5241, 0
        %5248 = vmatpush.bf16.msra.mxu0 0
        %5249 = vmatpush.bf16.msra.mxu0 0
        %5250 = vmatpush.bf16.msra.mxu0 0
        %5251 = vmatpush.bf16.msra.mxu0 0
        %5252 = vmatpush.bf16.msra.mxu0 0
        %5253 = vmatpush.bf16.msra.mxu0 0
        %5254 = vmatpush.bf16.msra.mxu0 0
        %5255 = vmatpush.bf16.msra.mxu0 %v5243
        %5256 = vmatmul.bf16.gmra.mxu0 %v5246
        %v5257 = vpop.f32.mrf.mxu0
        %v5258 = vadd.f32 0.0, %v5257
        %v5259 = vpop.f32.mrf.mxu0
        %v5260 = vadd.f32 0.0, %v5259
        %5261 = vdwg.mxu0
        %v5264 = vunpack.c.l.b16 %v5208
        %v5265 = vunpack.c.l.b16 %v5209
        %v5266 = vpack.c.b16 %v5265, %v5264
        %5267 = vrot.lane.b32.xlu0 %v5050, 64
        %v5268 = vpop.permute.xlu0 %5267
        %v5271 = vsel %vm3860, %v5266, 0
        %5273 = vmatpush.bf16.msra.mxu0 0
        %5274 = vmatpush.bf16.msra.mxu0 0
        %5275 = vmatpush.bf16.msra.mxu0 0
        %5276 = vmatpush.bf16.msra.mxu0 0
        %5277 = vmatpush.bf16.msra.mxu0 0
        %5278 = vmatpush.bf16.msra.mxu0 0
        %5279 = vmatpush.bf16.msra.mxu0 0
        %5280 = vmatpush.bf16.msra.mxu0 %v5268
        %5281 = vmatmul.bf16.gmra.mxu0 %v5271
        %v5282 = vpop.f32.mrf.mxu0
        %v5283 = vadd.f32 0.0, %v5282
        %v5284 = vpop.f32.mrf.mxu0
        %v5285 = vadd.f32 0.0, %v5284
        %5286 = vdwg.mxu0
        %v5289 = vunpack.c.l.b16 %v5210
        %v5290 = vunpack.c.l.b16 %v5211
        %v5291 = vpack.c.b16 %v5290, %v5289
        %5292 = vrot.lane.b32.xlu0 %v5077, 64
        %v5293 = vpop.permute.xlu0 %5292
        %v5296 = vsel %vm3860, %v5291, 0
        %5298 = vmatpush.bf16.msra.mxu0 0
        %5299 = vmatpush.bf16.msra.mxu0 0
        %5300 = vmatpush.bf16.msra.mxu0 0
        %5301 = vmatpush.bf16.msra.mxu0 0
        %5302 = vmatpush.bf16.msra.mxu0 0
        %5303 = vmatpush.bf16.msra.mxu0 0
        %5304 = vmatpush.bf16.msra.mxu0 0
        %5305 = vmatpush.bf16.msra.mxu0 %v5293
        %5306 = vmatmul.bf16.gmra.mxu0 %v5296
        %v5307 = vpop.f32.mrf.mxu0
        %v5308 = vadd.f32 0.0, %v5307
        %v5309 = vpop.f32.mrf.mxu0
        %v5310 = vadd.f32 0.0, %v5309
        %5311 = vdwg.mxu0
        %5314 = vrot.lane.b32.xlu0 %v5258, 8
        %v5315 = vpop.permute.xlu0 %5314
        %5316 = vrot.lane.b32.xlu0 %v5260, 8
        %v5317 = vpop.permute.xlu0 %5316
        %5322 = vrot.lane.b32.xlu0 %v5283, 16
        %v5323 = vpop.permute.xlu0 %5322
        %5324 = vrot.lane.b32.xlu0 %v5285, 16
        %v5325 = vpop.permute.xlu0 %5324
        %5330 = vrot.lane.b32.xlu0 %v5308, 24
        %v5331 = vpop.permute.xlu0 %5330
        %5332 = vrot.lane.b32.xlu0 %v5310, 24
        %v5333 = vpop.permute.xlu0 %5332
        %v5336 = vsel %vm3739, %v5233, %v5315
        %v5337 = vsel %vm3739, %v5235, %v5317
        %v5338 = vsel %vm3860, %v5336, %v5323
        %v5339 = vsel %vm3860, %v5337, %v5325
        %v5340 = vsel %vm4085, %v5338, %v5331
        %v5341 = vsel %vm4085, %v5339, %v5333
        %v5342 = vpack.c.bf16 %v5341, %v5340
        %v5347 = vunpack.c.l.b16 %v2624
        %v5348 = vunpack.c.l.b16 %v2625
        %v5349 = vunpack.c.l.b16 %v2626
        %v5350 = vunpack.c.l.b16 %v2627
        %v5351 = vpack.c.b16 %v5348, %v5347
        %v5352 = vpack.c.b16 %v5350, %v5349
        %v5356 = vsel %vm3412, %v5342, 0
        %5358 = vmatpush.bf16.msra.mxu0 0
        %5359 = vmatpush.bf16.msra.mxu0 0
        %5360 = vmatpush.bf16.msra.mxu0 0
        %5361 = vmatpush.bf16.msra.mxu0 0
        %5362 = vmatpush.bf16.msra.mxu0 0
        %5363 = vmatpush.bf16.msra.mxu0 0
        %5364 = vmatpush.bf16.msra.mxu0 %v5352
        %5365 = vmatpush.bf16.msra.mxu0 %v5351
        %5366 = vmatmul.bf16.gmra.mxu0 %v5356
        %v5367 = vpop.f32.mrf.mxu0
        %v5368 = vadd.f32 0.0, %v5367
        %v5369 = vpop.f32.mrf.mxu0
        %v5370 = vadd.f32 0.0, %v5369
        %5371 = vdwg.mxu0
        %v5372 = vadd.f32 %v4875, %v5368
        %v5373 = vadd.f32 %v4876, %v5370
        %v5375 = vperm.slane %v2620, 0
        %v5377 = vadd.f32 %v5372, %v5375
        %v5378 = vadd.f32 %v5373, %v5375
        %v5379 = vsel %vm3412, %v5377, 0.0
        %5380 = vadd.xlane.f32.xlu0 %v5379
        %v5381 = vpop.xlane.xlu0 %5380
        %v5382 = vsel %vm3412, %v5378, 0.0
        %5383 = vadd.xlane.f32.xlu0 %v5382
        %v5384 = vpop.xlane.xlu0 %5383
        %v5385 = vmul.f32 %v5381, %v3425
        %v5386 = vmul.f32 %v5384, %v3425
        %v5387 = vsub.f32 %v5377, %v5385
        %v5388 = vsub.f32 %v5378, %v5386
        %v5389 = vmul.f32 %v5387, %v5387
        %v5390 = vmul.f32 %v5388, %v5388
        %v5391 = vsel %vm3412, %v5389, 0.0
        %5392 = vadd.xlane.f32.xlu0 %v5391
        %v5393 = vpop.xlane.xlu0 %5392
        %v5394 = vsel %vm3412, %v5390, 0.0
        %5395 = vadd.xlane.f32.xlu0 %v5394
        %v5396 = vpop.xlane.xlu0 %5395
        %v5397 = vmul.f32 %v5393, %v3425
        %v5398 = vmul.f32 %v5396, %v3425
        %v5399 = vadd.f32 %v5397, 1e-05
        %v5400 = vadd.f32 %v5398, 1e-05
        %v5401 = vrsqrt.pop %v5399
        %v5402 = vmul.f32 %v5401, %v5399
        %v5403 = vmul.f32 %v5402, %v5401
        %v5404 = vmul.f32 0.5, %v5403
        %v5405 = vsub.f32 1.5, %v5404
        %v5406 = vmul.f32 %v5401, %v5405
        %vm5407 = vweird.f32 %v5399
        %vm5408 = vweird.f32 %v5401
        %vm5409 = vmor %vm5407, %vm5408
        %v5410 = vsel %vm5409, %v5401, %v5406
        %v5411 = vrsqrt.pop %v5400
        %v5412 = vmul.f32 %v5411, %v5400
        %v5413 = vmul.f32 %v5412, %v5411
        %v5414 = vmul.f32 0.5, %v5413
        %v5415 = vsub.f32 1.5, %v5414
        %v5416 = vmul.f32 %v5411, %v5415
        %vm5417 = vweird.f32 %v5400
        %vm5418 = vweird.f32 %v5411
        %vm5419 = vmor %vm5417, %vm5418
        %v5420 = vsel %vm5419, %v5411, %v5416
        %v5421 = vmul.f32 %v5387, %v5410
        %v5422 = vmul.f32 %v5388, %v5420
        %v5424 = vperm.slane %v2559, 0
        %v5426 = vmul.f32 %v5421, %v5424
        %v5427 = vmul.f32 %v5422, %v5424
        %v5429 = vperm.slane %v2558, 0
        %v5431 = vadd.f32 %v5426, %v5429
        %v5432 = vadd.f32 %v5427, %v5429
        %v5433 = vpack.c.bf16 %v5432, %v5431
        %v5435 = vperm.slane %v2560, 0
        %v5441 = vunpack.c.l.b16 %v2561
        %v5442 = vunpack.c.l.b16 %v2562
        %v5443 = vunpack.c.l.b16 %v2563
        %v5444 = vunpack.c.l.b16 %v2564
        %v5445 = vpack.c.b16 %v5442, %v5441
        %v5446 = vpack.c.b16 %v5444, %v5443
        %v5450 = vsel %vm3412, %v5433, 0
        %5452 = vmatpush.bf16.msra.mxu0 0
        %5453 = vmatpush.bf16.msra.mxu0 0
        %5454 = vmatpush.bf16.msra.mxu0 0
        %5455 = vmatpush.bf16.msra.mxu0 0
        %5456 = vmatpush.bf16.msra.mxu0 0
        %5457 = vmatpush.bf16.msra.mxu0 0
        %5458 = vmatpush.bf16.msra.mxu0 %v5446
        %5459 = vmatpush.bf16.msra.mxu0 %v5445
        %5460 = vmatmul.bf16.gmra.mxu0 %v5450
        %v5461 = vpop.f32.mrf.mxu0
        %v5462 = vadd.f32 %v5435, %v5461
        %v5463 = vpop.f32.mrf.mxu0
        %v5464 = vadd.f32 %v5435, %v5463
        %5465 = vdwg.mxu0
        %v5466 = vxor.u32 %v5462, 2147483648
        %v5467 = vxor.u32 %v5464, 2147483648
        %v5468 = vmul.f32 %v5466, 1.442695
        %v5469 = vpow.pop %v5468
        %v5470 = vmul.f32 %v5467, 1.442695
        %v5471 = vpow.pop %v5470
        %v5472 = vadd.f32 %v5469, 1.0
        %v5473 = vadd.f32 %v5471, 1.0
        %v5474 = vrcp.pop %v5472
        %v5475 = vmul.f32 %v5472, %v5474
        %v5476 = vsub.f32 1.0, %v5475
        %v5477 = vmul.f32 %v5474, %v5476
        %v5478 = vadd.f32 %v5474, %v5477
        %vm5479 = vweird.f32 %v5472
        %vm5480 = vweird.f32 %v5474
        %vm5481 = vmor %vm5479, %vm5480
        %v5482 = vsel %vm5481, %v5474, %v5478
        %v5483 = vand.u32 2147483647, %v5472
        %vm5484 = vcmp.eq.f32.partialorder %v5483, 8.507059e+37
        %v5485 = vand.u32 %v5472, 2147483648
        %v5486 = vor.u32 1.1754944e-38, %v5485
        %v5487 = vsel %vm5484, %v5486, %v5482
        %v5488 = vmul.f32 1.0, %v5487
        %v5489 = vrcp.pop %v5473
        %v5490 = vmul.f32 %v5473, %v5489
        %v5491 = vsub.f32 1.0, %v5490
        %v5492 = vmul.f32 %v5489, %v5491
        %v5493 = vadd.f32 %v5489, %v5492
        %vm5494 = vweird.f32 %v5473
        %vm5495 = vweird.f32 %v5489
        %vm5496 = vmor %vm5494, %vm5495
        %v5497 = vsel %vm5496, %v5489, %v5493
        %v5498 = vand.u32 2147483647, %v5473
        %vm5499 = vcmp.eq.f32.partialorder %v5498, 8.507059e+37
        %v5500 = vand.u32 %v5473, 2147483648
        %v5501 = vor.u32 1.1754944e-38, %v5500
        %v5502 = vsel %vm5499, %v5501, %v5497
        %v5503 = vmul.f32 1.0, %v5502
        %5506 = vrot.lane.b32.xlu0 %v5488, 96
        %v5507 = vpop.permute.xlu0 %5506
        %5508 = vrot.lane.b32.xlu0 %v5503, 96
        %v5509 = vpop.permute.xlu0 %5508
        %v5512 = vmul.f32 %v5462, %v5507
        %v5513 = vmul.f32 %v5464, %v5509
        %v5514 = vrot.slane %v5512, 5
        %v5515 = vrot.slane %v5513, 5
        %v5516 = vsel %vm4262, %v5514, %v5515
        %v5517 = vsel %vm4262, %v5515, %v5514
        %v5518 = vmul.f32 %v5517, %v3340
        %v5519 = vmul.f32 %v5516, %v3341
        %v5520 = vperm.slane %v2557, 0
        %v5521 = vmul.f32 %v5518, %v5520
        %v5522 = vmul.f32 %v5519, %v5520
        %v5523 = vadd.f32 %v5521, 0.0
        %v5524 = vadd.f32 %v5522, 0.0
        %v5525 = vrot.slane %v5512, 6
        %v5526 = vrot.slane %v5513, 6
        %v5527 = vsel %vm4274, %v5525, %v5526
        %v5528 = vsel %vm4274, %v5526, %v5525
        %v5529 = vmul.f32 %v5528, %v3352
        %v5530 = vmul.f32 %v5527, %v3353
        %v5531 = vperm.slane %v2557, 1
        %v5532 = vmul.f32 %v5529, %v5531
        %v5533 = vmul.f32 %v5530, %v5531
        %v5534 = vadd.f32 %v5523, %v5532
        %v5535 = vadd.f32 %v5524, %v5533
        %v5536 = vrot.slane %v5512, 7
        %v5537 = vrot.slane %v5513, 7
        %v5538 = vsel %vm4286, %v5536, %v5537
        %v5539 = vsel %vm4286, %v5537, %v5536
        %v5540 = vmul.f32 %v5539, %v3364
        %v5541 = vmul.f32 %v5538, %v3365
        %v5542 = vperm.slane %v2557, 2
        %v5543 = vmul.f32 %v5540, %v5542
        %v5544 = vmul.f32 %v5541, %v5542
        %v5545 = vadd.f32 %v5534, %v5543
        %v5546 = vadd.f32 %v5535, %v5544
        %v5547 = vmul.f32 %v5512, %v3374
        %v5548 = vmul.f32 %v5513, %v3375
        %v5549 = vperm.slane %v2557, 3
        %v5550 = vmul.f32 %v5547, %v5549
        %v5551 = vmul.f32 %v5548, %v5549
        %v5552 = vadd.f32 %v5545, %v5550
        %v5553 = vadd.f32 %v5546, %v5551
        %v5554 = vrot.slane %v5512, 1
        %v5555 = vrot.slane %v5513, 1
        %v5556 = vsel %vm4305, %v5554, %v5555
        %v5557 = vsel %vm4305, %v5555, %v5554
        %v5558 = vmul.f32 %v5556, %v3386
        %v5559 = vmul.f32 %v5557, %v3387
        %v5560 = vperm.slane %v2557, 4
        %v5561 = vmul.f32 %v5558, %v5560
        %v5562 = vmul.f32 %v5559, %v5560
        %v5563 = vadd.f32 %v5552, %v5561
        %v5564 = vadd.f32 %v5553, %v5562
        %v5565 = vrot.slane %v5512, 2
        %v5566 = vrot.slane %v5513, 2
        %v5567 = vsel %vm4317, %v5565, %v5566
        %v5568 = vsel %vm4317, %v5566, %v5565
        %v5569 = vmul.f32 %v5567, %v3398
        %v5570 = vmul.f32 %v5568, %v3399
        %v5571 = vperm.slane %v2557, 5
        %v5572 = vmul.f32 %v5569, %v5571
        %v5573 = vmul.f32 %v5570, %v5571
        %v5574 = vadd.f32 %v5563, %v5572
        %v5575 = vadd.f32 %v5564, %v5573
        %v5576 = vrot.slane %v5512, 3
        %v5577 = vrot.slane %v5513, 3
        %v5578 = vsel %vm4329, %v5576, %v5577
        %v5579 = vsel %vm4329, %v5577, %v5576
        %v5580 = vmul.f32 %v5578, %v3410
        %v5581 = vmul.f32 %v5579, %v3411
        %v5582 = vperm.slane %v2557, 6
        %v5583 = vmul.f32 %v5580, %v5582
        %v5584 = vmul.f32 %v5581, %v5582
        %v5585 = vadd.f32 %v5574, %v5583
        %v5586 = vadd.f32 %v5575, %v5584
        %v5588 = vperm.slane %v2556, 0
        %v5590 = vadd.f32 %v5585, %v5588
        %v5591 = vadd.f32 %v5586, %v5588
        %v5593 = vperm.slane %v2554, 0
        %v5595 = vmul.f32 %v5590, %v5593
        %v5596 = vmul.f32 %v5591, %v5593
        %v5598 = vperm.slane %v2555, 0
        %v5600 = vadd.f32 %v5595, %v5598
        %v5601 = vadd.f32 %v5596, %v5598
        %v5602 = vxor.u32 %v5600, 2147483648
        %v5603 = vxor.u32 %v5601, 2147483648
        %v5604 = vmul.f32 %v5602, 1.442695
        %v5605 = vpow.pop %v5604
        %v5606 = vmul.f32 %v5603, 1.442695
        %v5607 = vpow.pop %v5606
        %v5608 = vadd.f32 %v5605, 1.0
        %v5609 = vadd.f32 %v5607, 1.0
        %v5610 = vrcp.pop %v5608
        %v5611 = vmul.f32 %v5608, %v5610
        %v5612 = vsub.f32 1.0, %v5611
        %v5613 = vmul.f32 %v5610, %v5612
        %v5614 = vadd.f32 %v5610, %v5613
        %vm5615 = vweird.f32 %v5608
        %vm5616 = vweird.f32 %v5610
        %vm5617 = vmor %vm5615, %vm5616
        %v5618 = vsel %vm5617, %v5610, %v5614
        %v5619 = vand.u32 2147483647, %v5608
        %vm5620 = vcmp.eq.f32.partialorder %v5619, 8.507059e+37
        %v5621 = vand.u32 %v5608, 2147483648
        %v5622 = vor.u32 1.1754944e-38, %v5621
        %v5623 = vsel %vm5620, %v5622, %v5618
        %v5624 = vmul.f32 1.0, %v5623
        %v5625 = vrcp.pop %v5609
        %v5626 = vmul.f32 %v5609, %v5625
        %v5627 = vsub.f32 1.0, %v5626
        %v5628 = vmul.f32 %v5625, %v5627
        %v5629 = vadd.f32 %v5625, %v5628
        %vm5630 = vweird.f32 %v5609
        %vm5631 = vweird.f32 %v5625
        %vm5632 = vmor %vm5630, %vm5631
        %v5633 = vsel %vm5632, %v5625, %v5629
        %v5634 = vand.u32 2147483647, %v5609
        %vm5635 = vcmp.eq.f32.partialorder %v5634, 8.507059e+37
        %v5636 = vand.u32 %v5609, 2147483648
        %v5637 = vor.u32 1.1754944e-38, %v5636
        %v5638 = vsel %vm5635, %v5637, %v5633
        %v5639 = vmul.f32 1.0, %v5638
        %v5640 = vmul.f32 %v5600, %v5624
        %v5641 = vmul.f32 %v5601, %v5639
        %v5642 = vpack.c.bf16 %v5641, %v5640
        %v5644 = vperm.slane %v2565, 0
        %v5650 = vunpack.c.l.b16 %v2566
        %v5651 = vunpack.c.l.b16 %v2567
        %v5652 = vunpack.c.l.b16 %v2568
        %v5653 = vunpack.c.l.b16 %v2569
        %v5654 = vpack.c.b16 %v5651, %v5650
        %v5655 = vpack.c.b16 %v5653, %v5652
        %v5659 = vsel %vm3412, %v5642, 0
        %5661 = vmatpush.bf16.msra.mxu0 0
        %5662 = vmatpush.bf16.msra.mxu0 0
        %5663 = vmatpush.bf16.msra.mxu0 0
        %5664 = vmatpush.bf16.msra.mxu0 0
        %5665 = vmatpush.bf16.msra.mxu0 0
        %5666 = vmatpush.bf16.msra.mxu0 0
        %5667 = vmatpush.bf16.msra.mxu0 %v5655
        %5668 = vmatpush.bf16.msra.mxu0 %v5654
        %5669 = vmatmul.bf16.gmra.mxu0 %v5659
        %v5670 = vpop.f32.mrf.mxu0
        %v5671 = vadd.f32 %v5644, %v5670
        %v5672 = vpop.f32.mrf.mxu0
        %v5673 = vadd.f32 %v5644, %v5672
        %5674 = vdwg.mxu0
        %v5675 = vadd.f32 %v5377, %v5671
        %v5676 = vadd.f32 %v5378, %v5673
        %v5677 = vsel %vm3412, %v5675, 0.0
        %5678 = vadd.xlane.f32.xlu0 %v5677
        %v5679 = vpop.xlane.xlu0 %5678
        %v5680 = vsel %vm3412, %v5676, 0.0
        %5681 = vadd.xlane.f32.xlu0 %v5680
        %v5682 = vpop.xlane.xlu0 %5681
        %v5683 = vmul.f32 %v5679, %v3425
        %v5684 = vmul.f32 %v5682, %v3425
        %v5685 = vsub.f32 %v5675, %v5683
        %v5686 = vsub.f32 %v5676, %v5684
        %v5687 = vmul.f32 %v5685, %v5685
        %v5688 = vmul.f32 %v5686, %v5686
        %v5689 = vsel %vm3412, %v5687, 0.0
        %5690 = vadd.xlane.f32.xlu0 %v5689
        %v5691 = vpop.xlane.xlu0 %5690
        %v5692 = vsel %vm3412, %v5688, 0.0
        %5693 = vadd.xlane.f32.xlu0 %v5692
        %v5694 = vpop.xlane.xlu0 %5693
        %v5695 = vmul.f32 %v5691, %v3425
        %v5696 = vmul.f32 %v5694, %v3425
        %v5697 = vadd.f32 %v5695, 1e-05
        %v5698 = vadd.f32 %v5696, 1e-05
        %v5699 = vrsqrt.pop %v5697
        %v5700 = vmul.f32 %v5699, %v5697
        %v5701 = vmul.f32 %v5700, %v5699
        %v5702 = vmul.f32 0.5, %v5701
        %v5703 = vsub.f32 1.5, %v5702
        %v5704 = vmul.f32 %v5699, %v5703
        %vm5705 = vweird.f32 %v5697
        %vm5706 = vweird.f32 %v5699
        %vm5707 = vmor %vm5705, %vm5706
        %v5708 = vsel %vm5707, %v5699, %v5704
        %v5709 = vrsqrt.pop %v5698
        %v5710 = vmul.f32 %v5709, %v5698
        %v5711 = vmul.f32 %v5710, %v5709
        %v5712 = vmul.f32 0.5, %v5711
        %v5713 = vsub.f32 1.5, %v5712
        %v5714 = vmul.f32 %v5709, %v5713
        %vm5715 = vweird.f32 %v5698
        %vm5716 = vweird.f32 %v5709
        %vm5717 = vmor %vm5715, %vm5716
        %v5718 = vsel %vm5717, %v5709, %v5714
        %v5719 = vmul.f32 %v5685, %v5708
        %v5720 = vmul.f32 %v5686, %v5718
        %v5722 = vperm.slane %v2597, 0
        %v5724 = vmul.f32 %v5719, %v5722
        %v5725 = vmul.f32 %v5720, %v5722
        %v5727 = vperm.slane %v2596, 0
        %v5729 = vadd.f32 %v5724, %v5727
        %v5730 = vadd.f32 %v5725, %v5727
        %v5731 = vpack.c.bf16 %v5730, %v5729
        %v5733 = vperm.slane %v2594, 0
        %v5739 = vunpack.c.l.b16 %v2598
        %v5740 = vunpack.c.l.b16 %v2599
        %v5741 = vunpack.c.l.b16 %v2600
        %v5742 = vunpack.c.l.b16 %v2601
        %v5743 = vpack.c.b16 %v5740, %v5739
        %v5744 = vpack.c.b16 %v5742, %v5741
        %v5748 = vsel %vm3412, %v5731, 0
        %5750 = vmatpush.bf16.msra.mxu0 0
        %5751 = vmatpush.bf16.msra.mxu0 0
        %5752 = vmatpush.bf16.msra.mxu0 0
        %5753 = vmatpush.bf16.msra.mxu0 0
        %5754 = vmatpush.bf16.msra.mxu0 0
        %5755 = vmatpush.bf16.msra.mxu0 0
        %5756 = vmatpush.bf16.msra.mxu0 %v5744
        %5757 = vmatpush.bf16.msra.mxu0 %v5743
        %5758 = vmatmul.bf16.gmra.mxu0 %v5748
        %v5759 = vpop.f32.mrf.mxu0
        %v5760 = vadd.f32 %v5733, %v5759
        %v5761 = vpop.f32.mrf.mxu0
        %v5762 = vadd.f32 %v5733, %v5761
        %5763 = vdwg.mxu0
        %v5764 = vxor.u32 %v5760, 2147483648
        %v5765 = vxor.u32 %v5762, 2147483648
        %v5766 = vmul.f32 %v5764, 1.442695
        %v5767 = vpow.pop %v5766
        %v5768 = vmul.f32 %v5765, 1.442695
        %v5769 = vpow.pop %v5768
        %v5770 = vadd.f32 %v5767, 1.0
        %v5771 = vadd.f32 %v5769, 1.0
        %v5772 = vrcp.pop %v5770
        %v5773 = vmul.f32 %v5770, %v5772
        %v5774 = vsub.f32 1.0, %v5773
        %v5775 = vmul.f32 %v5772, %v5774
        %v5776 = vadd.f32 %v5772, %v5775
        %vm5777 = vweird.f32 %v5770
        %vm5778 = vweird.f32 %v5772
        %vm5779 = vmor %vm5777, %vm5778
        %v5780 = vsel %vm5779, %v5772, %v5776
        %v5781 = vand.u32 2147483647, %v5770
        %vm5782 = vcmp.eq.f32.partialorder %v5781, 8.507059e+37
        %v5783 = vand.u32 %v5770, 2147483648
        %v5784 = vor.u32 1.1754944e-38, %v5783
        %v5785 = vsel %vm5782, %v5784, %v5780
        %v5786 = vmul.f32 1.0, %v5785
        %v5787 = vrcp.pop %v5771
        %v5788 = vmul.f32 %v5771, %v5787
        %v5789 = vsub.f32 1.0, %v5788
        %v5790 = vmul.f32 %v5787, %v5789
        %v5791 = vadd.f32 %v5787, %v5790
        %vm5792 = vweird.f32 %v5771
        %vm5793 = vweird.f32 %v5787
        %vm5794 = vmor %vm5792, %vm5793
        %v5795 = vsel %vm5794, %v5787, %v5791
        %v5796 = vand.u32 2147483647, %v5771
        %vm5797 = vcmp.eq.f32.partialorder %v5796, 8.507059e+37
        %v5798 = vand.u32 %v5771, 2147483648
        %v5799 = vor.u32 1.1754944e-38, %v5798
        %v5800 = vsel %vm5797, %v5799, %v5795
        %v5801 = vmul.f32 1.0, %v5800
        %v5802 = vmul.f32 %v5760, %v5786
        %v5803 = vmul.f32 %v5762, %v5801
        %v5804 = vpack.c.bf16 %v5803, %v5802
        %v5806 = vperm.slane %v2595, 0
        %v5824 = vunpack.c.l.b16 %v2602
        %v5825 = vunpack.c.l.b16 %v2603
        %v5826 = vunpack.c.l.b16 %v2604
        %v5827 = vunpack.c.l.b16 %v2605
        %v5828 = vunpack.c.l.b16 %v2606
        %v5829 = vunpack.c.l.b16 %v2607
        %v5830 = vunpack.c.l.b16 %v2608
        %v5831 = vunpack.c.l.b16 %v2609
        %v5832 = vunpack.c.l.b16 %v2610
        %v5833 = vunpack.c.l.b16 %v2611
        %v5834 = vunpack.c.l.b16 %v2612
        %v5835 = vunpack.c.l.b16 %v2613
        %v5836 = vunpack.c.l.b16 %v2614
        %v5837 = vunpack.c.l.b16 %v2615
        %v5838 = vunpack.c.l.b16 %v2616
        %v5839 = vunpack.c.l.b16 %v2617
        %v5840 = vpack.c.b16 %v5825, %v5824
        %v5841 = vpack.c.b16 %v5827, %v5826
        %v5842 = vpack.c.b16 %v5829, %v5828
        %v5843 = vpack.c.b16 %v5831, %v5830
        %v5844 = vpack.c.b16 %v5833, %v5832
        %v5845 = vpack.c.b16 %v5835, %v5834
        %v5846 = vpack.c.b16 %v5837, %v5836
        %v5847 = vpack.c.b16 %v5839, %v5838
        %5856 = vmatpush.bf16.msra.mxu0 %v5847
        %5857 = vmatpush.bf16.msra.mxu0 %v5846
        %5858 = vmatpush.bf16.msra.mxu0 %v5845
        %5859 = vmatpush.bf16.msra.mxu0 %v5844
        %5860 = vmatpush.bf16.msra.mxu0 %v5843
        %5861 = vmatpush.bf16.msra.mxu0 %v5842
        %5862 = vmatpush.bf16.msra.mxu0 %v5841
        %5863 = vmatpush.bf16.msra.mxu0 %v5840
        %5864 = vmatmul.bf16.gmra.mxu0 %v5804
        %v5865 = vpop.f32.mrf.mxu0
        %v5866 = vadd.f32 %v5806, %v5865
        %v5867 = vpop.f32.mrf.mxu0
        %v5868 = vadd.f32 %v5806, %v5867
        %5869 = vdwg.mxu0
        %v5870 = vmul.f32 %v5866, 0.5
        %v5871 = vmul.f32 %v5868, 0.5
        %v5872 = vadd.f32 %v5675, %v5870
        %v5873 = vadd.f32 %v5676, %v5871
        %v5874 = vsel %vm3412, %v5872, 0.0
        %5875 = vadd.xlane.f32.xlu0 %v5874
        %v5876 = vpop.xlane.xlu0 %5875
        %v5877 = vsel %vm3412, %v5873, 0.0
        %5878 = vadd.xlane.f32.xlu0 %v5877
        %v5879 = vpop.xlane.xlu0 %5878
        %v5880 = vmul.f32 %v5876, %v3425
        %v5881 = vmul.f32 %v5879, %v3425
        %v5882 = vsub.f32 %v5872, %v5880
        %v5883 = vsub.f32 %v5873, %v5881
        %v5884 = vmul.f32 %v5882, %v5882
        %v5885 = vmul.f32 %v5883, %v5883
        %v5886 = vsel %vm3412, %v5884, 0.0
        %5887 = vadd.xlane.f32.xlu0 %v5886
        %v5888 = vpop.xlane.xlu0 %5887
        %v5889 = vsel %vm3412, %v5885, 0.0
        %5890 = vadd.xlane.f32.xlu0 %v5889
        %v5891 = vpop.xlane.xlu0 %5890
        %v5892 = vmul.f32 %v5888, %v3425
        %v5893 = vmul.f32 %v5891, %v3425
        %v5894 = vadd.f32 %v5892, 1e-05
        %v5895 = vadd.f32 %v5893, 1e-05
        %v5896 = vrsqrt.pop %v5894
        %v5897 = vmul.f32 %v5896, %v5894
        %v5898 = vmul.f32 %v5897, %v5896
        %v5899 = vmul.f32 0.5, %v5898
        %v5900 = vsub.f32 1.5, %v5899
        %v5901 = vmul.f32 %v5896, %v5900
        %vm5902 = vweird.f32 %v5894
        %vm5903 = vweird.f32 %v5896
        %vm5904 = vmor %vm5902, %vm5903
        %v5905 = vsel %vm5904, %v5896, %v5901
        %v5906 = vrsqrt.pop %v5895
        %v5907 = vmul.f32 %v5906, %v5895
        %v5908 = vmul.f32 %v5907, %v5906
        %v5909 = vmul.f32 0.5, %v5908
        %v5910 = vsub.f32 1.5, %v5909
        %v5911 = vmul.f32 %v5906, %v5910
        %vm5912 = vweird.f32 %v5895
        %vm5913 = vweird.f32 %v5906
        %vm5914 = vmor %vm5912, %vm5913
        %v5915 = vsel %vm5914, %v5906, %v5911
        %v5916 = vmul.f32 %v5882, %v5905
        %v5917 = vmul.f32 %v5883, %v5915
        %v5919 = vperm.slane %v2619, 0
        %v5921 = vmul.f32 %v5916, %v5919
        %v5922 = vmul.f32 %v5917, %v5919
        %v5924 = vperm.slane %v2618, 0
        %v5926 = vadd.f32 %v5921, %v5924
        %v5927 = vadd.f32 %v5922, %v5924
        %v5928 = vpack.c.bf16 %v5927, %v5926
        %v5930 = vperm.slane %v2454, 0
        %v5936 = vunpack.c.l.b16 %v2455
        %v5937 = vunpack.c.l.b16 %v2456
        %v5938 = vunpack.c.l.b16 %v2457
        %v5939 = vunpack.c.l.b16 %v2458
        %v5940 = vpack.c.b16 %v5937, %v5936
        %v5941 = vpack.c.b16 %v5939, %v5938
        %v5945 = vsel %vm3412, %v5928, 0
        %5947 = vmatpush.bf16.msra.mxu0 0
        %5948 = vmatpush.bf16.msra.mxu0 0
        %5949 = vmatpush.bf16.msra.mxu0 0
        %5950 = vmatpush.bf16.msra.mxu0 0
        %5951 = vmatpush.bf16.msra.mxu0 0
        %5952 = vmatpush.bf16.msra.mxu0 0
        %5953 = vmatpush.bf16.msra.mxu0 %v5941
        %5954 = vmatpush.bf16.msra.mxu0 %v5940
        %5955 = vmatmul.bf16.gmra.mxu0 %v5945
        %v5956 = vpop.f32.mrf.mxu0
        %v5957 = vadd.f32 %v5930, %v5956
        %v5958 = vpop.f32.mrf.mxu0
        %v5959 = vadd.f32 %v5930, %v5958
        %5960 = vdwg.mxu0
        %5961 = vmax.xlane.f32.xlu0 %v5957
        %v5962 = vpop.xlane.xlu0 %5961
        %5963 = vmax.xlane.f32.xlu0 %v5959
        %v5964 = vpop.xlane.xlu0 %5963
        %v5965 = vsub.f32 %v5957, %v5962
        %v5966 = vsub.f32 %v5959, %v5964
        %v5967 = vmul.f32 %v5965, 1.442695
        %v5968 = vpow.pop %v5967
        %v5969 = vmul.f32 %v5966, 1.442695
        %v5970 = vpow.pop %v5969
        %5971 = vadd.xlane.f32.xlu0 %v5968
        %v5972 = vpop.xlane.xlu0 %5971
        %5973 = vadd.xlane.f32.xlu0 %v5970
        %v5974 = vpop.xlane.xlu0 %5973
        %v5975 = vlog2.pop %v5972
        %v5976 = vmul.f32 %v5975, 0.6931472
        %v5977 = vlog2.pop %v5974
        %v5978 = vmul.f32 %v5977, 0.6931472
        %v5979 = vsub.f32 %v5965, %v5976
        %v5980 = vsub.f32 %v5966, %v5978
        %5981 = vst [vmem:[%s2388] sm:$0xff] %v5979
        %5982 = vst [vmem:[%s2388 + $0x8] sm:$0xff] %v5980
        %p5983 = scmp.lt.s32.totalorder %s162, 1
        %s5984 = scalar_select %p5983, %s162, 1
        %s5985 = smul.addr %s5984, 2
        %s5986 = smul.addr %s5985, 8
        %s5987 = scalar_lea.vmem %s137, %s5986
        // Predicated region
        $region397: #{forward.1} parent=291 // pred_check
          %p5988 = pneg %p1618
        $region398: #{forward.1} parent=291 // pred_check_branch
          %5990 = sbr.rel (%p5988) target = $region400
        $region399: #{forward.1} parent=291 // pred_region
          _
        $region400: #{forward.1} parent=291 // pred_fallthru
          _
      $region292: #{forward.1} parent=5 // pred_fallthru
        _
      %p5991 = scmp.le.s32.totalorder 2, %s157
      // Predicated region
      $region401: #{forward.1} parent=5 // pred_check
        %p5992 = pneg %p5991
      $region402: #{forward.1} parent=5 // pred_check_branch
        %5994 = sbr.rel (%p5992) target = $region404
      $region403: #{forward.1} parent=5 // pred_region
        %s5995 = ssub.s32 %s157, 2
        // Predicated region
        $region405: #{forward.1} parent=403 // pred_check
          %p5996 = pneg %p1624
        $region406: #{forward.1} parent=403 // pred_check_branch
          %5998 = sbr.rel (%p5996) target = $region408
        $region407: #{forward.1} parent=403 // pred_region
          %p5999 = scmp.lt.s32.totalorder %s163, 1
          %s6000 = scalar_select %p5999, %s163, 1
          %s6001 = smul.addr %s6000, 2
          %s6002 = smul.addr %s6001, 8
          %s6003 = scalar_lea.vmem %s137, %s6002
        $region408: #{forward.1} parent=403 // pred_fallthru
          _
      $region404: #{forward.1} parent=5 // pred_fallthru
        _
    $region6: #{forward.1} parent=1 // loop_footer
      %s161 = sadd.s32 1, %s157
    $region7: #{forward.1} parent=1 // loop_footer_branch
      %156 = sbr.rel target = $region3
    $region8: #{forward.1} parent=1 // loop_exit
      _
    %6004 = vsyncpa [#allocation3], 1
    %s6005 = scalar_lea.sflag [#allocation3], 1
    %6006 = vsyncpa %s6005, 1
    %6007 = vsyncpa [#allocation5], 1
    %6008 = vsyncpa [#allocation8], 1
    %6009 = vsyncpa [#allocation11], 1
    %6010 = vsyncpa [#allocation14], 1
    %6011 = vsyncpa [#allocation17], 1
    %6012 = vsyncpa [#allocation20], 1
    %6013 = vsyncpa [#allocation23], 1
    %6014 = vsyncpa [#allocation26], 1
    %6015 = vsyncpa [#allocation29], 1
    %6016 = vsyncpa [#allocation32], 1
    %6017 = vsyncpa [#allocation35], 1
    %6018 = vsyncpa [#allocation38], 1
    %6019 = vsyncpa [#allocation41], 1

</llo_original>
